<compile_context>
chip_gen: v5e
topology: v5e:2x2
jax: 0.10.0
libtpu: 0.0.40
codegen_flags: <defaults>
</compile_context>

<pallas_src>
import functools

import jax
import jax.numpy as jnp
from jax.experimental import pallas as pl
from jax.experimental.pallas import tpu as pltpu

LN_EPS = 1e-5  # torch.nn.LayerNorm default


# ----------------------------- in-kernel helpers ----------------------------


def _bf16(x):
    return x.astype(jnp.bfloat16)


def _ln(x, g, b):
    # f32 LayerNorm statistics over the last (feature) axis.
    mu = jnp.mean(x, axis=-1, keepdims=True)
    var = jnp.mean(jnp.square(x - mu), axis=-1, keepdims=True)
    return (x - mu) * jax.lax.rsqrt(var + LN_EPS) * g + b


def _ln_masked(x, g, b, true_n):
    # LayerNorm over the first `true_n` columns of a zero-padded (R, Dp) slab.
    # gamma is zero beyond `true_n`, so padded lanes come out exactly zero.
    dp = x.shape[-1]
    if true_n == dp:
        return _ln(x, g, b)
    mask = jax.lax.broadcasted_iota(jnp.int32, x.shape, x.ndim - 1) < true_n
    inv_n = 1.0 / float(true_n)
    mu = jnp.sum(x, axis=-1, keepdims=True) * inv_n          # padded columns are zero
    d = jnp.where(mask, x - mu, 0.0)
    var = jnp.sum(d * d, axis=-1, keepdims=True) * inv_n
    return d * jax.lax.rsqrt(var + LN_EPS) * g + b


def _attention(x, xb, cb, wq, wkv, wo, bo, heads, dh):
    # x : (N, D)   f32 residual input
    # xb: (N, D)   bf16 normed queries
    # cb: (M, Dc)  bf16 normed context (== xb for self-attention)
    inner = heads * dh
    q = _bf16(jnp.dot(xb, wq, preferred_element_type=jnp.float32))    # (N, inner); scale baked in
    kv = jnp.dot(cb, wkv, preferred_element_type=jnp.float32)         # (M, 2*inner)
    k = _bf16(kv[:, :inner])
    v = _bf16(kv[:, inner:])
    outs = []
    for h in range(heads):                                            # static unroll; tiny per-head core only
        sl = slice(h * dh, (h + 1) * dh)
        sim = jax.lax.dot_general(q[:, sl], k[:, sl], (((1,), (1,)), ((), ())),
                                  preferred_element_type=jnp.float32)  # (N, M) f32
        sim = sim - jnp.max(sim, axis=-1, keepdims=True)
        p = jnp.exp(sim)
        p = p * pl.reciprocal(jnp.sum(p, axis=-1, keepdims=True), approx=True)
        outs.append(jnp.dot(_bf16(p), v[:, sl], preferred_element_type=jnp.float32))  # (N, dh)
    o = outs[0] if heads == 1 else jnp.concatenate(outs, axis=-1)      # (N, inner)
    # single fused output projection + bias + residual
    return jnp.dot(_bf16(o), wo, preferred_element_type=jnp.float32) + bo + x


def _geglu_ff(x, ln_g, ln_b, w1, b1, w2, b2):
    # Fused: LN, single (R,D)x(D,2H) up-projection, gated exact GELU, down-projection, residual.
    hidden = w2.shape[0]
    xb = _bf16(_ln(x, ln_g, ln_b))
    u = jnp.dot(xb, w1, preferred_element_type=jnp.float32) + b1       # (R, 2H)
    a = u[:, :hidden]                                                  # 128-aligned static slices
    g = u[:, hidden:]
    gelu_g = 0.5 * g * (1.0 + jax.lax.erf(g * (1.0 / jnp.sqrt(2.0))))  # exact GELU
    y = _bf16(a * gelu_g)
    return jnp.dot(y, w2, preferred_element_type=jnp.float32) + b2 + x


# ----------------------------- fused Pallas kernel ---------------------------


def perceiver_kernel(
    data_ref, lat_ref,
    ca_ln_g, ca_ln_b, ca_lnc_g, ca_lnc_b, ca_wq, ca_wkv, ca_wo, ca_bo,
    cf_ln_g, cf_ln_b, cf_w1, cf_b1, cf_w2, cf_b2,
    sa_ln_g, sa_ln_b, sa_wq, sa_wkv, sa_wo, sa_bo,
    sf_ln_g, sf_ln_b, sf_w1, sf_b1, sf_w2, sf_b2,
    cls_g, cls_b, cls_w, cls_bias,
    o_ref,
    *, depth, self_per_cross, cross_heads, cross_dh, latent_heads, latent_dh,
    ctx_true_dim):
    ctx = data_ref[0]                          # (M, Dcp) f32, zero-padded beyond ctx_true_dim
    x = lat_ref[...]                           # (N, D)   f32 residual stream (stays on-chip)

    for li in range(depth):                    # static unrolled depth loop
        # cross attention: PreNorm(x) + PreNorm(ctx) + MHA + out-proj + residual
        xb = _bf16(_ln(x, ca_ln_g[li], ca_ln_b[li]))
        cb = _bf16(_ln_masked(ctx, ca_lnc_g[li], ca_lnc_b[li], ctx_true_dim))
        x = _attention(x, xb, cb, ca_wq[li], ca_wkv[li], ca_wo[li], ca_bo[li],
                       cross_heads, cross_dh)
        # cross feed-forward: PreNorm + GEGLU + residual
        x = _geglu_ff(x, cf_ln_g[li], cf_ln_b[li], cf_w1[li], cf_b1[li],
                      cf_w2[li], cf_b2[li])
        # latent self-attention blocks
        for s in range(self_per_cross):
            bi = li * self_per_cross + s
            xb = _bf16(_ln(x, sa_ln_g[bi], sa_ln_b[bi]))
            x = _attention(x, xb, xb, sa_wq[bi], sa_wkv[bi], sa_wo[bi], sa_bo[bi],
                           latent_heads, latent_dh)
            x = _geglu_ff(x, sf_ln_g[bi], sf_ln_b[bi], sf_w1[bi], sf_b1[bi],
                          sf_w2[bi], sf_b2[bi])

    # to_logits: LayerNorm + Linear; logits are 128-padded for lane-dense stores.
    xn = _ln(x, cls_g[...], cls_b[...])
    o_ref[0] = (jnp.dot(_bf16(xn), cls_w[...], preferred_element_type=jnp.float32)
                + cls_bias[...])


# ----------------------------- wrapper ---------------------------------------


def _round_up(n, m):
    return ((n + m - 1) // m) * m


def _const_spec(shape):
    n = len(shape)
    return pl.BlockSpec(shape, lambda i, _n=n: (0,) * _n)


_PARAM_ORDER = (
    "ca_ln_g", "ca_ln_b", "ca_lnc_g", "ca_lnc_b", "ca_wq", "ca_wkv", "ca_wo", "ca_bo",
    "cf_ln_g", "cf_ln_b", "cf_w1", "cf_b1", "cf_w2", "cf_b2",
    "sa_ln_g", "sa_ln_b", "sa_wq", "sa_wkv", "sa_wo", "sa_bo",
    "sf_ln_g", "sf_ln_b", "sf_w1", "sf_b1", "sf_w2", "sf_b2",
    "cls_g", "cls_b", "cls_w", "cls_bias",
)


def fourier_encode_positions(axis_sizes, max_freq, num_bands, dtype=jnp.float32):
    # replicates fourier_encode(pos, max_freq, num_bands) + '... n d -> ... (n d)'
    axis_pos = [jnp.linspace(-1.0, 1.0, num=s, dtype=dtype) for s in axis_sizes]
    pos = jnp.stack(jnp.meshgrid(*axis_pos, indexing="ij"), axis=-1)       # (*axis, n_ax)
    scales = jnp.linspace(1.0, max_freq / 2.0, num=num_bands, dtype=dtype)
    xp = pos[..., None] * scales * jnp.pi                                  # (*axis, n_ax, bands)
    enc = jnp.concatenate([jnp.sin(xp), jnp.cos(xp), pos[..., None]], axis=-1)
    return enc.reshape(*axis_sizes, -1)


def perceiver_forward(params, data, cfg):
    # data: (B, H, W, C) channels-last
    b = data.shape[0]
    axis_sizes = data.shape[1:-1]
    N = cfg["num_latents"]
    num_classes = cfg["num_classes"]

    # Fourier positional encoding (data-independent; eval mode -> start_pos=0)
    enc_pos = fourier_encode_positions(
        axis_sizes, cfg["max_freq"], cfg["num_freq_bands"], data.dtype)
    enc_pos = jnp.broadcast_to(enc_pos[None], (b,) + enc_pos.shape)
    data = jnp.concatenate([data, enc_pos], axis=-1)
    data = data.reshape(b, -1, data.shape[-1])              # (B, M, Dc)
    m = data.shape[1]
    dc = data.shape[2]
    dcp = params["ca_wkv"].shape[1]                         # 128-padded context width
    data = jnp.pad(data, ((0, 0), (0, 0), (0, dcp - dc)))   # lane-dense context slab

    pvals = [params[k] for k in _PARAM_ORDER]
    cpad = params["cls_w"].shape[1]

    kern = functools.partial(
        perceiver_kernel,
        depth=cfg["depth"], self_per_cross=cfg["self_per_cross_attn"],
        cross_heads=cfg["cross_heads"], cross_dh=cfg["cross_dim_head"],
        latent_heads=cfg["latent_heads"], latent_dh=cfg["latent_dim_head"],
        ctx_true_dim=dc)

    in_specs = [
        pl.BlockSpec((1, m, dcp), lambda i: (i, 0, 0)),     # per-batch context block
        _const_spec(params["latents"].shape),               # latents (const across grid)
    ] + [_const_spec(v.shape) for v in pvals]

    logits_pad = pl.pallas_call(
        kern,
        out_shape=jax.ShapeDtypeStruct((b, N, cpad), jnp.float32),
        grid=(b,),
        in_specs=in_specs,
        out_specs=pl.BlockSpec((1, N, cpad), lambda i: (i, 0, 0)),
        compiler_params=pltpu.CompilerParams(dimension_semantics=("parallel",)),
    )(data, params["latents"], *pvals)
    return logits_pad[:, :, :num_classes]


# ----------------------------- parameters ------------------------------------


def init_perceiver_params(key, cfg):
    D = cfg["latent_dim"]
    Dc = cfg["input_dim"]
    Dcp = _round_up(Dc, 128)
    depth = cfg["depth"]
    spc = cfg["self_per_cross_attn"]
    L = depth * spc
    ic = cfg["cross_heads"] * cfg["cross_dim_head"]
    il = cfg["latent_heads"] * cfg["latent_dim_head"]
    Fh = 4 * D                                     # FeedForward mult = 4
    Cpad = _round_up(cfg["num_classes"], 128)
    keys = iter(jax.random.split(key, 64))

    def nrm(shape, s=0.02, scale=1.0):
        # bf16 weight storage (f32 accumulation in-kernel)
        w = s * jax.random.normal(next(keys), shape, jnp.float32) * scale
        return w.astype(jnp.bfloat16)

    p = {}
    p["latents"] = jax.random.normal(next(keys), (cfg["num_latents"], D), jnp.float32)

    # ---- cross attention (stacked over depth); attention scale baked into wq
    p["ca_ln_g"] = jnp.ones((depth, 1, D), jnp.float32)
    p["ca_ln_b"] = jnp.zeros((depth, 1, D), jnp.float32)
    p["ca_lnc_g"] = jnp.zeros((depth, 1, Dcp), jnp.float32).at[:, :, :Dc].set(1.0)
    p["ca_lnc_b"] = jnp.zeros((depth, 1, Dcp), jnp.float32)
    p["ca_wq"] = nrm((depth, D, ic), scale=cfg["cross_dim_head"] ** (-0.5))
    p["ca_wkv"] = (jnp.zeros((depth, Dcp, 2 * ic), jnp.bfloat16)
                   .at[:, :Dc, :].set(nrm((depth, Dc, 2 * ic))))
    p["ca_wo"] = nrm((depth, ic, D))
    p["ca_bo"] = jnp.zeros((depth, 1, D), jnp.float32)

    # ---- cross feed-forward
    p["cf_ln_g"] = jnp.ones((depth, 1, D), jnp.float32)
    p["cf_ln_b"] = jnp.zeros((depth, 1, D), jnp.float32)
    p["cf_w1"] = nrm((depth, D, 2 * Fh))           # fused value|gate up-projection
    p["cf_b1"] = jnp.zeros((depth, 1, 2 * Fh), jnp.float32)
    p["cf_w2"] = nrm((depth, Fh, D))
    p["cf_b2"] = jnp.zeros((depth, 1, D), jnp.float32)

    # ---- latent self attention (stacked over depth * self_per_cross_attn)
    p["sa_ln_g"] = jnp.ones((L, 1, D), jnp.float32)
    p["sa_ln_b"] = jnp.zeros((L, 1, D), jnp.float32)
    p["sa_wq"] = nrm((L, D, il), scale=cfg["latent_dim_head"] ** (-0.5))
    p["sa_wkv"] = nrm((L, D, 2 * il))
    p["sa_wo"] = nrm((L, il, D))
    p["sa_bo"] = jnp.zeros((L, 1, D), jnp.float32)

    # ---- latent self feed-forward
    p["sf_ln_g"] = jnp.ones((L, 1, D), jnp.float32)
    p["sf_ln_b"] = jnp.zeros((L, 1, D), jnp.float32)
    p["sf_w1"] = nrm((L, D, 2 * Fh))
    p["sf_b1"] = jnp.zeros((L, 1, 2 * Fh), jnp.float32)
    p["sf_w2"] = nrm((L, Fh, D))
    p["sf_b2"] = jnp.zeros((L, 1, D), jnp.float32)

    # ---- classifier (LayerNorm + Linear), lane-padded output
    p["cls_g"] = jnp.ones((1, D), jnp.float32)
    p["cls_b"] = jnp.zeros((1, D), jnp.float32)
    p["cls_w"] = (jnp.zeros((D, Cpad), jnp.bfloat16)
                  .at[:, :cfg["num_classes"]].set(nrm((D, cfg["num_classes"]))))
    p["cls_bias"] = jnp.zeros((1, Cpad), jnp.float32)
    return p


# ----------------------------- main -------------------------------------------


if __name__ == "__main__":
    cfg = dict(
        num_freq_bands=4,
        max_freq=10.0,
        depth=2,
        input_channels=4,
        input_axis=2,
        num_latents=32,
        latent_dim=64,
        cross_heads=1,
        latent_heads=4,
        cross_dim_head=32,
        latent_dim_head=16,
        num_classes=16,
        self_per_cross_attn=1,
    )
    cfg["input_dim"] = (
        cfg["input_axis"] * (2 * cfg["num_freq_bands"] + 1) + cfg["input_channels"]
    )

    key = jax.random.PRNGKey(0)
    k_params, k_data = jax.random.split(key)
    params = init_perceiver_params(k_params, cfg)

    # layout: (B, H, W, C) channels-last input
    data = jax.random.normal(k_data, (2, 16, 16, cfg["input_channels"]), jnp.float32)

    fwd = jax.jit(functools.partial(perceiver_forward, cfg=cfg))
    logits = jax.block_until_ready(fwd(params, data))

    assert logits.shape == (2, cfg["num_latents"], cfg["num_classes"]), logits.shape
    assert bool(jnp.all(jnp.isfinite(logits)))
    print("KERNEL_OK")
</pallas_src>

<mosaic_0001>
module attributes {stable_mosaic.version = 11 : i64} {
  func.func @perceiver_kernel(%arg0: i32, %arg1: memref<1x256x128xf32, #tpu.memory_space<vmem>>, %arg2: memref<32x64xf32, #tpu.memory_space<vmem>>, %arg3: memref<2x1x64xf32, #tpu.memory_space<vmem>>, %arg4: memref<2x1x64xf32, #tpu.memory_space<vmem>>, %arg5: memref<2x1x128xf32, #tpu.memory_space<vmem>>, %arg6: memref<2x1x128xf32, #tpu.memory_space<vmem>>, %arg7: memref<2x64x32xbf16, #tpu.memory_space<vmem>>, %arg8: memref<2x128x64xbf16, #tpu.memory_space<vmem>>, %arg9: memref<2x32x64xbf16, #tpu.memory_space<vmem>>, %arg10: memref<2x1x64xf32, #tpu.memory_space<vmem>>, %arg11: memref<2x1x64xf32, #tpu.memory_space<vmem>>, %arg12: memref<2x1x64xf32, #tpu.memory_space<vmem>>, %arg13: memref<2x64x512xbf16, #tpu.memory_space<vmem>>, %arg14: memref<2x1x512xf32, #tpu.memory_space<vmem>>, %arg15: memref<2x256x64xbf16, #tpu.memory_space<vmem>>, %arg16: memref<2x1x64xf32, #tpu.memory_space<vmem>>, %arg17: memref<2x1x64xf32, #tpu.memory_space<vmem>>, %arg18: memref<2x1x64xf32, #tpu.memory_space<vmem>>, %arg19: memref<2x64x64xbf16, #tpu.memory_space<vmem>>, %arg20: memref<2x64x128xbf16, #tpu.memory_space<vmem>>, %arg21: memref<2x64x64xbf16, #tpu.memory_space<vmem>>, %arg22: memref<2x1x64xf32, #tpu.memory_space<vmem>>, %arg23: memref<2x1x64xf32, #tpu.memory_space<vmem>>, %arg24: memref<2x1x64xf32, #tpu.memory_space<vmem>>, %arg25: memref<2x64x512xbf16, #tpu.memory_space<vmem>>, %arg26: memref<2x1x512xf32, #tpu.memory_space<vmem>>, %arg27: memref<2x256x64xbf16, #tpu.memory_space<vmem>>, %arg28: memref<2x1x64xf32, #tpu.memory_space<vmem>>, %arg29: memref<1x64xf32, #tpu.memory_space<vmem>>, %arg30: memref<1x64xf32, #tpu.memory_space<vmem>>, %arg31: memref<64x128xbf16, #tpu.memory_space<vmem>>, %arg32: memref<1x128xf32, #tpu.memory_space<vmem>>, %arg33: memref<1x32x128xf32, #tpu.memory_space<vmem>>) attributes {dimension_semantics = [#tpu.dimension_semantics<parallel>], iteration_bounds = array<i64: 2>, scalar_prefetch = 0 : i64, scratch_operands = 0 : i64, tpu.core_type = #tpu.core_type<tc>, window_params = [{transform_indices = @transform_0, window_bounds = array<i64: 1, 256, 128>}, {pipeline_mode = #tpu.pipeline_mode<synchronous>, transform_indices = @transform_1, window_bounds = array<i64: 32, 64>}, {pipeline_mode = #tpu.pipeline_mode<synchronous>, transform_indices = @transform_2, window_bounds = array<i64: 2, 1, 64>}, {pipeline_mode = #tpu.pipeline_mode<synchronous>, transform_indices = @transform_3, window_bounds = array<i64: 2, 1, 64>}, {pipeline_mode = #tpu.pipeline_mode<synchronous>, transform_indices = @transform_4, window_bounds = array<i64: 2, 1, 128>}, {pipeline_mode = #tpu.pipeline_mode<synchronous>, transform_indices = @transform_5, window_bounds = array<i64: 2, 1, 128>}, {pipeline_mode = #tpu.pipeline_mode<synchronous>, transform_indices = @transform_6, window_bounds = array<i64: 2, 64, 32>}, {pipeline_mode = #tpu.pipeline_mode<synchronous>, transform_indices = @transform_7, window_bounds = array<i64: 2, 128, 64>}, {pipeline_mode = #tpu.pipeline_mode<synchronous>, transform_indices = @transform_8, window_bounds = array<i64: 2, 32, 64>}, {pipeline_mode = #tpu.pipeline_mode<synchronous>, transform_indices = @transform_9, window_bounds = array<i64: 2, 1, 64>}, {pipeline_mode = #tpu.pipeline_mode<synchronous>, transform_indices = @transform_10, window_bounds = array<i64: 2, 1, 64>}, {pipeline_mode = #tpu.pipeline_mode<synchronous>, transform_indices = @transform_11, window_bounds = array<i64: 2, 1, 64>}, {pipeline_mode = #tpu.pipeline_mode<synchronous>, transform_indices = @transform_12, window_bounds = array<i64: 2, 64, 512>}, {pipeline_mode = #tpu.pipeline_mode<synchronous>, transform_indices = @transform_13, window_bounds = array<i64: 2, 1, 512>}, {pipeline_mode = #tpu.pipeline_mode<synchronous>, transform_indices = @transform_14, window_bounds = array<i64: 2, 256, 64>}, {pipeline_mode = #tpu.pipeline_mode<synchronous>, transform_indices = @transform_15, window_bounds = array<i64: 2, 1, 64>}, {pipeline_mode = #tpu.pipeline_mode<synchronous>, transform_indices = @transform_16, window_bounds = array<i64: 2, 1, 64>}, {pipeline_mode = #tpu.pipeline_mode<synchronous>, transform_indices = @transform_17, window_bounds = array<i64: 2, 1, 64>}, {pipeline_mode = #tpu.pipeline_mode<synchronous>, transform_indices = @transform_18, window_bounds = array<i64: 2, 64, 64>}, {pipeline_mode = #tpu.pipeline_mode<synchronous>, transform_indices = @transform_19, window_bounds = array<i64: 2, 64, 128>}, {pipeline_mode = #tpu.pipeline_mode<synchronous>, transform_indices = @transform_20, window_bounds = array<i64: 2, 64, 64>}, {pipeline_mode = #tpu.pipeline_mode<synchronous>, transform_indices = @transform_21, window_bounds = array<i64: 2, 1, 64>}, {pipeline_mode = #tpu.pipeline_mode<synchronous>, transform_indices = @transform_22, window_bounds = array<i64: 2, 1, 64>}, {pipeline_mode = #tpu.pipeline_mode<synchronous>, transform_indices = @transform_23, window_bounds = array<i64: 2, 1, 64>}, {pipeline_mode = #tpu.pipeline_mode<synchronous>, transform_indices = @transform_24, window_bounds = array<i64: 2, 64, 512>}, {pipeline_mode = #tpu.pipeline_mode<synchronous>, transform_indices = @transform_25, window_bounds = array<i64: 2, 1, 512>}, {pipeline_mode = #tpu.pipeline_mode<synchronous>, transform_indices = @transform_26, window_bounds = array<i64: 2, 256, 64>}, {pipeline_mode = #tpu.pipeline_mode<synchronous>, transform_indices = @transform_27, window_bounds = array<i64: 2, 1, 64>}, {pipeline_mode = #tpu.pipeline_mode<synchronous>, transform_indices = @transform_28, window_bounds = array<i64: 1, 64>}, {pipeline_mode = #tpu.pipeline_mode<synchronous>, transform_indices = @transform_29, window_bounds = array<i64: 1, 64>}, {pipeline_mode = #tpu.pipeline_mode<synchronous>, transform_indices = @transform_30, window_bounds = array<i64: 64, 128>}, {pipeline_mode = #tpu.pipeline_mode<synchronous>, transform_indices = @transform_31, window_bounds = array<i64: 1, 128>}, {transform_indices = @transform_32, window_bounds = array<i64: 1, 32, 128>}]} {
    %c0 = arith.constant 0 : index
    %c0_0 = arith.constant 0 : index
    %c0_1 = arith.constant 0 : index
    %0 = vector.load %arg1[%c0, %c0_0, %c0_1] : memref<1x256x128xf32, #tpu.memory_space<vmem>>, vector<1x256x128xf32>
    %1 = vector.shape_cast %0 : vector<1x256x128xf32> to vector<256x128xf32>
    %c0_2 = arith.constant 0 : index
    %c0_3 = arith.constant 0 : index
    %2 = vector.load %arg2[%c0_2, %c0_3] : memref<32x64xf32, #tpu.memory_space<vmem>>, vector<32x64xf32>
    %c0_4 = arith.constant 0 : index
    %c0_5 = arith.constant 0 : index
    %c0_6 = arith.constant 0 : index
    %3 = vector.load %arg3[%c0_4, %c0_5, %c0_6] : memref<2x1x64xf32, #tpu.memory_space<vmem>>, vector<1x1x64xf32>
    %4 = vector.shape_cast %3 : vector<1x1x64xf32> to vector<1x64xf32>
    %c0_7 = arith.constant 0 : index
    %c0_8 = arith.constant 0 : index
    %c0_9 = arith.constant 0 : index
    %5 = vector.load %arg4[%c0_7, %c0_8, %c0_9] : memref<2x1x64xf32, #tpu.memory_space<vmem>>, vector<1x1x64xf32>
    %6 = vector.shape_cast %5 : vector<1x1x64xf32> to vector<1x64xf32>
    %cst = arith.constant dense<0.000000e+00> : vector<32xf32>
    %7 = vector.multi_reduction <add>, %2, %cst [1] : vector<32x64xf32> to vector<32xf32>
    %8 = vector.shape_cast %7 : vector<32xf32> to vector<32x1xf32>
    %cst_10 = arith.constant 6.400000e+01 : f32
    %9 = vector.broadcast %cst_10 : f32 to vector<32x1xf32>
    %10 = arith.divf %8, %9 : vector<32x1xf32>
    %11 = vector.broadcast %10 : vector<32x1xf32> to vector<32x64xf32>
    %12 = arith.subf %2, %11 : vector<32x64xf32>
    %13 = arith.mulf %12, %12 : vector<32x64xf32>
    %cst_11 = arith.constant dense<0.000000e+00> : vector<32xf32>
    %14 = vector.multi_reduction <add>, %13, %cst_11 [1] : vector<32x64xf32> to vector<32xf32>
    %15 = vector.shape_cast %14 : vector<32xf32> to vector<32x1xf32>
    %cst_12 = arith.constant 6.400000e+01 : f32
    %16 = vector.broadcast %cst_12 : f32 to vector<32x1xf32>
    %17 = arith.divf %15, %16 : vector<32x1xf32>
    %18 = vector.broadcast %10 : vector<32x1xf32> to vector<32x64xf32>
    %19 = arith.subf %2, %18 : vector<32x64xf32>
    %cst_13 = arith.constant 9.99999974E-6 : f32
    %20 = vector.broadcast %cst_13 : f32 to vector<32x1xf32>
    %21 = arith.addf %17, %20 : vector<32x1xf32>
    %22 = math.rsqrt %21 : vector<32x1xf32>
    %23 = vector.broadcast %22 : vector<32x1xf32> to vector<32x64xf32>
    %24 = arith.mulf %19, %23 : vector<32x64xf32>
    %25 = vector.broadcast %4 : vector<1x64xf32> to vector<32x64xf32>
    %26 = arith.mulf %24, %25 : vector<32x64xf32>
    %27 = vector.broadcast %6 : vector<1x64xf32> to vector<32x64xf32>
    %28 = arith.addf %26, %27 : vector<32x64xf32>
    %29 = arith.truncf %28 : vector<32x64xf32> to vector<32x64xbf16>
    %c0_14 = arith.constant 0 : index
    %c0_15 = arith.constant 0 : index
    %c0_16 = arith.constant 0 : index
    %30 = vector.load %arg5[%c0_14, %c0_15, %c0_16] : memref<2x1x128xf32, #tpu.memory_space<vmem>>, vector<1x1x128xf32>
    %31 = vector.shape_cast %30 : vector<1x1x128xf32> to vector<1x128xf32>
    %c0_17 = arith.constant 0 : index
    %c0_18 = arith.constant 0 : index
    %c0_19 = arith.constant 0 : index
    %32 = vector.load %arg6[%c0_17, %c0_18, %c0_19] : memref<2x1x128xf32, #tpu.memory_space<vmem>>, vector<1x1x128xf32>
    %33 = vector.shape_cast %32 : vector<1x1x128xf32> to vector<1x128xf32>
    %34 = tpu.iota {dimensions = array<i32: 1>} : vector<256x128xi32>
    %c22_i32 = arith.constant 22 : i32
    %35 = vector.broadcast %c22_i32 : i32 to vector<256x128xi32>
    %36 = arith.cmpi slt, %34, %35 : vector<256x128xi32>
    %cst_20 = arith.constant dense<0.000000e+00> : vector<256xf32>
    %37 = vector.multi_reduction <add>, %1, %cst_20 [1] : vector<256x128xf32> to vector<256xf32>
    %38 = vector.shape_cast %37 : vector<256xf32> to vector<256x1xf32>
    %cst_21 = arith.constant 0.0454545468 : f32
    %39 = vector.broadcast %cst_21 : f32 to vector<256x1xf32>
    %40 = arith.mulf %38, %39 : vector<256x1xf32>
    %41 = vector.broadcast %40 : vector<256x1xf32> to vector<256x128xf32>
    %42 = arith.subf %1, %41 : vector<256x128xf32>
    %cst_22 = arith.constant 0.000000e+00 : f32
    %43 = vector.broadcast %cst_22 : f32 to vector<256x128xf32>
    %44 = arith.select %36, %42, %43 : vector<256x128xi1>, vector<256x128xf32>
    %45 = arith.mulf %44, %44 : vector<256x128xf32>
    %cst_23 = arith.constant dense<0.000000e+00> : vector<256xf32>
    %46 = vector.multi_reduction <add>, %45, %cst_23 [1] : vector<256x128xf32> to vector<256xf32>
    %47 = vector.shape_cast %46 : vector<256xf32> to vector<256x1xf32>
    %cst_24 = arith.constant 0.0454545468 : f32
    %48 = vector.broadcast %cst_24 : f32 to vector<256x1xf32>
    %49 = arith.mulf %47, %48 : vector<256x1xf32>
    %cst_25 = arith.constant 9.99999974E-6 : f32
    %50 = vector.broadcast %cst_25 : f32 to vector<256x1xf32>
    %51 = arith.addf %49, %50 : vector<256x1xf32>
    %52 = math.rsqrt %51 : vector<256x1xf32>
    %53 = vector.broadcast %52 : vector<256x1xf32> to vector<256x128xf32>
    %54 = arith.mulf %44, %53 : vector<256x128xf32>
    %55 = vector.broadcast %31 : vector<1x128xf32> to vector<256x128xf32>
    %56 = arith.mulf %54, %55 : vector<256x128xf32>
    %57 = vector.broadcast %33 : vector<1x128xf32> to vector<256x128xf32>
    %58 = arith.addf %56, %57 : vector<256x128xf32>
    %59 = arith.truncf %58 : vector<256x128xf32> to vector<256x128xbf16>
    %c0_26 = arith.constant 0 : index
    %c0_27 = arith.constant 0 : index
    %c0_28 = arith.constant 0 : index
    %60 = vector.load %arg7[%c0_26, %c0_27, %c0_28] : memref<2x64x32xbf16, #tpu.memory_space<vmem>>, vector<1x64x32xbf16>
    %61 = vector.shape_cast %60 : vector<1x64x32xbf16> to vector<64x32xbf16>
    %c0_29 = arith.constant 0 : index
    %c0_30 = arith.constant 0 : index
    %c0_31 = arith.constant 0 : index
    %62 = vector.load %arg8[%c0_29, %c0_30, %c0_31] : memref<2x128x64xbf16, #tpu.memory_space<vmem>>, vector<1x128x64xbf16>
    %63 = vector.shape_cast %62 : vector<1x128x64xbf16> to vector<128x64xbf16>
    %c0_32 = arith.constant 0 : index
    %c0_33 = arith.constant 0 : index
    %c0_34 = arith.constant 0 : index
    %64 = vector.load %arg9[%c0_32, %c0_33, %c0_34] : memref<2x32x64xbf16, #tpu.memory_space<vmem>>, vector<1x32x64xbf16>
    %65 = vector.shape_cast %64 : vector<1x32x64xbf16> to vector<32x64xbf16>
    %c0_35 = arith.constant 0 : index
    %c0_36 = arith.constant 0 : index
    %c0_37 = arith.constant 0 : index
    %66 = vector.load %arg10[%c0_35, %c0_36, %c0_37] : memref<2x1x64xf32, #tpu.memory_space<vmem>>, vector<1x1x64xf32>
    %67 = vector.shape_cast %66 : vector<1x1x64xf32> to vector<1x64xf32>
    %cst_38 = arith.constant dense<0.000000e+00> : vector<32x32xf32>
    %68 = tpu.matmul %29, %61, %cst_38 {dimension_numbers = #tpu.dot_dimension_numbers<[1], [0], [0], [1], [0, 0, 1, 1], [], []>} : vector<32x64xbf16>, vector<64x32xbf16>, vector<32x32xf32> -> vector<32x32xf32>
    %69 = arith.truncf %68 : vector<32x32xf32> to vector<32x32xbf16>
    %cst_39 = arith.constant dense<0.000000e+00> : vector<256x64xf32>
    %70 = tpu.matmul %59, %63, %cst_39 {dimension_numbers = #tpu.dot_dimension_numbers<[1], [0], [0], [1], [0, 0, 1, 1], [], []>} : vector<256x128xbf16>, vector<128x64xbf16>, vector<256x64xf32> -> vector<256x64xf32>
    %71 = vector.extract_strided_slice %70 {offsets = [0, 0], sizes = [256, 32], strides = [1, 1]} : vector<256x64xf32> to vector<256x32xf32>
    %72 = arith.truncf %71 : vector<256x32xf32> to vector<256x32xbf16>
    %73 = vector.extract_strided_slice %70 {offsets = [0, 32], sizes = [256, 32], strides = [1, 1]} : vector<256x64xf32> to vector<256x32xf32>
    %74 = arith.truncf %73 : vector<256x32xf32> to vector<256x32xbf16>
    %cst_40 = arith.constant dense<0.000000e+00> : vector<32x256xf32>
    %75 = tpu.matmul %69, %72, %cst_40 {dimension_numbers = #tpu.dot_dimension_numbers<[1], [1], [0], [0], [0, 0, 1, 0], [], []>} : vector<32x32xbf16>, vector<256x32xbf16>, vector<32x256xf32> -> vector<32x256xf32>
    %cst_41 = arith.constant dense<0xFF800000> : vector<32xf32>
    %76 = vector.multi_reduction <maximumf>, %75, %cst_41 [1] : vector<32x256xf32> to vector<32xf32>
    %77 = vector.shape_cast %76 : vector<32xf32> to vector<32x1xf32>
    %78 = vector.broadcast %77 : vector<32x1xf32> to vector<32x256xf32>
    %79 = arith.subf %75, %78 : vector<32x256xf32>
    %80 = math.exp %79 : vector<32x256xf32>
    %cst_42 = arith.constant dense<0.000000e+00> : vector<32xf32>
    %81 = vector.multi_reduction <add>, %80, %cst_42 [1] : vector<32x256xf32> to vector<32xf32>
    %82 = vector.shape_cast %81 : vector<32xf32> to vector<32x1xf32>
    %83 = tpu.reciprocal %82 {approx = true} : vector<32x1xf32> -> vector<32x1xf32>
    %84 = vector.broadcast %83 : vector<32x1xf32> to vector<32x256xf32>
    %85 = arith.mulf %80, %84 : vector<32x256xf32>
    %86 = arith.truncf %85 : vector<32x256xf32> to vector<32x256xbf16>
    %cst_43 = arith.constant dense<0.000000e+00> : vector<32x32xf32>
    %87 = tpu.matmul %86, %74, %cst_43 {dimension_numbers = #tpu.dot_dimension_numbers<[1], [0], [0], [1], [0, 0, 1, 1], [], []>} : vector<32x256xbf16>, vector<256x32xbf16>, vector<32x32xf32> -> vector<32x32xf32>
    %88 = arith.truncf %87 : vector<32x32xf32> to vector<32x32xbf16>
    %cst_44 = arith.constant dense<0.000000e+00> : vector<32x64xf32>
    %89 = tpu.matmul %88, %65, %cst_44 {dimension_numbers = #tpu.dot_dimension_numbers<[1], [0], [0], [1], [0, 0, 1, 1], [], []>} : vector<32x32xbf16>, vector<32x64xbf16>, vector<32x64xf32> -> vector<32x64xf32>
    %90 = vector.broadcast %67 : vector<1x64xf32> to vector<32x64xf32>
    %91 = arith.addf %89, %90 : vector<32x64xf32>
    %92 = arith.addf %91, %2 : vector<32x64xf32>
    %c0_45 = arith.constant 0 : index
    %c0_46 = arith.constant 0 : index
    %c0_47 = arith.constant 0 : index
    %93 = vector.load %arg11[%c0_45, %c0_46, %c0_47] : memref<2x1x64xf32, #tpu.memory_space<vmem>>, vector<1x1x64xf32>
    %94 = vector.shape_cast %93 : vector<1x1x64xf32> to vector<1x64xf32>
    %c0_48 = arith.constant 0 : index
    %c0_49 = arith.constant 0 : index
    %c0_50 = arith.constant 0 : index
    %95 = vector.load %arg12[%c0_48, %c0_49, %c0_50] : memref<2x1x64xf32, #tpu.memory_space<vmem>>, vector<1x1x64xf32>
    %96 = vector.shape_cast %95 : vector<1x1x64xf32> to vector<1x64xf32>
    %c0_51 = arith.constant 0 : index
    %c0_52 = arith.constant 0 : index
    %c0_53 = arith.constant 0 : index
    %97 = vector.load %arg13[%c0_51, %c0_52, %c0_53] : memref<2x64x512xbf16, #tpu.memory_space<vmem>>, vector<1x64x512xbf16>
    %98 = vector.shape_cast %97 : vector<1x64x512xbf16> to vector<64x512xbf16>
    %c0_54 = arith.constant 0 : index
    %c0_55 = arith.constant 0 : index
    %c0_56 = arith.constant 0 : index
    %99 = vector.load %arg14[%c0_54, %c0_55, %c0_56] : memref<2x1x512xf32, #tpu.memory_space<vmem>>, vector<1x1x512xf32>
    %100 = vector.shape_cast %99 : vector<1x1x512xf32> to vector<1x512xf32>
    %c0_57 = arith.constant 0 : index
    %c0_58 = arith.constant 0 : index
    %c0_59 = arith.constant 0 : index
    %101 = vector.load %arg15[%c0_57, %c0_58, %c0_59] : memref<2x256x64xbf16, #tpu.memory_space<vmem>>, vector<1x256x64xbf16>
    %102 = vector.shape_cast %101 : vector<1x256x64xbf16> to vector<256x64xbf16>
    %c0_60 = arith.constant 0 : index
    %c0_61 = arith.constant 0 : index
    %c0_62 = arith.constant 0 : index
    %103 = vector.load %arg16[%c0_60, %c0_61, %c0_62] : memref<2x1x64xf32, #tpu.memory_space<vmem>>, vector<1x1x64xf32>
    %104 = vector.shape_cast %103 : vector<1x1x64xf32> to vector<1x64xf32>
    %cst_63 = arith.constant dense<0.000000e+00> : vector<32xf32>
    %105 = vector.multi_reduction <add>, %92, %cst_63 [1] : vector<32x64xf32> to vector<32xf32>
    %106 = vector.shape_cast %105 : vector<32xf32> to vector<32x1xf32>
    %cst_64 = arith.constant 6.400000e+01 : f32
    %107 = vector.broadcast %cst_64 : f32 to vector<32x1xf32>
    %108 = arith.divf %106, %107 : vector<32x1xf32>
    %109 = vector.broadcast %108 : vector<32x1xf32> to vector<32x64xf32>
    %110 = arith.subf %92, %109 : vector<32x64xf32>
    %111 = arith.mulf %110, %110 : vector<32x64xf32>
    %cst_65 = arith.constant dense<0.000000e+00> : vector<32xf32>
    %112 = vector.multi_reduction <add>, %111, %cst_65 [1] : vector<32x64xf32> to vector<32xf32>
    %113 = vector.shape_cast %112 : vector<32xf32> to vector<32x1xf32>
    %cst_66 = arith.constant 6.400000e+01 : f32
    %114 = vector.broadcast %cst_66 : f32 to vector<32x1xf32>
    %115 = arith.divf %113, %114 : vector<32x1xf32>
    %116 = vector.broadcast %108 : vector<32x1xf32> to vector<32x64xf32>
    %117 = arith.subf %92, %116 : vector<32x64xf32>
    %cst_67 = arith.constant 9.99999974E-6 : f32
    %118 = vector.broadcast %cst_67 : f32 to vector<32x1xf32>
    %119 = arith.addf %115, %118 : vector<32x1xf32>
    %120 = math.rsqrt %119 : vector<32x1xf32>
    %121 = vector.broadcast %120 : vector<32x1xf32> to vector<32x64xf32>
    %122 = arith.mulf %117, %121 : vector<32x64xf32>
    %123 = vector.broadcast %94 : vector<1x64xf32> to vector<32x64xf32>
    %124 = arith.mulf %122, %123 : vector<32x64xf32>
    %125 = vector.broadcast %96 : vector<1x64xf32> to vector<32x64xf32>
    %126 = arith.addf %124, %125 : vector<32x64xf32>
    %127 = arith.truncf %126 : vector<32x64xf32> to vector<32x64xbf16>
    %cst_68 = arith.constant dense<0.000000e+00> : vector<32x512xf32>
    %128 = tpu.matmul %127, %98, %cst_68 {dimension_numbers = #tpu.dot_dimension_numbers<[1], [0], [0], [1], [0, 0, 1, 1], [], []>} : vector<32x64xbf16>, vector<64x512xbf16>, vector<32x512xf32> -> vector<32x512xf32>
    %129 = vector.broadcast %100 : vector<1x512xf32> to vector<32x512xf32>
    %130 = arith.addf %128, %129 : vector<32x512xf32>
    %131 = vector.extract_strided_slice %130 {offsets = [0, 0], sizes = [32, 256], strides = [1, 1]} : vector<32x512xf32> to vector<32x256xf32>
    %132 = vector.extract_strided_slice %130 {offsets = [0, 256], sizes = [32, 256], strides = [1, 1]} : vector<32x512xf32> to vector<32x256xf32>
    %cst_69 = arith.constant 5.000000e-01 : f32
    %133 = vector.broadcast %cst_69 : f32 to vector<32x256xf32>
    %134 = arith.mulf %133, %132 : vector<32x256xf32>
    %cst_70 = arith.constant 2.000000e+00 : f32
    %135 = math.sqrt %cst_70 : f32
    %cst_71 = arith.constant 1.000000e+00 : f32
    %136 = arith.divf %cst_71, %135 : f32
    %137 = vector.broadcast %136 : f32 to vector<32x256xf32>
    %138 = arith.mulf %132, %137 : vector<32x256xf32>
    %139 = math.erf %138 : vector<32x256xf32>
    %cst_72 = arith.constant 1.000000e+00 : f32
    %140 = vector.broadcast %cst_72 : f32 to vector<32x256xf32>
    %141 = arith.addf %140, %139 : vector<32x256xf32>
    %142 = arith.mulf %134, %141 : vector<32x256xf32>
    %143 = arith.mulf %131, %142 : vector<32x256xf32>
    %144 = arith.truncf %143 : vector<32x256xf32> to vector<32x256xbf16>
    %cst_73 = arith.constant dense<0.000000e+00> : vector<32x64xf32>
    %145 = tpu.matmul %144, %102, %cst_73 {dimension_numbers = #tpu.dot_dimension_numbers<[1], [0], [0], [1], [0, 0, 1, 1], [], []>} : vector<32x256xbf16>, vector<256x64xbf16>, vector<32x64xf32> -> vector<32x64xf32>
    %146 = vector.broadcast %104 : vector<1x64xf32> to vector<32x64xf32>
    %147 = arith.addf %145, %146 : vector<32x64xf32>
    %148 = arith.addf %147, %92 : vector<32x64xf32>
    %c0_74 = arith.constant 0 : index
    %c0_75 = arith.constant 0 : index
    %c0_76 = arith.constant 0 : index
    %149 = vector.load %arg17[%c0_74, %c0_75, %c0_76] : memref<2x1x64xf32, #tpu.memory_space<vmem>>, vector<1x1x64xf32>
    %150 = vector.shape_cast %149 : vector<1x1x64xf32> to vector<1x64xf32>
    %c0_77 = arith.constant 0 : index
    %c0_78 = arith.constant 0 : index
    %c0_79 = arith.constant 0 : index
    %151 = vector.load %arg18[%c0_77, %c0_78, %c0_79] : memref<2x1x64xf32, #tpu.memory_space<vmem>>, vector<1x1x64xf32>
    %152 = vector.shape_cast %151 : vector<1x1x64xf32> to vector<1x64xf32>
    %cst_80 = arith.constant dense<0.000000e+00> : vector<32xf32>
    %153 = vector.multi_reduction <add>, %148, %cst_80 [1] : vector<32x64xf32> to vector<32xf32>
    %154 = vector.shape_cast %153 : vector<32xf32> to vector<32x1xf32>
    %cst_81 = arith.constant 6.400000e+01 : f32
    %155 = vector.broadcast %cst_81 : f32 to vector<32x1xf32>
    %156 = arith.divf %154, %155 : vector<32x1xf32>
    %157 = vector.broadcast %156 : vector<32x1xf32> to vector<32x64xf32>
    %158 = arith.subf %148, %157 : vector<32x64xf32>
    %159 = arith.mulf %158, %158 : vector<32x64xf32>
    %cst_82 = arith.constant dense<0.000000e+00> : vector<32xf32>
    %160 = vector.multi_reduction <add>, %159, %cst_82 [1] : vector<32x64xf32> to vector<32xf32>
    %161 = vector.shape_cast %160 : vector<32xf32> to vector<32x1xf32>
    %cst_83 = arith.constant 6.400000e+01 : f32
    %162 = vector.broadcast %cst_83 : f32 to vector<32x1xf32>
    %163 = arith.divf %161, %162 : vector<32x1xf32>
    %164 = vector.broadcast %156 : vector<32x1xf32> to vector<32x64xf32>
    %165 = arith.subf %148, %164 : vector<32x64xf32>
    %cst_84 = arith.constant 9.99999974E-6 : f32
    %166 = vector.broadcast %cst_84 : f32 to vector<32x1xf32>
    %167 = arith.addf %163, %166 : vector<32x1xf32>
    %168 = math.rsqrt %167 : vector<32x1xf32>
    %169 = vector.broadcast %168 : vector<32x1xf32> to vector<32x64xf32>
    %170 = arith.mulf %165, %169 : vector<32x64xf32>
    %171 = vector.broadcast %150 : vector<1x64xf32> to vector<32x64xf32>
    %172 = arith.mulf %170, %171 : vector<32x64xf32>
    %173 = vector.broadcast %152 : vector<1x64xf32> to vector<32x64xf32>
    %174 = arith.addf %172, %173 : vector<32x64xf32>
    %175 = arith.truncf %174 : vector<32x64xf32> to vector<32x64xbf16>
    %c0_85 = arith.constant 0 : index
    %c0_86 = arith.constant 0 : index
    %c0_87 = arith.constant 0 : index
    %176 = vector.load %arg19[%c0_85, %c0_86, %c0_87] : memref<2x64x64xbf16, #tpu.memory_space<vmem>>, vector<1x64x64xbf16>
    %177 = vector.shape_cast %176 : vector<1x64x64xbf16> to vector<64x64xbf16>
    %c0_88 = arith.constant 0 : index
    %c0_89 = arith.constant 0 : index
    %c0_90 = arith.constant 0 : index
    %178 = vector.load %arg20[%c0_88, %c0_89, %c0_90] : memref<2x64x128xbf16, #tpu.memory_space<vmem>>, vector<1x64x128xbf16>
    %179 = vector.shape_cast %178 : vector<1x64x128xbf16> to vector<64x128xbf16>
    %c0_91 = arith.constant 0 : index
    %c0_92 = arith.constant 0 : index
    %c0_93 = arith.constant 0 : index
    %180 = vector.load %arg21[%c0_91, %c0_92, %c0_93] : memref<2x64x64xbf16, #tpu.memory_space<vmem>>, vector<1x64x64xbf16>
    %181 = vector.shape_cast %180 : vector<1x64x64xbf16> to vector<64x64xbf16>
    %c0_94 = arith.constant 0 : index
    %c0_95 = arith.constant 0 : index
    %c0_96 = arith.constant 0 : index
    %182 = vector.load %arg22[%c0_94, %c0_95, %c0_96] : memref<2x1x64xf32, #tpu.memory_space<vmem>>, vector<1x1x64xf32>
    %183 = vector.shape_cast %182 : vector<1x1x64xf32> to vector<1x64xf32>
    %cst_97 = arith.constant dense<0.000000e+00> : vector<32x64xf32>
    %184 = tpu.matmul %175, %177, %cst_97 {dimension_numbers = #tpu.dot_dimension_numbers<[1], [0], [0], [1], [0, 0, 1, 1], [], []>} : vector<32x64xbf16>, vector<64x64xbf16>, vector<32x64xf32> -> vector<32x64xf32>
    %185 = arith.truncf %184 : vector<32x64xf32> to vector<32x64xbf16>
    %cst_98 = arith.constant dense<0.000000e+00> : vector<32x128xf32>
    %186 = tpu.matmul %175, %179, %cst_98 {dimension_numbers = #tpu.dot_dimension_numbers<[1], [0], [0], [1], [0, 0, 1, 1], [], []>} : vector<32x64xbf16>, vector<64x128xbf16>, vector<32x128xf32> -> vector<32x128xf32>
    %187 = vector.extract_strided_slice %186 {offsets = [0, 0], sizes = [32, 64], strides = [1, 1]} : vector<32x128xf32> to vector<32x64xf32>
    %188 = arith.truncf %187 : vector<32x64xf32> to vector<32x64xbf16>
    %189 = vector.extract_strided_slice %186 {offsets = [0, 64], sizes = [32, 64], strides = [1, 1]} : vector<32x128xf32> to vector<32x64xf32>
    %190 = arith.truncf %189 : vector<32x64xf32> to vector<32x64xbf16>
    %191 = vector.extract_strided_slice %185 {offsets = [0, 0], sizes = [32, 16], strides = [1, 1]} : vector<32x64xbf16> to vector<32x16xbf16>
    %192 = vector.extract_strided_slice %188 {offsets = [0, 0], sizes = [32, 16], strides = [1, 1]} : vector<32x64xbf16> to vector<32x16xbf16>
    %cst_99 = arith.constant dense<0.000000e+00> : vector<32x32xf32>
    %193 = tpu.matmul %191, %192, %cst_99 {dimension_numbers = #tpu.dot_dimension_numbers<[1], [1], [0], [0], [0, 0, 1, 0], [], []>} : vector<32x16xbf16>, vector<32x16xbf16>, vector<32x32xf32> -> vector<32x32xf32>
    %cst_100 = arith.constant dense<0xFF800000> : vector<32xf32>
    %194 = vector.multi_reduction <maximumf>, %193, %cst_100 [1] : vector<32x32xf32> to vector<32xf32>
    %195 = vector.shape_cast %194 : vector<32xf32> to vector<32x1xf32>
    %196 = vector.broadcast %195 : vector<32x1xf32> to vector<32x32xf32>
    %197 = arith.subf %193, %196 : vector<32x32xf32>
    %198 = math.exp %197 : vector<32x32xf32>
    %cst_101 = arith.constant dense<0.000000e+00> : vector<32xf32>
    %199 = vector.multi_reduction <add>, %198, %cst_101 [1] : vector<32x32xf32> to vector<32xf32>
    %200 = vector.shape_cast %199 : vector<32xf32> to vector<32x1xf32>
    %201 = tpu.reciprocal %200 {approx = true} : vector<32x1xf32> -> vector<32x1xf32>
    %202 = vector.broadcast %201 : vector<32x1xf32> to vector<32x32xf32>
    %203 = arith.mulf %198, %202 : vector<32x32xf32>
    %204 = arith.truncf %203 : vector<32x32xf32> to vector<32x32xbf16>
    %205 = vector.extract_strided_slice %190 {offsets = [0, 0], sizes = [32, 16], strides = [1, 1]} : vector<32x64xbf16> to vector<32x16xbf16>
    %cst_102 = arith.constant dense<0.000000e+00> : vector<32x16xf32>
    %206 = tpu.matmul %204, %205, %cst_102 {dimension_numbers = #tpu.dot_dimension_numbers<[1], [0], [0], [1], [0, 0, 1, 1], [], []>} : vector<32x32xbf16>, vector<32x16xbf16>, vector<32x16xf32> -> vector<32x16xf32>
    %207 = vector.extract_strided_slice %185 {offsets = [0, 16], sizes = [32, 16], strides = [1, 1]} : vector<32x64xbf16> to vector<32x16xbf16>
    %208 = vector.extract_strided_slice %188 {offsets = [0, 16], sizes = [32, 16], strides = [1, 1]} : vector<32x64xbf16> to vector<32x16xbf16>
    %cst_103 = arith.constant dense<0.000000e+00> : vector<32x32xf32>
    %209 = tpu.matmul %207, %208, %cst_103 {dimension_numbers = #tpu.dot_dimension_numbers<[1], [1], [0], [0], [0, 0, 1, 0], [], []>} : vector<32x16xbf16>, vector<32x16xbf16>, vector<32x32xf32> -> vector<32x32xf32>
    %cst_104 = arith.constant dense<0xFF800000> : vector<32xf32>
    %210 = vector.multi_reduction <maximumf>, %209, %cst_104 [1] : vector<32x32xf32> to vector<32xf32>
    %211 = vector.shape_cast %210 : vector<32xf32> to vector<32x1xf32>
    %212 = vector.broadcast %211 : vector<32x1xf32> to vector<32x32xf32>
    %213 = arith.subf %209, %212 : vector<32x32xf32>
    %214 = math.exp %213 : vector<32x32xf32>
    %cst_105 = arith.constant dense<0.000000e+00> : vector<32xf32>
    %215 = vector.multi_reduction <add>, %214, %cst_105 [1] : vector<32x32xf32> to vector<32xf32>
    %216 = vector.shape_cast %215 : vector<32xf32> to vector<32x1xf32>
    %217 = tpu.reciprocal %216 {approx = true} : vector<32x1xf32> -> vector<32x1xf32>
    %218 = vector.broadcast %217 : vector<32x1xf32> to vector<32x32xf32>
    %219 = arith.mulf %214, %218 : vector<32x32xf32>
    %220 = arith.truncf %219 : vector<32x32xf32> to vector<32x32xbf16>
    %221 = vector.extract_strided_slice %190 {offsets = [0, 16], sizes = [32, 16], strides = [1, 1]} : vector<32x64xbf16> to vector<32x16xbf16>
    %cst_106 = arith.constant dense<0.000000e+00> : vector<32x16xf32>
    %222 = tpu.matmul %220, %221, %cst_106 {dimension_numbers = #tpu.dot_dimension_numbers<[1], [0], [0], [1], [0, 0, 1, 1], [], []>} : vector<32x32xbf16>, vector<32x16xbf16>, vector<32x16xf32> -> vector<32x16xf32>
    %223 = vector.extract_strided_slice %185 {offsets = [0, 32], sizes = [32, 16], strides = [1, 1]} : vector<32x64xbf16> to vector<32x16xbf16>
    %224 = vector.extract_strided_slice %188 {offsets = [0, 32], sizes = [32, 16], strides = [1, 1]} : vector<32x64xbf16> to vector<32x16xbf16>
    %cst_107 = arith.constant dense<0.000000e+00> : vector<32x32xf32>
    %225 = tpu.matmul %223, %224, %cst_107 {dimension_numbers = #tpu.dot_dimension_numbers<[1], [1], [0], [0], [0, 0, 1, 0], [], []>} : vector<32x16xbf16>, vector<32x16xbf16>, vector<32x32xf32> -> vector<32x32xf32>
    %cst_108 = arith.constant dense<0xFF800000> : vector<32xf32>
    %226 = vector.multi_reduction <maximumf>, %225, %cst_108 [1] : vector<32x32xf32> to vector<32xf32>
    %227 = vector.shape_cast %226 : vector<32xf32> to vector<32x1xf32>
    %228 = vector.broadcast %227 : vector<32x1xf32> to vector<32x32xf32>
    %229 = arith.subf %225, %228 : vector<32x32xf32>
    %230 = math.exp %229 : vector<32x32xf32>
    %cst_109 = arith.constant dense<0.000000e+00> : vector<32xf32>
    %231 = vector.multi_reduction <add>, %230, %cst_109 [1] : vector<32x32xf32> to vector<32xf32>
    %232 = vector.shape_cast %231 : vector<32xf32> to vector<32x1xf32>
    %233 = tpu.reciprocal %232 {approx = true} : vector<32x1xf32> -> vector<32x1xf32>
    %234 = vector.broadcast %233 : vector<32x1xf32> to vector<32x32xf32>
    %235 = arith.mulf %230, %234 : vector<32x32xf32>
    %236 = arith.truncf %235 : vector<32x32xf32> to vector<32x32xbf16>
    %237 = vector.extract_strided_slice %190 {offsets = [0, 32], sizes = [32, 16], strides = [1, 1]} : vector<32x64xbf16> to vector<32x16xbf16>
    %cst_110 = arith.constant dense<0.000000e+00> : vector<32x16xf32>
    %238 = tpu.matmul %236, %237, %cst_110 {dimension_numbers = #tpu.dot_dimension_numbers<[1], [0], [0], [1], [0, 0, 1, 1], [], []>} : vector<32x32xbf16>, vector<32x16xbf16>, vector<32x16xf32> -> vector<32x16xf32>
    %239 = vector.extract_strided_slice %185 {offsets = [0, 48], sizes = [32, 16], strides = [1, 1]} : vector<32x64xbf16> to vector<32x16xbf16>
    %240 = vector.extract_strided_slice %188 {offsets = [0, 48], sizes = [32, 16], strides = [1, 1]} : vector<32x64xbf16> to vector<32x16xbf16>
    %cst_111 = arith.constant dense<0.000000e+00> : vector<32x32xf32>
    %241 = tpu.matmul %239, %240, %cst_111 {dimension_numbers = #tpu.dot_dimension_numbers<[1], [1], [0], [0], [0, 0, 1, 0], [], []>} : vector<32x16xbf16>, vector<32x16xbf16>, vector<32x32xf32> -> vector<32x32xf32>
    %cst_112 = arith.constant dense<0xFF800000> : vector<32xf32>
    %242 = vector.multi_reduction <maximumf>, %241, %cst_112 [1] : vector<32x32xf32> to vector<32xf32>
    %243 = vector.shape_cast %242 : vector<32xf32> to vector<32x1xf32>
    %244 = vector.broadcast %243 : vector<32x1xf32> to vector<32x32xf32>
    %245 = arith.subf %241, %244 : vector<32x32xf32>
    %246 = math.exp %245 : vector<32x32xf32>
    %cst_113 = arith.constant dense<0.000000e+00> : vector<32xf32>
    %247 = vector.multi_reduction <add>, %246, %cst_113 [1] : vector<32x32xf32> to vector<32xf32>
    %248 = vector.shape_cast %247 : vector<32xf32> to vector<32x1xf32>
    %249 = tpu.reciprocal %248 {approx = true} : vector<32x1xf32> -> vector<32x1xf32>
    %250 = vector.broadcast %249 : vector<32x1xf32> to vector<32x32xf32>
    %251 = arith.mulf %246, %250 : vector<32x32xf32>
    %252 = arith.truncf %251 : vector<32x32xf32> to vector<32x32xbf16>
    %253 = vector.extract_strided_slice %190 {offsets = [0, 48], sizes = [32, 16], strides = [1, 1]} : vector<32x64xbf16> to vector<32x16xbf16>
    %cst_114 = arith.constant dense<0.000000e+00> : vector<32x16xf32>
    %254 = tpu.matmul %252, %253, %cst_114 {dimension_numbers = #tpu.dot_dimension_numbers<[1], [0], [0], [1], [0, 0, 1, 1], [], []>} : vector<32x32xbf16>, vector<32x16xbf16>, vector<32x16xf32> -> vector<32x16xf32>
    %255 = tpu.concatenate %206, %222, %238, %254 in 1 : vector<32x16xf32>, vector<32x16xf32>, vector<32x16xf32>, vector<32x16xf32> -> vector<32x64xf32>
    %256 = arith.truncf %255 : vector<32x64xf32> to vector<32x64xbf16>
    %cst_115 = arith.constant dense<0.000000e+00> : vector<32x64xf32>
    %257 = tpu.matmul %256, %181, %cst_115 {dimension_numbers = #tpu.dot_dimension_numbers<[1], [0], [0], [1], [0, 0, 1, 1], [], []>} : vector<32x64xbf16>, vector<64x64xbf16>, vector<32x64xf32> -> vector<32x64xf32>
    %258 = vector.broadcast %183 : vector<1x64xf32> to vector<32x64xf32>
    %259 = arith.addf %257, %258 : vector<32x64xf32>
    %260 = arith.addf %259, %148 : vector<32x64xf32>
    %c0_116 = arith.constant 0 : index
    %c0_117 = arith.constant 0 : index
    %c0_118 = arith.constant 0 : index
    %261 = vector.load %arg23[%c0_116, %c0_117, %c0_118] : memref<2x1x64xf32, #tpu.memory_space<vmem>>, vector<1x1x64xf32>
    %262 = vector.shape_cast %261 : vector<1x1x64xf32> to vector<1x64xf32>
    %c0_119 = arith.constant 0 : index
    %c0_120 = arith.constant 0 : index
    %c0_121 = arith.constant 0 : index
    %263 = vector.load %arg24[%c0_119, %c0_120, %c0_121] : memref<2x1x64xf32, #tpu.memory_space<vmem>>, vector<1x1x64xf32>
    %264 = vector.shape_cast %263 : vector<1x1x64xf32> to vector<1x64xf32>
    %c0_122 = arith.constant 0 : index
    %c0_123 = arith.constant 0 : index
    %c0_124 = arith.constant 0 : index
    %265 = vector.load %arg25[%c0_122, %c0_123, %c0_124] : memref<2x64x512xbf16, #tpu.memory_space<vmem>>, vector<1x64x512xbf16>
    %266 = vector.shape_cast %265 : vector<1x64x512xbf16> to vector<64x512xbf16>
    %c0_125 = arith.constant 0 : index
    %c0_126 = arith.constant 0 : index
    %c0_127 = arith.constant 0 : index
    %267 = vector.load %arg26[%c0_125, %c0_126, %c0_127] : memref<2x1x512xf32, #tpu.memory_space<vmem>>, vector<1x1x512xf32>
    %268 = vector.shape_cast %267 : vector<1x1x512xf32> to vector<1x512xf32>
    %c0_128 = arith.constant 0 : index
    %c0_129 = arith.constant 0 : index
    %c0_130 = arith.constant 0 : index
    %269 = vector.load %arg27[%c0_128, %c0_129, %c0_130] : memref<2x256x64xbf16, #tpu.memory_space<vmem>>, vector<1x256x64xbf16>
    %270 = vector.shape_cast %269 : vector<1x256x64xbf16> to vector<256x64xbf16>
    %c0_131 = arith.constant 0 : index
    %c0_132 = arith.constant 0 : index
    %c0_133 = arith.constant 0 : index
    %271 = vector.load %arg28[%c0_131, %c0_132, %c0_133] : memref<2x1x64xf32, #tpu.memory_space<vmem>>, vector<1x1x64xf32>
    %272 = vector.shape_cast %271 : vector<1x1x64xf32> to vector<1x64xf32>
    %cst_134 = arith.constant dense<0.000000e+00> : vector<32xf32>
    %273 = vector.multi_reduction <add>, %260, %cst_134 [1] : vector<32x64xf32> to vector<32xf32>
    %274 = vector.shape_cast %273 : vector<32xf32> to vector<32x1xf32>
    %cst_135 = arith.constant 6.400000e+01 : f32
    %275 = vector.broadcast %cst_135 : f32 to vector<32x1xf32>
    %276 = arith.divf %274, %275 : vector<32x1xf32>
    %277 = vector.broadcast %276 : vector<32x1xf32> to vector<32x64xf32>
    %278 = arith.subf %260, %277 : vector<32x64xf32>
    %279 = arith.mulf %278, %278 : vector<32x64xf32>
    %cst_136 = arith.constant dense<0.000000e+00> : vector<32xf32>
    %280 = vector.multi_reduction <add>, %279, %cst_136 [1] : vector<32x64xf32> to vector<32xf32>
    %281 = vector.shape_cast %280 : vector<32xf32> to vector<32x1xf32>
    %cst_137 = arith.constant 6.400000e+01 : f32
    %282 = vector.broadcast %cst_137 : f32 to vector<32x1xf32>
    %283 = arith.divf %281, %282 : vector<32x1xf32>
    %284 = vector.broadcast %276 : vector<32x1xf32> to vector<32x64xf32>
    %285 = arith.subf %260, %284 : vector<32x64xf32>
    %cst_138 = arith.constant 9.99999974E-6 : f32
    %286 = vector.broadcast %cst_138 : f32 to vector<32x1xf32>
    %287 = arith.addf %283, %286 : vector<32x1xf32>
    %288 = math.rsqrt %287 : vector<32x1xf32>
    %289 = vector.broadcast %288 : vector<32x1xf32> to vector<32x64xf32>
    %290 = arith.mulf %285, %289 : vector<32x64xf32>
    %291 = vector.broadcast %262 : vector<1x64xf32> to vector<32x64xf32>
    %292 = arith.mulf %290, %291 : vector<32x64xf32>
    %293 = vector.broadcast %264 : vector<1x64xf32> to vector<32x64xf32>
    %294 = arith.addf %292, %293 : vector<32x64xf32>
    %295 = arith.truncf %294 : vector<32x64xf32> to vector<32x64xbf16>
    %cst_139 = arith.constant dense<0.000000e+00> : vector<32x512xf32>
    %296 = tpu.matmul %295, %266, %cst_139 {dimension_numbers = #tpu.dot_dimension_numbers<[1], [0], [0], [1], [0, 0, 1, 1], [], []>} : vector<32x64xbf16>, vector<64x512xbf16>, vector<32x512xf32> -> vector<32x512xf32>
    %297 = vector.broadcast %268 : vector<1x512xf32> to vector<32x512xf32>
    %298 = arith.addf %296, %297 : vector<32x512xf32>
    %299 = vector.extract_strided_slice %298 {offsets = [0, 0], sizes = [32, 256], strides = [1, 1]} : vector<32x512xf32> to vector<32x256xf32>
    %300 = vector.extract_strided_slice %298 {offsets = [0, 256], sizes = [32, 256], strides = [1, 1]} : vector<32x512xf32> to vector<32x256xf32>
    %cst_140 = arith.constant 5.000000e-01 : f32
    %301 = vector.broadcast %cst_140 : f32 to vector<32x256xf32>
    %302 = arith.mulf %301, %300 : vector<32x256xf32>
    %cst_141 = arith.constant 2.000000e+00 : f32
    %303 = math.sqrt %cst_141 : f32
    %cst_142 = arith.constant 1.000000e+00 : f32
    %304 = arith.divf %cst_142, %303 : f32
    %305 = vector.broadcast %304 : f32 to vector<32x256xf32>
    %306 = arith.mulf %300, %305 : vector<32x256xf32>
    %307 = math.erf %306 : vector<32x256xf32>
    %cst_143 = arith.constant 1.000000e+00 : f32
    %308 = vector.broadcast %cst_143 : f32 to vector<32x256xf32>
    %309 = arith.addf %308, %307 : vector<32x256xf32>
    %310 = arith.mulf %302, %309 : vector<32x256xf32>
    %311 = arith.mulf %299, %310 : vector<32x256xf32>
    %312 = arith.truncf %311 : vector<32x256xf32> to vector<32x256xbf16>
    %cst_144 = arith.constant dense<0.000000e+00> : vector<32x64xf32>
    %313 = tpu.matmul %312, %270, %cst_144 {dimension_numbers = #tpu.dot_dimension_numbers<[1], [0], [0], [1], [0, 0, 1, 1], [], []>} : vector<32x256xbf16>, vector<256x64xbf16>, vector<32x64xf32> -> vector<32x64xf32>
    %314 = vector.broadcast %272 : vector<1x64xf32> to vector<32x64xf32>
    %315 = arith.addf %313, %314 : vector<32x64xf32>
    %316 = arith.addf %315, %260 : vector<32x64xf32>
    %c1 = arith.constant 1 : index
    %c0_145 = arith.constant 0 : index
    %c0_146 = arith.constant 0 : index
    %317 = vector.load %arg3[%c1, %c0_145, %c0_146] : memref<2x1x64xf32, #tpu.memory_space<vmem>>, vector<1x1x64xf32>
    %318 = vector.shape_cast %317 : vector<1x1x64xf32> to vector<1x64xf32>
    %c1_147 = arith.constant 1 : index
    %c0_148 = arith.constant 0 : index
    %c0_149 = arith.constant 0 : index
    %319 = vector.load %arg4[%c1_147, %c0_148, %c0_149] : memref<2x1x64xf32, #tpu.memory_space<vmem>>, vector<1x1x64xf32>
    %320 = vector.shape_cast %319 : vector<1x1x64xf32> to vector<1x64xf32>
    %cst_150 = arith.constant dense<0.000000e+00> : vector<32xf32>
    %321 = vector.multi_reduction <add>, %316, %cst_150 [1] : vector<32x64xf32> to vector<32xf32>
    %322 = vector.shape_cast %321 : vector<32xf32> to vector<32x1xf32>
    %cst_151 = arith.constant 6.400000e+01 : f32
    %323 = vector.broadcast %cst_151 : f32 to vector<32x1xf32>
    %324 = arith.divf %322, %323 : vector<32x1xf32>
    %325 = vector.broadcast %324 : vector<32x1xf32> to vector<32x64xf32>
    %326 = arith.subf %316, %325 : vector<32x64xf32>
    %327 = arith.mulf %326, %326 : vector<32x64xf32>
    %cst_152 = arith.constant dense<0.000000e+00> : vector<32xf32>
    %328 = vector.multi_reduction <add>, %327, %cst_152 [1] : vector<32x64xf32> to vector<32xf32>
    %329 = vector.shape_cast %328 : vector<32xf32> to vector<32x1xf32>
    %cst_153 = arith.constant 6.400000e+01 : f32
    %330 = vector.broadcast %cst_153 : f32 to vector<32x1xf32>
    %331 = arith.divf %329, %330 : vector<32x1xf32>
    %332 = vector.broadcast %324 : vector<32x1xf32> to vector<32x64xf32>
    %333 = arith.subf %316, %332 : vector<32x64xf32>
    %cst_154 = arith.constant 9.99999974E-6 : f32
    %334 = vector.broadcast %cst_154 : f32 to vector<32x1xf32>
    %335 = arith.addf %331, %334 : vector<32x1xf32>
    %336 = math.rsqrt %335 : vector<32x1xf32>
    %337 = vector.broadcast %336 : vector<32x1xf32> to vector<32x64xf32>
    %338 = arith.mulf %333, %337 : vector<32x64xf32>
    %339 = vector.broadcast %318 : vector<1x64xf32> to vector<32x64xf32>
    %340 = arith.mulf %338, %339 : vector<32x64xf32>
    %341 = vector.broadcast %320 : vector<1x64xf32> to vector<32x64xf32>
    %342 = arith.addf %340, %341 : vector<32x64xf32>
    %343 = arith.truncf %342 : vector<32x64xf32> to vector<32x64xbf16>
    %c1_155 = arith.constant 1 : index
    %c0_156 = arith.constant 0 : index
    %c0_157 = arith.constant 0 : index
    %344 = vector.load %arg5[%c1_155, %c0_156, %c0_157] : memref<2x1x128xf32, #tpu.memory_space<vmem>>, vector<1x1x128xf32>
    %345 = vector.shape_cast %344 : vector<1x1x128xf32> to vector<1x128xf32>
    %c1_158 = arith.constant 1 : index
    %c0_159 = arith.constant 0 : index
    %c0_160 = arith.constant 0 : index
    %346 = vector.load %arg6[%c1_158, %c0_159, %c0_160] : memref<2x1x128xf32, #tpu.memory_space<vmem>>, vector<1x1x128xf32>
    %347 = vector.shape_cast %346 : vector<1x1x128xf32> to vector<1x128xf32>
    %348 = tpu.iota {dimensions = array<i32: 1>} : vector<256x128xi32>
    %c22_i32_161 = arith.constant 22 : i32
    %349 = vector.broadcast %c22_i32_161 : i32 to vector<256x128xi32>
    %350 = arith.cmpi slt, %348, %349 : vector<256x128xi32>
    %cst_162 = arith.constant dense<0.000000e+00> : vector<256xf32>
    %351 = vector.multi_reduction <add>, %1, %cst_162 [1] : vector<256x128xf32> to vector<256xf32>
    %352 = vector.shape_cast %351 : vector<256xf32> to vector<256x1xf32>
    %cst_163 = arith.constant 0.0454545468 : f32
    %353 = vector.broadcast %cst_163 : f32 to vector<256x1xf32>
    %354 = arith.mulf %352, %353 : vector<256x1xf32>
    %355 = vector.broadcast %354 : vector<256x1xf32> to vector<256x128xf32>
    %356 = arith.subf %1, %355 : vector<256x128xf32>
    %cst_164 = arith.constant 0.000000e+00 : f32
    %357 = vector.broadcast %cst_164 : f32 to vector<256x128xf32>
    %358 = arith.select %350, %356, %357 : vector<256x128xi1>, vector<256x128xf32>
    %359 = arith.mulf %358, %358 : vector<256x128xf32>
    %cst_165 = arith.constant dense<0.000000e+00> : vector<256xf32>
    %360 = vector.multi_reduction <add>, %359, %cst_165 [1] : vector<256x128xf32> to vector<256xf32>
    %361 = vector.shape_cast %360 : vector<256xf32> to vector<256x1xf32>
    %cst_166 = arith.constant 0.0454545468 : f32
    %362 = vector.broadcast %cst_166 : f32 to vector<256x1xf32>
    %363 = arith.mulf %361, %362 : vector<256x1xf32>
    %cst_167 = arith.constant 9.99999974E-6 : f32
    %364 = vector.broadcast %cst_167 : f32 to vector<256x1xf32>
    %365 = arith.addf %363, %364 : vector<256x1xf32>
    %366 = math.rsqrt %365 : vector<256x1xf32>
    %367 = vector.broadcast %366 : vector<256x1xf32> to vector<256x128xf32>
    %368 = arith.mulf %358, %367 : vector<256x128xf32>
    %369 = vector.broadcast %345 : vector<1x128xf32> to vector<256x128xf32>
    %370 = arith.mulf %368, %369 : vector<256x128xf32>
    %371 = vector.broadcast %347 : vector<1x128xf32> to vector<256x128xf32>
    %372 = arith.addf %370, %371 : vector<256x128xf32>
    %373 = arith.truncf %372 : vector<256x128xf32> to vector<256x128xbf16>
    %c1_168 = arith.constant 1 : index
    %c0_169 = arith.constant 0 : index
    %c0_170 = arith.constant 0 : index
    %374 = vector.load %arg7[%c1_168, %c0_169, %c0_170] : memref<2x64x32xbf16, #tpu.memory_space<vmem>>, vector<1x64x32xbf16>
    %375 = vector.shape_cast %374 : vector<1x64x32xbf16> to vector<64x32xbf16>
    %c1_171 = arith.constant 1 : index
    %c0_172 = arith.constant 0 : index
    %c0_173 = arith.constant 0 : index
    %376 = vector.load %arg8[%c1_171, %c0_172, %c0_173] : memref<2x128x64xbf16, #tpu.memory_space<vmem>>, vector<1x128x64xbf16>
    %377 = vector.shape_cast %376 : vector<1x128x64xbf16> to vector<128x64xbf16>
    %c1_174 = arith.constant 1 : index
    %c0_175 = arith.constant 0 : index
    %c0_176 = arith.constant 0 : index
    %378 = vector.load %arg9[%c1_174, %c0_175, %c0_176] : memref<2x32x64xbf16, #tpu.memory_space<vmem>>, vector<1x32x64xbf16>
    %379 = vector.shape_cast %378 : vector<1x32x64xbf16> to vector<32x64xbf16>
    %c1_177 = arith.constant 1 : index
    %c0_178 = arith.constant 0 : index
    %c0_179 = arith.constant 0 : index
    %380 = vector.load %arg10[%c1_177, %c0_178, %c0_179] : memref<2x1x64xf32, #tpu.memory_space<vmem>>, vector<1x1x64xf32>
    %381 = vector.shape_cast %380 : vector<1x1x64xf32> to vector<1x64xf32>
    %cst_180 = arith.constant dense<0.000000e+00> : vector<32x32xf32>
    %382 = tpu.matmul %343, %375, %cst_180 {dimension_numbers = #tpu.dot_dimension_numbers<[1], [0], [0], [1], [0, 0, 1, 1], [], []>} : vector<32x64xbf16>, vector<64x32xbf16>, vector<32x32xf32> -> vector<32x32xf32>
    %383 = arith.truncf %382 : vector<32x32xf32> to vector<32x32xbf16>
    %cst_181 = arith.constant dense<0.000000e+00> : vector<256x64xf32>
    %384 = tpu.matmul %373, %377, %cst_181 {dimension_numbers = #tpu.dot_dimension_numbers<[1], [0], [0], [1], [0, 0, 1, 1], [], []>} : vector<256x128xbf16>, vector<128x64xbf16>, vector<256x64xf32> -> vector<256x64xf32>
    %385 = vector.extract_strided_slice %384 {offsets = [0, 0], sizes = [256, 32], strides = [1, 1]} : vector<256x64xf32> to vector<256x32xf32>
    %386 = arith.truncf %385 : vector<256x32xf32> to vector<256x32xbf16>
    %387 = vector.extract_strided_slice %384 {offsets = [0, 32], sizes = [256, 32], strides = [1, 1]} : vector<256x64xf32> to vector<256x32xf32>
    %388 = arith.truncf %387 : vector<256x32xf32> to vector<256x32xbf16>
    %cst_182 = arith.constant dense<0.000000e+00> : vector<32x256xf32>
    %389 = tpu.matmul %383, %386, %cst_182 {dimension_numbers = #tpu.dot_dimension_numbers<[1], [1], [0], [0], [0, 0, 1, 0], [], []>} : vector<32x32xbf16>, vector<256x32xbf16>, vector<32x256xf32> -> vector<32x256xf32>
    %cst_183 = arith.constant dense<0xFF800000> : vector<32xf32>
    %390 = vector.multi_reduction <maximumf>, %389, %cst_183 [1] : vector<32x256xf32> to vector<32xf32>
    %391 = vector.shape_cast %390 : vector<32xf32> to vector<32x1xf32>
    %392 = vector.broadcast %391 : vector<32x1xf32> to vector<32x256xf32>
    %393 = arith.subf %389, %392 : vector<32x256xf32>
    %394 = math.exp %393 : vector<32x256xf32>
    %cst_184 = arith.constant dense<0.000000e+00> : vector<32xf32>
    %395 = vector.multi_reduction <add>, %394, %cst_184 [1] : vector<32x256xf32> to vector<32xf32>
    %396 = vector.shape_cast %395 : vector<32xf32> to vector<32x1xf32>
    %397 = tpu.reciprocal %396 {approx = true} : vector<32x1xf32> -> vector<32x1xf32>
    %398 = vector.broadcast %397 : vector<32x1xf32> to vector<32x256xf32>
    %399 = arith.mulf %394, %398 : vector<32x256xf32>
    %400 = arith.truncf %399 : vector<32x256xf32> to vector<32x256xbf16>
    %cst_185 = arith.constant dense<0.000000e+00> : vector<32x32xf32>
    %401 = tpu.matmul %400, %388, %cst_185 {dimension_numbers = #tpu.dot_dimension_numbers<[1], [0], [0], [1], [0, 0, 1, 1], [], []>} : vector<32x256xbf16>, vector<256x32xbf16>, vector<32x32xf32> -> vector<32x32xf32>
    %402 = arith.truncf %401 : vector<32x32xf32> to vector<32x32xbf16>
    %cst_186 = arith.constant dense<0.000000e+00> : vector<32x64xf32>
    %403 = tpu.matmul %402, %379, %cst_186 {dimension_numbers = #tpu.dot_dimension_numbers<[1], [0], [0], [1], [0, 0, 1, 1], [], []>} : vector<32x32xbf16>, vector<32x64xbf16>, vector<32x64xf32> -> vector<32x64xf32>
    %404 = vector.broadcast %381 : vector<1x64xf32> to vector<32x64xf32>
    %405 = arith.addf %403, %404 : vector<32x64xf32>
    %406 = arith.addf %405, %316 : vector<32x64xf32>
    %c1_187 = arith.constant 1 : index
    %c0_188 = arith.constant 0 : index
    %c0_189 = arith.constant 0 : index
    %407 = vector.load %arg11[%c1_187, %c0_188, %c0_189] : memref<2x1x64xf32, #tpu.memory_space<vmem>>, vector<1x1x64xf32>
    %408 = vector.shape_cast %407 : vector<1x1x64xf32> to vector<1x64xf32>
    %c1_190 = arith.constant 1 : index
    %c0_191 = arith.constant 0 : index
    %c0_192 = arith.constant 0 : index
    %409 = vector.load %arg12[%c1_190, %c0_191, %c0_192] : memref<2x1x64xf32, #tpu.memory_space<vmem>>, vector<1x1x64xf32>
    %410 = vector.shape_cast %409 : vector<1x1x64xf32> to vector<1x64xf32>
    %c1_193 = arith.constant 1 : index
    %c0_194 = arith.constant 0 : index
    %c0_195 = arith.constant 0 : index
    %411 = vector.load %arg13[%c1_193, %c0_194, %c0_195] : memref<2x64x512xbf16, #tpu.memory_space<vmem>>, vector<1x64x512xbf16>
    %412 = vector.shape_cast %411 : vector<1x64x512xbf16> to vector<64x512xbf16>
    %c1_196 = arith.constant 1 : index
    %c0_197 = arith.constant 0 : index
    %c0_198 = arith.constant 0 : index
    %413 = vector.load %arg14[%c1_196, %c0_197, %c0_198] : memref<2x1x512xf32, #tpu.memory_space<vmem>>, vector<1x1x512xf32>
    %414 = vector.shape_cast %413 : vector<1x1x512xf32> to vector<1x512xf32>
    %c1_199 = arith.constant 1 : index
    %c0_200 = arith.constant 0 : index
    %c0_201 = arith.constant 0 : index
    %415 = vector.load %arg15[%c1_199, %c0_200, %c0_201] : memref<2x256x64xbf16, #tpu.memory_space<vmem>>, vector<1x256x64xbf16>
    %416 = vector.shape_cast %415 : vector<1x256x64xbf16> to vector<256x64xbf16>
    %c1_202 = arith.constant 1 : index
    %c0_203 = arith.constant 0 : index
    %c0_204 = arith.constant 0 : index
    %417 = vector.load %arg16[%c1_202, %c0_203, %c0_204] : memref<2x1x64xf32, #tpu.memory_space<vmem>>, vector<1x1x64xf32>
    %418 = vector.shape_cast %417 : vector<1x1x64xf32> to vector<1x64xf32>
    %cst_205 = arith.constant dense<0.000000e+00> : vector<32xf32>
    %419 = vector.multi_reduction <add>, %406, %cst_205 [1] : vector<32x64xf32> to vector<32xf32>
    %420 = vector.shape_cast %419 : vector<32xf32> to vector<32x1xf32>
    %cst_206 = arith.constant 6.400000e+01 : f32
    %421 = vector.broadcast %cst_206 : f32 to vector<32x1xf32>
    %422 = arith.divf %420, %421 : vector<32x1xf32>
    %423 = vector.broadcast %422 : vector<32x1xf32> to vector<32x64xf32>
    %424 = arith.subf %406, %423 : vector<32x64xf32>
    %425 = arith.mulf %424, %424 : vector<32x64xf32>
    %cst_207 = arith.constant dense<0.000000e+00> : vector<32xf32>
    %426 = vector.multi_reduction <add>, %425, %cst_207 [1] : vector<32x64xf32> to vector<32xf32>
    %427 = vector.shape_cast %426 : vector<32xf32> to vector<32x1xf32>
    %cst_208 = arith.constant 6.400000e+01 : f32
    %428 = vector.broadcast %cst_208 : f32 to vector<32x1xf32>
    %429 = arith.divf %427, %428 : vector<32x1xf32>
    %430 = vector.broadcast %422 : vector<32x1xf32> to vector<32x64xf32>
    %431 = arith.subf %406, %430 : vector<32x64xf32>
    %cst_209 = arith.constant 9.99999974E-6 : f32
    %432 = vector.broadcast %cst_209 : f32 to vector<32x1xf32>
    %433 = arith.addf %429, %432 : vector<32x1xf32>
    %434 = math.rsqrt %433 : vector<32x1xf32>
    %435 = vector.broadcast %434 : vector<32x1xf32> to vector<32x64xf32>
    %436 = arith.mulf %431, %435 : vector<32x64xf32>
    %437 = vector.broadcast %408 : vector<1x64xf32> to vector<32x64xf32>
    %438 = arith.mulf %436, %437 : vector<32x64xf32>
    %439 = vector.broadcast %410 : vector<1x64xf32> to vector<32x64xf32>
    %440 = arith.addf %438, %439 : vector<32x64xf32>
    %441 = arith.truncf %440 : vector<32x64xf32> to vector<32x64xbf16>
    %cst_210 = arith.constant dense<0.000000e+00> : vector<32x512xf32>
    %442 = tpu.matmul %441, %412, %cst_210 {dimension_numbers = #tpu.dot_dimension_numbers<[1], [0], [0], [1], [0, 0, 1, 1], [], []>} : vector<32x64xbf16>, vector<64x512xbf16>, vector<32x512xf32> -> vector<32x512xf32>
    %443 = vector.broadcast %414 : vector<1x512xf32> to vector<32x512xf32>
    %444 = arith.addf %442, %443 : vector<32x512xf32>
    %445 = vector.extract_strided_slice %444 {offsets = [0, 0], sizes = [32, 256], strides = [1, 1]} : vector<32x512xf32> to vector<32x256xf32>
    %446 = vector.extract_strided_slice %444 {offsets = [0, 256], sizes = [32, 256], strides = [1, 1]} : vector<32x512xf32> to vector<32x256xf32>
    %cst_211 = arith.constant 5.000000e-01 : f32
    %447 = vector.broadcast %cst_211 : f32 to vector<32x256xf32>
    %448 = arith.mulf %447, %446 : vector<32x256xf32>
    %cst_212 = arith.constant 2.000000e+00 : f32
    %449 = math.sqrt %cst_212 : f32
    %cst_213 = arith.constant 1.000000e+00 : f32
    %450 = arith.divf %cst_213, %449 : f32
    %451 = vector.broadcast %450 : f32 to vector<32x256xf32>
    %452 = arith.mulf %446, %451 : vector<32x256xf32>
    %453 = math.erf %452 : vector<32x256xf32>
    %cst_214 = arith.constant 1.000000e+00 : f32
    %454 = vector.broadcast %cst_214 : f32 to vector<32x256xf32>
    %455 = arith.addf %454, %453 : vector<32x256xf32>
    %456 = arith.mulf %448, %455 : vector<32x256xf32>
    %457 = arith.mulf %445, %456 : vector<32x256xf32>
    %458 = arith.truncf %457 : vector<32x256xf32> to vector<32x256xbf16>
    %cst_215 = arith.constant dense<0.000000e+00> : vector<32x64xf32>
    %459 = tpu.matmul %458, %416, %cst_215 {dimension_numbers = #tpu.dot_dimension_numbers<[1], [0], [0], [1], [0, 0, 1, 1], [], []>} : vector<32x256xbf16>, vector<256x64xbf16>, vector<32x64xf32> -> vector<32x64xf32>
    %460 = vector.broadcast %418 : vector<1x64xf32> to vector<32x64xf32>
    %461 = arith.addf %459, %460 : vector<32x64xf32>
    %462 = arith.addf %461, %406 : vector<32x64xf32>
    %c1_216 = arith.constant 1 : index
    %c0_217 = arith.constant 0 : index
    %c0_218 = arith.constant 0 : index
    %463 = vector.load %arg17[%c1_216, %c0_217, %c0_218] : memref<2x1x64xf32, #tpu.memory_space<vmem>>, vector<1x1x64xf32>
    %464 = vector.shape_cast %463 : vector<1x1x64xf32> to vector<1x64xf32>
    %c1_219 = arith.constant 1 : index
    %c0_220 = arith.constant 0 : index
    %c0_221 = arith.constant 0 : index
    %465 = vector.load %arg18[%c1_219, %c0_220, %c0_221] : memref<2x1x64xf32, #tpu.memory_space<vmem>>, vector<1x1x64xf32>
    %466 = vector.shape_cast %465 : vector<1x1x64xf32> to vector<1x64xf32>
    %cst_222 = arith.constant dense<0.000000e+00> : vector<32xf32>
    %467 = vector.multi_reduction <add>, %462, %cst_222 [1] : vector<32x64xf32> to vector<32xf32>
    %468 = vector.shape_cast %467 : vector<32xf32> to vector<32x1xf32>
    %cst_223 = arith.constant 6.400000e+01 : f32
    %469 = vector.broadcast %cst_223 : f32 to vector<32x1xf32>
    %470 = arith.divf %468, %469 : vector<32x1xf32>
    %471 = vector.broadcast %470 : vector<32x1xf32> to vector<32x64xf32>
    %472 = arith.subf %462, %471 : vector<32x64xf32>
    %473 = arith.mulf %472, %472 : vector<32x64xf32>
    %cst_224 = arith.constant dense<0.000000e+00> : vector<32xf32>
    %474 = vector.multi_reduction <add>, %473, %cst_224 [1] : vector<32x64xf32> to vector<32xf32>
    %475 = vector.shape_cast %474 : vector<32xf32> to vector<32x1xf32>
    %cst_225 = arith.constant 6.400000e+01 : f32
    %476 = vector.broadcast %cst_225 : f32 to vector<32x1xf32>
    %477 = arith.divf %475, %476 : vector<32x1xf32>
    %478 = vector.broadcast %470 : vector<32x1xf32> to vector<32x64xf32>
    %479 = arith.subf %462, %478 : vector<32x64xf32>
    %cst_226 = arith.constant 9.99999974E-6 : f32
    %480 = vector.broadcast %cst_226 : f32 to vector<32x1xf32>
    %481 = arith.addf %477, %480 : vector<32x1xf32>
    %482 = math.rsqrt %481 : vector<32x1xf32>
    %483 = vector.broadcast %482 : vector<32x1xf32> to vector<32x64xf32>
    %484 = arith.mulf %479, %483 : vector<32x64xf32>
    %485 = vector.broadcast %464 : vector<1x64xf32> to vector<32x64xf32>
    %486 = arith.mulf %484, %485 : vector<32x64xf32>
    %487 = vector.broadcast %466 : vector<1x64xf32> to vector<32x64xf32>
    %488 = arith.addf %486, %487 : vector<32x64xf32>
    %489 = arith.truncf %488 : vector<32x64xf32> to vector<32x64xbf16>
    %c1_227 = arith.constant 1 : index
    %c0_228 = arith.constant 0 : index
    %c0_229 = arith.constant 0 : index
    %490 = vector.load %arg19[%c1_227, %c0_228, %c0_229] : memref<2x64x64xbf16, #tpu.memory_space<vmem>>, vector<1x64x64xbf16>
    %491 = vector.shape_cast %490 : vector<1x64x64xbf16> to vector<64x64xbf16>
    %c1_230 = arith.constant 1 : index
    %c0_231 = arith.constant 0 : index
    %c0_232 = arith.constant 0 : index
    %492 = vector.load %arg20[%c1_230, %c0_231, %c0_232] : memref<2x64x128xbf16, #tpu.memory_space<vmem>>, vector<1x64x128xbf16>
    %493 = vector.shape_cast %492 : vector<1x64x128xbf16> to vector<64x128xbf16>
    %c1_233 = arith.constant 1 : index
    %c0_234 = arith.constant 0 : index
    %c0_235 = arith.constant 0 : index
    %494 = vector.load %arg21[%c1_233, %c0_234, %c0_235] : memref<2x64x64xbf16, #tpu.memory_space<vmem>>, vector<1x64x64xbf16>
    %495 = vector.shape_cast %494 : vector<1x64x64xbf16> to vector<64x64xbf16>
    %c1_236 = arith.constant 1 : index
    %c0_237 = arith.constant 0 : index
    %c0_238 = arith.constant 0 : index
    %496 = vector.load %arg22[%c1_236, %c0_237, %c0_238] : memref<2x1x64xf32, #tpu.memory_space<vmem>>, vector<1x1x64xf32>
    %497 = vector.shape_cast %496 : vector<1x1x64xf32> to vector<1x64xf32>
    %cst_239 = arith.constant dense<0.000000e+00> : vector<32x64xf32>
    %498 = tpu.matmul %489, %491, %cst_239 {dimension_numbers = #tpu.dot_dimension_numbers<[1], [0], [0], [1], [0, 0, 1, 1], [], []>} : vector<32x64xbf16>, vector<64x64xbf16>, vector<32x64xf32> -> vector<32x64xf32>
    %499 = arith.truncf %498 : vector<32x64xf32> to vector<32x64xbf16>
    %cst_240 = arith.constant dense<0.000000e+00> : vector<32x128xf32>
    %500 = tpu.matmul %489, %493, %cst_240 {dimension_numbers = #tpu.dot_dimension_numbers<[1], [0], [0], [1], [0, 0, 1, 1], [], []>} : vector<32x64xbf16>, vector<64x128xbf16>, vector<32x128xf32> -> vector<32x128xf32>
    %501 = vector.extract_strided_slice %500 {offsets = [0, 0], sizes = [32, 64], strides = [1, 1]} : vector<32x128xf32> to vector<32x64xf32>
    %502 = arith.truncf %501 : vector<32x64xf32> to vector<32x64xbf16>
    %503 = vector.extract_strided_slice %500 {offsets = [0, 64], sizes = [32, 64], strides = [1, 1]} : vector<32x128xf32> to vector<32x64xf32>
    %504 = arith.truncf %503 : vector<32x64xf32> to vector<32x64xbf16>
    %505 = vector.extract_strided_slice %499 {offsets = [0, 0], sizes = [32, 16], strides = [1, 1]} : vector<32x64xbf16> to vector<32x16xbf16>
    %506 = vector.extract_strided_slice %502 {offsets = [0, 0], sizes = [32, 16], strides = [1, 1]} : vector<32x64xbf16> to vector<32x16xbf16>
    %cst_241 = arith.constant dense<0.000000e+00> : vector<32x32xf32>
    %507 = tpu.matmul %505, %506, %cst_241 {dimension_numbers = #tpu.dot_dimension_numbers<[1], [1], [0], [0], [0, 0, 1, 0], [], []>} : vector<32x16xbf16>, vector<32x16xbf16>, vector<32x32xf32> -> vector<32x32xf32>
    %cst_242 = arith.constant dense<0xFF800000> : vector<32xf32>
    %508 = vector.multi_reduction <maximumf>, %507, %cst_242 [1] : vector<32x32xf32> to vector<32xf32>
    %509 = vector.shape_cast %508 : vector<32xf32> to vector<32x1xf32>
    %510 = vector.broadcast %509 : vector<32x1xf32> to vector<32x32xf32>
    %511 = arith.subf %507, %510 : vector<32x32xf32>
    %512 = math.exp %511 : vector<32x32xf32>
    %cst_243 = arith.constant dense<0.000000e+00> : vector<32xf32>
    %513 = vector.multi_reduction <add>, %512, %cst_243 [1] : vector<32x32xf32> to vector<32xf32>
    %514 = vector.shape_cast %513 : vector<32xf32> to vector<32x1xf32>
    %515 = tpu.reciprocal %514 {approx = true} : vector<32x1xf32> -> vector<32x1xf32>
    %516 = vector.broadcast %515 : vector<32x1xf32> to vector<32x32xf32>
    %517 = arith.mulf %512, %516 : vector<32x32xf32>
    %518 = arith.truncf %517 : vector<32x32xf32> to vector<32x32xbf16>
    %519 = vector.extract_strided_slice %504 {offsets = [0, 0], sizes = [32, 16], strides = [1, 1]} : vector<32x64xbf16> to vector<32x16xbf16>
    %cst_244 = arith.constant dense<0.000000e+00> : vector<32x16xf32>
    %520 = tpu.matmul %518, %519, %cst_244 {dimension_numbers = #tpu.dot_dimension_numbers<[1], [0], [0], [1], [0, 0, 1, 1], [], []>} : vector<32x32xbf16>, vector<32x16xbf16>, vector<32x16xf32> -> vector<32x16xf32>
    %521 = vector.extract_strided_slice %499 {offsets = [0, 16], sizes = [32, 16], strides = [1, 1]} : vector<32x64xbf16> to vector<32x16xbf16>
    %522 = vector.extract_strided_slice %502 {offsets = [0, 16], sizes = [32, 16], strides = [1, 1]} : vector<32x64xbf16> to vector<32x16xbf16>
    %cst_245 = arith.constant dense<0.000000e+00> : vector<32x32xf32>
    %523 = tpu.matmul %521, %522, %cst_245 {dimension_numbers = #tpu.dot_dimension_numbers<[1], [1], [0], [0], [0, 0, 1, 0], [], []>} : vector<32x16xbf16>, vector<32x16xbf16>, vector<32x32xf32> -> vector<32x32xf32>
    %cst_246 = arith.constant dense<0xFF800000> : vector<32xf32>
    %524 = vector.multi_reduction <maximumf>, %523, %cst_246 [1] : vector<32x32xf32> to vector<32xf32>
    %525 = vector.shape_cast %524 : vector<32xf32> to vector<32x1xf32>
    %526 = vector.broadcast %525 : vector<32x1xf32> to vector<32x32xf32>
    %527 = arith.subf %523, %526 : vector<32x32xf32>
    %528 = math.exp %527 : vector<32x32xf32>
    %cst_247 = arith.constant dense<0.000000e+00> : vector<32xf32>
    %529 = vector.multi_reduction <add>, %528, %cst_247 [1] : vector<32x32xf32> to vector<32xf32>
    %530 = vector.shape_cast %529 : vector<32xf32> to vector<32x1xf32>
    %531 = tpu.reciprocal %530 {approx = true} : vector<32x1xf32> -> vector<32x1xf32>
    %532 = vector.broadcast %531 : vector<32x1xf32> to vector<32x32xf32>
    %533 = arith.mulf %528, %532 : vector<32x32xf32>
    %534 = arith.truncf %533 : vector<32x32xf32> to vector<32x32xbf16>
    %535 = vector.extract_strided_slice %504 {offsets = [0, 16], sizes = [32, 16], strides = [1, 1]} : vector<32x64xbf16> to vector<32x16xbf16>
    %cst_248 = arith.constant dense<0.000000e+00> : vector<32x16xf32>
    %536 = tpu.matmul %534, %535, %cst_248 {dimension_numbers = #tpu.dot_dimension_numbers<[1], [0], [0], [1], [0, 0, 1, 1], [], []>} : vector<32x32xbf16>, vector<32x16xbf16>, vector<32x16xf32> -> vector<32x16xf32>
    %537 = vector.extract_strided_slice %499 {offsets = [0, 32], sizes = [32, 16], strides = [1, 1]} : vector<32x64xbf16> to vector<32x16xbf16>
    %538 = vector.extract_strided_slice %502 {offsets = [0, 32], sizes = [32, 16], strides = [1, 1]} : vector<32x64xbf16> to vector<32x16xbf16>
    %cst_249 = arith.constant dense<0.000000e+00> : vector<32x32xf32>
    %539 = tpu.matmul %537, %538, %cst_249 {dimension_numbers = #tpu.dot_dimension_numbers<[1], [1], [0], [0], [0, 0, 1, 0], [], []>} : vector<32x16xbf16>, vector<32x16xbf16>, vector<32x32xf32> -> vector<32x32xf32>
    %cst_250 = arith.constant dense<0xFF800000> : vector<32xf32>
    %540 = vector.multi_reduction <maximumf>, %539, %cst_250 [1] : vector<32x32xf32> to vector<32xf32>
    %541 = vector.shape_cast %540 : vector<32xf32> to vector<32x1xf32>
    %542 = vector.broadcast %541 : vector<32x1xf32> to vector<32x32xf32>
    %543 = arith.subf %539, %542 : vector<32x32xf32>
    %544 = math.exp %543 : vector<32x32xf32>
    %cst_251 = arith.constant dense<0.000000e+00> : vector<32xf32>
    %545 = vector.multi_reduction <add>, %544, %cst_251 [1] : vector<32x32xf32> to vector<32xf32>
    %546 = vector.shape_cast %545 : vector<32xf32> to vector<32x1xf32>
    %547 = tpu.reciprocal %546 {approx = true} : vector<32x1xf32> -> vector<32x1xf32>
    %548 = vector.broadcast %547 : vector<32x1xf32> to vector<32x32xf32>
    %549 = arith.mulf %544, %548 : vector<32x32xf32>
    %550 = arith.truncf %549 : vector<32x32xf32> to vector<32x32xbf16>
    %551 = vector.extract_strided_slice %504 {offsets = [0, 32], sizes = [32, 16], strides = [1, 1]} : vector<32x64xbf16> to vector<32x16xbf16>
    %cst_252 = arith.constant dense<0.000000e+00> : vector<32x16xf32>
    %552 = tpu.matmul %550, %551, %cst_252 {dimension_numbers = #tpu.dot_dimension_numbers<[1], [0], [0], [1], [0, 0, 1, 1], [], []>} : vector<32x32xbf16>, vector<32x16xbf16>, vector<32x16xf32> -> vector<32x16xf32>
    %553 = vector.extract_strided_slice %499 {offsets = [0, 48], sizes = [32, 16], strides = [1, 1]} : vector<32x64xbf16> to vector<32x16xbf16>
    %554 = vector.extract_strided_slice %502 {offsets = [0, 48], sizes = [32, 16], strides = [1, 1]} : vector<32x64xbf16> to vector<32x16xbf16>
    %cst_253 = arith.constant dense<0.000000e+00> : vector<32x32xf32>
    %555 = tpu.matmul %553, %554, %cst_253 {dimension_numbers = #tpu.dot_dimension_numbers<[1], [1], [0], [0], [0, 0, 1, 0], [], []>} : vector<32x16xbf16>, vector<32x16xbf16>, vector<32x32xf32> -> vector<32x32xf32>
    %cst_254 = arith.constant dense<0xFF800000> : vector<32xf32>
    %556 = vector.multi_reduction <maximumf>, %555, %cst_254 [1] : vector<32x32xf32> to vector<32xf32>
    %557 = vector.shape_cast %556 : vector<32xf32> to vector<32x1xf32>
    %558 = vector.broadcast %557 : vector<32x1xf32> to vector<32x32xf32>
    %559 = arith.subf %555, %558 : vector<32x32xf32>
    %560 = math.exp %559 : vector<32x32xf32>
    %cst_255 = arith.constant dense<0.000000e+00> : vector<32xf32>
    %561 = vector.multi_reduction <add>, %560, %cst_255 [1] : vector<32x32xf32> to vector<32xf32>
    %562 = vector.shape_cast %561 : vector<32xf32> to vector<32x1xf32>
    %563 = tpu.reciprocal %562 {approx = true} : vector<32x1xf32> -> vector<32x1xf32>
    %564 = vector.broadcast %563 : vector<32x1xf32> to vector<32x32xf32>
    %565 = arith.mulf %560, %564 : vector<32x32xf32>
    %566 = arith.truncf %565 : vector<32x32xf32> to vector<32x32xbf16>
    %567 = vector.extract_strided_slice %504 {offsets = [0, 48], sizes = [32, 16], strides = [1, 1]} : vector<32x64xbf16> to vector<32x16xbf16>
    %cst_256 = arith.constant dense<0.000000e+00> : vector<32x16xf32>
    %568 = tpu.matmul %566, %567, %cst_256 {dimension_numbers = #tpu.dot_dimension_numbers<[1], [0], [0], [1], [0, 0, 1, 1], [], []>} : vector<32x32xbf16>, vector<32x16xbf16>, vector<32x16xf32> -> vector<32x16xf32>
    %569 = tpu.concatenate %520, %536, %552, %568 in 1 : vector<32x16xf32>, vector<32x16xf32>, vector<32x16xf32>, vector<32x16xf32> -> vector<32x64xf32>
    %570 = arith.truncf %569 : vector<32x64xf32> to vector<32x64xbf16>
    %cst_257 = arith.constant dense<0.000000e+00> : vector<32x64xf32>
    %571 = tpu.matmul %570, %495, %cst_257 {dimension_numbers = #tpu.dot_dimension_numbers<[1], [0], [0], [1], [0, 0, 1, 1], [], []>} : vector<32x64xbf16>, vector<64x64xbf16>, vector<32x64xf32> -> vector<32x64xf32>
    %572 = vector.broadcast %497 : vector<1x64xf32> to vector<32x64xf32>
    %573 = arith.addf %571, %572 : vector<32x64xf32>
    %574 = arith.addf %573, %462 : vector<32x64xf32>
    %c1_258 = arith.constant 1 : index
    %c0_259 = arith.constant 0 : index
    %c0_260 = arith.constant 0 : index
    %575 = vector.load %arg23[%c1_258, %c0_259, %c0_260] : memref<2x1x64xf32, #tpu.memory_space<vmem>>, vector<1x1x64xf32>
    %576 = vector.shape_cast %575 : vector<1x1x64xf32> to vector<1x64xf32>
    %c1_261 = arith.constant 1 : index
    %c0_262 = arith.constant 0 : index
    %c0_263 = arith.constant 0 : index
    %577 = vector.load %arg24[%c1_261, %c0_262, %c0_263] : memref<2x1x64xf32, #tpu.memory_space<vmem>>, vector<1x1x64xf32>
    %578 = vector.shape_cast %577 : vector<1x1x64xf32> to vector<1x64xf32>
    %c1_264 = arith.constant 1 : index
    %c0_265 = arith.constant 0 : index
    %c0_266 = arith.constant 0 : index
    %579 = vector.load %arg25[%c1_264, %c0_265, %c0_266] : memref<2x64x512xbf16, #tpu.memory_space<vmem>>, vector<1x64x512xbf16>
    %580 = vector.shape_cast %579 : vector<1x64x512xbf16> to vector<64x512xbf16>
    %c1_267 = arith.constant 1 : index
    %c0_268 = arith.constant 0 : index
    %c0_269 = arith.constant 0 : index
    %581 = vector.load %arg26[%c1_267, %c0_268, %c0_269] : memref<2x1x512xf32, #tpu.memory_space<vmem>>, vector<1x1x512xf32>
    %582 = vector.shape_cast %581 : vector<1x1x512xf32> to vector<1x512xf32>
    %c1_270 = arith.constant 1 : index
    %c0_271 = arith.constant 0 : index
    %c0_272 = arith.constant 0 : index
    %583 = vector.load %arg27[%c1_270, %c0_271, %c0_272] : memref<2x256x64xbf16, #tpu.memory_space<vmem>>, vector<1x256x64xbf16>
    %584 = vector.shape_cast %583 : vector<1x256x64xbf16> to vector<256x64xbf16>
    %c1_273 = arith.constant 1 : index
    %c0_274 = arith.constant 0 : index
    %c0_275 = arith.constant 0 : index
    %585 = vector.load %arg28[%c1_273, %c0_274, %c0_275] : memref<2x1x64xf32, #tpu.memory_space<vmem>>, vector<1x1x64xf32>
    %586 = vector.shape_cast %585 : vector<1x1x64xf32> to vector<1x64xf32>
    %cst_276 = arith.constant dense<0.000000e+00> : vector<32xf32>
    %587 = vector.multi_reduction <add>, %574, %cst_276 [1] : vector<32x64xf32> to vector<32xf32>
    %588 = vector.shape_cast %587 : vector<32xf32> to vector<32x1xf32>
    %cst_277 = arith.constant 6.400000e+01 : f32
    %589 = vector.broadcast %cst_277 : f32 to vector<32x1xf32>
    %590 = arith.divf %588, %589 : vector<32x1xf32>
    %591 = vector.broadcast %590 : vector<32x1xf32> to vector<32x64xf32>
    %592 = arith.subf %574, %591 : vector<32x64xf32>
    %593 = arith.mulf %592, %592 : vector<32x64xf32>
    %cst_278 = arith.constant dense<0.000000e+00> : vector<32xf32>
    %594 = vector.multi_reduction <add>, %593, %cst_278 [1] : vector<32x64xf32> to vector<32xf32>
    %595 = vector.shape_cast %594 : vector<32xf32> to vector<32x1xf32>
    %cst_279 = arith.constant 6.400000e+01 : f32
    %596 = vector.broadcast %cst_279 : f32 to vector<32x1xf32>
    %597 = arith.divf %595, %596 : vector<32x1xf32>
    %598 = vector.broadcast %590 : vector<32x1xf32> to vector<32x64xf32>
    %599 = arith.subf %574, %598 : vector<32x64xf32>
    %cst_280 = arith.constant 9.99999974E-6 : f32
    %600 = vector.broadcast %cst_280 : f32 to vector<32x1xf32>
    %601 = arith.addf %597, %600 : vector<32x1xf32>
    %602 = math.rsqrt %601 : vector<32x1xf32>
    %603 = vector.broadcast %602 : vector<32x1xf32> to vector<32x64xf32>
    %604 = arith.mulf %599, %603 : vector<32x64xf32>
    %605 = vector.broadcast %576 : vector<1x64xf32> to vector<32x64xf32>
    %606 = arith.mulf %604, %605 : vector<32x64xf32>
    %607 = vector.broadcast %578 : vector<1x64xf32> to vector<32x64xf32>
    %608 = arith.addf %606, %607 : vector<32x64xf32>
    %609 = arith.truncf %608 : vector<32x64xf32> to vector<32x64xbf16>
    %cst_281 = arith.constant dense<0.000000e+00> : vector<32x512xf32>
    %610 = tpu.matmul %609, %580, %cst_281 {dimension_numbers = #tpu.dot_dimension_numbers<[1], [0], [0], [1], [0, 0, 1, 1], [], []>} : vector<32x64xbf16>, vector<64x512xbf16>, vector<32x512xf32> -> vector<32x512xf32>
    %611 = vector.broadcast %582 : vector<1x512xf32> to vector<32x512xf32>
    %612 = arith.addf %610, %611 : vector<32x512xf32>
    %613 = vector.extract_strided_slice %612 {offsets = [0, 0], sizes = [32, 256], strides = [1, 1]} : vector<32x512xf32> to vector<32x256xf32>
    %614 = vector.extract_strided_slice %612 {offsets = [0, 256], sizes = [32, 256], strides = [1, 1]} : vector<32x512xf32> to vector<32x256xf32>
    %cst_282 = arith.constant 5.000000e-01 : f32
    %615 = vector.broadcast %cst_282 : f32 to vector<32x256xf32>
    %616 = arith.mulf %615, %614 : vector<32x256xf32>
    %cst_283 = arith.constant 2.000000e+00 : f32
    %617 = math.sqrt %cst_283 : f32
    %cst_284 = arith.constant 1.000000e+00 : f32
    %618 = arith.divf %cst_284, %617 : f32
    %619 = vector.broadcast %618 : f32 to vector<32x256xf32>
    %620 = arith.mulf %614, %619 : vector<32x256xf32>
    %621 = math.erf %620 : vector<32x256xf32>
    %cst_285 = arith.constant 1.000000e+00 : f32
    %622 = vector.broadcast %cst_285 : f32 to vector<32x256xf32>
    %623 = arith.addf %622, %621 : vector<32x256xf32>
    %624 = arith.mulf %616, %623 : vector<32x256xf32>
    %625 = arith.mulf %613, %624 : vector<32x256xf32>
    %626 = arith.truncf %625 : vector<32x256xf32> to vector<32x256xbf16>
    %cst_286 = arith.constant dense<0.000000e+00> : vector<32x64xf32>
    %627 = tpu.matmul %626, %584, %cst_286 {dimension_numbers = #tpu.dot_dimension_numbers<[1], [0], [0], [1], [0, 0, 1, 1], [], []>} : vector<32x256xbf16>, vector<256x64xbf16>, vector<32x64xf32> -> vector<32x64xf32>
    %628 = vector.broadcast %586 : vector<1x64xf32> to vector<32x64xf32>
    %629 = arith.addf %627, %628 : vector<32x64xf32>
    %630 = arith.addf %629, %574 : vector<32x64xf32>
    %c0_287 = arith.constant 0 : index
    %c0_288 = arith.constant 0 : index
    %631 = vector.load %arg29[%c0_287, %c0_288] : memref<1x64xf32, #tpu.memory_space<vmem>>, vector<1x64xf32>
    %c0_289 = arith.constant 0 : index
    %c0_290 = arith.constant 0 : index
    %632 = vector.load %arg30[%c0_289, %c0_290] : memref<1x64xf32, #tpu.memory_space<vmem>>, vector<1x64xf32>
    %cst_291 = arith.constant dense<0.000000e+00> : vector<32xf32>
    %633 = vector.multi_reduction <add>, %630, %cst_291 [1] : vector<32x64xf32> to vector<32xf32>
    %634 = vector.shape_cast %633 : vector<32xf32> to vector<32x1xf32>
    %cst_292 = arith.constant 6.400000e+01 : f32
    %635 = vector.broadcast %cst_292 : f32 to vector<32x1xf32>
    %636 = arith.divf %634, %635 : vector<32x1xf32>
    %637 = vector.broadcast %636 : vector<32x1xf32> to vector<32x64xf32>
    %638 = arith.subf %630, %637 : vector<32x64xf32>
    %639 = arith.mulf %638, %638 : vector<32x64xf32>
    %cst_293 = arith.constant dense<0.000000e+00> : vector<32xf32>
    %640 = vector.multi_reduction <add>, %639, %cst_293 [1] : vector<32x64xf32> to vector<32xf32>
    %641 = vector.shape_cast %640 : vector<32xf32> to vector<32x1xf32>
    %cst_294 = arith.constant 6.400000e+01 : f32
    %642 = vector.broadcast %cst_294 : f32 to vector<32x1xf32>
    %643 = arith.divf %641, %642 : vector<32x1xf32>
    %644 = vector.broadcast %636 : vector<32x1xf32> to vector<32x64xf32>
    %645 = arith.subf %630, %644 : vector<32x64xf32>
    %cst_295 = arith.constant 9.99999974E-6 : f32
    %646 = vector.broadcast %cst_295 : f32 to vector<32x1xf32>
    %647 = arith.addf %643, %646 : vector<32x1xf32>
    %648 = math.rsqrt %647 : vector<32x1xf32>
    %649 = vector.broadcast %648 : vector<32x1xf32> to vector<32x64xf32>
    %650 = arith.mulf %645, %649 : vector<32x64xf32>
    %651 = vector.broadcast %631 : vector<1x64xf32> to vector<32x64xf32>
    %652 = arith.mulf %650, %651 : vector<32x64xf32>
    %653 = vector.broadcast %632 : vector<1x64xf32> to vector<32x64xf32>
    %654 = arith.addf %652, %653 : vector<32x64xf32>
    %655 = arith.truncf %654 : vector<32x64xf32> to vector<32x64xbf16>
    %c0_296 = arith.constant 0 : index
    %c0_297 = arith.constant 0 : index
    %656 = vector.load %arg31[%c0_296, %c0_297] : memref<64x128xbf16, #tpu.memory_space<vmem>>, vector<64x128xbf16>
    %cst_298 = arith.constant dense<0.000000e+00> : vector<32x128xf32>
    %657 = tpu.matmul %655, %656, %cst_298 {dimension_numbers = #tpu.dot_dimension_numbers<[1], [0], [0], [1], [0, 0, 1, 1], [], []>} : vector<32x64xbf16>, vector<64x128xbf16>, vector<32x128xf32> -> vector<32x128xf32>
    %c0_299 = arith.constant 0 : index
    %c0_300 = arith.constant 0 : index
    %658 = vector.load %arg32[%c0_299, %c0_300] : memref<1x128xf32, #tpu.memory_space<vmem>>, vector<1x128xf32>
    %659 = vector.broadcast %658 : vector<1x128xf32> to vector<32x128xf32>
    %660 = arith.addf %657, %659 : vector<32x128xf32>
    %c0_301 = arith.constant 0 : index
    %c0_302 = arith.constant 0 : index
    %c0_303 = arith.constant 0 : index
    %661 = vector.load %arg33[%c0_301, %c0_302, %c0_303] : memref<1x32x128xf32, #tpu.memory_space<vmem>>, vector<1x32x128xf32>
    %662 = vector.shape_cast %661 : vector<1x32x128xf32> to vector<32x128xf32>
    %663 = vector.shape_cast %660 : vector<32x128xf32> to vector<1x32x128xf32>
    tpu.vector_store %arg33[%c0_301, %c0_302, %c0_303], %663 {strides = array<i32>} : memref<1x32x128xf32, #tpu.memory_space<vmem>>, vector<1x32x128xf32>,
    return
  }
  func.func @transform_0(%arg0: i32) -> (i32, i32, i32) {
    %c0_i32 = arith.constant 0 : i32
    %c0_i32_0 = arith.constant 0 : i32
    %c0_i32_1 = arith.constant 0 : i32
    return %arg0, %c0_i32, %c0_i32_0 : i32, i32, i32
  }
  func.func @transform_1(%arg0: i32) -> (i32, i32) {
    %c0_i32 = arith.constant 0 : i32
    %c0_i32_0 = arith.constant 0 : i32
    %c0_i32_1 = arith.constant 0 : i32
    return %c0_i32, %c0_i32_0 : i32, i32
  }
  func.func @transform_2(%arg0: i32) -> (i32, i32, i32) {
    %c0_i32 = arith.constant 0 : i32
    %c0_i32_0 = arith.constant 0 : i32
    %c0_i32_1 = arith.constant 0 : i32
    %c0_i32_2 = arith.constant 0 : i32
    return %c0_i32, %c0_i32_0, %c0_i32_1 : i32, i32, i32
  }
  func.func @transform_3(%arg0: i32) -> (i32, i32, i32) {
    %c0_i32 = arith.constant 0 : i32
    %c0_i32_0 = arith.constant 0 : i32
    %c0_i32_1 = arith.constant 0 : i32
    %c0_i32_2 = arith.constant 0 : i32
    return %c0_i32, %c0_i32_0, %c0_i32_1 : i32, i32, i32
  }
  func.func @transform_4(%arg0: i32) -> (i32, i32, i32) {
    %c0_i32 = arith.constant 0 : i32
    %c0_i32_0 = arith.constant 0 : i32
    %c0_i32_1 = arith.constant 0 : i32
    %c0_i32_2 = arith.constant 0 : i32
    return %c0_i32, %c0_i32_0, %c0_i32_1 : i32, i32, i32
  }
  func.func @transform_5(%arg0: i32) -> (i32, i32, i32) {
    %c0_i32 = arith.constant 0 : i32
    %c0_i32_0 = arith.constant 0 : i32
    %c0_i32_1 = arith.constant 0 : i32
    %c0_i32_2 = arith.constant 0 : i32
    return %c0_i32, %c0_i32_0, %c0_i32_1 : i32, i32, i32
  }
  func.func @transform_6(%arg0: i32) -> (i32, i32, i32) {
    %c0_i32 = arith.constant 0 : i32
    %c0_i32_0 = arith.constant 0 : i32
    %c0_i32_1 = arith.constant 0 : i32
    %c0_i32_2 = arith.constant 0 : i32
    return %c0_i32, %c0_i32_0, %c0_i32_1 : i32, i32, i32
  }
  func.func @transform_7(%arg0: i32) -> (i32, i32, i32) {
    %c0_i32 = arith.constant 0 : i32
    %c0_i32_0 = arith.constant 0 : i32
    %c0_i32_1 = arith.constant 0 : i32
    %c0_i32_2 = arith.constant 0 : i32
    return %c0_i32, %c0_i32_0, %c0_i32_1 : i32, i32, i32
  }
  func.func @transform_8(%arg0: i32) -> (i32, i32, i32) {
    %c0_i32 = arith.constant 0 : i32
    %c0_i32_0 = arith.constant 0 : i32
    %c0_i32_1 = arith.constant 0 : i32
    %c0_i32_2 = arith.constant 0 : i32
    return %c0_i32, %c0_i32_0, %c0_i32_1 : i32, i32, i32
  }
  func.func @transform_9(%arg0: i32) -> (i32, i32, i32) {
    %c0_i32 = arith.constant 0 : i32
    %c0_i32_0 = arith.constant 0 : i32
    %c0_i32_1 = arith.constant 0 : i32
    %c0_i32_2 = arith.constant 0 : i32
    return %c0_i32, %c0_i32_0, %c0_i32_1 : i32, i32, i32
  }
  func.func @transform_10(%arg0: i32) -> (i32, i32, i32) {
    %c0_i32 = arith.constant 0 : i32
    %c0_i32_0 = arith.constant 0 : i32
    %c0_i32_1 = arith.constant 0 : i32
    %c0_i32_2 = arith.constant 0 : i32
    return %c0_i32, %c0_i32_0, %c0_i32_1 : i32, i32, i32
  }
  func.func @transform_11(%arg0: i32) -> (i32, i32, i32) {
    %c0_i32 = arith.constant 0 : i32
    %c0_i32_0 = arith.constant 0 : i32
    %c0_i32_1 = arith.constant 0 : i32
    %c0_i32_2 = arith.constant 0 : i32
    return %c0_i32, %c0_i32_0, %c0_i32_1 : i32, i32, i32
  }
  func.func @transform_12(%arg0: i32) -> (i32, i32, i32) {
    %c0_i32 = arith.constant 0 : i32
    %c0_i32_0 = arith.constant 0 : i32
    %c0_i32_1 = arith.constant 0 : i32
    %c0_i32_2 = arith.constant 0 : i32
    return %c0_i32, %c0_i32_0, %c0_i32_1 : i32, i32, i32
  }
  func.func @transform_13(%arg0: i32) -> (i32, i32, i32) {
    %c0_i32 = arith.constant 0 : i32
    %c0_i32_0 = arith.constant 0 : i32
    %c0_i32_1 = arith.constant 0 : i32
    %c0_i32_2 = arith.constant 0 : i32
    return %c0_i32, %c0_i32_0, %c0_i32_1 : i32, i32, i32
  }
  func.func @transform_14(%arg0: i32) -> (i32, i32, i32) {
    %c0_i32 = arith.constant 0 : i32
    %c0_i32_0 = arith.constant 0 : i32
    %c0_i32_1 = arith.constant 0 : i32
    %c0_i32_2 = arith.constant 0 : i32
    return %c0_i32, %c0_i32_0, %c0_i32_1 : i32, i32, i32
  }
  func.func @transform_15(%arg0: i32) -> (i32, i32, i32) {
    %c0_i32 = arith.constant 0 : i32
    %c0_i32_0 = arith.constant 0 : i32
    %c0_i32_1 = arith.constant 0 : i32
    %c0_i32_2 = arith.constant 0 : i32
    return %c0_i32, %c0_i32_0, %c0_i32_1 : i32, i32, i32
  }
  func.func @transform_16(%arg0: i32) -> (i32, i32, i32) {
    %c0_i32 = arith.constant 0 : i32
    %c0_i32_0 = arith.constant 0 : i32
    %c0_i32_1 = arith.constant 0 : i32
    %c0_i32_2 = arith.constant 0 : i32
    return %c0_i32, %c0_i32_0, %c0_i32_1 : i32, i32, i32
  }
  func.func @transform_17(%arg0: i32) -> (i32, i32, i32) {
    %c0_i32 = arith.constant 0 : i32
    %c0_i32_0 = arith.constant 0 : i32
    %c0_i32_1 = arith.constant 0 : i32
    %c0_i32_2 = arith.constant 0 : i32
    return %c0_i32, %c0_i32_0, %c0_i32_1 : i32, i32, i32
  }
  func.func @transform_18(%arg0: i32) -> (i32, i32, i32) {
    %c0_i32 = arith.constant 0 : i32
    %c0_i32_0 = arith.constant 0 : i32
    %c0_i32_1 = arith.constant 0 : i32
    %c0_i32_2 = arith.constant 0 : i32
    return %c0_i32, %c0_i32_0, %c0_i32_1 : i32, i32, i32
  }
  func.func @transform_19(%arg0: i32) -> (i32, i32, i32) {
    %c0_i32 = arith.constant 0 : i32
    %c0_i32_0 = arith.constant 0 : i32
    %c0_i32_1 = arith.constant 0 : i32
    %c0_i32_2 = arith.constant 0 : i32
    return %c0_i32, %c0_i32_0, %c0_i32_1 : i32, i32, i32
  }
  func.func @transform_20(%arg0: i32) -> (i32, i32, i32) {
    %c0_i32 = arith.constant 0 : i32
    %c0_i32_0 = arith.constant 0 : i32
    %c0_i32_1 = arith.constant 0 : i32
    %c0_i32_2 = arith.constant 0 : i32
    return %c0_i32, %c0_i32_0, %c0_i32_1 : i32, i32, i32
  }
  func.func @transform_21(%arg0: i32) -> (i32, i32, i32) {
    %c0_i32 = arith.constant 0 : i32
    %c0_i32_0 = arith.constant 0 : i32
    %c0_i32_1 = arith.constant 0 : i32
    %c0_i32_2 = arith.constant 0 : i32
    return %c0_i32, %c0_i32_0, %c0_i32_1 : i32, i32, i32
  }
  func.func @transform_22(%arg0: i32) -> (i32, i32, i32) {
    %c0_i32 = arith.constant 0 : i32
    %c0_i32_0 = arith.constant 0 : i32
    %c0_i32_1 = arith.constant 0 : i32
    %c0_i32_2 = arith.constant 0 : i32
    return %c0_i32, %c0_i32_0, %c0_i32_1 : i32, i32, i32
  }
  func.func @transform_23(%arg0: i32) -> (i32, i32, i32) {
    %c0_i32 = arith.constant 0 : i32
    %c0_i32_0 = arith.constant 0 : i32
    %c0_i32_1 = arith.constant 0 : i32
    %c0_i32_2 = arith.constant 0 : i32
    return %c0_i32, %c0_i32_0, %c0_i32_1 : i32, i32, i32
  }
  func.func @transform_24(%arg0: i32) -> (i32, i32, i32) {
    %c0_i32 = arith.constant 0 : i32
    %c0_i32_0 = arith.constant 0 : i32
    %c0_i32_1 = arith.constant 0 : i32
    %c0_i32_2 = arith.constant 0 : i32
    return %c0_i32, %c0_i32_0, %c0_i32_1 : i32, i32, i32
  }
  func.func @transform_25(%arg0: i32) -> (i32, i32, i32) {
    %c0_i32 = arith.constant 0 : i32
    %c0_i32_0 = arith.constant 0 : i32
    %c0_i32_1 = arith.constant 0 : i32
    %c0_i32_2 = arith.constant 0 : i32
    return %c0_i32, %c0_i32_0, %c0_i32_1 : i32, i32, i32
  }
  func.func @transform_26(%arg0: i32) -> (i32, i32, i32) {
    %c0_i32 = arith.constant 0 : i32
    %c0_i32_0 = arith.constant 0 : i32
    %c0_i32_1 = arith.constant 0 : i32
    %c0_i32_2 = arith.constant 0 : i32
    return %c0_i32, %c0_i32_0, %c0_i32_1 : i32, i32, i32
  }
  func.func @transform_27(%arg0: i32) -> (i32, i32, i32) {
    %c0_i32 = arith.constant 0 : i32
    %c0_i32_0 = arith.constant 0 : i32
    %c0_i32_1 = arith.constant 0 : i32
    %c0_i32_2 = arith.constant 0 : i32
    return %c0_i32, %c0_i32_0, %c0_i32_1 : i32, i32, i32
  }
  func.func @transform_28(%arg0: i32) -> (i32, i32) {
    %c0_i32 = arith.constant 0 : i32
    %c0_i32_0 = arith.constant 0 : i32
    %c0_i32_1 = arith.constant 0 : i32
    return %c0_i32, %c0_i32_0 : i32, i32
  }
  func.func @transform_29(%arg0: i32) -> (i32, i32) {
    %c0_i32 = arith.constant 0 : i32
    %c0_i32_0 = arith.constant 0 : i32
    %c0_i32_1 = arith.constant 0 : i32
    return %c0_i32, %c0_i32_0 : i32, i32
  }
  func.func @transform_30(%arg0: i32) -> (i32, i32) {
    %c0_i32 = arith.constant 0 : i32
    %c0_i32_0 = arith.constant 0 : i32
    %c0_i32_1 = arith.constant 0 : i32
    return %c0_i32, %c0_i32_0 : i32, i32
  }
  func.func @transform_31(%arg0: i32) -> (i32, i32) {
    %c0_i32 = arith.constant 0 : i32
    %c0_i32_0 = arith.constant 0 : i32
    %c0_i32_1 = arith.constant 0 : i32
    return %c0_i32, %c0_i32_0 : i32, i32
  }
  func.func @transform_32(%arg0: i32) -> (i32, i32, i32) {
    %c0_i32 = arith.constant 0 : i32
    %c0_i32_0 = arith.constant 0 : i32
    %c0_i32_1 = arith.constant 0 : i32
    return %arg0, %c0_i32, %c0_i32_0 : i32, i32, i32
  }
}

</mosaic_0001>

<llo_original>
// kernel: perceiver_forward.1
$region0: #{perceiver_forward.1}
  #allocation0 [shape = 'u32[]', space=smem, size = 0x4, offset = 0x4, fixed_abs, tag = 'smem constant byte address 0x4 - core index']
  #allocation1 [shape = 'u32[72,128]{1,0:T(1,128)}', space=vmem, size = 0x9000, scoped, tag = 'internal scratch']
  %s0 = inlined_call_operand.smem [shape: u32[33], index: -1, kind: input, shape index: {}]
  %s1 = sld [smem:[%s0]]
  %s2 = scalar_lea.smem %s0, 1
  %s3 = sld [smem:[%s2]]
  %s4 = scalar_lea.smem %s0, 2
  %s5 = sld [smem:[%s4]]
  %s6 = scalar_lea.smem %s0, 3
  %s7 = sld [smem:[%s6]]
  %s8 = scalar_lea.smem %s0, 4
  %s9 = sld [smem:[%s8]]
  %s10 = scalar_lea.smem %s0, 5
  %s11 = sld [smem:[%s10]]
  %s12 = scalar_lea.smem %s0, 6
  %s13 = sld [smem:[%s12]]
  %s14 = scalar_lea.smem %s0, 7
  %s15 = sld [smem:[%s14]]
  %s16 = scalar_lea.smem %s0, 8
  %s17 = sld [smem:[%s16]]
  %s18 = scalar_lea.smem %s0, 9
  %s19 = sld [smem:[%s18]]
  %s20 = scalar_lea.smem %s0, 10
  %s21 = sld [smem:[%s20]]
  %s22 = scalar_lea.smem %s0, 11
  %s23 = sld [smem:[%s22]]
  %s24 = scalar_lea.smem %s0, 12
  %s25 = sld [smem:[%s24]]
  %s26 = scalar_lea.smem %s0, 13
  %s27 = sld [smem:[%s26]]
  %s28 = scalar_lea.smem %s0, 14
  %s29 = sld [smem:[%s28]]
  %s30 = scalar_lea.smem %s0, 15
  %s31 = sld [smem:[%s30]]
  %s32 = scalar_lea.smem %s0, 16
  %s33 = sld [smem:[%s32]]
  %s34 = scalar_lea.smem %s0, 17
  %s35 = sld [smem:[%s34]]
  %s36 = scalar_lea.smem %s0, 18
  %s37 = sld [smem:[%s36]]
  %s38 = scalar_lea.smem %s0, 19
  %s39 = sld [smem:[%s38]]
  %s40 = scalar_lea.smem %s0, 20
  %s41 = sld [smem:[%s40]]
  %s42 = scalar_lea.smem %s0, 21
  %s43 = sld [smem:[%s42]]
  %s44 = scalar_lea.smem %s0, 22
  %s45 = sld [smem:[%s44]]
  %s46 = scalar_lea.smem %s0, 23
  %s47 = sld [smem:[%s46]]
  %s48 = scalar_lea.smem %s0, 24
  %s49 = sld [smem:[%s48]]
  %s50 = scalar_lea.smem %s0, 25
  %s51 = sld [smem:[%s50]]
  %s52 = scalar_lea.smem %s0, 26
  %s53 = sld [smem:[%s52]]
  %s54 = scalar_lea.smem %s0, 27
  %s55 = sld [smem:[%s54]]
  %s56 = scalar_lea.smem %s0, 28
  %s57 = sld [smem:[%s56]]
  %s58 = scalar_lea.smem %s0, 29
  %s59 = sld [smem:[%s58]]
  %s60 = scalar_lea.smem %s0, 30
  %s61 = sld [smem:[%s60]]
  %s62 = scalar_lea.smem %s0, 31
  %s63 = sld [smem:[%s62]]
  %s64 = scalar_lea.smem %s0, 32
  %s65 = sld [smem:[%s64]]
  %s66 = sld [smem:[#allocation0]]
  $region161: #{perceiver_forward.1} parent=0
    _
  %s68 = ssub.s32 1, %s66
  %s69 = scalar_select 0, %s68, %s66
  loop: start=0, step=1, limit=4
  $region2: #{perceiver_forward.1} parent=0 // loop_pre_header
    _
  $region3: #{perceiver_forward.1} parent=0 // loop_header
    %s71 = sphi 0, %s75
    %p72 = scmp.ge.s32.totalorder %s71, 4
    %s81 = sphi 0, %s83
    %s84 = sphi 0, %s81
    %s85 = sphi 0, %s84
    %s101 = sphi 0, %s85
    %s105 = sphi 0, %s105
    %s107 = sphi 0, %s105
    %s108 = sphi 0, %s107
    %s122 = sphi 0, %s108
    %s126 = sphi 0, %s126
    %s128 = sphi 0, %s126
    %s129 = sphi 0, %s128
    %s143 = sphi 0, %s129
    %s147 = sphi 0, %s147
    %s149 = sphi 0, %s147
    %s150 = sphi 0, %s149
    %s164 = sphi 0, %s150
    %s168 = sphi 0, %s168
    %s170 = sphi 0, %s168
    %s171 = sphi 0, %s170
    %s185 = sphi 0, %s171
    %s189 = sphi 0, %s189
    %s191 = sphi 0, %s189
    %s192 = sphi 0, %s191
    %s206 = sphi 0, %s192
    %s210 = sphi 0, %s210
    %s212 = sphi 0, %s210
    %s213 = sphi 0, %s212
    %s227 = sphi 0, %s213
    %s231 = sphi 0, %s231
    %s233 = sphi 0, %s231
    %s234 = sphi 0, %s233
    %s248 = sphi 0, %s234
    %s252 = sphi 0, %s252
    %s254 = sphi 0, %s252
    %s255 = sphi 0, %s254
    %s269 = sphi 0, %s255
    %s273 = sphi 0, %s273
    %s275 = sphi 0, %s273
    %s276 = sphi 0, %s275
    %s290 = sphi 0, %s276
    %s294 = sphi 0, %s294
    %s296 = sphi 0, %s294
    %s297 = sphi 0, %s296
    %s311 = sphi 0, %s297
    %s315 = sphi 0, %s315
    %s317 = sphi 0, %s315
    %s318 = sphi 0, %s317
    %s332 = sphi 0, %s318
    %s336 = sphi 0, %s336
    %s338 = sphi 0, %s336
    %s339 = sphi 0, %s338
    %s353 = sphi 0, %s339
    %s357 = sphi 0, %s357
    %s359 = sphi 0, %s357
    %s360 = sphi 0, %s359
    %s374 = sphi 0, %s360
    %s378 = sphi 0, %s378
    %s380 = sphi 0, %s378
    %s381 = sphi 0, %s380
    %s395 = sphi 0, %s381
    %s399 = sphi 0, %s399
    %s401 = sphi 0, %s399
    %s402 = sphi 0, %s401
    %s416 = sphi 0, %s402
    %s420 = sphi 0, %s420
    %s422 = sphi 0, %s420
    %s423 = sphi 0, %s422
    %s437 = sphi 0, %s423
    %s441 = sphi 0, %s441
    %s443 = sphi 0, %s441
    %s444 = sphi 0, %s443
    %s458 = sphi 0, %s444
    %s462 = sphi 0, %s462
    %s464 = sphi 0, %s462
    %s465 = sphi 0, %s464
    %s479 = sphi 0, %s465
    %s483 = sphi 0, %s483
    %s485 = sphi 0, %s483
    %s486 = sphi 0, %s485
    %s500 = sphi 0, %s486
    %s504 = sphi 0, %s504
    %s506 = sphi 0, %s504
    %s507 = sphi 0, %s506
    %s521 = sphi 0, %s507
    %s525 = sphi 0, %s525
    %s527 = sphi 0, %s525
    %s528 = sphi 0, %s527
    %s542 = sphi 0, %s528
    %s546 = sphi 0, %s546
    %s548 = sphi 0, %s546
    %s549 = sphi 0, %s548
    %s563 = sphi 0, %s549
    %s567 = sphi 0, %s567
    %s569 = sphi 0, %s567
    %s570 = sphi 0, %s569
    %s584 = sphi 0, %s570
    %s588 = sphi 0, %s588
    %s590 = sphi 0, %s588
    %s591 = sphi 0, %s590
    %s605 = sphi 0, %s591
    %s609 = sphi 0, %s609
    %s611 = sphi 0, %s609
    %s612 = sphi 0, %s611
    %s626 = sphi 0, %s612
    %s630 = sphi 0, %s630
    %s632 = sphi 0, %s630
    %s633 = sphi 0, %s632
    %s647 = sphi 0, %s633
    %s651 = sphi 0, %s651
    %s653 = sphi 0, %s651
    %s654 = sphi 0, %s653
    %s668 = sphi 0, %s654
    %s672 = sphi 0, %s672
    %s674 = sphi 0, %s672
    %s675 = sphi 0, %s674
    %s689 = sphi 0, %s675
    %s693 = sphi 0, %s693
    %s695 = sphi 0, %s693
    %s696 = sphi 0, %s695
    %s710 = sphi 0, %s696
    %s714 = sphi 0, %s714
    %s716 = sphi 0, %s714
    %s717 = sphi 0, %s716
    %s731 = sphi 0, %s717
    %s735 = sphi 0, %s735
    %s737 = sphi 0, %s735
    %s738 = sphi 0, %s737
    %s752 = sphi 0, %s738
    %s758 = sphi 0, %s760
    %s761 = sphi 0, %s758
    %s762 = sphi 0, %s761
    %s778 = sphi 0, %s762
  $region4: #{perceiver_forward.1} parent=0 // loop_header_branch
    %74 = sbr.rel (%p72) target = $region8
  $region5: #{perceiver_forward.1} parent=0 // loop_body
    %s76 = ssub.s32 %s71, 1
    %s77 = ssub.s32 %s71, 2
    %s78 = sadd.s32 %s71, 1
    %s79 = ssub.s32 %s71, %s78
    %p80 = scmp.eq.s32.totalorder %s79, 0
    %s82 = sadd.s32 %s81, 1
    %s83 = scalar_select %p80, %s81, %s82
    %p86 = pneg %p80
    %p87 = scmp.eq.s32.totalorder %s71, 1
    %p88 = por %p86, %p87
    %p89 = scmp.ne.s32.totalorder %s81, %s84
    %p90 = scmp.eq.s32.totalorder %s71, 0
    %p91 = por %p89, %p90
    %p92 = scmp.ne.s32.totalorder %s81, %s84
    %p93 = scmp.eq.s32.totalorder %s76, 1
    %p94 = por %p92, %p93
    %p95 = scmp.ne.s32.totalorder %s84, %s85
    %p96 = scmp.eq.s32.totalorder %s76, 0
    %p97 = por %p95, %p96
    %p98 = scmp.ne.s32.totalorder %s84, %s85
    %p99 = scmp.eq.s32.totalorder %s77, 1
    %p100 = por %p98, %p99
    %p102 = scmp.ne.s32.totalorder %s85, %s101
    %p103 = scmp.eq.s32.totalorder %s77, 0
    %p104 = por %p102, %p103
    %s106 = sadd.s32 %s105, 1
    %p109 = scmp.eq.s32.totalorder %s71, 1
    %p110 = scmp.ne.s32.totalorder %s105, %s107
    %p111 = scmp.eq.s32.totalorder %s71, 0
    %p112 = por %p110, %p111
    %p113 = scmp.ne.s32.totalorder %s105, %s107
    %p114 = scmp.eq.s32.totalorder %s76, 1
    %p115 = por %p113, %p114
    %p116 = scmp.ne.s32.totalorder %s107, %s108
    %p117 = scmp.eq.s32.totalorder %s76, 0
    %p118 = por %p116, %p117
    %p119 = scmp.ne.s32.totalorder %s107, %s108
    %p120 = scmp.eq.s32.totalorder %s77, 1
    %p121 = por %p119, %p120
    %p123 = scmp.ne.s32.totalorder %s108, %s122
    %p124 = scmp.eq.s32.totalorder %s77, 0
    %p125 = por %p123, %p124
    %s127 = sadd.s32 %s126, 1
    %p130 = scmp.eq.s32.totalorder %s71, 1
    %p131 = scmp.ne.s32.totalorder %s126, %s128
    %p132 = scmp.eq.s32.totalorder %s71, 0
    %p133 = por %p131, %p132
    %p134 = scmp.ne.s32.totalorder %s126, %s128
    %p135 = scmp.eq.s32.totalorder %s76, 1
    %p136 = por %p134, %p135
    %p137 = scmp.ne.s32.totalorder %s128, %s129
    %p138 = scmp.eq.s32.totalorder %s76, 0
    %p139 = por %p137, %p138
    %p140 = scmp.ne.s32.totalorder %s128, %s129
    %p141 = scmp.eq.s32.totalorder %s77, 1
    %p142 = por %p140, %p141
    %p144 = scmp.ne.s32.totalorder %s129, %s143
    %p145 = scmp.eq.s32.totalorder %s77, 0
    %p146 = por %p144, %p145
    %s148 = sadd.s32 %s147, 1
    %p151 = scmp.eq.s32.totalorder %s71, 1
    %p152 = scmp.ne.s32.totalorder %s147, %s149
    %p153 = scmp.eq.s32.totalorder %s71, 0
    %p154 = por %p152, %p153
    %p155 = scmp.ne.s32.totalorder %s147, %s149
    %p156 = scmp.eq.s32.totalorder %s76, 1
    %p157 = por %p155, %p156
    %p158 = scmp.ne.s32.totalorder %s149, %s150
    %p159 = scmp.eq.s32.totalorder %s76, 0
    %p160 = por %p158, %p159
    %p161 = scmp.ne.s32.totalorder %s149, %s150
    %p162 = scmp.eq.s32.totalorder %s77, 1
    %p163 = por %p161, %p162
    %p165 = scmp.ne.s32.totalorder %s150, %s164
    %p166 = scmp.eq.s32.totalorder %s77, 0
    %p167 = por %p165, %p166
    %s169 = sadd.s32 %s168, 1
    %p172 = scmp.eq.s32.totalorder %s71, 1
    %p173 = scmp.ne.s32.totalorder %s168, %s170
    %p174 = scmp.eq.s32.totalorder %s71, 0
    %p175 = por %p173, %p174
    %p176 = scmp.ne.s32.totalorder %s168, %s170
    %p177 = scmp.eq.s32.totalorder %s76, 1
    %p178 = por %p176, %p177
    %p179 = scmp.ne.s32.totalorder %s170, %s171
    %p180 = scmp.eq.s32.totalorder %s76, 0
    %p181 = por %p179, %p180
    %p182 = scmp.ne.s32.totalorder %s170, %s171
    %p183 = scmp.eq.s32.totalorder %s77, 1
    %p184 = por %p182, %p183
    %p186 = scmp.ne.s32.totalorder %s171, %s185
    %p187 = scmp.eq.s32.totalorder %s77, 0
    %p188 = por %p186, %p187
    %s190 = sadd.s32 %s189, 1
    %p193 = scmp.eq.s32.totalorder %s71, 1
    %p194 = scmp.ne.s32.totalorder %s189, %s191
    %p195 = scmp.eq.s32.totalorder %s71, 0
    %p196 = por %p194, %p195
    %p197 = scmp.ne.s32.totalorder %s189, %s191
    %p198 = scmp.eq.s32.totalorder %s76, 1
    %p199 = por %p197, %p198
    %p200 = scmp.ne.s32.totalorder %s191, %s192
    %p201 = scmp.eq.s32.totalorder %s76, 0
    %p202 = por %p200, %p201
    %p203 = scmp.ne.s32.totalorder %s191, %s192
    %p204 = scmp.eq.s32.totalorder %s77, 1
    %p205 = por %p203, %p204
    %p207 = scmp.ne.s32.totalorder %s192, %s206
    %p208 = scmp.eq.s32.totalorder %s77, 0
    %p209 = por %p207, %p208
    %s211 = sadd.s32 %s210, 1
    %p214 = scmp.eq.s32.totalorder %s71, 1
    %p215 = scmp.ne.s32.totalorder %s210, %s212
    %p216 = scmp.eq.s32.totalorder %s71, 0
    %p217 = por %p215, %p216
    %p218 = scmp.ne.s32.totalorder %s210, %s212
    %p219 = scmp.eq.s32.totalorder %s76, 1
    %p220 = por %p218, %p219
    %p221 = scmp.ne.s32.totalorder %s212, %s213
    %p222 = scmp.eq.s32.totalorder %s76, 0
    %p223 = por %p221, %p222
    %p224 = scmp.ne.s32.totalorder %s212, %s213
    %p225 = scmp.eq.s32.totalorder %s77, 1
    %p226 = por %p224, %p225
    %p228 = scmp.ne.s32.totalorder %s213, %s227
    %p229 = scmp.eq.s32.totalorder %s77, 0
    %p230 = por %p228, %p229
    %s232 = sadd.s32 %s231, 1
    %p235 = scmp.eq.s32.totalorder %s71, 1
    %p236 = scmp.ne.s32.totalorder %s231, %s233
    %p237 = scmp.eq.s32.totalorder %s71, 0
    %p238 = por %p236, %p237
    %p239 = scmp.ne.s32.totalorder %s231, %s233
    %p240 = scmp.eq.s32.totalorder %s76, 1
    %p241 = por %p239, %p240
    %p242 = scmp.ne.s32.totalorder %s233, %s234
    %p243 = scmp.eq.s32.totalorder %s76, 0
    %p244 = por %p242, %p243
    %p245 = scmp.ne.s32.totalorder %s233, %s234
    %p246 = scmp.eq.s32.totalorder %s77, 1
    %p247 = por %p245, %p246
    %p249 = scmp.ne.s32.totalorder %s234, %s248
    %p250 = scmp.eq.s32.totalorder %s77, 0
    %p251 = por %p249, %p250
    %s253 = sadd.s32 %s252, 1
    %p256 = scmp.eq.s32.totalorder %s71, 1
    %p257 = scmp.ne.s32.totalorder %s252, %s254
    %p258 = scmp.eq.s32.totalorder %s71, 0
    %p259 = por %p257, %p258
    %p260 = scmp.ne.s32.totalorder %s252, %s254
    %p261 = scmp.eq.s32.totalorder %s76, 1
    %p262 = por %p260, %p261
    %p263 = scmp.ne.s32.totalorder %s254, %s255
    %p264 = scmp.eq.s32.totalorder %s76, 0
    %p265 = por %p263, %p264
    %p266 = scmp.ne.s32.totalorder %s254, %s255
    %p267 = scmp.eq.s32.totalorder %s77, 1
    %p268 = por %p266, %p267
    %p270 = scmp.ne.s32.totalorder %s255, %s269
    %p271 = scmp.eq.s32.totalorder %s77, 0
    %p272 = por %p270, %p271
    %s274 = sadd.s32 %s273, 1
    %p277 = scmp.eq.s32.totalorder %s71, 1
    %p278 = scmp.ne.s32.totalorder %s273, %s275
    %p279 = scmp.eq.s32.totalorder %s71, 0
    %p280 = por %p278, %p279
    %p281 = scmp.ne.s32.totalorder %s273, %s275
    %p282 = scmp.eq.s32.totalorder %s76, 1
    %p283 = por %p281, %p282
    %p284 = scmp.ne.s32.totalorder %s275, %s276
    %p285 = scmp.eq.s32.totalorder %s76, 0
    %p286 = por %p284, %p285
    %p287 = scmp.ne.s32.totalorder %s275, %s276
    %p288 = scmp.eq.s32.totalorder %s77, 1
    %p289 = por %p287, %p288
    %p291 = scmp.ne.s32.totalorder %s276, %s290
    %p292 = scmp.eq.s32.totalorder %s77, 0
    %p293 = por %p291, %p292
    %s295 = sadd.s32 %s294, 1
    %p298 = scmp.eq.s32.totalorder %s71, 1
    %p299 = scmp.ne.s32.totalorder %s294, %s296
    %p300 = scmp.eq.s32.totalorder %s71, 0
    %p301 = por %p299, %p300
    %p302 = scmp.ne.s32.totalorder %s294, %s296
    %p303 = scmp.eq.s32.totalorder %s76, 1
    %p304 = por %p302, %p303
    %p305 = scmp.ne.s32.totalorder %s296, %s297
    %p306 = scmp.eq.s32.totalorder %s76, 0
    %p307 = por %p305, %p306
    %p308 = scmp.ne.s32.totalorder %s296, %s297
    %p309 = scmp.eq.s32.totalorder %s77, 1
    %p310 = por %p308, %p309
    %p312 = scmp.ne.s32.totalorder %s297, %s311
    %p313 = scmp.eq.s32.totalorder %s77, 0
    %p314 = por %p312, %p313
    %s316 = sadd.s32 %s315, 1
    %p319 = scmp.eq.s32.totalorder %s71, 1
    %p320 = scmp.ne.s32.totalorder %s315, %s317
    %p321 = scmp.eq.s32.totalorder %s71, 0
    %p322 = por %p320, %p321
    %p323 = scmp.ne.s32.totalorder %s315, %s317
    %p324 = scmp.eq.s32.totalorder %s76, 1
    %p325 = por %p323, %p324
    %p326 = scmp.ne.s32.totalorder %s317, %s318
    %p327 = scmp.eq.s32.totalorder %s76, 0
    %p328 = por %p326, %p327
    %p329 = scmp.ne.s32.totalorder %s317, %s318
    %p330 = scmp.eq.s32.totalorder %s77, 1
    %p331 = por %p329, %p330
    %p333 = scmp.ne.s32.totalorder %s318, %s332
    %p334 = scmp.eq.s32.totalorder %s77, 0
    %p335 = por %p333, %p334
    %s337 = sadd.s32 %s336, 1
    %p340 = scmp.eq.s32.totalorder %s71, 1
    %p341 = scmp.ne.s32.totalorder %s336, %s338
    %p342 = scmp.eq.s32.totalorder %s71, 0
    %p343 = por %p341, %p342
    %p344 = scmp.ne.s32.totalorder %s336, %s338
    %p345 = scmp.eq.s32.totalorder %s76, 1
    %p346 = por %p344, %p345
    %p347 = scmp.ne.s32.totalorder %s338, %s339
    %p348 = scmp.eq.s32.totalorder %s76, 0
    %p349 = por %p347, %p348
    %p350 = scmp.ne.s32.totalorder %s338, %s339
    %p351 = scmp.eq.s32.totalorder %s77, 1
    %p352 = por %p350, %p351
    %p354 = scmp.ne.s32.totalorder %s339, %s353
    %p355 = scmp.eq.s32.totalorder %s77, 0
    %p356 = por %p354, %p355
    %s358 = sadd.s32 %s357, 1
    %p361 = scmp.eq.s32.totalorder %s71, 1
    %p362 = scmp.ne.s32.totalorder %s357, %s359
    %p363 = scmp.eq.s32.totalorder %s71, 0
    %p364 = por %p362, %p363
    %p365 = scmp.ne.s32.totalorder %s357, %s359
    %p366 = scmp.eq.s32.totalorder %s76, 1
    %p367 = por %p365, %p366
    %p368 = scmp.ne.s32.totalorder %s359, %s360
    %p369 = scmp.eq.s32.totalorder %s76, 0
    %p370 = por %p368, %p369
    %p371 = scmp.ne.s32.totalorder %s359, %s360
    %p372 = scmp.eq.s32.totalorder %s77, 1
    %p373 = por %p371, %p372
    %p375 = scmp.ne.s32.totalorder %s360, %s374
    %p376 = scmp.eq.s32.totalorder %s77, 0
    %p377 = por %p375, %p376
    %s379 = sadd.s32 %s378, 1
    %p382 = scmp.eq.s32.totalorder %s71, 1
    %p383 = scmp.ne.s32.totalorder %s378, %s380
    %p384 = scmp.eq.s32.totalorder %s71, 0
    %p385 = por %p383, %p384
    %p386 = scmp.ne.s32.totalorder %s378, %s380
    %p387 = scmp.eq.s32.totalorder %s76, 1
    %p388 = por %p386, %p387
    %p389 = scmp.ne.s32.totalorder %s380, %s381
    %p390 = scmp.eq.s32.totalorder %s76, 0
    %p391 = por %p389, %p390
    %p392 = scmp.ne.s32.totalorder %s380, %s381
    %p393 = scmp.eq.s32.totalorder %s77, 1
    %p394 = por %p392, %p393
    %p396 = scmp.ne.s32.totalorder %s381, %s395
    %p397 = scmp.eq.s32.totalorder %s77, 0
    %p398 = por %p396, %p397
    %s400 = sadd.s32 %s399, 1
    %p403 = scmp.eq.s32.totalorder %s71, 1
    %p404 = scmp.ne.s32.totalorder %s399, %s401
    %p405 = scmp.eq.s32.totalorder %s71, 0
    %p406 = por %p404, %p405
    %p407 = scmp.ne.s32.totalorder %s399, %s401
    %p408 = scmp.eq.s32.totalorder %s76, 1
    %p409 = por %p407, %p408
    %p410 = scmp.ne.s32.totalorder %s401, %s402
    %p411 = scmp.eq.s32.totalorder %s76, 0
    %p412 = por %p410, %p411
    %p413 = scmp.ne.s32.totalorder %s401, %s402
    %p414 = scmp.eq.s32.totalorder %s77, 1
    %p415 = por %p413, %p414
    %p417 = scmp.ne.s32.totalorder %s402, %s416
    %p418 = scmp.eq.s32.totalorder %s77, 0
    %p419 = por %p417, %p418
    %s421 = sadd.s32 %s420, 1
    %p424 = scmp.eq.s32.totalorder %s71, 1
    %p425 = scmp.ne.s32.totalorder %s420, %s422
    %p426 = scmp.eq.s32.totalorder %s71, 0
    %p427 = por %p425, %p426
    %p428 = scmp.ne.s32.totalorder %s420, %s422
    %p429 = scmp.eq.s32.totalorder %s76, 1
    %p430 = por %p428, %p429
    %p431 = scmp.ne.s32.totalorder %s422, %s423
    %p432 = scmp.eq.s32.totalorder %s76, 0
    %p433 = por %p431, %p432
    %p434 = scmp.ne.s32.totalorder %s422, %s423
    %p435 = scmp.eq.s32.totalorder %s77, 1
    %p436 = por %p434, %p435
    %p438 = scmp.ne.s32.totalorder %s423, %s437
    %p439 = scmp.eq.s32.totalorder %s77, 0
    %p440 = por %p438, %p439
    %s442 = sadd.s32 %s441, 1
    %p445 = scmp.eq.s32.totalorder %s71, 1
    %p446 = scmp.ne.s32.totalorder %s441, %s443
    %p447 = scmp.eq.s32.totalorder %s71, 0
    %p448 = por %p446, %p447
    %p449 = scmp.ne.s32.totalorder %s441, %s443
    %p450 = scmp.eq.s32.totalorder %s76, 1
    %p451 = por %p449, %p450
    %p452 = scmp.ne.s32.totalorder %s443, %s444
    %p453 = scmp.eq.s32.totalorder %s76, 0
    %p454 = por %p452, %p453
    %p455 = scmp.ne.s32.totalorder %s443, %s444
    %p456 = scmp.eq.s32.totalorder %s77, 1
    %p457 = por %p455, %p456
    %p459 = scmp.ne.s32.totalorder %s444, %s458
    %p460 = scmp.eq.s32.totalorder %s77, 0
    %p461 = por %p459, %p460
    %s463 = sadd.s32 %s462, 1
    %p466 = scmp.eq.s32.totalorder %s71, 1
    %p467 = scmp.ne.s32.totalorder %s462, %s464
    %p468 = scmp.eq.s32.totalorder %s71, 0
    %p469 = por %p467, %p468
    %p470 = scmp.ne.s32.totalorder %s462, %s464
    %p471 = scmp.eq.s32.totalorder %s76, 1
    %p472 = por %p470, %p471
    %p473 = scmp.ne.s32.totalorder %s464, %s465
    %p474 = scmp.eq.s32.totalorder %s76, 0
    %p475 = por %p473, %p474
    %p476 = scmp.ne.s32.totalorder %s464, %s465
    %p477 = scmp.eq.s32.totalorder %s77, 1
    %p478 = por %p476, %p477
    %p480 = scmp.ne.s32.totalorder %s465, %s479
    %p481 = scmp.eq.s32.totalorder %s77, 0
    %p482 = por %p480, %p481
    %s484 = sadd.s32 %s483, 1
    %p487 = scmp.eq.s32.totalorder %s71, 1
    %p488 = scmp.ne.s32.totalorder %s483, %s485
    %p489 = scmp.eq.s32.totalorder %s71, 0
    %p490 = por %p488, %p489
    %p491 = scmp.ne.s32.totalorder %s483, %s485
    %p492 = scmp.eq.s32.totalorder %s76, 1
    %p493 = por %p491, %p492
    %p494 = scmp.ne.s32.totalorder %s485, %s486
    %p495 = scmp.eq.s32.totalorder %s76, 0
    %p496 = por %p494, %p495
    %p497 = scmp.ne.s32.totalorder %s485, %s486
    %p498 = scmp.eq.s32.totalorder %s77, 1
    %p499 = por %p497, %p498
    %p501 = scmp.ne.s32.totalorder %s486, %s500
    %p502 = scmp.eq.s32.totalorder %s77, 0
    %p503 = por %p501, %p502
    %s505 = sadd.s32 %s504, 1
    %p508 = scmp.eq.s32.totalorder %s71, 1
    %p509 = scmp.ne.s32.totalorder %s504, %s506
    %p510 = scmp.eq.s32.totalorder %s71, 0
    %p511 = por %p509, %p510
    %p512 = scmp.ne.s32.totalorder %s504, %s506
    %p513 = scmp.eq.s32.totalorder %s76, 1
    %p514 = por %p512, %p513
    %p515 = scmp.ne.s32.totalorder %s506, %s507
    %p516 = scmp.eq.s32.totalorder %s76, 0
    %p517 = por %p515, %p516
    %p518 = scmp.ne.s32.totalorder %s506, %s507
    %p519 = scmp.eq.s32.totalorder %s77, 1
    %p520 = por %p518, %p519
    %p522 = scmp.ne.s32.totalorder %s507, %s521
    %p523 = scmp.eq.s32.totalorder %s77, 0
    %p524 = por %p522, %p523
    %s526 = sadd.s32 %s525, 1
    %p529 = scmp.eq.s32.totalorder %s71, 1
    %p530 = scmp.ne.s32.totalorder %s525, %s527
    %p531 = scmp.eq.s32.totalorder %s71, 0
    %p532 = por %p530, %p531
    %p533 = scmp.ne.s32.totalorder %s525, %s527
    %p534 = scmp.eq.s32.totalorder %s76, 1
    %p535 = por %p533, %p534
    %p536 = scmp.ne.s32.totalorder %s527, %s528
    %p537 = scmp.eq.s32.totalorder %s76, 0
    %p538 = por %p536, %p537
    %p539 = scmp.ne.s32.totalorder %s527, %s528
    %p540 = scmp.eq.s32.totalorder %s77, 1
    %p541 = por %p539, %p540
    %p543 = scmp.ne.s32.totalorder %s528, %s542
    %p544 = scmp.eq.s32.totalorder %s77, 0
    %p545 = por %p543, %p544
    %s547 = sadd.s32 %s546, 1
    %p550 = scmp.eq.s32.totalorder %s71, 1
    %p551 = scmp.ne.s32.totalorder %s546, %s548
    %p552 = scmp.eq.s32.totalorder %s71, 0
    %p553 = por %p551, %p552
    %p554 = scmp.ne.s32.totalorder %s546, %s548
    %p555 = scmp.eq.s32.totalorder %s76, 1
    %p556 = por %p554, %p555
    %p557 = scmp.ne.s32.totalorder %s548, %s549
    %p558 = scmp.eq.s32.totalorder %s76, 0
    %p559 = por %p557, %p558
    %p560 = scmp.ne.s32.totalorder %s548, %s549
    %p561 = scmp.eq.s32.totalorder %s77, 1
    %p562 = por %p560, %p561
    %p564 = scmp.ne.s32.totalorder %s549, %s563
    %p565 = scmp.eq.s32.totalorder %s77, 0
    %p566 = por %p564, %p565
    %s568 = sadd.s32 %s567, 1
    %p571 = scmp.eq.s32.totalorder %s71, 1
    %p572 = scmp.ne.s32.totalorder %s567, %s569
    %p573 = scmp.eq.s32.totalorder %s71, 0
    %p574 = por %p572, %p573
    %p575 = scmp.ne.s32.totalorder %s567, %s569
    %p576 = scmp.eq.s32.totalorder %s76, 1
    %p577 = por %p575, %p576
    %p578 = scmp.ne.s32.totalorder %s569, %s570
    %p579 = scmp.eq.s32.totalorder %s76, 0
    %p580 = por %p578, %p579
    %p581 = scmp.ne.s32.totalorder %s569, %s570
    %p582 = scmp.eq.s32.totalorder %s77, 1
    %p583 = por %p581, %p582
    %p585 = scmp.ne.s32.totalorder %s570, %s584
    %p586 = scmp.eq.s32.totalorder %s77, 0
    %p587 = por %p585, %p586
    %s589 = sadd.s32 %s588, 1
    %p592 = scmp.eq.s32.totalorder %s71, 1
    %p593 = scmp.ne.s32.totalorder %s588, %s590
    %p594 = scmp.eq.s32.totalorder %s71, 0
    %p595 = por %p593, %p594
    %p596 = scmp.ne.s32.totalorder %s588, %s590
    %p597 = scmp.eq.s32.totalorder %s76, 1
    %p598 = por %p596, %p597
    %p599 = scmp.ne.s32.totalorder %s590, %s591
    %p600 = scmp.eq.s32.totalorder %s76, 0
    %p601 = por %p599, %p600
    %p602 = scmp.ne.s32.totalorder %s590, %s591
    %p603 = scmp.eq.s32.totalorder %s77, 1
    %p604 = por %p602, %p603
    %p606 = scmp.ne.s32.totalorder %s591, %s605
    %p607 = scmp.eq.s32.totalorder %s77, 0
    %p608 = por %p606, %p607
    %s610 = sadd.s32 %s609, 1
    %p613 = scmp.eq.s32.totalorder %s71, 1
    %p614 = scmp.ne.s32.totalorder %s609, %s611
    %p615 = scmp.eq.s32.totalorder %s71, 0
    %p616 = por %p614, %p615
    %p617 = scmp.ne.s32.totalorder %s609, %s611
    %p618 = scmp.eq.s32.totalorder %s76, 1
    %p619 = por %p617, %p618
    %p620 = scmp.ne.s32.totalorder %s611, %s612
    %p621 = scmp.eq.s32.totalorder %s76, 0
    %p622 = por %p620, %p621
    %p623 = scmp.ne.s32.totalorder %s611, %s612
    %p624 = scmp.eq.s32.totalorder %s77, 1
    %p625 = por %p623, %p624
    %p627 = scmp.ne.s32.totalorder %s612, %s626
    %p628 = scmp.eq.s32.totalorder %s77, 0
    %p629 = por %p627, %p628
    %s631 = sadd.s32 %s630, 1
    %p634 = scmp.eq.s32.totalorder %s71, 1
    %p635 = scmp.ne.s32.totalorder %s630, %s632
    %p636 = scmp.eq.s32.totalorder %s71, 0
    %p637 = por %p635, %p636
    %p638 = scmp.ne.s32.totalorder %s630, %s632
    %p639 = scmp.eq.s32.totalorder %s76, 1
    %p640 = por %p638, %p639
    %p641 = scmp.ne.s32.totalorder %s632, %s633
    %p642 = scmp.eq.s32.totalorder %s76, 0
    %p643 = por %p641, %p642
    %p644 = scmp.ne.s32.totalorder %s632, %s633
    %p645 = scmp.eq.s32.totalorder %s77, 1
    %p646 = por %p644, %p645
    %p648 = scmp.ne.s32.totalorder %s633, %s647
    %p649 = scmp.eq.s32.totalorder %s77, 0
    %p650 = por %p648, %p649
    %s652 = sadd.s32 %s651, 1
    %p655 = scmp.eq.s32.totalorder %s71, 1
    %p656 = scmp.ne.s32.totalorder %s651, %s653
    %p657 = scmp.eq.s32.totalorder %s71, 0
    %p658 = por %p656, %p657
    %p659 = scmp.ne.s32.totalorder %s651, %s653
    %p660 = scmp.eq.s32.totalorder %s76, 1
    %p661 = por %p659, %p660
    %p662 = scmp.ne.s32.totalorder %s653, %s654
    %p663 = scmp.eq.s32.totalorder %s76, 0
    %p664 = por %p662, %p663
    %p665 = scmp.ne.s32.totalorder %s653, %s654
    %p666 = scmp.eq.s32.totalorder %s77, 1
    %p667 = por %p665, %p666
    %p669 = scmp.ne.s32.totalorder %s654, %s668
    %p670 = scmp.eq.s32.totalorder %s77, 0
    %p671 = por %p669, %p670
    %s673 = sadd.s32 %s672, 1
    %p676 = scmp.eq.s32.totalorder %s71, 1
    %p677 = scmp.ne.s32.totalorder %s672, %s674
    %p678 = scmp.eq.s32.totalorder %s71, 0
    %p679 = por %p677, %p678
    %p680 = scmp.ne.s32.totalorder %s672, %s674
    %p681 = scmp.eq.s32.totalorder %s76, 1
    %p682 = por %p680, %p681
    %p683 = scmp.ne.s32.totalorder %s674, %s675
    %p684 = scmp.eq.s32.totalorder %s76, 0
    %p685 = por %p683, %p684
    %p686 = scmp.ne.s32.totalorder %s674, %s675
    %p687 = scmp.eq.s32.totalorder %s77, 1
    %p688 = por %p686, %p687
    %p690 = scmp.ne.s32.totalorder %s675, %s689
    %p691 = scmp.eq.s32.totalorder %s77, 0
    %p692 = por %p690, %p691
    %s694 = sadd.s32 %s693, 1
    %p697 = scmp.eq.s32.totalorder %s71, 1
    %p698 = scmp.ne.s32.totalorder %s693, %s695
    %p699 = scmp.eq.s32.totalorder %s71, 0
    %p700 = por %p698, %p699
    %p701 = scmp.ne.s32.totalorder %s693, %s695
    %p702 = scmp.eq.s32.totalorder %s76, 1
    %p703 = por %p701, %p702
    %p704 = scmp.ne.s32.totalorder %s695, %s696
    %p705 = scmp.eq.s32.totalorder %s76, 0
    %p706 = por %p704, %p705
    %p707 = scmp.ne.s32.totalorder %s695, %s696
    %p708 = scmp.eq.s32.totalorder %s77, 1
    %p709 = por %p707, %p708
    %p711 = scmp.ne.s32.totalorder %s696, %s710
    %p712 = scmp.eq.s32.totalorder %s77, 0
    %p713 = por %p711, %p712
    %s715 = sadd.s32 %s714, 1
    %p718 = scmp.eq.s32.totalorder %s71, 1
    %p719 = scmp.ne.s32.totalorder %s714, %s716
    %p720 = scmp.eq.s32.totalorder %s71, 0
    %p721 = por %p719, %p720
    %p722 = scmp.ne.s32.totalorder %s714, %s716
    %p723 = scmp.eq.s32.totalorder %s76, 1
    %p724 = por %p722, %p723
    %p725 = scmp.ne.s32.totalorder %s716, %s717
    %p726 = scmp.eq.s32.totalorder %s76, 0
    %p727 = por %p725, %p726
    %p728 = scmp.ne.s32.totalorder %s716, %s717
    %p729 = scmp.eq.s32.totalorder %s77, 1
    %p730 = por %p728, %p729
    %p732 = scmp.ne.s32.totalorder %s717, %s731
    %p733 = scmp.eq.s32.totalorder %s77, 0
    %p734 = por %p732, %p733
    %s736 = sadd.s32 %s735, 1
    %p739 = scmp.eq.s32.totalorder %s71, 1
    %p740 = scmp.ne.s32.totalorder %s735, %s737
    %p741 = scmp.eq.s32.totalorder %s71, 0
    %p742 = por %p740, %p741
    %p743 = scmp.ne.s32.totalorder %s735, %s737
    %p744 = scmp.eq.s32.totalorder %s76, 1
    %p745 = por %p743, %p744
    %p746 = scmp.ne.s32.totalorder %s737, %s738
    %p747 = scmp.eq.s32.totalorder %s76, 0
    %p748 = por %p746, %p747
    %p749 = scmp.ne.s32.totalorder %s737, %s738
    %p750 = scmp.eq.s32.totalorder %s77, 1
    %p751 = por %p749, %p750
    %p753 = scmp.ne.s32.totalorder %s738, %s752
    %p754 = scmp.eq.s32.totalorder %s77, 0
    %p755 = por %p753, %p754
    %s756 = ssub.s32 %s71, %s78
    %p757 = scmp.eq.s32.totalorder %s756, 0
    %s759 = sadd.s32 %s758, 1
    %s760 = scalar_select %p757, %s758, %s759
    %p763 = pneg %p757
    %p764 = scmp.eq.s32.totalorder %s71, 1
    %p765 = por %p763, %p764
    %p766 = scmp.ne.s32.totalorder %s758, %s761
    %p767 = scmp.eq.s32.totalorder %s71, 0
    %p768 = por %p766, %p767
    %p769 = scmp.ne.s32.totalorder %s758, %s761
    %p770 = scmp.eq.s32.totalorder %s76, 1
    %p771 = por %p769, %p770
    %p772 = scmp.ne.s32.totalorder %s761, %s762
    %p773 = scmp.eq.s32.totalorder %s76, 0
    %p774 = por %p772, %p773
    %p775 = scmp.ne.s32.totalorder %s761, %s762
    %p776 = scmp.eq.s32.totalorder %s77, 1
    %p777 = por %p775, %p776
    %p779 = scmp.ne.s32.totalorder %s762, %s778
    %p780 = scmp.eq.s32.totalorder %s77, 0
    %p781 = por %p779, %p780
    %p782 = scmp.le.s32.totalorder 1, %s71
    %p783 = scmp.lt.s32.totalorder %s71, 3
    %p784 = pnand %p782, %p783
    %p785 = pneg %p784
    // Predicated region
    $region9: #{perceiver_forward.1} parent=5 // pred_check
      _
    $region10: #{perceiver_forward.1} parent=5 // pred_check_branch
      %787 = sbr.rel (%p784) target = $region12
    $region11: #{perceiver_forward.1} parent=5 // pred_region
      %s788 = ssub.s32 %s71, 1
      // Predicated region
      $region13: #{perceiver_forward.1} parent=11 // pred_check
        %p789 = pneg %p118
      $region14: #{perceiver_forward.1} parent=11 // pred_check_branch
        %791 = sbr.rel (%p789) target = $region16
      $region15: #{perceiver_forward.1} parent=11 // pred_region
        _
      $region16: #{perceiver_forward.1} parent=11 // pred_fallthru
        _
      // Predicated region
      $region17: #{perceiver_forward.1} parent=11 // pred_check
        %p792 = pneg %p139
      $region18: #{perceiver_forward.1} parent=11 // pred_check_branch
        %794 = sbr.rel (%p792) target = $region20
      $region19: #{perceiver_forward.1} parent=11 // pred_region
        _
      $region20: #{perceiver_forward.1} parent=11 // pred_fallthru
        _
      // Predicated region
      $region21: #{perceiver_forward.1} parent=11 // pred_check
        %p795 = pneg %p160
      $region22: #{perceiver_forward.1} parent=11 // pred_check_branch
        %797 = sbr.rel (%p795) target = $region24
      $region23: #{perceiver_forward.1} parent=11 // pred_region
        _
      $region24: #{perceiver_forward.1} parent=11 // pred_fallthru
        _
      // Predicated region
      $region25: #{perceiver_forward.1} parent=11 // pred_check
        %p798 = pneg %p181
      $region26: #{perceiver_forward.1} parent=11 // pred_check_branch
        %800 = sbr.rel (%p798) target = $region28
      $region27: #{perceiver_forward.1} parent=11 // pred_region
        _
      $region28: #{perceiver_forward.1} parent=11 // pred_fallthru
        _
      // Predicated region
      $region29: #{perceiver_forward.1} parent=11 // pred_check
        %p801 = pneg %p202
      $region30: #{perceiver_forward.1} parent=11 // pred_check_branch
        %803 = sbr.rel (%p801) target = $region32
      $region31: #{perceiver_forward.1} parent=11 // pred_region
        _
      $region32: #{perceiver_forward.1} parent=11 // pred_fallthru
        _
      // Predicated region
      $region33: #{perceiver_forward.1} parent=11 // pred_check
        %p804 = pneg %p223
      $region34: #{perceiver_forward.1} parent=11 // pred_check_branch
        %806 = sbr.rel (%p804) target = $region36
      $region35: #{perceiver_forward.1} parent=11 // pred_region
        _
      $region36: #{perceiver_forward.1} parent=11 // pred_fallthru
        _
      // Predicated region
      $region37: #{perceiver_forward.1} parent=11 // pred_check
        %p807 = pneg %p244
      $region38: #{perceiver_forward.1} parent=11 // pred_check_branch
        %809 = sbr.rel (%p807) target = $region40
      $region39: #{perceiver_forward.1} parent=11 // pred_region
        _
      $region40: #{perceiver_forward.1} parent=11 // pred_fallthru
        _
      // Predicated region
      $region41: #{perceiver_forward.1} parent=11 // pred_check
        %p810 = pneg %p265
      $region42: #{perceiver_forward.1} parent=11 // pred_check_branch
        %812 = sbr.rel (%p810) target = $region44
      $region43: #{perceiver_forward.1} parent=11 // pred_region
        _
      $region44: #{perceiver_forward.1} parent=11 // pred_fallthru
        _
      // Predicated region
      $region45: #{perceiver_forward.1} parent=11 // pred_check
        %p813 = pneg %p286
      $region46: #{perceiver_forward.1} parent=11 // pred_check_branch
        %815 = sbr.rel (%p813) target = $region48
      $region47: #{perceiver_forward.1} parent=11 // pred_region
        _
      $region48: #{perceiver_forward.1} parent=11 // pred_fallthru
        _
      // Predicated region
      $region49: #{perceiver_forward.1} parent=11 // pred_check
        %p816 = pneg %p307
      $region50: #{perceiver_forward.1} parent=11 // pred_check_branch
        %818 = sbr.rel (%p816) target = $region52
      $region51: #{perceiver_forward.1} parent=11 // pred_region
        _
      $region52: #{perceiver_forward.1} parent=11 // pred_fallthru
        _
      // Predicated region
      $region53: #{perceiver_forward.1} parent=11 // pred_check
        %p819 = pneg %p328
      $region54: #{perceiver_forward.1} parent=11 // pred_check_branch
        %821 = sbr.rel (%p819) target = $region56
      $region55: #{perceiver_forward.1} parent=11 // pred_region
        _
      $region56: #{perceiver_forward.1} parent=11 // pred_fallthru
        _
      // Predicated region
      $region57: #{perceiver_forward.1} parent=11 // pred_check
        %p822 = pneg %p349
      $region58: #{perceiver_forward.1} parent=11 // pred_check_branch
        %824 = sbr.rel (%p822) target = $region60
      $region59: #{perceiver_forward.1} parent=11 // pred_region
        _
      $region60: #{perceiver_forward.1} parent=11 // pred_fallthru
        _
      // Predicated region
      $region61: #{perceiver_forward.1} parent=11 // pred_check
        %p825 = pneg %p370
      $region62: #{perceiver_forward.1} parent=11 // pred_check_branch
        %827 = sbr.rel (%p825) target = $region64
      $region63: #{perceiver_forward.1} parent=11 // pred_region
        _
      $region64: #{perceiver_forward.1} parent=11 // pred_fallthru
        _
      // Predicated region
      $region65: #{perceiver_forward.1} parent=11 // pred_check
        %p828 = pneg %p391
      $region66: #{perceiver_forward.1} parent=11 // pred_check_branch
        %830 = sbr.rel (%p828) target = $region68
      $region67: #{perceiver_forward.1} parent=11 // pred_region
        _
      $region68: #{perceiver_forward.1} parent=11 // pred_fallthru
        _
      // Predicated region
      $region69: #{perceiver_forward.1} parent=11 // pred_check
        %p831 = pneg %p412
      $region70: #{perceiver_forward.1} parent=11 // pred_check_branch
        %833 = sbr.rel (%p831) target = $region72
      $region71: #{perceiver_forward.1} parent=11 // pred_region
        _
      $region72: #{perceiver_forward.1} parent=11 // pred_fallthru
        _
      // Predicated region
      $region73: #{perceiver_forward.1} parent=11 // pred_check
        %p834 = pneg %p433
      $region74: #{perceiver_forward.1} parent=11 // pred_check_branch
        %836 = sbr.rel (%p834) target = $region76
      $region75: #{perceiver_forward.1} parent=11 // pred_region
        _
      $region76: #{perceiver_forward.1} parent=11 // pred_fallthru
        _
      // Predicated region
      $region77: #{perceiver_forward.1} parent=11 // pred_check
        %p837 = pneg %p454
      $region78: #{perceiver_forward.1} parent=11 // pred_check_branch
        %839 = sbr.rel (%p837) target = $region80
      $region79: #{perceiver_forward.1} parent=11 // pred_region
        _
      $region80: #{perceiver_forward.1} parent=11 // pred_fallthru
        _
      // Predicated region
      $region81: #{perceiver_forward.1} parent=11 // pred_check
        %p840 = pneg %p475
      $region82: #{perceiver_forward.1} parent=11 // pred_check_branch
        %842 = sbr.rel (%p840) target = $region84
      $region83: #{perceiver_forward.1} parent=11 // pred_region
        _
      $region84: #{perceiver_forward.1} parent=11 // pred_fallthru
        _
      // Predicated region
      $region85: #{perceiver_forward.1} parent=11 // pred_check
        %p843 = pneg %p496
      $region86: #{perceiver_forward.1} parent=11 // pred_check_branch
        %845 = sbr.rel (%p843) target = $region88
      $region87: #{perceiver_forward.1} parent=11 // pred_region
        _
      $region88: #{perceiver_forward.1} parent=11 // pred_fallthru
        _
      // Predicated region
      $region89: #{perceiver_forward.1} parent=11 // pred_check
        %p846 = pneg %p517
      $region90: #{perceiver_forward.1} parent=11 // pred_check_branch
        %848 = sbr.rel (%p846) target = $region92
      $region91: #{perceiver_forward.1} parent=11 // pred_region
        _
      $region92: #{perceiver_forward.1} parent=11 // pred_fallthru
        _
      // Predicated region
      $region93: #{perceiver_forward.1} parent=11 // pred_check
        %p849 = pneg %p538
      $region94: #{perceiver_forward.1} parent=11 // pred_check_branch
        %851 = sbr.rel (%p849) target = $region96
      $region95: #{perceiver_forward.1} parent=11 // pred_region
        _
      $region96: #{perceiver_forward.1} parent=11 // pred_fallthru
        _
      // Predicated region
      $region97: #{perceiver_forward.1} parent=11 // pred_check
        %p852 = pneg %p559
      $region98: #{perceiver_forward.1} parent=11 // pred_check_branch
        %854 = sbr.rel (%p852) target = $region100
      $region99: #{perceiver_forward.1} parent=11 // pred_region
        _
      $region100: #{perceiver_forward.1} parent=11 // pred_fallthru
        _
      // Predicated region
      $region101: #{perceiver_forward.1} parent=11 // pred_check
        %p855 = pneg %p580
      $region102: #{perceiver_forward.1} parent=11 // pred_check_branch
        %857 = sbr.rel (%p855) target = $region104
      $region103: #{perceiver_forward.1} parent=11 // pred_region
        _
      $region104: #{perceiver_forward.1} parent=11 // pred_fallthru
        _
      // Predicated region
      $region105: #{perceiver_forward.1} parent=11 // pred_check
        %p858 = pneg %p601
      $region106: #{perceiver_forward.1} parent=11 // pred_check_branch
        %860 = sbr.rel (%p858) target = $region108
      $region107: #{perceiver_forward.1} parent=11 // pred_region
        _
      $region108: #{perceiver_forward.1} parent=11 // pred_fallthru
        _
      // Predicated region
      $region109: #{perceiver_forward.1} parent=11 // pred_check
        %p861 = pneg %p622
      $region110: #{perceiver_forward.1} parent=11 // pred_check_branch
        %863 = sbr.rel (%p861) target = $region112
      $region111: #{perceiver_forward.1} parent=11 // pred_region
        _
      $region112: #{perceiver_forward.1} parent=11 // pred_fallthru
        _
      // Predicated region
      $region113: #{perceiver_forward.1} parent=11 // pred_check
        %p864 = pneg %p643
      $region114: #{perceiver_forward.1} parent=11 // pred_check_branch
        %866 = sbr.rel (%p864) target = $region116
      $region115: #{perceiver_forward.1} parent=11 // pred_region
        _
      $region116: #{perceiver_forward.1} parent=11 // pred_fallthru
        _
      // Predicated region
      $region117: #{perceiver_forward.1} parent=11 // pred_check
        %p867 = pneg %p664
      $region118: #{perceiver_forward.1} parent=11 // pred_check_branch
        %869 = sbr.rel (%p867) target = $region120
      $region119: #{perceiver_forward.1} parent=11 // pred_region
        _
      $region120: #{perceiver_forward.1} parent=11 // pred_fallthru
        _
      // Predicated region
      $region121: #{perceiver_forward.1} parent=11 // pred_check
        %p870 = pneg %p685
      $region122: #{perceiver_forward.1} parent=11 // pred_check_branch
        %872 = sbr.rel (%p870) target = $region124
      $region123: #{perceiver_forward.1} parent=11 // pred_region
        _
      $region124: #{perceiver_forward.1} parent=11 // pred_fallthru
        _
      // Predicated region
      $region125: #{perceiver_forward.1} parent=11 // pred_check
        %p873 = pneg %p706
      $region126: #{perceiver_forward.1} parent=11 // pred_check_branch
        %875 = sbr.rel (%p873) target = $region128
      $region127: #{perceiver_forward.1} parent=11 // pred_region
        _
      $region128: #{perceiver_forward.1} parent=11 // pred_fallthru
        _
      // Predicated region
      $region129: #{perceiver_forward.1} parent=11 // pred_check
        %p876 = pneg %p727
      $region130: #{perceiver_forward.1} parent=11 // pred_check_branch
        %878 = sbr.rel (%p876) target = $region132
      $region131: #{perceiver_forward.1} parent=11 // pred_region
        _
      $region132: #{perceiver_forward.1} parent=11 // pred_fallthru
        _
      // Predicated region
      $region133: #{perceiver_forward.1} parent=11 // pred_check
        %p879 = pneg %p748
      $region134: #{perceiver_forward.1} parent=11 // pred_check_branch
        %881 = sbr.rel (%p879) target = $region136
      $region135: #{perceiver_forward.1} parent=11 // pred_region
        _
      $region136: #{perceiver_forward.1} parent=11 // pred_fallthru
        _
    $region12: #{perceiver_forward.1} parent=5 // pred_fallthru
      _
    %p882 = scmp.lt.s32.totalorder %s71, 2
    // Predicated region
    $region137: #{perceiver_forward.1} parent=5 // pred_check
      %p883 = pneg %p882
    $region138: #{perceiver_forward.1} parent=5 // pred_check_branch
      %885 = sbr.rel (%p883) target = $region140
    $region139: #{perceiver_forward.1} parent=5 // pred_region
      // Predicated region
      $region141: #{perceiver_forward.1} parent=139 // pred_check
        %p886 = pneg %p91
      $region142: #{perceiver_forward.1} parent=139 // pred_check_branch
        %888 = sbr.rel (%p886) target = $region144
      $region143: #{perceiver_forward.1} parent=139 // pred_region
        %p889 = scmp.lt.s32.totalorder %s71, 1
        %s890 = scalar_select %p889, %s71, 1
        %s891 = smul.addr %s890, 32
        %s892 = smul.addr %s891, 8
        %s893 = scalar_lea.vmem %s1, %s892
      $region144: #{perceiver_forward.1} parent=139 // pred_fallthru
        _
    $region140: #{perceiver_forward.1} parent=5 // pred_fallthru
      _
    %p894 = scmp.le.s32.totalorder 1, %s71
    %p895 = scmp.lt.s32.totalorder %s71, 3
    %p896 = pnand %p894, %p895
    %p897 = pneg %p896
    // Predicated region
    $region145: #{perceiver_forward.1} parent=5 // pred_check
      _
    $region146: #{perceiver_forward.1} parent=5 // pred_check_branch
      %899 = sbr.rel (%p896) target = $region148
    $region147: #{perceiver_forward.1} parent=5 // pred_region
      %s900 = ssub.s32 %s71, 1
      %p901 = scmp.lt.s32.totalorder %s76, 1
      %s902 = scalar_select %p901, %s76, 1
      %s903 = smul.addr %s902, 32
      %s904 = smul.addr %s903, 8
      %s905 = scalar_lea.vmem %s1, %s904
      %p906 = pneg %p97
      %p907 = pneg %p94
      %p908 = pneg %p118
      %p909 = pneg %p115
      %p910 = pneg %p139
      %p911 = pneg %p136
      %p912 = pneg %p160
      %p913 = pneg %p157
      %p914 = pneg %p181
      %p915 = pneg %p178
      %p916 = pneg %p202
      %p917 = pneg %p199
      %p918 = pneg %p223
      %p919 = pneg %p220
      %p920 = pneg %p244
      %p921 = pneg %p241
      %p922 = pneg %p265
      %p923 = pneg %p262
      %p924 = pneg %p286
      %p925 = pneg %p283
      %p926 = pneg %p307
      %p927 = pneg %p304
      %p928 = pneg %p328
      %p929 = pneg %p325
      %p930 = pneg %p349
      %p931 = pneg %p346
      %p932 = pneg %p370
      %p933 = pneg %p367
      %p934 = pneg %p391
      %p935 = pneg %p388
      %p936 = pneg %p412
      %p937 = pneg %p409
      %p938 = pneg %p433
      %p939 = pneg %p430
      %p940 = pneg %p454
      %p941 = pneg %p451
      %p942 = pneg %p475
      %p943 = pneg %p472
      %p944 = pneg %p496
      %p945 = pneg %p493
      %p946 = pneg %p517
      %p947 = pneg %p514
      %p948 = pneg %p538
      %p949 = pneg %p535
      %p950 = pneg %p559
      %p951 = pneg %p556
      %p952 = pneg %p580
      %p953 = pneg %p577
      %p954 = pneg %p601
      %p955 = pneg %p598
      %p956 = pneg %p622
      %p957 = pneg %p619
      %p958 = pneg %p643
      %p959 = pneg %p640
      %p960 = pneg %p664
      %p961 = pneg %p661
      %p962 = pneg %p685
      %p963 = pneg %p682
      %p964 = pneg %p706
      %p965 = pneg %p703
      %p966 = pneg %p727
      %p967 = pneg %p724
      %p968 = pneg %p748
      %p969 = pneg %p745
      %p970 = pneg %p774
      %p971 = pneg %p771
      %p972 = scmp.lt.s32.totalorder %s76, 1
      %s973 = scalar_select %p972, %s76, 1
      %s974 = smul.addr %s973, 4
      %s975 = smul.addr %s974, 8
      %s976 = scalar_lea.vmem %s65, %s975
      %p977 = scmp.lt.s32.totalorder %s76, 1
      %s978 = scalar_select %p977, %s76, 1
      %s979 = smul.addr %s978, 32
      %s980 = smul.addr %s979, 8
      %s981 = scalar_lea.vmem %s1, %s980
      %p982 = scmp.lt.s32.totalorder %s76, 1
      %s983 = scalar_select %p982, %s76, 1
      %s984 = smul.addr %s983, 4
      %s985 = smul.addr %s984, 8
      %s986 = scalar_lea.vmem %s65, %s985
      %v988 = vld [vmem:[%s981] sm:$0xff]
      %v989 = vld [vmem:[%s981 + $0x8] sm:$0xff]
      %v990 = vld [vmem:[%s981 + $0x10] sm:$0xff]
      %v991 = vld [vmem:[%s981 + $0x18] sm:$0xff]
      %v992 = vld [vmem:[%s981 + $0x20] sm:$0xff]
      %v993 = vld [vmem:[%s981 + $0x28] sm:$0xff]
      %v994 = vld [vmem:[%s981 + $0x30] sm:$0xff]
      %v995 = vld [vmem:[%s981 + $0x38] sm:$0xff]
      %v996 = vld [vmem:[%s981 + $0x40] sm:$0xff]
      %v997 = vld [vmem:[%s981 + $0x48] sm:$0xff]
      %v998 = vld [vmem:[%s981 + $0x50] sm:$0xff]
      %v999 = vld [vmem:[%s981 + $0x58] sm:$0xff]
      %v1000 = vld [vmem:[%s981 + $0x60] sm:$0xff]
      %v1001 = vld [vmem:[%s981 + $0x68] sm:$0xff]
      %v1002 = vld [vmem:[%s981 + $0x70] sm:$0xff]
      %v1003 = vld [vmem:[%s981 + $0x78] sm:$0xff]
      %v1004 = vld [vmem:[%s981 + $0x80] sm:$0xff]
      %v1005 = vld [vmem:[%s981 + $0x88] sm:$0xff]
      %v1006 = vld [vmem:[%s981 + $0x90] sm:$0xff]
      %v1007 = vld [vmem:[%s981 + $0x98] sm:$0xff]
      %v1008 = vld [vmem:[%s981 + $0xa0] sm:$0xff]
      %v1009 = vld [vmem:[%s981 + $0xa8] sm:$0xff]
      %v1010 = vld [vmem:[%s981 + $0xb0] sm:$0xff]
      %v1011 = vld [vmem:[%s981 + $0xb8] sm:$0xff]
      %v1012 = vld [vmem:[%s981 + $0xc0] sm:$0xff]
      %v1013 = vld [vmem:[%s981 + $0xc8] sm:$0xff]
      %v1014 = vld [vmem:[%s981 + $0xd0] sm:$0xff]
      %v1015 = vld [vmem:[%s981 + $0xd8] sm:$0xff]
      %v1016 = vld [vmem:[%s981 + $0xe0] sm:$0xff]
      %v1017 = vld [vmem:[%s981 + $0xe8] sm:$0xff]
      %v1018 = vld [vmem:[%s981 + $0xf0] sm:$0xff]
      %v1019 = vld [vmem:[%s981 + $0xf8] sm:$0xff]
      %v1020 = vld [vmem:[%s3] sm:$0xff]
      %v1021 = vld [vmem:[%s3 + $0x8] sm:$0xff]
      %v1022 = vld [vmem:[%s3 + $0x10] sm:$0xff]
      %v1023 = vld [vmem:[%s3 + $0x18] sm:$0xff]
      %v1024 = vld [vmem:[%s5] sm:$0x1]
      %v1025 = vld [vmem:[%s7] sm:$0x1]
      %vm1026 = vcmask 523264
      %v1027 = vsel %vm1026, %v1020, 0.0
      %1028 = vadd.xlane.f32.xlu0 %v1027
      %v1029 = vpop.xlane.xlu0 %1028
      %v1030 = vsel %vm1026, %v1021, 0.0
      %1031 = vadd.xlane.f32.xlu0 %v1030
      %v1032 = vpop.xlane.xlu0 %1031
      %v1033 = vsel %vm1026, %v1022, 0.0
      %1034 = vadd.xlane.f32.xlu0 %v1033
      %v1035 = vpop.xlane.xlu0 %1034
      %v1036 = vsel %vm1026, %v1023, 0.0
      %1037 = vadd.xlane.f32.xlu0 %v1036
      %v1038 = vpop.xlane.xlu0 %1037
      %v1039 = vrcp.pop 64.0
      %v1040 = vmul.f32 64.0, %v1039
      %v1041 = vsub.f32 1.0, %v1040
      %v1042 = vmul.f32 %v1039, %v1041
      %v1043 = vadd.f32 %v1039, %v1042
      %vm1044 = vweird.f32 %v1039
      %v1045 = vsel %vm1044, %v1039, %v1043
      %v1046 = vmul.f32 %v1029, %v1045
      %v1047 = vmul.f32 %v1032, %v1045
      %v1048 = vmul.f32 %v1035, %v1045
      %v1049 = vmul.f32 %v1038, %v1045
      %v1050 = vsub.f32 %v1020, %v1046
      %v1051 = vsub.f32 %v1021, %v1047
      %v1052 = vsub.f32 %v1022, %v1048
      %v1053 = vsub.f32 %v1023, %v1049
      %v1054 = vmul.f32 %v1050, %v1050
      %v1055 = vmul.f32 %v1051, %v1051
      %v1056 = vmul.f32 %v1052, %v1052
      %v1057 = vmul.f32 %v1053, %v1053
      %v1058 = vsel %vm1026, %v1054, 0.0
      %1059 = vadd.xlane.f32.xlu0 %v1058
      %v1060 = vpop.xlane.xlu0 %1059
      %v1061 = vsel %vm1026, %v1055, 0.0
      %1062 = vadd.xlane.f32.xlu0 %v1061
      %v1063 = vpop.xlane.xlu0 %1062
      %v1064 = vsel %vm1026, %v1056, 0.0
      %1065 = vadd.xlane.f32.xlu0 %v1064
      %v1066 = vpop.xlane.xlu0 %1065
      %v1067 = vsel %vm1026, %v1057, 0.0
      %1068 = vadd.xlane.f32.xlu0 %v1067
      %v1069 = vpop.xlane.xlu0 %1068
      %v1070 = vmul.f32 %v1060, %v1045
      %v1071 = vmul.f32 %v1063, %v1045
      %v1072 = vmul.f32 %v1066, %v1045
      %v1073 = vmul.f32 %v1069, %v1045
      %v1074 = vadd.f32 %v1070, 1e-05
      %v1075 = vadd.f32 %v1071, 1e-05
      %v1076 = vadd.f32 %v1072, 1e-05
      %v1077 = vadd.f32 %v1073, 1e-05
      %v1078 = vrsqrt.pop %v1074
      %v1079 = vmul.f32 %v1078, %v1074
      %v1080 = vmul.f32 %v1079, %v1078
      %v1081 = vmul.f32 0.5, %v1080
      %v1082 = vsub.f32 1.5, %v1081
      %v1083 = vmul.f32 %v1078, %v1082
      %vm1084 = vweird.f32 %v1074
      %vm1085 = vweird.f32 %v1078
      %vm1086 = vmor %vm1084, %vm1085
      %v1087 = vsel %vm1086, %v1078, %v1083
      %v1088 = vrsqrt.pop %v1075
      %v1089 = vmul.f32 %v1088, %v1075
      %v1090 = vmul.f32 %v1089, %v1088
      %v1091 = vmul.f32 0.5, %v1090
      %v1092 = vsub.f32 1.5, %v1091
      %v1093 = vmul.f32 %v1088, %v1092
      %vm1094 = vweird.f32 %v1075
      %vm1095 = vweird.f32 %v1088
      %vm1096 = vmor %vm1094, %vm1095
      %v1097 = vsel %vm1096, %v1088, %v1093
      %v1098 = vrsqrt.pop %v1076
      %v1099 = vmul.f32 %v1098, %v1076
      %v1100 = vmul.f32 %v1099, %v1098
      %v1101 = vmul.f32 0.5, %v1100
      %v1102 = vsub.f32 1.5, %v1101
      %v1103 = vmul.f32 %v1098, %v1102
      %vm1104 = vweird.f32 %v1076
      %vm1105 = vweird.f32 %v1098
      %vm1106 = vmor %vm1104, %vm1105
      %v1107 = vsel %vm1106, %v1098, %v1103
      %v1108 = vrsqrt.pop %v1077
      %v1109 = vmul.f32 %v1108, %v1077
      %v1110 = vmul.f32 %v1109, %v1108
      %v1111 = vmul.f32 0.5, %v1110
      %v1112 = vsub.f32 1.5, %v1111
      %v1113 = vmul.f32 %v1108, %v1112
      %vm1114 = vweird.f32 %v1077
      %vm1115 = vweird.f32 %v1108
      %vm1116 = vmor %vm1114, %vm1115
      %v1117 = vsel %vm1116, %v1108, %v1113
      %v1118 = vmul.f32 %v1050, %v1087
      %v1119 = vmul.f32 %v1051, %v1097
      %v1120 = vmul.f32 %v1052, %v1107
      %v1121 = vmul.f32 %v1053, %v1117
      %v1123 = vperm.slane %v1024, 0
      %v1125 = vmul.f32 %v1118, %v1123
      %v1126 = vmul.f32 %v1119, %v1123
      %v1127 = vmul.f32 %v1120, %v1123
      %v1128 = vmul.f32 %v1121, %v1123
      %v1130 = vperm.slane %v1025, 0
      %v1132 = vadd.f32 %v1125, %v1130
      %v1133 = vadd.f32 %v1126, %v1130
      %v1134 = vadd.f32 %v1127, %v1130
      %v1135 = vadd.f32 %v1128, %v1130
      %v1136 = vpack.c.bf16 %v1133, %v1132
      %v1137 = vpack.c.bf16 %v1135, %v1134
      %v1138 = vld [vmem:[%s9] sm:$0x1]
      %v1139 = vld [vmem:[%s11] sm:$0x1]
      %v1140 = vlaneseq
      %v1141 = vand.u32 %v1140, 127
      %vm1142 = vcmp.lt.s32.totalorder %v1141, 22
      %1143 = vadd.xlane.f32.xlu0 %v988
      %v1144 = vpop.xlane.xlu0 %1143
      %1145 = vadd.xlane.f32.xlu0 %v989
      %v1146 = vpop.xlane.xlu0 %1145
      %1147 = vadd.xlane.f32.xlu0 %v990
      %v1148 = vpop.xlane.xlu0 %1147
      %1149 = vadd.xlane.f32.xlu0 %v991
      %v1150 = vpop.xlane.xlu0 %1149
      %1151 = vadd.xlane.f32.xlu0 %v992
      %v1152 = vpop.xlane.xlu0 %1151
      %1153 = vadd.xlane.f32.xlu0 %v993
      %v1154 = vpop.xlane.xlu0 %1153
      %1155 = vadd.xlane.f32.xlu0 %v994
      %v1156 = vpop.xlane.xlu0 %1155
      %1157 = vadd.xlane.f32.xlu0 %v995
      %v1158 = vpop.xlane.xlu0 %1157
      %1159 = vadd.xlane.f32.xlu0 %v996
      %v1160 = vpop.xlane.xlu0 %1159
      %1161 = vadd.xlane.f32.xlu0 %v997
      %v1162 = vpop.xlane.xlu0 %1161
      %1163 = vadd.xlane.f32.xlu0 %v998
      %v1164 = vpop.xlane.xlu0 %1163
      %1165 = vadd.xlane.f32.xlu0 %v999
      %v1166 = vpop.xlane.xlu0 %1165
      %1167 = vadd.xlane.f32.xlu0 %v1000
      %v1168 = vpop.xlane.xlu0 %1167
      %1169 = vadd.xlane.f32.xlu0 %v1001
      %v1170 = vpop.xlane.xlu0 %1169
      %1171 = vadd.xlane.f32.xlu0 %v1002
      %v1172 = vpop.xlane.xlu0 %1171
      %1173 = vadd.xlane.f32.xlu0 %v1003
      %v1174 = vpop.xlane.xlu0 %1173
      %1175 = vadd.xlane.f32.xlu0 %v1004
      %v1176 = vpop.xlane.xlu0 %1175
      %1177 = vadd.xlane.f32.xlu0 %v1005
      %v1178 = vpop.xlane.xlu0 %1177
      %1179 = vadd.xlane.f32.xlu0 %v1006
      %v1180 = vpop.xlane.xlu0 %1179
      %1181 = vadd.xlane.f32.xlu0 %v1007
      %v1182 = vpop.xlane.xlu0 %1181
      %1183 = vadd.xlane.f32.xlu0 %v1008
      %v1184 = vpop.xlane.xlu0 %1183
      %1185 = vadd.xlane.f32.xlu0 %v1009
      %v1186 = vpop.xlane.xlu0 %1185
      %1187 = vadd.xlane.f32.xlu0 %v1010
      %v1188 = vpop.xlane.xlu0 %1187
      %1189 = vadd.xlane.f32.xlu0 %v1011
      %v1190 = vpop.xlane.xlu0 %1189
      %1191 = vadd.xlane.f32.xlu0 %v1012
      %v1192 = vpop.xlane.xlu0 %1191
      %1193 = vadd.xlane.f32.xlu0 %v1013
      %v1194 = vpop.xlane.xlu0 %1193
      %1195 = vadd.xlane.f32.xlu0 %v1014
      %v1196 = vpop.xlane.xlu0 %1195
      %1197 = vadd.xlane.f32.xlu0 %v1015
      %v1198 = vpop.xlane.xlu0 %1197
      %1199 = vadd.xlane.f32.xlu0 %v1016
      %v1200 = vpop.xlane.xlu0 %1199
      %1201 = vadd.xlane.f32.xlu0 %v1017
      %v1202 = vpop.xlane.xlu0 %1201
      %1203 = vadd.xlane.f32.xlu0 %v1018
      %v1204 = vpop.xlane.xlu0 %1203
      %1205 = vadd.xlane.f32.xlu0 %v1019
      %v1206 = vpop.xlane.xlu0 %1205
      %v1207 = vmul.f32 %v1144, 0.045454547
      %v1208 = vmul.f32 %v1146, 0.045454547
      %v1209 = vmul.f32 %v1148, 0.045454547
      %v1210 = vmul.f32 %v1150, 0.045454547
      %v1211 = vmul.f32 %v1152, 0.045454547
      %v1212 = vmul.f32 %v1154, 0.045454547
      %v1213 = vmul.f32 %v1156, 0.045454547
      %v1214 = vmul.f32 %v1158, 0.045454547
      %v1215 = vmul.f32 %v1160, 0.045454547
      %v1216 = vmul.f32 %v1162, 0.045454547
      %v1217 = vmul.f32 %v1164, 0.045454547
      %v1218 = vmul.f32 %v1166, 0.045454547
      %v1219 = vmul.f32 %v1168, 0.045454547
      %v1220 = vmul.f32 %v1170, 0.045454547
      %v1221 = vmul.f32 %v1172, 0.045454547
      %v1222 = vmul.f32 %v1174, 0.045454547
      %v1223 = vmul.f32 %v1176, 0.045454547
      %v1224 = vmul.f32 %v1178, 0.045454547
      %v1225 = vmul.f32 %v1180, 0.045454547
      %v1226 = vmul.f32 %v1182, 0.045454547
      %v1227 = vmul.f32 %v1184, 0.045454547
      %v1228 = vmul.f32 %v1186, 0.045454547
      %v1229 = vmul.f32 %v1188, 0.045454547
      %v1230 = vmul.f32 %v1190, 0.045454547
      %v1231 = vmul.f32 %v1192, 0.045454547
      %v1232 = vmul.f32 %v1194, 0.045454547
      %v1233 = vmul.f32 %v1196, 0.045454547
      %v1234 = vmul.f32 %v1198, 0.045454547
      %v1235 = vmul.f32 %v1200, 0.045454547
      %v1236 = vmul.f32 %v1202, 0.045454547
      %v1237 = vmul.f32 %v1204, 0.045454547
      %v1238 = vmul.f32 %v1206, 0.045454547
      %v1239 = vsub.f32 %v988, %v1207
      %v1240 = vsub.f32 %v989, %v1208
      %v1241 = vsub.f32 %v990, %v1209
      %v1242 = vsub.f32 %v991, %v1210
      %v1243 = vsub.f32 %v992, %v1211
      %v1244 = vsub.f32 %v993, %v1212
      %v1245 = vsub.f32 %v994, %v1213
      %v1246 = vsub.f32 %v995, %v1214
      %v1247 = vsub.f32 %v996, %v1215
      %v1248 = vsub.f32 %v997, %v1216
      %v1249 = vsub.f32 %v998, %v1217
      %v1250 = vsub.f32 %v999, %v1218
      %v1251 = vsub.f32 %v1000, %v1219
      %v1252 = vsub.f32 %v1001, %v1220
      %v1253 = vsub.f32 %v1002, %v1221
      %v1254 = vsub.f32 %v1003, %v1222
      %v1255 = vsub.f32 %v1004, %v1223
      %v1256 = vsub.f32 %v1005, %v1224
      %v1257 = vsub.f32 %v1006, %v1225
      %v1258 = vsub.f32 %v1007, %v1226
      %v1259 = vsub.f32 %v1008, %v1227
      %v1260 = vsub.f32 %v1009, %v1228
      %v1261 = vsub.f32 %v1010, %v1229
      %v1262 = vsub.f32 %v1011, %v1230
      %v1263 = vsub.f32 %v1012, %v1231
      %v1264 = vsub.f32 %v1013, %v1232
      %v1265 = vsub.f32 %v1014, %v1233
      %v1266 = vsub.f32 %v1015, %v1234
      %v1267 = vsub.f32 %v1016, %v1235
      %v1268 = vsub.f32 %v1017, %v1236
      %v1269 = vsub.f32 %v1018, %v1237
      %v1270 = vsub.f32 %v1019, %v1238
      %v1271 = vsel %vm1142, %v1239, 0.0
      %v1272 = vsel %vm1142, %v1240, 0.0
      %v1273 = vsel %vm1142, %v1241, 0.0
      %v1274 = vsel %vm1142, %v1242, 0.0
      %v1275 = vsel %vm1142, %v1243, 0.0
      %v1276 = vsel %vm1142, %v1244, 0.0
      %v1277 = vsel %vm1142, %v1245, 0.0
      %v1278 = vsel %vm1142, %v1246, 0.0
      %v1279 = vsel %vm1142, %v1247, 0.0
      %v1280 = vsel %vm1142, %v1248, 0.0
      %v1281 = vsel %vm1142, %v1249, 0.0
      %v1282 = vsel %vm1142, %v1250, 0.0
      %v1283 = vsel %vm1142, %v1251, 0.0
      %v1284 = vsel %vm1142, %v1252, 0.0
      %v1285 = vsel %vm1142, %v1253, 0.0
      %v1286 = vsel %vm1142, %v1254, 0.0
      %v1287 = vsel %vm1142, %v1255, 0.0
      %v1288 = vsel %vm1142, %v1256, 0.0
      %v1289 = vsel %vm1142, %v1257, 0.0
      %v1290 = vsel %vm1142, %v1258, 0.0
      %v1291 = vsel %vm1142, %v1259, 0.0
      %v1292 = vsel %vm1142, %v1260, 0.0
      %v1293 = vsel %vm1142, %v1261, 0.0
      %v1294 = vsel %vm1142, %v1262, 0.0
      %v1295 = vsel %vm1142, %v1263, 0.0
      %v1296 = vsel %vm1142, %v1264, 0.0
      %v1297 = vsel %vm1142, %v1265, 0.0
      %v1298 = vsel %vm1142, %v1266, 0.0
      %v1299 = vsel %vm1142, %v1267, 0.0
      %v1300 = vsel %vm1142, %v1268, 0.0
      %v1301 = vsel %vm1142, %v1269, 0.0
      %v1302 = vsel %vm1142, %v1270, 0.0
      %v1303 = vmul.f32 %v1271, %v1271
      %v1304 = vmul.f32 %v1272, %v1272
      %v1305 = vmul.f32 %v1273, %v1273
      %v1306 = vmul.f32 %v1274, %v1274
      %v1307 = vmul.f32 %v1275, %v1275
      %v1308 = vmul.f32 %v1276, %v1276
      %v1309 = vmul.f32 %v1277, %v1277
      %v1310 = vmul.f32 %v1278, %v1278
      %v1311 = vmul.f32 %v1279, %v1279
      %v1312 = vmul.f32 %v1280, %v1280
      %v1313 = vmul.f32 %v1281, %v1281
      %v1314 = vmul.f32 %v1282, %v1282
      %v1315 = vmul.f32 %v1283, %v1283
      %v1316 = vmul.f32 %v1284, %v1284
      %v1317 = vmul.f32 %v1285, %v1285
      %v1318 = vmul.f32 %v1286, %v1286
      %v1319 = vmul.f32 %v1287, %v1287
      %v1320 = vmul.f32 %v1288, %v1288
      %v1321 = vmul.f32 %v1289, %v1289
      %v1322 = vmul.f32 %v1290, %v1290
      %v1323 = vmul.f32 %v1291, %v1291
      %v1324 = vmul.f32 %v1292, %v1292
      %v1325 = vmul.f32 %v1293, %v1293
      %v1326 = vmul.f32 %v1294, %v1294
      %v1327 = vmul.f32 %v1295, %v1295
      %v1328 = vmul.f32 %v1296, %v1296
      %v1329 = vmul.f32 %v1297, %v1297
      %v1330 = vmul.f32 %v1298, %v1298
      %v1331 = vmul.f32 %v1299, %v1299
      %v1332 = vmul.f32 %v1300, %v1300
      %v1333 = vmul.f32 %v1301, %v1301
      %v1334 = vmul.f32 %v1302, %v1302
      %1335 = vadd.xlane.f32.xlu0 %v1303
      %v1336 = vpop.xlane.xlu0 %1335
      %1337 = vadd.xlane.f32.xlu0 %v1304
      %v1338 = vpop.xlane.xlu0 %1337
      %1339 = vadd.xlane.f32.xlu0 %v1305
      %v1340 = vpop.xlane.xlu0 %1339
      %1341 = vadd.xlane.f32.xlu0 %v1306
      %v1342 = vpop.xlane.xlu0 %1341
      %1343 = vadd.xlane.f32.xlu0 %v1307
      %v1344 = vpop.xlane.xlu0 %1343
      %1345 = vadd.xlane.f32.xlu0 %v1308
      %v1346 = vpop.xlane.xlu0 %1345
      %1347 = vadd.xlane.f32.xlu0 %v1309
      %v1348 = vpop.xlane.xlu0 %1347
      %1349 = vadd.xlane.f32.xlu0 %v1310
      %v1350 = vpop.xlane.xlu0 %1349
      %1351 = vadd.xlane.f32.xlu0 %v1311
      %v1352 = vpop.xlane.xlu0 %1351
      %1353 = vadd.xlane.f32.xlu0 %v1312
      %v1354 = vpop.xlane.xlu0 %1353
      %1355 = vadd.xlane.f32.xlu0 %v1313
      %v1356 = vpop.xlane.xlu0 %1355
      %1357 = vadd.xlane.f32.xlu0 %v1314
      %v1358 = vpop.xlane.xlu0 %1357
      %1359 = vadd.xlane.f32.xlu0 %v1315
      %v1360 = vpop.xlane.xlu0 %1359
      %1361 = vadd.xlane.f32.xlu0 %v1316
      %v1362 = vpop.xlane.xlu0 %1361
      %1363 = vadd.xlane.f32.xlu0 %v1317
      %v1364 = vpop.xlane.xlu0 %1363
      %1365 = vadd.xlane.f32.xlu0 %v1318
      %v1366 = vpop.xlane.xlu0 %1365
      %1367 = vadd.xlane.f32.xlu0 %v1319
      %v1368 = vpop.xlane.xlu0 %1367
      %1369 = vadd.xlane.f32.xlu0 %v1320
      %v1370 = vpop.xlane.xlu0 %1369
      %1371 = vadd.xlane.f32.xlu0 %v1321
      %v1372 = vpop.xlane.xlu0 %1371
      %1373 = vadd.xlane.f32.xlu0 %v1322
      %v1374 = vpop.xlane.xlu0 %1373
      %1375 = vadd.xlane.f32.xlu0 %v1323
      %v1376 = vpop.xlane.xlu0 %1375
      %1377 = vadd.xlane.f32.xlu0 %v1324
      %v1378 = vpop.xlane.xlu0 %1377
      %1379 = vadd.xlane.f32.xlu0 %v1325
      %v1380 = vpop.xlane.xlu0 %1379
      %1381 = vadd.xlane.f32.xlu0 %v1326
      %v1382 = vpop.xlane.xlu0 %1381
      %1383 = vadd.xlane.f32.xlu0 %v1327
      %v1384 = vpop.xlane.xlu0 %1383
      %1385 = vadd.xlane.f32.xlu0 %v1328
      %v1386 = vpop.xlane.xlu0 %1385
      %1387 = vadd.xlane.f32.xlu0 %v1329
      %v1388 = vpop.xlane.xlu0 %1387
      %1389 = vadd.xlane.f32.xlu0 %v1330
      %v1390 = vpop.xlane.xlu0 %1389
      %1391 = vadd.xlane.f32.xlu0 %v1331
      %v1392 = vpop.xlane.xlu0 %1391
      %1393 = vadd.xlane.f32.xlu0 %v1332
      %v1394 = vpop.xlane.xlu0 %1393
      %1395 = vadd.xlane.f32.xlu0 %v1333
      %v1396 = vpop.xlane.xlu0 %1395
      %1397 = vadd.xlane.f32.xlu0 %v1334
      %v1398 = vpop.xlane.xlu0 %1397
      %v1399 = vmul.f32 %v1336, 0.045454547
      %v1400 = vmul.f32 %v1338, 0.045454547
      %v1401 = vmul.f32 %v1340, 0.045454547
      %v1402 = vmul.f32 %v1342, 0.045454547
      %v1403 = vmul.f32 %v1344, 0.045454547
      %v1404 = vmul.f32 %v1346, 0.045454547
      %v1405 = vmul.f32 %v1348, 0.045454547
      %v1406 = vmul.f32 %v1350, 0.045454547
      %v1407 = vmul.f32 %v1352, 0.045454547
      %v1408 = vmul.f32 %v1354, 0.045454547
      %v1409 = vmul.f32 %v1356, 0.045454547
      %v1410 = vmul.f32 %v1358, 0.045454547
      %v1411 = vmul.f32 %v1360, 0.045454547
      %v1412 = vmul.f32 %v1362, 0.045454547
      %v1413 = vmul.f32 %v1364, 0.045454547
      %v1414 = vmul.f32 %v1366, 0.045454547
      %v1415 = vmul.f32 %v1368, 0.045454547
      %v1416 = vmul.f32 %v1370, 0.045454547
      %v1417 = vmul.f32 %v1372, 0.045454547
      %v1418 = vmul.f32 %v1374, 0.045454547
      %v1419 = vmul.f32 %v1376, 0.045454547
      %v1420 = vmul.f32 %v1378, 0.045454547
      %v1421 = vmul.f32 %v1380, 0.045454547
      %v1422 = vmul.f32 %v1382, 0.045454547
      %v1423 = vmul.f32 %v1384, 0.045454547
      %v1424 = vmul.f32 %v1386, 0.045454547
      %v1425 = vmul.f32 %v1388, 0.045454547
      %v1426 = vmul.f32 %v1390, 0.045454547
      %v1427 = vmul.f32 %v1392, 0.045454547
      %v1428 = vmul.f32 %v1394, 0.045454547
      %v1429 = vmul.f32 %v1396, 0.045454547
      %v1430 = vmul.f32 %v1398, 0.045454547
      %v1431 = vadd.f32 %v1399, 1e-05
      %v1432 = vadd.f32 %v1400, 1e-05
      %v1433 = vadd.f32 %v1401, 1e-05
      %v1434 = vadd.f32 %v1402, 1e-05
      %v1435 = vadd.f32 %v1403, 1e-05
      %v1436 = vadd.f32 %v1404, 1e-05
      %v1437 = vadd.f32 %v1405, 1e-05
      %v1438 = vadd.f32 %v1406, 1e-05
      %v1439 = vadd.f32 %v1407, 1e-05
      %v1440 = vadd.f32 %v1408, 1e-05
      %v1441 = vadd.f32 %v1409, 1e-05
      %v1442 = vadd.f32 %v1410, 1e-05
      %v1443 = vadd.f32 %v1411, 1e-05
      %v1444 = vadd.f32 %v1412, 1e-05
      %v1445 = vadd.f32 %v1413, 1e-05
      %v1446 = vadd.f32 %v1414, 1e-05
      %v1447 = vadd.f32 %v1415, 1e-05
      %v1448 = vadd.f32 %v1416, 1e-05
      %v1449 = vadd.f32 %v1417, 1e-05
      %v1450 = vadd.f32 %v1418, 1e-05
      %v1451 = vadd.f32 %v1419, 1e-05
      %v1452 = vadd.f32 %v1420, 1e-05
      %v1453 = vadd.f32 %v1421, 1e-05
      %v1454 = vadd.f32 %v1422, 1e-05
      %v1455 = vadd.f32 %v1423, 1e-05
      %v1456 = vadd.f32 %v1424, 1e-05
      %v1457 = vadd.f32 %v1425, 1e-05
      %v1458 = vadd.f32 %v1426, 1e-05
      %v1459 = vadd.f32 %v1427, 1e-05
      %v1460 = vadd.f32 %v1428, 1e-05
      %v1461 = vadd.f32 %v1429, 1e-05
      %v1462 = vadd.f32 %v1430, 1e-05
      %v1463 = vrsqrt.pop %v1431
      %v1464 = vmul.f32 %v1463, %v1431
      %v1465 = vmul.f32 %v1464, %v1463
      %v1466 = vmul.f32 0.5, %v1465
      %v1467 = vsub.f32 1.5, %v1466
      %v1468 = vmul.f32 %v1463, %v1467
      %vm1469 = vweird.f32 %v1431
      %vm1470 = vweird.f32 %v1463
      %vm1471 = vmor %vm1469, %vm1470
      %v1472 = vsel %vm1471, %v1463, %v1468
      %v1473 = vrsqrt.pop %v1432
      %v1474 = vmul.f32 %v1473, %v1432
      %v1475 = vmul.f32 %v1474, %v1473
      %v1476 = vmul.f32 0.5, %v1475
      %v1477 = vsub.f32 1.5, %v1476
      %v1478 = vmul.f32 %v1473, %v1477
      %vm1479 = vweird.f32 %v1432
      %vm1480 = vweird.f32 %v1473
      %vm1481 = vmor %vm1479, %vm1480
      %v1482 = vsel %vm1481, %v1473, %v1478
      %v1483 = vrsqrt.pop %v1433
      %v1484 = vmul.f32 %v1483, %v1433
      %v1485 = vmul.f32 %v1484, %v1483
      %v1486 = vmul.f32 0.5, %v1485
      %v1487 = vsub.f32 1.5, %v1486
      %v1488 = vmul.f32 %v1483, %v1487
      %vm1489 = vweird.f32 %v1433
      %vm1490 = vweird.f32 %v1483
      %vm1491 = vmor %vm1489, %vm1490
      %v1492 = vsel %vm1491, %v1483, %v1488
      %v1493 = vrsqrt.pop %v1434
      %v1494 = vmul.f32 %v1493, %v1434
      %v1495 = vmul.f32 %v1494, %v1493
      %v1496 = vmul.f32 0.5, %v1495
      %v1497 = vsub.f32 1.5, %v1496
      %v1498 = vmul.f32 %v1493, %v1497
      %vm1499 = vweird.f32 %v1434
      %vm1500 = vweird.f32 %v1493
      %vm1501 = vmor %vm1499, %vm1500
      %v1502 = vsel %vm1501, %v1493, %v1498
      %v1503 = vrsqrt.pop %v1435
      %v1504 = vmul.f32 %v1503, %v1435
      %v1505 = vmul.f32 %v1504, %v1503
      %v1506 = vmul.f32 0.5, %v1505
      %v1507 = vsub.f32 1.5, %v1506
      %v1508 = vmul.f32 %v1503, %v1507
      %vm1509 = vweird.f32 %v1435
      %vm1510 = vweird.f32 %v1503
      %vm1511 = vmor %vm1509, %vm1510
      %v1512 = vsel %vm1511, %v1503, %v1508
      %v1513 = vrsqrt.pop %v1436
      %v1514 = vmul.f32 %v1513, %v1436
      %v1515 = vmul.f32 %v1514, %v1513
      %v1516 = vmul.f32 0.5, %v1515
      %v1517 = vsub.f32 1.5, %v1516
      %v1518 = vmul.f32 %v1513, %v1517
      %vm1519 = vweird.f32 %v1436
      %vm1520 = vweird.f32 %v1513
      %vm1521 = vmor %vm1519, %vm1520
      %v1522 = vsel %vm1521, %v1513, %v1518
      %v1523 = vrsqrt.pop %v1437
      %v1524 = vmul.f32 %v1523, %v1437
      %v1525 = vmul.f32 %v1524, %v1523
      %v1526 = vmul.f32 0.5, %v1525
      %v1527 = vsub.f32 1.5, %v1526
      %v1528 = vmul.f32 %v1523, %v1527
      %vm1529 = vweird.f32 %v1437
      %vm1530 = vweird.f32 %v1523
      %vm1531 = vmor %vm1529, %vm1530
      %v1532 = vsel %vm1531, %v1523, %v1528
      %v1533 = vrsqrt.pop %v1438
      %v1534 = vmul.f32 %v1533, %v1438
      %v1535 = vmul.f32 %v1534, %v1533
      %v1536 = vmul.f32 0.5, %v1535
      %v1537 = vsub.f32 1.5, %v1536
      %v1538 = vmul.f32 %v1533, %v1537
      %vm1539 = vweird.f32 %v1438
      %vm1540 = vweird.f32 %v1533
      %vm1541 = vmor %vm1539, %vm1540
      %v1542 = vsel %vm1541, %v1533, %v1538
      %v1543 = vrsqrt.pop %v1439
      %v1544 = vmul.f32 %v1543, %v1439
      %v1545 = vmul.f32 %v1544, %v1543
      %v1546 = vmul.f32 0.5, %v1545
      %v1547 = vsub.f32 1.5, %v1546
      %v1548 = vmul.f32 %v1543, %v1547
      %vm1549 = vweird.f32 %v1439
      %vm1550 = vweird.f32 %v1543
      %vm1551 = vmor %vm1549, %vm1550
      %v1552 = vsel %vm1551, %v1543, %v1548
      %v1553 = vrsqrt.pop %v1440
      %v1554 = vmul.f32 %v1553, %v1440
      %v1555 = vmul.f32 %v1554, %v1553
      %v1556 = vmul.f32 0.5, %v1555
      %v1557 = vsub.f32 1.5, %v1556
      %v1558 = vmul.f32 %v1553, %v1557
      %vm1559 = vweird.f32 %v1440
      %vm1560 = vweird.f32 %v1553
      %vm1561 = vmor %vm1559, %vm1560
      %v1562 = vsel %vm1561, %v1553, %v1558
      %v1563 = vrsqrt.pop %v1441
      %v1564 = vmul.f32 %v1563, %v1441
      %v1565 = vmul.f32 %v1564, %v1563
      %v1566 = vmul.f32 0.5, %v1565
      %v1567 = vsub.f32 1.5, %v1566
      %v1568 = vmul.f32 %v1563, %v1567
      %vm1569 = vweird.f32 %v1441
      %vm1570 = vweird.f32 %v1563
      %vm1571 = vmor %vm1569, %vm1570
      %v1572 = vsel %vm1571, %v1563, %v1568
      %v1573 = vrsqrt.pop %v1442
      %v1574 = vmul.f32 %v1573, %v1442
      %v1575 = vmul.f32 %v1574, %v1573
      %v1576 = vmul.f32 0.5, %v1575
      %v1577 = vsub.f32 1.5, %v1576
      %v1578 = vmul.f32 %v1573, %v1577
      %vm1579 = vweird.f32 %v1442
      %vm1580 = vweird.f32 %v1573
      %vm1581 = vmor %vm1579, %vm1580
      %v1582 = vsel %vm1581, %v1573, %v1578
      %v1583 = vrsqrt.pop %v1443
      %v1584 = vmul.f32 %v1583, %v1443
      %v1585 = vmul.f32 %v1584, %v1583
      %v1586 = vmul.f32 0.5, %v1585
      %v1587 = vsub.f32 1.5, %v1586
      %v1588 = vmul.f32 %v1583, %v1587
      %vm1589 = vweird.f32 %v1443
      %vm1590 = vweird.f32 %v1583
      %vm1591 = vmor %vm1589, %vm1590
      %v1592 = vsel %vm1591, %v1583, %v1588
      %v1593 = vrsqrt.pop %v1444
      %v1594 = vmul.f32 %v1593, %v1444
      %v1595 = vmul.f32 %v1594, %v1593
      %v1596 = vmul.f32 0.5, %v1595
      %v1597 = vsub.f32 1.5, %v1596
      %v1598 = vmul.f32 %v1593, %v1597
      %vm1599 = vweird.f32 %v1444
      %vm1600 = vweird.f32 %v1593
      %vm1601 = vmor %vm1599, %vm1600
      %v1602 = vsel %vm1601, %v1593, %v1598
      %v1603 = vrsqrt.pop %v1445
      %v1604 = vmul.f32 %v1603, %v1445
      %v1605 = vmul.f32 %v1604, %v1603
      %v1606 = vmul.f32 0.5, %v1605
      %v1607 = vsub.f32 1.5, %v1606
      %v1608 = vmul.f32 %v1603, %v1607
      %vm1609 = vweird.f32 %v1445
      %vm1610 = vweird.f32 %v1603
      %vm1611 = vmor %vm1609, %vm1610
      %v1612 = vsel %vm1611, %v1603, %v1608
      %v1613 = vrsqrt.pop %v1446
      %v1614 = vmul.f32 %v1613, %v1446
      %v1615 = vmul.f32 %v1614, %v1613
      %v1616 = vmul.f32 0.5, %v1615
      %v1617 = vsub.f32 1.5, %v1616
      %v1618 = vmul.f32 %v1613, %v1617
      %vm1619 = vweird.f32 %v1446
      %vm1620 = vweird.f32 %v1613
      %vm1621 = vmor %vm1619, %vm1620
      %v1622 = vsel %vm1621, %v1613, %v1618
      %v1623 = vrsqrt.pop %v1447
      %v1624 = vmul.f32 %v1623, %v1447
      %v1625 = vmul.f32 %v1624, %v1623
      %v1626 = vmul.f32 0.5, %v1625
      %v1627 = vsub.f32 1.5, %v1626
      %v1628 = vmul.f32 %v1623, %v1627
      %vm1629 = vweird.f32 %v1447
      %vm1630 = vweird.f32 %v1623
      %vm1631 = vmor %vm1629, %vm1630
      %v1632 = vsel %vm1631, %v1623, %v1628
      %v1633 = vrsqrt.pop %v1448
      %v1634 = vmul.f32 %v1633, %v1448
      %v1635 = vmul.f32 %v1634, %v1633
      %v1636 = vmul.f32 0.5, %v1635
      %v1637 = vsub.f32 1.5, %v1636
      %v1638 = vmul.f32 %v1633, %v1637
      %vm1639 = vweird.f32 %v1448
      %vm1640 = vweird.f32 %v1633
      %vm1641 = vmor %vm1639, %vm1640
      %v1642 = vsel %vm1641, %v1633, %v1638
      %v1643 = vrsqrt.pop %v1449
      %v1644 = vmul.f32 %v1643, %v1449
      %v1645 = vmul.f32 %v1644, %v1643
      %v1646 = vmul.f32 0.5, %v1645
      %v1647 = vsub.f32 1.5, %v1646
      %v1648 = vmul.f32 %v1643, %v1647
      %vm1649 = vweird.f32 %v1449
      %vm1650 = vweird.f32 %v1643
      %vm1651 = vmor %vm1649, %vm1650
      %v1652 = vsel %vm1651, %v1643, %v1648
      %v1653 = vrsqrt.pop %v1450
      %v1654 = vmul.f32 %v1653, %v1450
      %v1655 = vmul.f32 %v1654, %v1653
      %v1656 = vmul.f32 0.5, %v1655
      %v1657 = vsub.f32 1.5, %v1656
      %v1658 = vmul.f32 %v1653, %v1657
      %vm1659 = vweird.f32 %v1450
      %vm1660 = vweird.f32 %v1653
      %vm1661 = vmor %vm1659, %vm1660
      %v1662 = vsel %vm1661, %v1653, %v1658
      %v1663 = vrsqrt.pop %v1451
      %v1664 = vmul.f32 %v1663, %v1451
      %v1665 = vmul.f32 %v1664, %v1663
      %v1666 = vmul.f32 0.5, %v1665
      %v1667 = vsub.f32 1.5, %v1666
      %v1668 = vmul.f32 %v1663, %v1667
      %vm1669 = vweird.f32 %v1451
      %vm1670 = vweird.f32 %v1663
      %vm1671 = vmor %vm1669, %vm1670
      %v1672 = vsel %vm1671, %v1663, %v1668
      %v1673 = vrsqrt.pop %v1452
      %v1674 = vmul.f32 %v1673, %v1452
      %v1675 = vmul.f32 %v1674, %v1673
      %v1676 = vmul.f32 0.5, %v1675
      %v1677 = vsub.f32 1.5, %v1676
      %v1678 = vmul.f32 %v1673, %v1677
      %vm1679 = vweird.f32 %v1452
      %vm1680 = vweird.f32 %v1673
      %vm1681 = vmor %vm1679, %vm1680
      %v1682 = vsel %vm1681, %v1673, %v1678
      %v1683 = vrsqrt.pop %v1453
      %v1684 = vmul.f32 %v1683, %v1453
      %v1685 = vmul.f32 %v1684, %v1683
      %v1686 = vmul.f32 0.5, %v1685
      %v1687 = vsub.f32 1.5, %v1686
      %v1688 = vmul.f32 %v1683, %v1687
      %vm1689 = vweird.f32 %v1453
      %vm1690 = vweird.f32 %v1683
      %vm1691 = vmor %vm1689, %vm1690
      %v1692 = vsel %vm1691, %v1683, %v1688
      %v1693 = vrsqrt.pop %v1454
      %v1694 = vmul.f32 %v1693, %v1454
      %v1695 = vmul.f32 %v1694, %v1693
      %v1696 = vmul.f32 0.5, %v1695
      %v1697 = vsub.f32 1.5, %v1696
      %v1698 = vmul.f32 %v1693, %v1697
      %vm1699 = vweird.f32 %v1454
      %vm1700 = vweird.f32 %v1693
      %vm1701 = vmor %vm1699, %vm1700
      %v1702 = vsel %vm1701, %v1693, %v1698
      %v1703 = vrsqrt.pop %v1455
      %v1704 = vmul.f32 %v1703, %v1455
      %v1705 = vmul.f32 %v1704, %v1703
      %v1706 = vmul.f32 0.5, %v1705
      %v1707 = vsub.f32 1.5, %v1706
      %v1708 = vmul.f32 %v1703, %v1707
      %vm1709 = vweird.f32 %v1455
      %vm1710 = vweird.f32 %v1703
      %vm1711 = vmor %vm1709, %vm1710
      %v1712 = vsel %vm1711, %v1703, %v1708
      %v1713 = vrsqrt.pop %v1456
      %v1714 = vmul.f32 %v1713, %v1456
      %v1715 = vmul.f32 %v1714, %v1713
      %v1716 = vmul.f32 0.5, %v1715
      %v1717 = vsub.f32 1.5, %v1716
      %v1718 = vmul.f32 %v1713, %v1717
      %vm1719 = vweird.f32 %v1456
      %vm1720 = vweird.f32 %v1713
      %vm1721 = vmor %vm1719, %vm1720
      %v1722 = vsel %vm1721, %v1713, %v1718
      %v1723 = vrsqrt.pop %v1457
      %v1724 = vmul.f32 %v1723, %v1457
      %v1725 = vmul.f32 %v1724, %v1723
      %v1726 = vmul.f32 0.5, %v1725
      %v1727 = vsub.f32 1.5, %v1726
      %v1728 = vmul.f32 %v1723, %v1727
      %vm1729 = vweird.f32 %v1457
      %vm1730 = vweird.f32 %v1723
      %vm1731 = vmor %vm1729, %vm1730
      %v1732 = vsel %vm1731, %v1723, %v1728
      %v1733 = vrsqrt.pop %v1458
      %v1734 = vmul.f32 %v1733, %v1458
      %v1735 = vmul.f32 %v1734, %v1733
      %v1736 = vmul.f32 0.5, %v1735
      %v1737 = vsub.f32 1.5, %v1736
      %v1738 = vmul.f32 %v1733, %v1737
      %vm1739 = vweird.f32 %v1458
      %vm1740 = vweird.f32 %v1733
      %vm1741 = vmor %vm1739, %vm1740
      %v1742 = vsel %vm1741, %v1733, %v1738
      %v1743 = vrsqrt.pop %v1459
      %v1744 = vmul.f32 %v1743, %v1459
      %v1745 = vmul.f32 %v1744, %v1743
      %v1746 = vmul.f32 0.5, %v1745
      %v1747 = vsub.f32 1.5, %v1746
      %v1748 = vmul.f32 %v1743, %v1747
      %vm1749 = vweird.f32 %v1459
      %vm1750 = vweird.f32 %v1743
      %vm1751 = vmor %vm1749, %vm1750
      %v1752 = vsel %vm1751, %v1743, %v1748
      %v1753 = vrsqrt.pop %v1460
      %v1754 = vmul.f32 %v1753, %v1460
      %v1755 = vmul.f32 %v1754, %v1753
      %v1756 = vmul.f32 0.5, %v1755
      %v1757 = vsub.f32 1.5, %v1756
      %v1758 = vmul.f32 %v1753, %v1757
      %vm1759 = vweird.f32 %v1460
      %vm1760 = vweird.f32 %v1753
      %vm1761 = vmor %vm1759, %vm1760
      %v1762 = vsel %vm1761, %v1753, %v1758
      %v1763 = vrsqrt.pop %v1461
      %v1764 = vmul.f32 %v1763, %v1461
      %v1765 = vmul.f32 %v1764, %v1763
      %v1766 = vmul.f32 0.5, %v1765
      %v1767 = vsub.f32 1.5, %v1766
      %v1768 = vmul.f32 %v1763, %v1767
      %vm1769 = vweird.f32 %v1461
      %vm1770 = vweird.f32 %v1763
      %vm1771 = vmor %vm1769, %vm1770
      %v1772 = vsel %vm1771, %v1763, %v1768
      %v1773 = vrsqrt.pop %v1462
      %v1774 = vmul.f32 %v1773, %v1462
      %v1775 = vmul.f32 %v1774, %v1773
      %v1776 = vmul.f32 0.5, %v1775
      %v1777 = vsub.f32 1.5, %v1776
      %v1778 = vmul.f32 %v1773, %v1777
      %vm1779 = vweird.f32 %v1462
      %vm1780 = vweird.f32 %v1773
      %vm1781 = vmor %vm1779, %vm1780
      %v1782 = vsel %vm1781, %v1773, %v1778
      %v1783 = vmul.f32 %v1271, %v1472
      %v1784 = vmul.f32 %v1272, %v1482
      %v1785 = vmul.f32 %v1273, %v1492
      %v1786 = vmul.f32 %v1274, %v1502
      %v1787 = vmul.f32 %v1275, %v1512
      %v1788 = vmul.f32 %v1276, %v1522
      %v1789 = vmul.f32 %v1277, %v1532
      %v1790 = vmul.f32 %v1278, %v1542
      %v1791 = vmul.f32 %v1279, %v1552
      %v1792 = vmul.f32 %v1280, %v1562
      %v1793 = vmul.f32 %v1281, %v1572
      %v1794 = vmul.f32 %v1282, %v1582
      %v1795 = vmul.f32 %v1283, %v1592
      %v1796 = vmul.f32 %v1284, %v1602
      %v1797 = vmul.f32 %v1285, %v1612
      %v1798 = vmul.f32 %v1286, %v1622
      %v1799 = vmul.f32 %v1287, %v1632
      %v1800 = vmul.f32 %v1288, %v1642
      %v1801 = vmul.f32 %v1289, %v1652
      %v1802 = vmul.f32 %v1290, %v1662
      %v1803 = vmul.f32 %v1291, %v1672
      %v1804 = vmul.f32 %v1292, %v1682
      %v1805 = vmul.f32 %v1293, %v1692
      %v1806 = vmul.f32 %v1294, %v1702
      %v1807 = vmul.f32 %v1295, %v1712
      %v1808 = vmul.f32 %v1296, %v1722
      %v1809 = vmul.f32 %v1297, %v1732
      %v1810 = vmul.f32 %v1298, %v1742
      %v1811 = vmul.f32 %v1299, %v1752
      %v1812 = vmul.f32 %v1300, %v1762
      %v1813 = vmul.f32 %v1301, %v1772
      %v1814 = vmul.f32 %v1302, %v1782
      %v1816 = vperm.slane %v1138, 0
      %v1818 = vmul.f32 %v1783, %v1816
      %v1819 = vmul.f32 %v1784, %v1816
      %v1820 = vmul.f32 %v1785, %v1816
      %v1821 = vmul.f32 %v1786, %v1816
      %v1822 = vmul.f32 %v1787, %v1816
      %v1823 = vmul.f32 %v1788, %v1816
      %v1824 = vmul.f32 %v1789, %v1816
      %v1825 = vmul.f32 %v1790, %v1816
      %v1826 = vmul.f32 %v1791, %v1816
      %v1827 = vmul.f32 %v1792, %v1816
      %v1828 = vmul.f32 %v1793, %v1816
      %v1829 = vmul.f32 %v1794, %v1816
      %v1830 = vmul.f32 %v1795, %v1816
      %v1831 = vmul.f32 %v1796, %v1816
      %v1832 = vmul.f32 %v1797, %v1816
      %v1833 = vmul.f32 %v1798, %v1816
      %v1834 = vmul.f32 %v1799, %v1816
      %v1835 = vmul.f32 %v1800, %v1816
      %v1836 = vmul.f32 %v1801, %v1816
      %v1837 = vmul.f32 %v1802, %v1816
      %v1838 = vmul.f32 %v1803, %v1816
      %v1839 = vmul.f32 %v1804, %v1816
      %v1840 = vmul.f32 %v1805, %v1816
      %v1841 = vmul.f32 %v1806, %v1816
      %v1842 = vmul.f32 %v1807, %v1816
      %v1843 = vmul.f32 %v1808, %v1816
      %v1844 = vmul.f32 %v1809, %v1816
      %v1845 = vmul.f32 %v1810, %v1816
      %v1846 = vmul.f32 %v1811, %v1816
      %v1847 = vmul.f32 %v1812, %v1816
      %v1848 = vmul.f32 %v1813, %v1816
      %v1849 = vmul.f32 %v1814, %v1816
      %v1851 = vperm.slane %v1139, 0
      %v1853 = vadd.f32 %v1818, %v1851
      %v1854 = vadd.f32 %v1819, %v1851
      %v1855 = vadd.f32 %v1820, %v1851
      %v1856 = vadd.f32 %v1821, %v1851
      %v1857 = vadd.f32 %v1822, %v1851
      %v1858 = vadd.f32 %v1823, %v1851
      %v1859 = vadd.f32 %v1824, %v1851
      %v1860 = vadd.f32 %v1825, %v1851
      %v1861 = vadd.f32 %v1826, %v1851
      %v1862 = vadd.f32 %v1827, %v1851
      %v1863 = vadd.f32 %v1828, %v1851
      %v1864 = vadd.f32 %v1829, %v1851
      %v1865 = vadd.f32 %v1830, %v1851
      %v1866 = vadd.f32 %v1831, %v1851
      %v1867 = vadd.f32 %v1832, %v1851
      %v1868 = vadd.f32 %v1833, %v1851
      %v1869 = vadd.f32 %v1834, %v1851
      %v1870 = vadd.f32 %v1835, %v1851
      %v1871 = vadd.f32 %v1836, %v1851
      %v1872 = vadd.f32 %v1837, %v1851
      %v1873 = vadd.f32 %v1838, %v1851
      %v1874 = vadd.f32 %v1839, %v1851
      %v1875 = vadd.f32 %v1840, %v1851
      %v1876 = vadd.f32 %v1841, %v1851
      %v1877 = vadd.f32 %v1842, %v1851
      %v1878 = vadd.f32 %v1843, %v1851
      %v1879 = vadd.f32 %v1844, %v1851
      %v1880 = vadd.f32 %v1845, %v1851
      %v1881 = vadd.f32 %v1846, %v1851
      %v1882 = vadd.f32 %v1847, %v1851
      %v1883 = vadd.f32 %v1848, %v1851
      %v1884 = vadd.f32 %v1849, %v1851
      %v1885 = vpack.c.bf16 %v1854, %v1853
      %v1886 = vpack.c.bf16 %v1856, %v1855
      %v1887 = vpack.c.bf16 %v1858, %v1857
      %v1888 = vpack.c.bf16 %v1860, %v1859
      %v1889 = vpack.c.bf16 %v1862, %v1861
      %v1890 = vpack.c.bf16 %v1864, %v1863
      %v1891 = vpack.c.bf16 %v1866, %v1865
      %v1892 = vpack.c.bf16 %v1868, %v1867
      %v1893 = vpack.c.bf16 %v1870, %v1869
      %v1894 = vpack.c.bf16 %v1872, %v1871
      %v1895 = vpack.c.bf16 %v1874, %v1873
      %v1896 = vpack.c.bf16 %v1876, %v1875
      %v1897 = vpack.c.bf16 %v1878, %v1877
      %v1898 = vpack.c.bf16 %v1880, %v1879
      %v1899 = vpack.c.bf16 %v1882, %v1881
      %v1900 = vpack.c.bf16 %v1884, %v1883
      %v1901 = vld [vmem:[%s13] sm:$0xf]
      %v1902 = vld [vmem:[%s13 + $0x4] sm:$0xf]
      %v1903 = vld [vmem:[%s13 + $0x8] sm:$0xf]
      %v1904 = vld [vmem:[%s13 + $0xc] sm:$0xf]
      %v1905 = vld [vmem:[%s13 + $0x10] sm:$0xf]
      %v1906 = vld [vmem:[%s13 + $0x14] sm:$0xf]
      %v1907 = vld [vmem:[%s13 + $0x18] sm:$0xf]
      %v1908 = vld [vmem:[%s13 + $0x1c] sm:$0xf]
      %v1909 = vld [vmem:[%s15] sm:$0xf]
      %v1910 = vld [vmem:[%s15 + $0x4] sm:$0xf]
      %v1911 = vld [vmem:[%s15 + $0x8] sm:$0xf]
      %v1912 = vld [vmem:[%s15 + $0xc] sm:$0xf]
      %v1913 = vld [vmem:[%s15 + $0x10] sm:$0xf]
      %v1914 = vld [vmem:[%s15 + $0x14] sm:$0xf]
      %v1915 = vld [vmem:[%s15 + $0x18] sm:$0xf]
      %v1916 = vld [vmem:[%s15 + $0x1c] sm:$0xf]
      %v1917 = vld [vmem:[%s15 + $0x20] sm:$0xf]
      %v1918 = vld [vmem:[%s15 + $0x24] sm:$0xf]
      %v1919 = vld [vmem:[%s15 + $0x28] sm:$0xf]
      %v1920 = vld [vmem:[%s15 + $0x2c] sm:$0xf]
      %v1921 = vld [vmem:[%s15 + $0x30] sm:$0xf]
      %v1922 = vld [vmem:[%s15 + $0x34] sm:$0xf]
      %v1923 = vld [vmem:[%s15 + $0x38] sm:$0xf]
      %v1924 = vld [vmem:[%s15 + $0x3c] sm:$0xf]
      %v1925 = vld [vmem:[%s17] sm:$0xf]
      %v1926 = vld [vmem:[%s17 + $0x4] sm:$0xf]
      %v1927 = vld [vmem:[%s17 + $0x8] sm:$0xf]
      %v1928 = vld [vmem:[%s17 + $0xc] sm:$0xf]
      %v1929 = vld [vmem:[%s19] sm:$0x1]
      %v1938 = vunpack.c.l.b16 %v1901
      %v1939 = vunpack.c.l.b16 %v1902
      %v1940 = vunpack.c.l.b16 %v1903
      %v1941 = vunpack.c.l.b16 %v1904
      %v1942 = vunpack.c.l.b16 %v1905
      %v1943 = vunpack.c.l.b16 %v1906
      %v1944 = vunpack.c.l.b16 %v1907
      %v1945 = vunpack.c.l.b16 %v1908
      %v1946 = vpack.c.b16 %v1939, %v1938
      %v1947 = vpack.c.b16 %v1941, %v1940
      %v1948 = vpack.c.b16 %v1943, %v1942
      %v1949 = vpack.c.b16 %v1945, %v1944
      %v1955 = vsel %vm1026, %v1136, 0
      %v1958 = vsel %vm1026, %v1137, 0
      %1960 = vmatpush.bf16.msra.mxu0 0
      %1961 = vmatpush.bf16.msra.mxu0 0
      %1962 = vmatpush.bf16.msra.mxu0 0
      %1963 = vmatpush.bf16.msra.mxu0 0
      %1964 = vmatpush.bf16.msra.mxu0 %v1949
      %1965 = vmatpush.bf16.msra.mxu0 %v1948
      %1966 = vmatpush.bf16.msra.mxu0 %v1947
      %1967 = vmatpush.bf16.msra.mxu0 %v1946
      %1968 = vmatmul.bf16.gmra.mxu0 %v1955
      %v1969 = vpop.f32.mrf.mxu0
      %v1970 = vadd.f32 0.0, %v1969
      %v1971 = vpop.f32.mrf.mxu0
      %v1972 = vadd.f32 0.0, %v1971
      %1973 = vmatmul.bf16.gmra.mxu0 %v1958
      %v1974 = vpop.f32.mrf.mxu0
      %v1975 = vadd.f32 0.0, %v1974
      %v1976 = vpop.f32.mrf.mxu0
      %v1977 = vadd.f32 0.0, %v1976
      %1978 = vdwg.mxu0
      %v1979 = vpack.c.bf16 %v1972, %v1970
      %v1980 = vpack.c.bf16 %v1977, %v1975
      %v1997 = vunpack.c.l.b16 %v1909
      %v1998 = vunpack.c.l.b16 %v1910
      %v1999 = vunpack.c.l.b16 %v1911
      %v2000 = vunpack.c.l.b16 %v1912
      %v2001 = vunpack.c.l.b16 %v1913
      %v2002 = vunpack.c.l.b16 %v1914
      %v2003 = vunpack.c.l.b16 %v1915
      %v2004 = vunpack.c.l.b16 %v1916
      %v2005 = vunpack.c.l.b16 %v1917
      %v2006 = vunpack.c.l.b16 %v1918
      %v2007 = vunpack.c.l.b16 %v1919
      %v2008 = vunpack.c.l.b16 %v1920
      %v2009 = vunpack.c.l.b16 %v1921
      %v2010 = vunpack.c.l.b16 %v1922
      %v2011 = vunpack.c.l.b16 %v1923
      %v2012 = vunpack.c.l.b16 %v1924
      %v2013 = vpack.c.b16 %v1998, %v1997
      %v2014 = vpack.c.b16 %v2000, %v1999
      %v2015 = vpack.c.b16 %v2002, %v2001
      %v2016 = vpack.c.b16 %v2004, %v2003
      %v2017 = vpack.c.b16 %v2006, %v2005
      %v2018 = vpack.c.b16 %v2008, %v2007
      %v2019 = vpack.c.b16 %v2010, %v2009
      %v2020 = vpack.c.b16 %v2012, %v2011
      %2029 = vmatpush.bf16.msra.mxu0 %v2020
      %2030 = vmatpush.bf16.msra.mxu0 %v2019
      %2031 = vmatpush.bf16.msra.mxu0 %v2018
      %2032 = vmatpush.bf16.msra.mxu0 %v2017
      %2033 = vmatpush.bf16.msra.mxu0 %v2016
      %2034 = vmatpush.bf16.msra.mxu0 %v2015
      %2035 = vmatpush.bf16.msra.mxu0 %v2014
      %2036 = vmatpush.bf16.msra.mxu0 %v2013
      %2037 = vmatmul.bf16.gmra.mxu0 %v1885
      %v2038 = vpop.f32.mrf.mxu0
      %v2039 = vadd.f32 0.0, %v2038
      %v2040 = vpop.f32.mrf.mxu0
      %v2041 = vadd.f32 0.0, %v2040
      %2042 = vmatmul.bf16.gmra.mxu0 %v1886
      %v2043 = vpop.f32.mrf.mxu0
      %v2044 = vadd.f32 0.0, %v2043
      %v2045 = vpop.f32.mrf.mxu0
      %v2046 = vadd.f32 0.0, %v2045
      %2047 = vmatmul.bf16.gmra.mxu0 %v1887
      %v2048 = vpop.f32.mrf.mxu0
      %v2049 = vadd.f32 0.0, %v2048
      %v2050 = vpop.f32.mrf.mxu0
      %v2051 = vadd.f32 0.0, %v2050
      %2052 = vmatmul.bf16.gmra.mxu0 %v1888
      %v2053 = vpop.f32.mrf.mxu0
      %v2054 = vadd.f32 0.0, %v2053
      %v2055 = vpop.f32.mrf.mxu0
      %v2056 = vadd.f32 0.0, %v2055
      %2057 = vmatmul.bf16.gmra.mxu0 %v1889
      %v2058 = vpop.f32.mrf.mxu0
      %v2059 = vadd.f32 0.0, %v2058
      %v2060 = vpop.f32.mrf.mxu0
      %v2061 = vadd.f32 0.0, %v2060
      %2062 = vmatmul.bf16.gmra.mxu0 %v1890
      %v2063 = vpop.f32.mrf.mxu0
      %v2064 = vadd.f32 0.0, %v2063
      %v2065 = vpop.f32.mrf.mxu0
      %v2066 = vadd.f32 0.0, %v2065
      %2067 = vmatmul.bf16.gmra.mxu0 %v1891
      %v2068 = vpop.f32.mrf.mxu0
      %v2069 = vadd.f32 0.0, %v2068
      %v2070 = vpop.f32.mrf.mxu0
      %v2071 = vadd.f32 0.0, %v2070
      %2072 = vmatmul.bf16.gmra.mxu0 %v1892
      %v2073 = vpop.f32.mrf.mxu0
      %v2074 = vadd.f32 0.0, %v2073
      %v2075 = vpop.f32.mrf.mxu0
      %v2076 = vadd.f32 0.0, %v2075
      %2077 = vmatmul.bf16.gmra.mxu0 %v1893
      %v2078 = vpop.f32.mrf.mxu0
      %v2079 = vadd.f32 0.0, %v2078
      %v2080 = vpop.f32.mrf.mxu0
      %v2081 = vadd.f32 0.0, %v2080
      %2082 = vmatmul.bf16.gmra.mxu0 %v1894
      %v2083 = vpop.f32.mrf.mxu0
      %v2084 = vadd.f32 0.0, %v2083
      %v2085 = vpop.f32.mrf.mxu0
      %v2086 = vadd.f32 0.0, %v2085
      %2087 = vmatmul.bf16.gmra.mxu0 %v1895
      %v2088 = vpop.f32.mrf.mxu0
      %v2089 = vadd.f32 0.0, %v2088
      %v2090 = vpop.f32.mrf.mxu0
      %v2091 = vadd.f32 0.0, %v2090
      %2092 = vmatmul.bf16.gmra.mxu0 %v1896
      %v2093 = vpop.f32.mrf.mxu0
      %v2094 = vadd.f32 0.0, %v2093
      %v2095 = vpop.f32.mrf.mxu0
      %v2096 = vadd.f32 0.0, %v2095
      %2097 = vmatmul.bf16.gmra.mxu0 %v1897
      %v2098 = vpop.f32.mrf.mxu0
      %v2099 = vadd.f32 0.0, %v2098
      %v2100 = vpop.f32.mrf.mxu0
      %v2101 = vadd.f32 0.0, %v2100
      %2102 = vmatmul.bf16.gmra.mxu0 %v1898
      %v2103 = vpop.f32.mrf.mxu0
      %v2104 = vadd.f32 0.0, %v2103
      %v2105 = vpop.f32.mrf.mxu0
      %v2106 = vadd.f32 0.0, %v2105
      %2107 = vmatmul.bf16.gmra.mxu0 %v1899
      %v2108 = vpop.f32.mrf.mxu0
      %v2109 = vadd.f32 0.0, %v2108
      %v2110 = vpop.f32.mrf.mxu0
      %v2111 = vadd.f32 0.0, %v2110
      %2112 = vmatmul.bf16.gmra.mxu0 %v1900
      %v2113 = vpop.f32.mrf.mxu0
      %v2114 = vadd.f32 0.0, %v2113
      %v2115 = vpop.f32.mrf.mxu0
      %v2116 = vadd.f32 0.0, %v2115
      %2117 = vdwg.mxu0
      %v2118 = vpack.c.bf16 %v2041, %v2039
      %v2119 = vpack.c.bf16 %v2046, %v2044
      %v2120 = vpack.c.bf16 %v2051, %v2049
      %v2121 = vpack.c.bf16 %v2056, %v2054
      %v2122 = vpack.c.bf16 %v2061, %v2059
      %v2123 = vpack.c.bf16 %v2066, %v2064
      %v2124 = vpack.c.bf16 %v2071, %v2069
      %v2125 = vpack.c.bf16 %v2076, %v2074
      %v2126 = vpack.c.bf16 %v2081, %v2079
      %v2127 = vpack.c.bf16 %v2086, %v2084
      %v2128 = vpack.c.bf16 %v2091, %v2089
      %v2129 = vpack.c.bf16 %v2096, %v2094
      %v2130 = vpack.c.bf16 %v2101, %v2099
      %v2131 = vpack.c.bf16 %v2106, %v2104
      %v2132 = vpack.c.bf16 %v2111, %v2109
      %v2133 = vpack.c.bf16 %v2116, %v2114
      %vm2134 = vcmask 261120
      %v2136 = vsel %vm2134, %v1979, 0
      %v2139 = vsel %vm2134, %v1980, 0
      %v2142 = vsel %vm2134, %v2118, 0
      %v2145 = vsel %vm2134, %v2119, 0
      %v2148 = vsel %vm2134, %v2120, 0
      %v2151 = vsel %vm2134, %v2121, 0
      %v2154 = vsel %vm2134, %v2122, 0
      %v2157 = vsel %vm2134, %v2123, 0
      %v2160 = vsel %vm2134, %v2124, 0
      %v2163 = vsel %vm2134, %v2125, 0
      %v2166 = vsel %vm2134, %v2126, 0
      %v2169 = vsel %vm2134, %v2127, 0
      %v2172 = vsel %vm2134, %v2128, 0
      %v2175 = vsel %vm2134, %v2129, 0
      %v2178 = vsel %vm2134, %v2130, 0
      %v2181 = vsel %vm2134, %v2131, 0
      %v2184 = vsel %vm2134, %v2132, 0
      %v2187 = vsel %vm2134, %v2133, 0
      %2189 = vmatpush.bf16.xpose.msra.mxu0 %v2163
      %2190 = vmatpush.bf16.xpose.msra.mxu0 %v2160
      %2191 = vmatpush.bf16.xpose.msra.mxu0 %v2157
      %2192 = vmatpush.bf16.xpose.msra.mxu0 %v2154
      %2193 = vmatpush.bf16.xpose.msra.mxu0 %v2151
      %2194 = vmatpush.bf16.xpose.msra.mxu0 %v2148
      %2195 = vmatpush.bf16.xpose.msra.mxu0 %v2145
      %2196 = vmatpush.bf16.xpose.msra.mxu0 %v2142
      %2197 = vmatmul.bf16.gmra.mxu0 %v2136
      %v2198 = vpop.f32.mrf.mxu0
      %v2199 = vadd.f32 0.0, %v2198
      %v2200 = vpop.f32.mrf.mxu0
      %v2201 = vadd.f32 0.0, %v2200
      %2202 = vmatmul.bf16.gmra.mxu0 %v2139
      %v2203 = vpop.f32.mrf.mxu0
      %v2204 = vadd.f32 0.0, %v2203
      %v2205 = vpop.f32.mrf.mxu0
      %v2206 = vadd.f32 0.0, %v2205
      %2207 = vdwg.mxu0
      %2208 = vmatpush.bf16.xpose.msra.mxu0 %v2187
      %2209 = vmatpush.bf16.xpose.msra.mxu0 %v2184
      %2210 = vmatpush.bf16.xpose.msra.mxu0 %v2181
      %2211 = vmatpush.bf16.xpose.msra.mxu0 %v2178
      %2212 = vmatpush.bf16.xpose.msra.mxu0 %v2175
      %2213 = vmatpush.bf16.xpose.msra.mxu0 %v2172
      %2214 = vmatpush.bf16.xpose.msra.mxu0 %v2169
      %2215 = vmatpush.bf16.xpose.msra.mxu0 %v2166
      %2216 = vmatmul.bf16.gmra.mxu0 %v2136
      %v2217 = vpop.f32.mrf.mxu0
      %v2218 = vadd.f32 0.0, %v2217
      %v2219 = vpop.f32.mrf.mxu0
      %v2220 = vadd.f32 0.0, %v2219
      %2221 = vmatmul.bf16.gmra.mxu0 %v2139
      %v2222 = vpop.f32.mrf.mxu0
      %v2223 = vadd.f32 0.0, %v2222
      %v2224 = vpop.f32.mrf.mxu0
      %v2225 = vadd.f32 0.0, %v2224
      %2226 = vdwg.mxu0
      %v2227 = vmax.f32 %v2199, %v2218
      %2228 = vmax.xlane.f32.xlu0 %v2227
      %v2229 = vpop.xlane.xlu0 %2228
      %v2230 = vmax.f32 %v2201, %v2220
      %2231 = vmax.xlane.f32.xlu0 %v2230
      %v2232 = vpop.xlane.xlu0 %2231
      %v2233 = vmax.f32 %v2204, %v2223
      %2234 = vmax.xlane.f32.xlu0 %v2233
      %v2235 = vpop.xlane.xlu0 %2234
      %v2236 = vmax.f32 %v2206, %v2225
      %2237 = vmax.xlane.f32.xlu0 %v2236
      %v2238 = vpop.xlane.xlu0 %2237
      %v2239 = vsub.f32 %v2199, %v2229
      %v2240 = vsub.f32 %v2218, %v2229
      %v2241 = vsub.f32 %v2201, %v2232
      %v2242 = vsub.f32 %v2220, %v2232
      %v2243 = vsub.f32 %v2204, %v2235
      %v2244 = vsub.f32 %v2223, %v2235
      %v2245 = vsub.f32 %v2206, %v2238
      %v2246 = vsub.f32 %v2225, %v2238
      %v2247 = vmul.f32 %v2239, 1.442695
      %v2248 = vpow.pop %v2247
      %v2249 = vmul.f32 %v2240, 1.442695
      %v2250 = vpow.pop %v2249
      %v2251 = vmul.f32 %v2241, 1.442695
      %v2252 = vpow.pop %v2251
      %v2253 = vmul.f32 %v2242, 1.442695
      %v2254 = vpow.pop %v2253
      %v2255 = vmul.f32 %v2243, 1.442695
      %v2256 = vpow.pop %v2255
      %v2257 = vmul.f32 %v2244, 1.442695
      %v2258 = vpow.pop %v2257
      %v2259 = vmul.f32 %v2245, 1.442695
      %v2260 = vpow.pop %v2259
      %v2261 = vmul.f32 %v2246, 1.442695
      %v2262 = vpow.pop %v2261
      %v2263 = vadd.f32 %v2248, %v2250
      %2264 = vadd.xlane.f32.xlu0 %v2263
      %v2265 = vpop.xlane.xlu0 %2264
      %v2266 = vadd.f32 %v2252, %v2254
      %2267 = vadd.xlane.f32.xlu0 %v2266
      %v2268 = vpop.xlane.xlu0 %2267
      %v2269 = vadd.f32 %v2256, %v2258
      %2270 = vadd.xlane.f32.xlu0 %v2269
      %v2271 = vpop.xlane.xlu0 %2270
      %v2272 = vadd.f32 %v2260, %v2262
      %2273 = vadd.xlane.f32.xlu0 %v2272
      %v2274 = vpop.xlane.xlu0 %2273
      %v2275 = vrcp.pop %v2265
      %v2276 = vrcp.pop %v2268
      %v2277 = vrcp.pop %v2271
      %v2278 = vrcp.pop %v2274
      %v2279 = vmul.f32 %v2248, %v2275
      %v2280 = vmul.f32 %v2250, %v2275
      %v2281 = vmul.f32 %v2252, %v2276
      %v2282 = vmul.f32 %v2254, %v2276
      %v2283 = vmul.f32 %v2256, %v2277
      %v2284 = vmul.f32 %v2258, %v2277
      %v2285 = vmul.f32 %v2260, %v2278
      %v2286 = vmul.f32 %v2262, %v2278
      %v2287 = vpack.c.bf16 %v2281, %v2279
      %v2288 = vpack.c.bf16 %v2282, %v2280
      %v2289 = vpack.c.bf16 %v2285, %v2283
      %v2290 = vpack.c.bf16 %v2286, %v2284
      %2307 = vrot.lane.b32.xlu0 %v2118, 96
      %v2308 = vpop.permute.xlu0 %2307
      %2309 = vrot.lane.b32.xlu0 %v2119, 96
      %v2310 = vpop.permute.xlu0 %2309
      %2311 = vrot.lane.b32.xlu0 %v2120, 96
      %v2312 = vpop.permute.xlu0 %2311
      %2313 = vrot.lane.b32.xlu0 %v2121, 96
      %v2314 = vpop.permute.xlu0 %2313
      %2315 = vrot.lane.b32.xlu0 %v2122, 96
      %v2316 = vpop.permute.xlu0 %2315
      %2317 = vrot.lane.b32.xlu0 %v2123, 96
      %v2318 = vpop.permute.xlu0 %2317
      %2319 = vrot.lane.b32.xlu0 %v2124, 96
      %v2320 = vpop.permute.xlu0 %2319
      %2321 = vrot.lane.b32.xlu0 %v2125, 96
      %v2322 = vpop.permute.xlu0 %2321
      %2323 = vrot.lane.b32.xlu0 %v2126, 96
      %v2324 = vpop.permute.xlu0 %2323
      %2325 = vrot.lane.b32.xlu0 %v2127, 96
      %v2326 = vpop.permute.xlu0 %2325
      %2327 = vrot.lane.b32.xlu0 %v2128, 96
      %v2328 = vpop.permute.xlu0 %2327
      %2329 = vrot.lane.b32.xlu0 %v2129, 96
      %v2330 = vpop.permute.xlu0 %2329
      %2331 = vrot.lane.b32.xlu0 %v2130, 96
      %v2332 = vpop.permute.xlu0 %2331
      %2333 = vrot.lane.b32.xlu0 %v2131, 96
      %v2334 = vpop.permute.xlu0 %2333
      %2335 = vrot.lane.b32.xlu0 %v2132, 96
      %v2336 = vpop.permute.xlu0 %2335
      %2337 = vrot.lane.b32.xlu0 %v2133, 96
      %v2338 = vpop.permute.xlu0 %2337
      %2355 = vmatpush.bf16.msra.mxu0 %v2322
      %2356 = vmatpush.bf16.msra.mxu0 %v2320
      %2357 = vmatpush.bf16.msra.mxu0 %v2318
      %2358 = vmatpush.bf16.msra.mxu0 %v2316
      %2359 = vmatpush.bf16.msra.mxu0 %v2314
      %2360 = vmatpush.bf16.msra.mxu0 %v2312
      %2361 = vmatpush.bf16.msra.mxu0 %v2310
      %2362 = vmatpush.bf16.msra.mxu0 %v2308
      %2363 = vmatmul.bf16.gmra.mxu0 %v2287
      %v2364 = vpop.f32.mrf.mxu0
      %v2365 = vadd.f32 0.0, %v2364
      %v2366 = vpop.f32.mrf.mxu0
      %v2367 = vadd.f32 0.0, %v2366
      %2368 = vmatmul.bf16.gmra.mxu0 %v2289
      %v2369 = vpop.f32.mrf.mxu0
      %v2370 = vadd.f32 0.0, %v2369
      %v2371 = vpop.f32.mrf.mxu0
      %v2372 = vadd.f32 0.0, %v2371
      %2373 = vdwg.mxu0
      %2374 = vmatpush.bf16.msra.mxu0 %v2338
      %2375 = vmatpush.bf16.msra.mxu0 %v2336
      %2376 = vmatpush.bf16.msra.mxu0 %v2334
      %2377 = vmatpush.bf16.msra.mxu0 %v2332
      %2378 = vmatpush.bf16.msra.mxu0 %v2330
      %2379 = vmatpush.bf16.msra.mxu0 %v2328
      %2380 = vmatpush.bf16.msra.mxu0 %v2326
      %2381 = vmatpush.bf16.msra.mxu0 %v2324
      %2382 = vmatmul.bf16.gmra.mxu0 %v2288
      %v2383 = vpop.f32.mrf.mxu0
      %v2384 = vadd.f32 %v2365, %v2383
      %v2385 = vpop.f32.mrf.mxu0
      %v2386 = vadd.f32 %v2367, %v2385
      %2387 = vmatmul.bf16.gmra.mxu0 %v2290
      %v2388 = vpop.f32.mrf.mxu0
      %v2389 = vadd.f32 %v2370, %v2388
      %v2390 = vpop.f32.mrf.mxu0
      %v2391 = vadd.f32 %v2372, %v2390
      %2392 = vdwg.mxu0
      %v2393 = vpack.c.bf16 %v2386, %v2384
      %v2394 = vpack.c.bf16 %v2391, %v2389
      %v2396 = vperm.slane %v1929, 0
      %v2402 = vunpack.c.l.b16 %v1925
      %v2403 = vunpack.c.l.b16 %v1926
      %v2404 = vunpack.c.l.b16 %v1927
      %v2405 = vunpack.c.l.b16 %v1928
      %v2406 = vpack.c.b16 %v2403, %v2402
      %v2407 = vpack.c.b16 %v2405, %v2404
      %v2411 = vsel %vm2134, %v2393, 0
      %v2414 = vsel %vm2134, %v2394, 0
      %2416 = vmatpush.bf16.msra.mxu0 0
      %2417 = vmatpush.bf16.msra.mxu0 0
      %2418 = vmatpush.bf16.msra.mxu0 0
      %2419 = vmatpush.bf16.msra.mxu0 0
      %2420 = vmatpush.bf16.msra.mxu0 0
      %2421 = vmatpush.bf16.msra.mxu0 0
      %2422 = vmatpush.bf16.msra.mxu0 %v2407
      %2423 = vmatpush.bf16.msra.mxu0 %v2406
      %2424 = vmatmul.bf16.gmra.mxu0 %v2411
      %v2425 = vpop.f32.mrf.mxu0
      %v2426 = vadd.f32 %v2396, %v2425
      %v2427 = vpop.f32.mrf.mxu0
      %v2428 = vadd.f32 %v2396, %v2427
      %2429 = vmatmul.bf16.gmra.mxu0 %v2414
      %v2430 = vpop.f32.mrf.mxu0
      %v2431 = vadd.f32 %v2396, %v2430
      %v2432 = vpop.f32.mrf.mxu0
      %v2433 = vadd.f32 %v2396, %v2432
      %2434 = vdwg.mxu0
      %v2435 = vadd.f32 %v2426, %v1020
      %v2436 = vadd.f32 %v2428, %v1021
      %v2437 = vadd.f32 %v2431, %v1022
      %v2438 = vadd.f32 %v2433, %v1023
      %v2439 = vld [vmem:[%s21] sm:$0x1]
      %v2440 = vld [vmem:[%s23] sm:$0x1]
      %v2441 = vld [vmem:[%s25] sm:$0xff]
      %v2442 = vld [vmem:[%s25 + $0x8] sm:$0xff]
      %v2443 = vld [vmem:[%s25 + $0x10] sm:$0xff]
      %v2444 = vld [vmem:[%s25 + $0x18] sm:$0xff]
      %v2445 = vld [vmem:[%s25 + $0x20] sm:$0xff]
      %v2446 = vld [vmem:[%s25 + $0x28] sm:$0xff]
      %v2447 = vld [vmem:[%s25 + $0x30] sm:$0xff]
      %v2448 = vld [vmem:[%s25 + $0x38] sm:$0xff]
      %v2449 = vld [vmem:[%s25 + $0x40] sm:$0xff]
      %v2450 = vld [vmem:[%s25 + $0x48] sm:$0xff]
      %v2451 = vld [vmem:[%s25 + $0x50] sm:$0xff]
      %v2452 = vld [vmem:[%s25 + $0x58] sm:$0xff]
      %v2453 = vld [vmem:[%s25 + $0x60] sm:$0xff]
      %v2454 = vld [vmem:[%s25 + $0x68] sm:$0xff]
      %v2455 = vld [vmem:[%s25 + $0x70] sm:$0xff]
      %v2456 = vld [vmem:[%s25 + $0x78] sm:$0xff]
      %v2457 = vld [vmem:[%s27] sm:$0xf]
      %v2458 = vld [vmem:[%s29] sm:$0xf]
      %v2459 = vld [vmem:[%s29 + $0x4] sm:$0xf]
      %v2460 = vld [vmem:[%s29 + $0x8] sm:$0xf]
      %v2461 = vld [vmem:[%s29 + $0xc] sm:$0xf]
      %v2462 = vld [vmem:[%s29 + $0x10] sm:$0xf]
      %v2463 = vld [vmem:[%s29 + $0x14] sm:$0xf]
      %v2464 = vld [vmem:[%s29 + $0x18] sm:$0xf]
      %v2465 = vld [vmem:[%s29 + $0x1c] sm:$0xf]
      %v2466 = vld [vmem:[%s29 + $0x20] sm:$0xf]
      %v2467 = vld [vmem:[%s29 + $0x24] sm:$0xf]
      %v2468 = vld [vmem:[%s29 + $0x28] sm:$0xf]
      %v2469 = vld [vmem:[%s29 + $0x2c] sm:$0xf]
      %v2470 = vld [vmem:[%s29 + $0x30] sm:$0xf]
      %v2471 = vld [vmem:[%s29 + $0x34] sm:$0xf]
      %v2472 = vld [vmem:[%s29 + $0x38] sm:$0xf]
      %v2473 = vld [vmem:[%s29 + $0x3c] sm:$0xf]
      %v2474 = vld [vmem:[%s29 + $0x40] sm:$0xf]
      %v2475 = vld [vmem:[%s29 + $0x44] sm:$0xf]
      %v2476 = vld [vmem:[%s29 + $0x48] sm:$0xf]
      %v2477 = vld [vmem:[%s29 + $0x4c] sm:$0xf]
      %v2478 = vld [vmem:[%s29 + $0x50] sm:$0xf]
      %v2479 = vld [vmem:[%s29 + $0x54] sm:$0xf]
      %v2480 = vld [vmem:[%s29 + $0x58] sm:$0xf]
      %v2481 = vld [vmem:[%s29 + $0x5c] sm:$0xf]
      %v2482 = vld [vmem:[%s29 + $0x60] sm:$0xf]
      %v2483 = vld [vmem:[%s29 + $0x64] sm:$0xf]
      %v2484 = vld [vmem:[%s29 + $0x68] sm:$0xf]
      %v2485 = vld [vmem:[%s29 + $0x6c] sm:$0xf]
      %v2486 = vld [vmem:[%s29 + $0x70] sm:$0xf]
      %v2487 = vld [vmem:[%s29 + $0x74] sm:$0xf]
      %v2488 = vld [vmem:[%s29 + $0x78] sm:$0xf]
      %v2489 = vld [vmem:[%s29 + $0x7c] sm:$0xf]
      %v2490 = vld [vmem:[%s31] sm:$0x1]
      %v2491 = vsel %vm1026, %v2435, 0.0
      %2492 = vadd.xlane.f32.xlu0 %v2491
      %v2493 = vpop.xlane.xlu0 %2492
      %v2494 = vsel %vm1026, %v2436, 0.0
      %2495 = vadd.xlane.f32.xlu0 %v2494
      %v2496 = vpop.xlane.xlu0 %2495
      %v2497 = vsel %vm1026, %v2437, 0.0
      %2498 = vadd.xlane.f32.xlu0 %v2497
      %v2499 = vpop.xlane.xlu0 %2498
      %v2500 = vsel %vm1026, %v2438, 0.0
      %2501 = vadd.xlane.f32.xlu0 %v2500
      %v2502 = vpop.xlane.xlu0 %2501
      %v2503 = vmul.f32 %v2493, %v1045
      %v2504 = vmul.f32 %v2496, %v1045
      %v2505 = vmul.f32 %v2499, %v1045
      %v2506 = vmul.f32 %v2502, %v1045
      %v2507 = vsub.f32 %v2435, %v2503
      %v2508 = vsub.f32 %v2436, %v2504
      %v2509 = vsub.f32 %v2437, %v2505
      %v2510 = vsub.f32 %v2438, %v2506
      %v2511 = vmul.f32 %v2507, %v2507
      %v2512 = vmul.f32 %v2508, %v2508
      %v2513 = vmul.f32 %v2509, %v2509
      %v2514 = vmul.f32 %v2510, %v2510
      %v2515 = vsel %vm1026, %v2511, 0.0
      %2516 = vadd.xlane.f32.xlu0 %v2515
      %v2517 = vpop.xlane.xlu0 %2516
      %v2518 = vsel %vm1026, %v2512, 0.0
      %2519 = vadd.xlane.f32.xlu0 %v2518
      %v2520 = vpop.xlane.xlu0 %2519
      %v2521 = vsel %vm1026, %v2513, 0.0
      %2522 = vadd.xlane.f32.xlu0 %v2521
      %v2523 = vpop.xlane.xlu0 %2522
      %v2524 = vsel %vm1026, %v2514, 0.0
      %2525 = vadd.xlane.f32.xlu0 %v2524
      %v2526 = vpop.xlane.xlu0 %2525
      %v2527 = vmul.f32 %v2517, %v1045
      %v2528 = vmul.f32 %v2520, %v1045
      %v2529 = vmul.f32 %v2523, %v1045
      %v2530 = vmul.f32 %v2526, %v1045
      %v2531 = vadd.f32 %v2527, 1e-05
      %v2532 = vadd.f32 %v2528, 1e-05
      %v2533 = vadd.f32 %v2529, 1e-05
      %v2534 = vadd.f32 %v2530, 1e-05
      %v2535 = vrsqrt.pop %v2531
      %v2536 = vmul.f32 %v2535, %v2531
      %v2537 = vmul.f32 %v2536, %v2535
      %v2538 = vmul.f32 0.5, %v2537
      %v2539 = vsub.f32 1.5, %v2538
      %v2540 = vmul.f32 %v2535, %v2539
      %vm2541 = vweird.f32 %v2531
      %vm2542 = vweird.f32 %v2535
      %vm2543 = vmor %vm2541, %vm2542
      %v2544 = vsel %vm2543, %v2535, %v2540
      %v2545 = vrsqrt.pop %v2532
      %v2546 = vmul.f32 %v2545, %v2532
      %v2547 = vmul.f32 %v2546, %v2545
      %v2548 = vmul.f32 0.5, %v2547
      %v2549 = vsub.f32 1.5, %v2548
      %v2550 = vmul.f32 %v2545, %v2549
      %vm2551 = vweird.f32 %v2532
      %vm2552 = vweird.f32 %v2545
      %vm2553 = vmor %vm2551, %vm2552
      %v2554 = vsel %vm2553, %v2545, %v2550
      %v2555 = vrsqrt.pop %v2533
      %v2556 = vmul.f32 %v2555, %v2533
      %v2557 = vmul.f32 %v2556, %v2555
      %v2558 = vmul.f32 0.5, %v2557
      %v2559 = vsub.f32 1.5, %v2558
      %v2560 = vmul.f32 %v2555, %v2559
      %vm2561 = vweird.f32 %v2533
      %vm2562 = vweird.f32 %v2555
      %vm2563 = vmor %vm2561, %vm2562
      %v2564 = vsel %vm2563, %v2555, %v2560
      %v2565 = vrsqrt.pop %v2534
      %v2566 = vmul.f32 %v2565, %v2534
      %v2567 = vmul.f32 %v2566, %v2565
      %v2568 = vmul.f32 0.5, %v2567
      %v2569 = vsub.f32 1.5, %v2568
      %v2570 = vmul.f32 %v2565, %v2569
      %vm2571 = vweird.f32 %v2534
      %vm2572 = vweird.f32 %v2565
      %vm2573 = vmor %vm2571, %vm2572
      %v2574 = vsel %vm2573, %v2565, %v2570
      %v2575 = vmul.f32 %v2507, %v2544
      %v2576 = vmul.f32 %v2508, %v2554
      %v2577 = vmul.f32 %v2509, %v2564
      %v2578 = vmul.f32 %v2510, %v2574
      %v2580 = vperm.slane %v2439, 0
      %v2582 = vmul.f32 %v2575, %v2580
      %v2583 = vmul.f32 %v2576, %v2580
      %v2584 = vmul.f32 %v2577, %v2580
      %v2585 = vmul.f32 %v2578, %v2580
      %v2587 = vperm.slane %v2440, 0
      %v2589 = vadd.f32 %v2582, %v2587
      %v2590 = vadd.f32 %v2583, %v2587
      %v2591 = vadd.f32 %v2584, %v2587
      %v2592 = vadd.f32 %v2585, %v2587
      %v2593 = vpack.c.bf16 %v2590, %v2589
      %v2594 = vpack.c.bf16 %v2592, %v2591
      %v2596 = vperm.slane %v2457, 0
      %v2597 = vperm.slane %v2457, 1
      %v2598 = vperm.slane %v2457, 2
      %v2599 = vperm.slane %v2457, 3
      %v2620 = vunpack.c.l.b16 %v2441
      %v2621 = vunpack.c.h.b16 %v2441
      %v2622 = vunpack.c.l.b16 %v2442
      %v2623 = vunpack.c.h.b16 %v2442
      %v2624 = vunpack.c.l.b16 %v2443
      %v2625 = vunpack.c.h.b16 %v2443
      %v2626 = vunpack.c.l.b16 %v2444
      %v2627 = vunpack.c.h.b16 %v2444
      %v2628 = vunpack.c.l.b16 %v2445
      %v2629 = vunpack.c.h.b16 %v2445
      %v2630 = vunpack.c.l.b16 %v2446
      %v2631 = vunpack.c.h.b16 %v2446
      %v2632 = vunpack.c.l.b16 %v2447
      %v2633 = vunpack.c.h.b16 %v2447
      %v2634 = vunpack.c.l.b16 %v2448
      %v2635 = vunpack.c.h.b16 %v2448
      %v2636 = vunpack.c.l.b16 %v2449
      %v2637 = vunpack.c.h.b16 %v2449
      %v2638 = vunpack.c.l.b16 %v2450
      %v2639 = vunpack.c.h.b16 %v2450
      %v2640 = vunpack.c.l.b16 %v2451
      %v2641 = vunpack.c.h.b16 %v2451
      %v2642 = vunpack.c.l.b16 %v2452
      %v2643 = vunpack.c.h.b16 %v2452
      %v2644 = vunpack.c.l.b16 %v2453
      %v2645 = vunpack.c.h.b16 %v2453
      %v2646 = vunpack.c.l.b16 %v2454
      %v2647 = vunpack.c.h.b16 %v2454
      %v2648 = vunpack.c.l.b16 %v2455
      %v2649 = vunpack.c.h.b16 %v2455
      %v2650 = vunpack.c.l.b16 %v2456
      %v2651 = vunpack.c.h.b16 %v2456
      %v2652 = vpack.c.b16 %v2624, %v2620
      %v2653 = vpack.c.b16 %v2625, %v2621
      %v2654 = vpack.c.b16 %v2626, %v2622
      %v2655 = vpack.c.b16 %v2627, %v2623
      %v2656 = vpack.c.b16 %v2632, %v2628
      %v2657 = vpack.c.b16 %v2633, %v2629
      %v2658 = vpack.c.b16 %v2634, %v2630
      %v2659 = vpack.c.b16 %v2635, %v2631
      %v2660 = vpack.c.b16 %v2640, %v2636
      %v2661 = vpack.c.b16 %v2641, %v2637
      %v2662 = vpack.c.b16 %v2642, %v2638
      %v2663 = vpack.c.b16 %v2643, %v2639
      %v2664 = vpack.c.b16 %v2648, %v2644
      %v2665 = vpack.c.b16 %v2649, %v2645
      %v2666 = vpack.c.b16 %v2650, %v2646
      %v2667 = vpack.c.b16 %v2651, %v2647
      %v2685 = vsel %vm1026, %v2593, 0
      %v2688 = vsel %vm1026, %v2594, 0
      %2690 = vmatpush.bf16.msra.mxu0 0
      %2691 = vmatpush.bf16.msra.mxu0 0
      %2692 = vmatpush.bf16.msra.mxu0 0
      %2693 = vmatpush.bf16.msra.mxu0 0
      %2694 = vmatpush.bf16.msra.mxu0 %v2664
      %2695 = vmatpush.bf16.msra.mxu0 %v2660
      %2696 = vmatpush.bf16.msra.mxu0 %v2656
      %2697 = vmatpush.bf16.msra.mxu0 %v2652
      %2698 = vmatmul.bf16.gmra.mxu0 %v2685
      %v2699 = vpop.f32.mrf.mxu0
      %v2700 = vadd.f32 %v2596, %v2699
      %v2701 = vpop.f32.mrf.mxu0
      %v2702 = vadd.f32 %v2596, %v2701
      %2703 = vmatmul.bf16.gmra.mxu0 %v2688
      %v2704 = vpop.f32.mrf.mxu0
      %v2705 = vadd.f32 %v2596, %v2704
      %v2706 = vpop.f32.mrf.mxu0
      %v2707 = vadd.f32 %v2596, %v2706
      %2708 = vdwg.mxu0
      %2709 = vmatpush.bf16.msra.mxu0 0
      %2710 = vmatpush.bf16.msra.mxu0 0
      %2711 = vmatpush.bf16.msra.mxu0 0
      %2712 = vmatpush.bf16.msra.mxu0 0
      %2713 = vmatpush.bf16.msra.mxu0 %v2665
      %2714 = vmatpush.bf16.msra.mxu0 %v2661
      %2715 = vmatpush.bf16.msra.mxu0 %v2657
      %2716 = vmatpush.bf16.msra.mxu0 %v2653
      %2717 = vmatmul.bf16.gmra.mxu0 %v2685
      %v2718 = vpop.f32.mrf.mxu0
      %v2719 = vadd.f32 %v2597, %v2718
      %v2720 = vpop.f32.mrf.mxu0
      %v2721 = vadd.f32 %v2597, %v2720
      %2722 = vmatmul.bf16.gmra.mxu0 %v2688
      %v2723 = vpop.f32.mrf.mxu0
      %v2724 = vadd.f32 %v2597, %v2723
      %v2725 = vpop.f32.mrf.mxu0
      %v2726 = vadd.f32 %v2597, %v2725
      %2727 = vdwg.mxu0
      %2728 = vmatpush.bf16.msra.mxu0 0
      %2729 = vmatpush.bf16.msra.mxu0 0
      %2730 = vmatpush.bf16.msra.mxu0 0
      %2731 = vmatpush.bf16.msra.mxu0 0
      %2732 = vmatpush.bf16.msra.mxu0 %v2666
      %2733 = vmatpush.bf16.msra.mxu0 %v2662
      %2734 = vmatpush.bf16.msra.mxu0 %v2658
      %2735 = vmatpush.bf16.msra.mxu0 %v2654
      %2736 = vmatmul.bf16.gmra.mxu0 %v2685
      %v2737 = vpop.f32.mrf.mxu0
      %v2738 = vadd.f32 %v2598, %v2737
      %v2739 = vpop.f32.mrf.mxu0
      %v2740 = vadd.f32 %v2598, %v2739
      %2741 = vmatmul.bf16.gmra.mxu0 %v2688
      %v2742 = vpop.f32.mrf.mxu0
      %v2743 = vadd.f32 %v2598, %v2742
      %v2744 = vpop.f32.mrf.mxu0
      %v2745 = vadd.f32 %v2598, %v2744
      %2746 = vdwg.mxu0
      %2747 = vmatpush.bf16.msra.mxu0 0
      %2748 = vmatpush.bf16.msra.mxu0 0
      %2749 = vmatpush.bf16.msra.mxu0 0
      %2750 = vmatpush.bf16.msra.mxu0 0
      %2751 = vmatpush.bf16.msra.mxu0 %v2667
      %2752 = vmatpush.bf16.msra.mxu0 %v2663
      %2753 = vmatpush.bf16.msra.mxu0 %v2659
      %2754 = vmatpush.bf16.msra.mxu0 %v2655
      %2755 = vmatmul.bf16.gmra.mxu0 %v2685
      %v2756 = vpop.f32.mrf.mxu0
      %v2757 = vadd.f32 %v2599, %v2756
      %v2758 = vpop.f32.mrf.mxu0
      %v2759 = vadd.f32 %v2599, %v2758
      %2760 = vmatmul.bf16.gmra.mxu0 %v2688
      %v2761 = vpop.f32.mrf.mxu0
      %v2762 = vadd.f32 %v2599, %v2761
      %v2763 = vpop.f32.mrf.mxu0
      %v2764 = vadd.f32 %v2599, %v2763
      %2765 = vdwg.mxu0
      %v2766 = vmul.f32 %v2738, 0.5
      %v2767 = vmul.f32 %v2757, 0.5
      %v2768 = vmul.f32 %v2740, 0.5
      %v2769 = vmul.f32 %v2759, 0.5
      %v2770 = vmul.f32 %v2743, 0.5
      %v2771 = vmul.f32 %v2762, 0.5
      %v2772 = vmul.f32 %v2745, 0.5
      %v2773 = vmul.f32 %v2764, 0.5
      %v2774 = vmul.f32 %v2738, 0.70710677
      %v2775 = vmul.f32 %v2757, 0.70710677
      %v2776 = vmul.f32 %v2740, 0.70710677
      %v2777 = vmul.f32 %v2759, 0.70710677
      %v2778 = vmul.f32 %v2743, 0.70710677
      %v2779 = vmul.f32 %v2762, 0.70710677
      %v2780 = vmul.f32 %v2745, 0.70710677
      %v2781 = vmul.f32 %v2764, 0.70710677
      %v2782 = vmul.f32 %v2774, %v2774
      %v2783 = vmin.f32 16.0, %v2782
      %v2784 = vmul.f32 %v2783, 2.1237322e-06
      %v2785 = vadd.f32 %v2784, 0.00028619796
      %v2786 = vmul.f32 %v2783, %v2785
      %v2787 = vadd.f32 %v2786, 0.0036580483
      %v2788 = vmul.f32 %v2783, %v2787
      %v2789 = vadd.f32 %v2788, 0.05243302
      %v2790 = vmul.f32 %v2783, %v2789
      %v2791 = vadd.f32 %v2790, 0.18741608
      %v2792 = vmul.f32 %v2783, %v2791
      %v2793 = vadd.f32 %v2792, 1.1283791
      %v2794 = vmul.f32 %v2774, %v2793
      %v2795 = vmul.f32 %v2783, 3.8918573e-05
      %v2796 = vadd.f32 %v2795, 0.001143296
      %v2797 = vmul.f32 %v2783, %v2796
      %v2798 = vadd.f32 %v2797, 0.014752088
      %v2799 = vmul.f32 %v2783, %v2798
      %v2800 = vadd.f32 %v2799, 0.112945676
      %v2801 = vmul.f32 %v2783, %v2800
      %v2802 = vadd.f32 %v2801, 0.4994258
      %v2803 = vmul.f32 %v2783, %v2802
      %v2804 = vadd.f32 %v2803, 1.0
      %v2805 = vrcp.pop %v2804
      %v2806 = vmul.f32 %v2804, %v2805
      %v2807 = vsub.f32 1.0, %v2806
      %v2808 = vmul.f32 %v2805, %v2807
      %v2809 = vadd.f32 %v2805, %v2808
      %vm2810 = vweird.f32 %v2804
      %vm2811 = vweird.f32 %v2805
      %vm2812 = vmor %vm2810, %vm2811
      %v2813 = vsel %vm2812, %v2805, %v2809
      %v2814 = vand.u32 2147483647, %v2804
      %vm2815 = vcmp.eq.f32.partialorder %v2814, 8.507059e+37
      %v2816 = vand.u32 %v2804, 2147483648
      %v2817 = vor.u32 1.1754944e-38, %v2816
      %v2818 = vsel %vm2815, %v2817, %v2813
      %v2819 = vmul.f32 %v2794, %v2818
      %v2820 = vmin.f32 %v2819, 1.0
      %v2821 = vmax.f32 %v2820, -1.0
      %v2822 = vmul.f32 %v2775, %v2775
      %v2823 = vmin.f32 16.0, %v2822
      %v2824 = vmul.f32 %v2823, 2.1237322e-06
      %v2825 = vadd.f32 %v2824, 0.00028619796
      %v2826 = vmul.f32 %v2823, %v2825
      %v2827 = vadd.f32 %v2826, 0.0036580483
      %v2828 = vmul.f32 %v2823, %v2827
      %v2829 = vadd.f32 %v2828, 0.05243302
      %v2830 = vmul.f32 %v2823, %v2829
      %v2831 = vadd.f32 %v2830, 0.18741608
      %v2832 = vmul.f32 %v2823, %v2831
      %v2833 = vadd.f32 %v2832, 1.1283791
      %v2834 = vmul.f32 %v2775, %v2833
      %v2835 = vmul.f32 %v2823, 3.8918573e-05
      %v2836 = vadd.f32 %v2835, 0.001143296
      %v2837 = vmul.f32 %v2823, %v2836
      %v2838 = vadd.f32 %v2837, 0.014752088
      %v2839 = vmul.f32 %v2823, %v2838
      %v2840 = vadd.f32 %v2839, 0.112945676
      %v2841 = vmul.f32 %v2823, %v2840
      %v2842 = vadd.f32 %v2841, 0.4994258
      %v2843 = vmul.f32 %v2823, %v2842
      %v2844 = vadd.f32 %v2843, 1.0
      %v2845 = vrcp.pop %v2844
      %v2846 = vmul.f32 %v2844, %v2845
      %v2847 = vsub.f32 1.0, %v2846
      %v2848 = vmul.f32 %v2845, %v2847
      %v2849 = vadd.f32 %v2845, %v2848
      %vm2850 = vweird.f32 %v2844
      %vm2851 = vweird.f32 %v2845
      %vm2852 = vmor %vm2850, %vm2851
      %v2853 = vsel %vm2852, %v2845, %v2849
      %v2854 = vand.u32 2147483647, %v2844
      %vm2855 = vcmp.eq.f32.partialorder %v2854, 8.507059e+37
      %v2856 = vand.u32 %v2844, 2147483648
      %v2857 = vor.u32 1.1754944e-38, %v2856
      %v2858 = vsel %vm2855, %v2857, %v2853
      %v2859 = vmul.f32 %v2834, %v2858
      %v2860 = vmin.f32 %v2859, 1.0
      %v2861 = vmax.f32 %v2860, -1.0
      %v2862 = vmul.f32 %v2776, %v2776
      %v2863 = vmin.f32 16.0, %v2862
      %v2864 = vmul.f32 %v2863, 2.1237322e-06
      %v2865 = vadd.f32 %v2864, 0.00028619796
      %v2866 = vmul.f32 %v2863, %v2865
      %v2867 = vadd.f32 %v2866, 0.0036580483
      %v2868 = vmul.f32 %v2863, %v2867
      %v2869 = vadd.f32 %v2868, 0.05243302
      %v2870 = vmul.f32 %v2863, %v2869
      %v2871 = vadd.f32 %v2870, 0.18741608
      %v2872 = vmul.f32 %v2863, %v2871
      %v2873 = vadd.f32 %v2872, 1.1283791
      %v2874 = vmul.f32 %v2776, %v2873
      %v2875 = vmul.f32 %v2863, 3.8918573e-05
      %v2876 = vadd.f32 %v2875, 0.001143296
      %v2877 = vmul.f32 %v2863, %v2876
      %v2878 = vadd.f32 %v2877, 0.014752088
      %v2879 = vmul.f32 %v2863, %v2878
      %v2880 = vadd.f32 %v2879, 0.112945676
      %v2881 = vmul.f32 %v2863, %v2880
      %v2882 = vadd.f32 %v2881, 0.4994258
      %v2883 = vmul.f32 %v2863, %v2882
      %v2884 = vadd.f32 %v2883, 1.0
      %v2885 = vrcp.pop %v2884
      %v2886 = vmul.f32 %v2884, %v2885
      %v2887 = vsub.f32 1.0, %v2886
      %v2888 = vmul.f32 %v2885, %v2887
      %v2889 = vadd.f32 %v2885, %v2888
      %vm2890 = vweird.f32 %v2884
      %vm2891 = vweird.f32 %v2885
      %vm2892 = vmor %vm2890, %vm2891
      %v2893 = vsel %vm2892, %v2885, %v2889
      %v2894 = vand.u32 2147483647, %v2884
      %vm2895 = vcmp.eq.f32.partialorder %v2894, 8.507059e+37
      %v2896 = vand.u32 %v2884, 2147483648
      %v2897 = vor.u32 1.1754944e-38, %v2896
      %v2898 = vsel %vm2895, %v2897, %v2893
      %v2899 = vmul.f32 %v2874, %v2898
      %v2900 = vmin.f32 %v2899, 1.0
      %v2901 = vmax.f32 %v2900, -1.0
      %v2902 = vmul.f32 %v2777, %v2777
      %v2903 = vmin.f32 16.0, %v2902
      %v2904 = vmul.f32 %v2903, 2.1237322e-06
      %v2905 = vadd.f32 %v2904, 0.00028619796
      %v2906 = vmul.f32 %v2903, %v2905
      %v2907 = vadd.f32 %v2906, 0.0036580483
      %v2908 = vmul.f32 %v2903, %v2907
      %v2909 = vadd.f32 %v2908, 0.05243302
      %v2910 = vmul.f32 %v2903, %v2909
      %v2911 = vadd.f32 %v2910, 0.18741608
      %v2912 = vmul.f32 %v2903, %v2911
      %v2913 = vadd.f32 %v2912, 1.1283791
      %v2914 = vmul.f32 %v2777, %v2913
      %v2915 = vmul.f32 %v2903, 3.8918573e-05
      %v2916 = vadd.f32 %v2915, 0.001143296
      %v2917 = vmul.f32 %v2903, %v2916
      %v2918 = vadd.f32 %v2917, 0.014752088
      %v2919 = vmul.f32 %v2903, %v2918
      %v2920 = vadd.f32 %v2919, 0.112945676
      %v2921 = vmul.f32 %v2903, %v2920
      %v2922 = vadd.f32 %v2921, 0.4994258
      %v2923 = vmul.f32 %v2903, %v2922
      %v2924 = vadd.f32 %v2923, 1.0
      %v2925 = vrcp.pop %v2924
      %v2926 = vmul.f32 %v2924, %v2925
      %v2927 = vsub.f32 1.0, %v2926
      %v2928 = vmul.f32 %v2925, %v2927
      %v2929 = vadd.f32 %v2925, %v2928
      %vm2930 = vweird.f32 %v2924
      %vm2931 = vweird.f32 %v2925
      %vm2932 = vmor %vm2930, %vm2931
      %v2933 = vsel %vm2932, %v2925, %v2929
      %v2934 = vand.u32 2147483647, %v2924
      %vm2935 = vcmp.eq.f32.partialorder %v2934, 8.507059e+37
      %v2936 = vand.u32 %v2924, 2147483648
      %v2937 = vor.u32 1.1754944e-38, %v2936
      %v2938 = vsel %vm2935, %v2937, %v2933
      %v2939 = vmul.f32 %v2914, %v2938
      %v2940 = vmin.f32 %v2939, 1.0
      %v2941 = vmax.f32 %v2940, -1.0
      %v2942 = vmul.f32 %v2778, %v2778
      %v2943 = vmin.f32 16.0, %v2942
      %v2944 = vmul.f32 %v2943, 2.1237322e-06
      %v2945 = vadd.f32 %v2944, 0.00028619796
      %v2946 = vmul.f32 %v2943, %v2945
      %v2947 = vadd.f32 %v2946, 0.0036580483
      %v2948 = vmul.f32 %v2943, %v2947
      %v2949 = vadd.f32 %v2948, 0.05243302
      %v2950 = vmul.f32 %v2943, %v2949
      %v2951 = vadd.f32 %v2950, 0.18741608
      %v2952 = vmul.f32 %v2943, %v2951
      %v2953 = vadd.f32 %v2952, 1.1283791
      %v2954 = vmul.f32 %v2778, %v2953
      %v2955 = vmul.f32 %v2943, 3.8918573e-05
      %v2956 = vadd.f32 %v2955, 0.001143296
      %v2957 = vmul.f32 %v2943, %v2956
      %v2958 = vadd.f32 %v2957, 0.014752088
      %v2959 = vmul.f32 %v2943, %v2958
      %v2960 = vadd.f32 %v2959, 0.112945676
      %v2961 = vmul.f32 %v2943, %v2960
      %v2962 = vadd.f32 %v2961, 0.4994258
      %v2963 = vmul.f32 %v2943, %v2962
      %v2964 = vadd.f32 %v2963, 1.0
      %v2965 = vrcp.pop %v2964
      %v2966 = vmul.f32 %v2964, %v2965
      %v2967 = vsub.f32 1.0, %v2966
      %v2968 = vmul.f32 %v2965, %v2967
      %v2969 = vadd.f32 %v2965, %v2968
      %vm2970 = vweird.f32 %v2964
      %vm2971 = vweird.f32 %v2965
      %vm2972 = vmor %vm2970, %vm2971
      %v2973 = vsel %vm2972, %v2965, %v2969
      %v2974 = vand.u32 2147483647, %v2964
      %vm2975 = vcmp.eq.f32.partialorder %v2974, 8.507059e+37
      %v2976 = vand.u32 %v2964, 2147483648
      %v2977 = vor.u32 1.1754944e-38, %v2976
      %v2978 = vsel %vm2975, %v2977, %v2973
      %v2979 = vmul.f32 %v2954, %v2978
      %v2980 = vmin.f32 %v2979, 1.0
      %v2981 = vmax.f32 %v2980, -1.0
      %v2982 = vmul.f32 %v2779, %v2779
      %v2983 = vmin.f32 16.0, %v2982
      %v2984 = vmul.f32 %v2983, 2.1237322e-06
      %v2985 = vadd.f32 %v2984, 0.00028619796
      %v2986 = vmul.f32 %v2983, %v2985
      %v2987 = vadd.f32 %v2986, 0.0036580483
      %v2988 = vmul.f32 %v2983, %v2987
      %v2989 = vadd.f32 %v2988, 0.05243302
      %v2990 = vmul.f32 %v2983, %v2989
      %v2991 = vadd.f32 %v2990, 0.18741608
      %v2992 = vmul.f32 %v2983, %v2991
      %v2993 = vadd.f32 %v2992, 1.1283791
      %v2994 = vmul.f32 %v2779, %v2993
      %v2995 = vmul.f32 %v2983, 3.8918573e-05
      %v2996 = vadd.f32 %v2995, 0.001143296
      %v2997 = vmul.f32 %v2983, %v2996
      %v2998 = vadd.f32 %v2997, 0.014752088
      %v2999 = vmul.f32 %v2983, %v2998
      %v3000 = vadd.f32 %v2999, 0.112945676
      %v3001 = vmul.f32 %v2983, %v3000
      %v3002 = vadd.f32 %v3001, 0.4994258
      %v3003 = vmul.f32 %v2983, %v3002
      %v3004 = vadd.f32 %v3003, 1.0
      %v3005 = vrcp.pop %v3004
      %v3006 = vmul.f32 %v3004, %v3005
      %v3007 = vsub.f32 1.0, %v3006
      %v3008 = vmul.f32 %v3005, %v3007
      %v3009 = vadd.f32 %v3005, %v3008
      %vm3010 = vweird.f32 %v3004
      %vm3011 = vweird.f32 %v3005
      %vm3012 = vmor %vm3010, %vm3011
      %v3013 = vsel %vm3012, %v3005, %v3009
      %v3014 = vand.u32 2147483647, %v3004
      %vm3015 = vcmp.eq.f32.partialorder %v3014, 8.507059e+37
      %v3016 = vand.u32 %v3004, 2147483648
      %v3017 = vor.u32 1.1754944e-38, %v3016
      %v3018 = vsel %vm3015, %v3017, %v3013
      %v3019 = vmul.f32 %v2994, %v3018
      %v3020 = vmin.f32 %v3019, 1.0
      %v3021 = vmax.f32 %v3020, -1.0
      %v3022 = vmul.f32 %v2780, %v2780
      %v3023 = vmin.f32 16.0, %v3022
      %v3024 = vmul.f32 %v3023, 2.1237322e-06
      %v3025 = vadd.f32 %v3024, 0.00028619796
      %v3026 = vmul.f32 %v3023, %v3025
      %v3027 = vadd.f32 %v3026, 0.0036580483
      %v3028 = vmul.f32 %v3023, %v3027
      %v3029 = vadd.f32 %v3028, 0.05243302
      %v3030 = vmul.f32 %v3023, %v3029
      %v3031 = vadd.f32 %v3030, 0.18741608
      %v3032 = vmul.f32 %v3023, %v3031
      %v3033 = vadd.f32 %v3032, 1.1283791
      %v3034 = vmul.f32 %v2780, %v3033
      %v3035 = vmul.f32 %v3023, 3.8918573e-05
      %v3036 = vadd.f32 %v3035, 0.001143296
      %v3037 = vmul.f32 %v3023, %v3036
      %v3038 = vadd.f32 %v3037, 0.014752088
      %v3039 = vmul.f32 %v3023, %v3038
      %v3040 = vadd.f32 %v3039, 0.112945676
      %v3041 = vmul.f32 %v3023, %v3040
      %v3042 = vadd.f32 %v3041, 0.4994258
      %v3043 = vmul.f32 %v3023, %v3042
      %v3044 = vadd.f32 %v3043, 1.0
      %v3045 = vrcp.pop %v3044
      %v3046 = vmul.f32 %v3044, %v3045
      %v3047 = vsub.f32 1.0, %v3046
      %v3048 = vmul.f32 %v3045, %v3047
      %v3049 = vadd.f32 %v3045, %v3048
      %vm3050 = vweird.f32 %v3044
      %vm3051 = vweird.f32 %v3045
      %vm3052 = vmor %vm3050, %vm3051
      %v3053 = vsel %vm3052, %v3045, %v3049
      %v3054 = vand.u32 2147483647, %v3044
      %vm3055 = vcmp.eq.f32.partialorder %v3054, 8.507059e+37
      %v3056 = vand.u32 %v3044, 2147483648
      %v3057 = vor.u32 1.1754944e-38, %v3056
      %v3058 = vsel %vm3055, %v3057, %v3053
      %v3059 = vmul.f32 %v3034, %v3058
      %v3060 = vmin.f32 %v3059, 1.0
      %v3061 = vmax.f32 %v3060, -1.0
      %v3062 = vmul.f32 %v2781, %v2781
      %v3063 = vmin.f32 16.0, %v3062
      %v3064 = vmul.f32 %v3063, 2.1237322e-06
      %v3065 = vadd.f32 %v3064, 0.00028619796
      %v3066 = vmul.f32 %v3063, %v3065
      %v3067 = vadd.f32 %v3066, 0.0036580483
      %v3068 = vmul.f32 %v3063, %v3067
      %v3069 = vadd.f32 %v3068, 0.05243302
      %v3070 = vmul.f32 %v3063, %v3069
      %v3071 = vadd.f32 %v3070, 0.18741608
      %v3072 = vmul.f32 %v3063, %v3071
      %v3073 = vadd.f32 %v3072, 1.1283791
      %v3074 = vmul.f32 %v2781, %v3073
      %v3075 = vmul.f32 %v3063, 3.8918573e-05
      %v3076 = vadd.f32 %v3075, 0.001143296
      %v3077 = vmul.f32 %v3063, %v3076
      %v3078 = vadd.f32 %v3077, 0.014752088
      %v3079 = vmul.f32 %v3063, %v3078
      %v3080 = vadd.f32 %v3079, 0.112945676
      %v3081 = vmul.f32 %v3063, %v3080
      %v3082 = vadd.f32 %v3081, 0.4994258
      %v3083 = vmul.f32 %v3063, %v3082
      %v3084 = vadd.f32 %v3083, 1.0
      %v3085 = vrcp.pop %v3084
      %v3086 = vmul.f32 %v3084, %v3085
      %v3087 = vsub.f32 1.0, %v3086
      %v3088 = vmul.f32 %v3085, %v3087
      %v3089 = vadd.f32 %v3085, %v3088
      %vm3090 = vweird.f32 %v3084
      %vm3091 = vweird.f32 %v3085
      %vm3092 = vmor %vm3090, %vm3091
      %v3093 = vsel %vm3092, %v3085, %v3089
      %v3094 = vand.u32 2147483647, %v3084
      %vm3095 = vcmp.eq.f32.partialorder %v3094, 8.507059e+37
      %v3096 = vand.u32 %v3084, 2147483648
      %v3097 = vor.u32 1.1754944e-38, %v3096
      %v3098 = vsel %vm3095, %v3097, %v3093
      %v3099 = vmul.f32 %v3074, %v3098
      %v3100 = vmin.f32 %v3099, 1.0
      %v3101 = vmax.f32 %v3100, -1.0
      %v3102 = vadd.f32 %v2821, 1.0
      %v3103 = vadd.f32 %v2861, 1.0
      %v3104 = vadd.f32 %v2901, 1.0
      %v3105 = vadd.f32 %v2941, 1.0
      %v3106 = vadd.f32 %v2981, 1.0
      %v3107 = vadd.f32 %v3021, 1.0
      %v3108 = vadd.f32 %v3061, 1.0
      %v3109 = vadd.f32 %v3101, 1.0
      %v3110 = vmul.f32 %v2766, %v3102
      %v3111 = vmul.f32 %v2767, %v3103
      %v3112 = vmul.f32 %v2768, %v3104
      %v3113 = vmul.f32 %v2769, %v3105
      %v3114 = vmul.f32 %v2770, %v3106
      %v3115 = vmul.f32 %v2771, %v3107
      %v3116 = vmul.f32 %v2772, %v3108
      %v3117 = vmul.f32 %v2773, %v3109
      %v3118 = vmul.f32 %v2700, %v3110
      %v3119 = vmul.f32 %v2719, %v3111
      %v3120 = vmul.f32 %v2702, %v3112
      %v3121 = vmul.f32 %v2721, %v3113
      %v3122 = vmul.f32 %v2705, %v3114
      %v3123 = vmul.f32 %v2724, %v3115
      %v3124 = vmul.f32 %v2707, %v3116
      %v3125 = vmul.f32 %v2726, %v3117
      %v3126 = vpack.c.bf16 %v3120, %v3118
      %v3127 = vpack.c.bf16 %v3121, %v3119
      %v3128 = vpack.c.bf16 %v3124, %v3122
      %v3129 = vpack.c.bf16 %v3125, %v3123
      %v3131 = vperm.slane %v2490, 0
      %v3165 = vunpack.c.l.b16 %v2458
      %v3166 = vunpack.c.l.b16 %v2459
      %v3167 = vunpack.c.l.b16 %v2460
      %v3168 = vunpack.c.l.b16 %v2461
      %v3169 = vunpack.c.l.b16 %v2462
      %v3170 = vunpack.c.l.b16 %v2463
      %v3171 = vunpack.c.l.b16 %v2464
      %v3172 = vunpack.c.l.b16 %v2465
      %v3173 = vunpack.c.l.b16 %v2466
      %v3174 = vunpack.c.l.b16 %v2467
      %v3175 = vunpack.c.l.b16 %v2468
      %v3176 = vunpack.c.l.b16 %v2469
      %v3177 = vunpack.c.l.b16 %v2470
      %v3178 = vunpack.c.l.b16 %v2471
      %v3179 = vunpack.c.l.b16 %v2472
      %v3180 = vunpack.c.l.b16 %v2473
      %v3181 = vunpack.c.l.b16 %v2474
      %v3182 = vunpack.c.l.b16 %v2475
      %v3183 = vunpack.c.l.b16 %v2476
      %v3184 = vunpack.c.l.b16 %v2477
      %v3185 = vunpack.c.l.b16 %v2478
      %v3186 = vunpack.c.l.b16 %v2479
      %v3187 = vunpack.c.l.b16 %v2480
      %v3188 = vunpack.c.l.b16 %v2481
      %v3189 = vunpack.c.l.b16 %v2482
      %v3190 = vunpack.c.l.b16 %v2483
      %v3191 = vunpack.c.l.b16 %v2484
      %v3192 = vunpack.c.l.b16 %v2485
      %v3193 = vunpack.c.l.b16 %v2486
      %v3194 = vunpack.c.l.b16 %v2487
      %v3195 = vunpack.c.l.b16 %v2488
      %v3196 = vunpack.c.l.b16 %v2489
      %v3197 = vpack.c.b16 %v3166, %v3165
      %v3198 = vpack.c.b16 %v3168, %v3167
      %v3199 = vpack.c.b16 %v3170, %v3169
      %v3200 = vpack.c.b16 %v3172, %v3171
      %v3201 = vpack.c.b16 %v3174, %v3173
      %v3202 = vpack.c.b16 %v3176, %v3175
      %v3203 = vpack.c.b16 %v3178, %v3177
      %v3204 = vpack.c.b16 %v3180, %v3179
      %v3205 = vpack.c.b16 %v3182, %v3181
      %v3206 = vpack.c.b16 %v3184, %v3183
      %v3207 = vpack.c.b16 %v3186, %v3185
      %v3208 = vpack.c.b16 %v3188, %v3187
      %v3209 = vpack.c.b16 %v3190, %v3189
      %v3210 = vpack.c.b16 %v3192, %v3191
      %v3211 = vpack.c.b16 %v3194, %v3193
      %v3212 = vpack.c.b16 %v3196, %v3195
      %3229 = vmatpush.bf16.msra.mxu0 %v3204
      %3230 = vmatpush.bf16.msra.mxu0 %v3203
      %3231 = vmatpush.bf16.msra.mxu0 %v3202
      %3232 = vmatpush.bf16.msra.mxu0 %v3201
      %3233 = vmatpush.bf16.msra.mxu0 %v3200
      %3234 = vmatpush.bf16.msra.mxu0 %v3199
      %3235 = vmatpush.bf16.msra.mxu0 %v3198
      %3236 = vmatpush.bf16.msra.mxu0 %v3197
      %3237 = vmatmul.bf16.gmra.mxu0 %v3126
      %v3238 = vpop.f32.mrf.mxu0
      %v3239 = vadd.f32 %v3131, %v3238
      %v3240 = vpop.f32.mrf.mxu0
      %v3241 = vadd.f32 %v3131, %v3240
      %3242 = vmatmul.bf16.gmra.mxu0 %v3128
      %v3243 = vpop.f32.mrf.mxu0
      %v3244 = vadd.f32 %v3131, %v3243
      %v3245 = vpop.f32.mrf.mxu0
      %v3246 = vadd.f32 %v3131, %v3245
      %3247 = vdwg.mxu0
      %3248 = vmatpush.bf16.msra.mxu0 %v3212
      %3249 = vmatpush.bf16.msra.mxu0 %v3211
      %3250 = vmatpush.bf16.msra.mxu0 %v3210
      %3251 = vmatpush.bf16.msra.mxu0 %v3209
      %3252 = vmatpush.bf16.msra.mxu0 %v3208
      %3253 = vmatpush.bf16.msra.mxu0 %v3207
      %3254 = vmatpush.bf16.msra.mxu0 %v3206
      %3255 = vmatpush.bf16.msra.mxu0 %v3205
      %3256 = vmatmul.bf16.gmra.mxu0 %v3127
      %v3257 = vpop.f32.mrf.mxu0
      %v3258 = vadd.f32 %v3239, %v3257
      %v3259 = vpop.f32.mrf.mxu0
      %v3260 = vadd.f32 %v3241, %v3259
      %3261 = vmatmul.bf16.gmra.mxu0 %v3129
      %v3262 = vpop.f32.mrf.mxu0
      %v3263 = vadd.f32 %v3244, %v3262
      %v3264 = vpop.f32.mrf.mxu0
      %v3265 = vadd.f32 %v3246, %v3264
      %3266 = vdwg.mxu0
      %v3267 = vadd.f32 %v3258, %v2435
      %v3268 = vadd.f32 %v3260, %v2436
      %v3269 = vadd.f32 %v3263, %v2437
      %v3270 = vadd.f32 %v3265, %v2438
      %v3271 = vld [vmem:[%s33] sm:$0x1]
      %v3272 = vld [vmem:[%s35] sm:$0x1]
      %v3273 = vsel %vm1026, %v3267, 0.0
      %3274 = vadd.xlane.f32.xlu0 %v3273
      %v3275 = vpop.xlane.xlu0 %3274
      %v3276 = vsel %vm1026, %v3268, 0.0
      %3277 = vadd.xlane.f32.xlu0 %v3276
      %v3278 = vpop.xlane.xlu0 %3277
      %v3279 = vsel %vm1026, %v3269, 0.0
      %3280 = vadd.xlane.f32.xlu0 %v3279
      %v3281 = vpop.xlane.xlu0 %3280
      %v3282 = vsel %vm1026, %v3270, 0.0
      %3283 = vadd.xlane.f32.xlu0 %v3282
      %v3284 = vpop.xlane.xlu0 %3283
      %v3285 = vmul.f32 %v3275, %v1045
      %v3286 = vmul.f32 %v3278, %v1045
      %v3287 = vmul.f32 %v3281, %v1045
      %v3288 = vmul.f32 %v3284, %v1045
      %v3289 = vsub.f32 %v3267, %v3285
      %v3290 = vsub.f32 %v3268, %v3286
      %v3291 = vsub.f32 %v3269, %v3287
      %v3292 = vsub.f32 %v3270, %v3288
      %v3293 = vmul.f32 %v3289, %v3289
      %v3294 = vmul.f32 %v3290, %v3290
      %v3295 = vmul.f32 %v3291, %v3291
      %v3296 = vmul.f32 %v3292, %v3292
      %v3297 = vsel %vm1026, %v3293, 0.0
      %3298 = vadd.xlane.f32.xlu0 %v3297
      %v3299 = vpop.xlane.xlu0 %3298
      %v3300 = vsel %vm1026, %v3294, 0.0
      %3301 = vadd.xlane.f32.xlu0 %v3300
      %v3302 = vpop.xlane.xlu0 %3301
      %v3303 = vsel %vm1026, %v3295, 0.0
      %3304 = vadd.xlane.f32.xlu0 %v3303
      %v3305 = vpop.xlane.xlu0 %3304
      %v3306 = vsel %vm1026, %v3296, 0.0
      %3307 = vadd.xlane.f32.xlu0 %v3306
      %v3308 = vpop.xlane.xlu0 %3307
      %v3309 = vmul.f32 %v3299, %v1045
      %v3310 = vmul.f32 %v3302, %v1045
      %v3311 = vmul.f32 %v3305, %v1045
      %v3312 = vmul.f32 %v3308, %v1045
      %v3313 = vadd.f32 %v3309, 1e-05
      %v3314 = vadd.f32 %v3310, 1e-05
      %v3315 = vadd.f32 %v3311, 1e-05
      %v3316 = vadd.f32 %v3312, 1e-05
      %v3317 = vrsqrt.pop %v3313
      %v3318 = vmul.f32 %v3317, %v3313
      %v3319 = vmul.f32 %v3318, %v3317
      %v3320 = vmul.f32 0.5, %v3319
      %v3321 = vsub.f32 1.5, %v3320
      %v3322 = vmul.f32 %v3317, %v3321
      %vm3323 = vweird.f32 %v3313
      %vm3324 = vweird.f32 %v3317
      %vm3325 = vmor %vm3323, %vm3324
      %v3326 = vsel %vm3325, %v3317, %v3322
      %v3327 = vrsqrt.pop %v3314
      %v3328 = vmul.f32 %v3327, %v3314
      %v3329 = vmul.f32 %v3328, %v3327
      %v3330 = vmul.f32 0.5, %v3329
      %v3331 = vsub.f32 1.5, %v3330
      %v3332 = vmul.f32 %v3327, %v3331
      %vm3333 = vweird.f32 %v3314
      %vm3334 = vweird.f32 %v3327
      %vm3335 = vmor %vm3333, %vm3334
      %v3336 = vsel %vm3335, %v3327, %v3332
      %v3337 = vrsqrt.pop %v3315
      %v3338 = vmul.f32 %v3337, %v3315
      %v3339 = vmul.f32 %v3338, %v3337
      %v3340 = vmul.f32 0.5, %v3339
      %v3341 = vsub.f32 1.5, %v3340
      %v3342 = vmul.f32 %v3337, %v3341
      %vm3343 = vweird.f32 %v3315
      %vm3344 = vweird.f32 %v3337
      %vm3345 = vmor %vm3343, %vm3344
      %v3346 = vsel %vm3345, %v3337, %v3342
      %v3347 = vrsqrt.pop %v3316
      %v3348 = vmul.f32 %v3347, %v3316
      %v3349 = vmul.f32 %v3348, %v3347
      %v3350 = vmul.f32 0.5, %v3349
      %v3351 = vsub.f32 1.5, %v3350
      %v3352 = vmul.f32 %v3347, %v3351
      %vm3353 = vweird.f32 %v3316
      %vm3354 = vweird.f32 %v3347
      %vm3355 = vmor %vm3353, %vm3354
      %v3356 = vsel %vm3355, %v3347, %v3352
      %v3357 = vmul.f32 %v3289, %v3326
      %v3358 = vmul.f32 %v3290, %v3336
      %v3359 = vmul.f32 %v3291, %v3346
      %v3360 = vmul.f32 %v3292, %v3356
      %v3362 = vperm.slane %v3271, 0
      %v3364 = vmul.f32 %v3357, %v3362
      %v3365 = vmul.f32 %v3358, %v3362
      %v3366 = vmul.f32 %v3359, %v3362
      %v3367 = vmul.f32 %v3360, %v3362
      %v3369 = vperm.slane %v3272, 0
      %v3371 = vadd.f32 %v3364, %v3369
      %v3372 = vadd.f32 %v3365, %v3369
      %v3373 = vadd.f32 %v3366, %v3369
      %v3374 = vadd.f32 %v3367, %v3369
      %v3375 = vpack.c.bf16 %v3372, %v3371
      %v3376 = vpack.c.bf16 %v3374, %v3373
      %v3377 = vld [vmem:[%s37] sm:$0xf]
      %v3378 = vld [vmem:[%s37 + $0x4] sm:$0xf]
      %v3379 = vld [vmem:[%s37 + $0x8] sm:$0xf]
      %v3380 = vld [vmem:[%s37 + $0xc] sm:$0xf]
      %v3381 = vld [vmem:[%s37 + $0x10] sm:$0xf]
      %v3382 = vld [vmem:[%s37 + $0x14] sm:$0xf]
      %v3383 = vld [vmem:[%s37 + $0x18] sm:$0xf]
      %v3384 = vld [vmem:[%s37 + $0x1c] sm:$0xf]
      %v3385 = vld [vmem:[%s39] sm:$0xf]
      %v3386 = vld [vmem:[%s39 + $0x4] sm:$0xf]
      %v3387 = vld [vmem:[%s39 + $0x8] sm:$0xf]
      %v3388 = vld [vmem:[%s39 + $0xc] sm:$0xf]
      %v3389 = vld [vmem:[%s39 + $0x10] sm:$0xf]
      %v3390 = vld [vmem:[%s39 + $0x14] sm:$0xf]
      %v3391 = vld [vmem:[%s39 + $0x18] sm:$0xf]
      %v3392 = vld [vmem:[%s39 + $0x1c] sm:$0xf]
      %v3393 = vld [vmem:[%s41] sm:$0xf]
      %v3394 = vld [vmem:[%s41 + $0x4] sm:$0xf]
      %v3395 = vld [vmem:[%s41 + $0x8] sm:$0xf]
      %v3396 = vld [vmem:[%s41 + $0xc] sm:$0xf]
      %v3397 = vld [vmem:[%s41 + $0x10] sm:$0xf]
      %v3398 = vld [vmem:[%s41 + $0x14] sm:$0xf]
      %v3399 = vld [vmem:[%s41 + $0x18] sm:$0xf]
      %v3400 = vld [vmem:[%s41 + $0x1c] sm:$0xf]
      %v3401 = vld [vmem:[%s43] sm:$0x1]
      %v3410 = vunpack.c.l.b16 %v3377
      %v3411 = vunpack.c.l.b16 %v3378
      %v3412 = vunpack.c.l.b16 %v3379
      %v3413 = vunpack.c.l.b16 %v3380
      %v3414 = vunpack.c.l.b16 %v3381
      %v3415 = vunpack.c.l.b16 %v3382
      %v3416 = vunpack.c.l.b16 %v3383
      %v3417 = vunpack.c.l.b16 %v3384
      %v3418 = vpack.c.b16 %v3411, %v3410
      %v3419 = vpack.c.b16 %v3413, %v3412
      %v3420 = vpack.c.b16 %v3415, %v3414
      %v3421 = vpack.c.b16 %v3417, %v3416
      %v3427 = vsel %vm1026, %v3375, 0
      %v3430 = vsel %vm1026, %v3376, 0
      %3432 = vmatpush.bf16.msra.mxu0 0
      %3433 = vmatpush.bf16.msra.mxu0 0
      %3434 = vmatpush.bf16.msra.mxu0 0
      %3435 = vmatpush.bf16.msra.mxu0 0
      %3436 = vmatpush.bf16.msra.mxu0 %v3421
      %3437 = vmatpush.bf16.msra.mxu0 %v3420
      %3438 = vmatpush.bf16.msra.mxu0 %v3419
      %3439 = vmatpush.bf16.msra.mxu0 %v3418
      %3440 = vmatmul.bf16.gmra.mxu0 %v3427
      %v3441 = vpop.f32.mrf.mxu0
      %v3442 = vadd.f32 0.0, %v3441
      %v3443 = vpop.f32.mrf.mxu0
      %v3444 = vadd.f32 0.0, %v3443
      %3445 = vmatmul.bf16.gmra.mxu0 %v3430
      %v3446 = vpop.f32.mrf.mxu0
      %v3447 = vadd.f32 0.0, %v3446
      %v3448 = vpop.f32.mrf.mxu0
      %v3449 = vadd.f32 0.0, %v3448
      %3450 = vdwg.mxu0
      %v3451 = vpack.c.bf16 %v3442, %v3442
      %v3452 = vpack.c.bf16 %v3444, %v3444
      %v3453 = vpack.c.bf16 %v3447, %v3447
      %v3454 = vpack.c.bf16 %v3449, %v3449
      %v3463 = vunpack.c.l.b16 %v3385
      %v3464 = vunpack.c.l.b16 %v3386
      %v3465 = vunpack.c.l.b16 %v3387
      %v3466 = vunpack.c.l.b16 %v3388
      %v3467 = vunpack.c.l.b16 %v3389
      %v3468 = vunpack.c.l.b16 %v3390
      %v3469 = vunpack.c.l.b16 %v3391
      %v3470 = vunpack.c.l.b16 %v3392
      %v3471 = vpack.c.b16 %v3464, %v3463
      %v3472 = vpack.c.b16 %v3466, %v3465
      %v3473 = vpack.c.b16 %v3468, %v3467
      %v3474 = vpack.c.b16 %v3470, %v3469
      %3479 = vmatpush.bf16.msra.mxu0 0
      %3480 = vmatpush.bf16.msra.mxu0 0
      %3481 = vmatpush.bf16.msra.mxu0 0
      %3482 = vmatpush.bf16.msra.mxu0 0
      %3483 = vmatpush.bf16.msra.mxu0 %v3474
      %3484 = vmatpush.bf16.msra.mxu0 %v3473
      %3485 = vmatpush.bf16.msra.mxu0 %v3472
      %3486 = vmatpush.bf16.msra.mxu0 %v3471
      %3487 = vmatmul.bf16.gmra.mxu0 %v3427
      %v3488 = vpop.f32.mrf.mxu0
      %v3489 = vadd.f32 0.0, %v3488
      %v3490 = vpop.f32.mrf.mxu0
      %v3491 = vadd.f32 0.0, %v3490
      %3492 = vmatmul.bf16.gmra.mxu0 %v3430
      %v3493 = vpop.f32.mrf.mxu0
      %v3494 = vadd.f32 0.0, %v3493
      %v3495 = vpop.f32.mrf.mxu0
      %v3496 = vadd.f32 0.0, %v3495
      %3497 = vdwg.mxu0
      %v3498 = vpack.c.bf16 %v3489, %v3489
      %v3499 = vpack.c.bf16 %v3491, %v3491
      %v3500 = vpack.c.bf16 %v3494, %v3494
      %v3501 = vpack.c.bf16 %v3496, %v3496
      %v3506 = vunpack.c.l.b16 %v3451
      %v3507 = vunpack.c.l.b16 %v3452
      %v3508 = vunpack.c.l.b16 %v3453
      %v3509 = vunpack.c.l.b16 %v3454
      %v3510 = vpack.c.b16 %v3507, %v3506
      %v3511 = vpack.c.b16 %v3509, %v3508
      %v3516 = vunpack.c.l.b16 %v3498
      %v3517 = vunpack.c.l.b16 %v3499
      %v3518 = vunpack.c.l.b16 %v3500
      %v3519 = vunpack.c.l.b16 %v3501
      %v3520 = vpack.c.b16 %v3517, %v3516
      %v3521 = vpack.c.b16 %v3519, %v3518
      %vm3522 = vcmask 130048
      %v3524 = vsel %vm3522, %v3510, 0
      %v3527 = vsel %vm3522, %v3511, 0
      %v3530 = vsel %vm3522, %v3520, 0
      %v3533 = vsel %vm3522, %v3521, 0
      %3535 = vmatpush.bf16.xpose.msra.mxu0 0
      %3536 = vmatpush.bf16.xpose.msra.mxu0 0
      %3537 = vmatpush.bf16.xpose.msra.mxu0 0
      %3538 = vmatpush.bf16.xpose.msra.mxu0 0
      %3539 = vmatpush.bf16.xpose.msra.mxu0 0
      %3540 = vmatpush.bf16.xpose.msra.mxu0 0
      %3541 = vmatpush.bf16.xpose.msra.mxu0 %v3533
      %3542 = vmatpush.bf16.xpose.msra.mxu0 %v3530
      %3543 = vmatmul.bf16.gmra.mxu0 %v3524
      %v3544 = vpop.f32.mrf.mxu0
      %v3545 = vadd.f32 0.0, %v3544
      %v3546 = vpop.f32.mrf.mxu0
      %v3547 = vadd.f32 0.0, %v3546
      %3548 = vmatmul.bf16.gmra.mxu0 %v3527
      %v3549 = vpop.f32.mrf.mxu0
      %v3550 = vadd.f32 0.0, %v3549
      %v3551 = vpop.f32.mrf.mxu0
      %v3552 = vadd.f32 0.0, %v3551
      %3553 = vdwg.mxu0
      %v3554 = vsel %vm2134, %v3545, -inf
      %3555 = vmax.xlane.f32.xlu0 %v3554
      %v3556 = vpop.xlane.xlu0 %3555
      %v3557 = vsel %vm2134, %v3547, -inf
      %3558 = vmax.xlane.f32.xlu0 %v3557
      %v3559 = vpop.xlane.xlu0 %3558
      %v3560 = vsel %vm2134, %v3550, -inf
      %3561 = vmax.xlane.f32.xlu0 %v3560
      %v3562 = vpop.xlane.xlu0 %3561
      %v3563 = vsel %vm2134, %v3552, -inf
      %3564 = vmax.xlane.f32.xlu0 %v3563
      %v3565 = vpop.xlane.xlu0 %3564
      %v3566 = vsub.f32 %v3545, %v3556
      %v3567 = vsub.f32 %v3547, %v3559
      %v3568 = vsub.f32 %v3550, %v3562
      %v3569 = vsub.f32 %v3552, %v3565
      %v3570 = vmul.f32 %v3566, 1.442695
      %v3571 = vpow.pop %v3570
      %v3572 = vmul.f32 %v3567, 1.442695
      %v3573 = vpow.pop %v3572
      %v3574 = vmul.f32 %v3568, 1.442695
      %v3575 = vpow.pop %v3574
      %v3576 = vmul.f32 %v3569, 1.442695
      %v3577 = vpow.pop %v3576
      %v3578 = vsel %vm2134, %v3571, 0.0
      %3579 = vadd.xlane.f32.xlu0 %v3578
      %v3580 = vpop.xlane.xlu0 %3579
      %v3581 = vsel %vm2134, %v3573, 0.0
      %3582 = vadd.xlane.f32.xlu0 %v3581
      %v3583 = vpop.xlane.xlu0 %3582
      %v3584 = vsel %vm2134, %v3575, 0.0
      %3585 = vadd.xlane.f32.xlu0 %v3584
      %v3586 = vpop.xlane.xlu0 %3585
      %v3587 = vsel %vm2134, %v3577, 0.0
      %3588 = vadd.xlane.f32.xlu0 %v3587
      %v3589 = vpop.xlane.xlu0 %3588
      %v3590 = vrcp.pop %v3580
      %v3591 = vrcp.pop %v3583
      %v3592 = vrcp.pop %v3586
      %v3593 = vrcp.pop %v3589
      %v3594 = vmul.f32 %v3571, %v3590
      %v3595 = vmul.f32 %v3573, %v3591
      %v3596 = vmul.f32 %v3575, %v3592
      %v3597 = vmul.f32 %v3577, %v3593
      %v3598 = vpack.c.bf16 %v3595, %v3594
      %v3599 = vpack.c.bf16 %v3597, %v3596
      %3600 = vrot.lane.b32.xlu0 %v3520, 64
      %v3601 = vpop.permute.xlu0 %3600
      %3602 = vrot.lane.b32.xlu0 %v3521, 64
      %v3603 = vpop.permute.xlu0 %3602
      %v3607 = vsel %vm2134, %v3598, 0
      %v3610 = vsel %vm2134, %v3599, 0
      %3612 = vmatpush.bf16.msra.mxu0 0
      %3613 = vmatpush.bf16.msra.mxu0 0
      %3614 = vmatpush.bf16.msra.mxu0 0
      %3615 = vmatpush.bf16.msra.mxu0 0
      %3616 = vmatpush.bf16.msra.mxu0 0
      %3617 = vmatpush.bf16.msra.mxu0 0
      %3618 = vmatpush.bf16.msra.mxu0 %v3603
      %3619 = vmatpush.bf16.msra.mxu0 %v3601
      %3620 = vmatmul.bf16.gmra.mxu0 %v3607
      %v3621 = vpop.f32.mrf.mxu0
      %v3622 = vadd.f32 0.0, %v3621
      %v3623 = vpop.f32.mrf.mxu0
      %v3624 = vadd.f32 0.0, %v3623
      %3625 = vmatmul.bf16.gmra.mxu0 %v3610
      %v3626 = vpop.f32.mrf.mxu0
      %v3627 = vadd.f32 0.0, %v3626
      %v3628 = vpop.f32.mrf.mxu0
      %v3629 = vadd.f32 0.0, %v3628
      %3630 = vdwg.mxu0
      %3631 = vrot.lane.b32.xlu0 %v3510, 112
      %v3632 = vpop.permute.xlu0 %3631
      %3633 = vrot.lane.b32.xlu0 %v3511, 112
      %v3634 = vpop.permute.xlu0 %3633
      %3635 = vrot.lane.b32.xlu0 %v3520, 112
      %v3636 = vpop.permute.xlu0 %3635
      %3637 = vrot.lane.b32.xlu0 %v3521, 112
      %v3638 = vpop.permute.xlu0 %3637
      %v3640 = vsel %vm3522, %v3632, 0
      %v3643 = vsel %vm3522, %v3634, 0
      %v3646 = vsel %vm3522, %v3636, 0
      %v3649 = vsel %vm3522, %v3638, 0
      %3651 = vmatpush.bf16.xpose.msra.mxu0 0
      %3652 = vmatpush.bf16.xpose.msra.mxu0 0
      %3653 = vmatpush.bf16.xpose.msra.mxu0 0
      %3654 = vmatpush.bf16.xpose.msra.mxu0 0
      %3655 = vmatpush.bf16.xpose.msra.mxu0 0
      %3656 = vmatpush.bf16.xpose.msra.mxu0 0
      %3657 = vmatpush.bf16.xpose.msra.mxu0 %v3649
      %3658 = vmatpush.bf16.xpose.msra.mxu0 %v3646
      %3659 = vmatmul.bf16.gmra.mxu0 %v3640
      %v3660 = vpop.f32.mrf.mxu0
      %v3661 = vadd.f32 0.0, %v3660
      %v3662 = vpop.f32.mrf.mxu0
      %v3663 = vadd.f32 0.0, %v3662
      %3664 = vmatmul.bf16.gmra.mxu0 %v3643
      %v3665 = vpop.f32.mrf.mxu0
      %v3666 = vadd.f32 0.0, %v3665
      %v3667 = vpop.f32.mrf.mxu0
      %v3668 = vadd.f32 0.0, %v3667
      %3669 = vdwg.mxu0
      %v3670 = vsel %vm2134, %v3661, -inf
      %3671 = vmax.xlane.f32.xlu0 %v3670
      %v3672 = vpop.xlane.xlu0 %3671
      %v3673 = vsel %vm2134, %v3663, -inf
      %3674 = vmax.xlane.f32.xlu0 %v3673
      %v3675 = vpop.xlane.xlu0 %3674
      %v3676 = vsel %vm2134, %v3666, -inf
      %3677 = vmax.xlane.f32.xlu0 %v3676
      %v3678 = vpop.xlane.xlu0 %3677
      %v3679 = vsel %vm2134, %v3668, -inf
      %3680 = vmax.xlane.f32.xlu0 %v3679
      %v3681 = vpop.xlane.xlu0 %3680
      %v3682 = vsub.f32 %v3661, %v3672
      %v3683 = vsub.f32 %v3663, %v3675
      %v3684 = vsub.f32 %v3666, %v3678
      %v3685 = vsub.f32 %v3668, %v3681
      %v3686 = vmul.f32 %v3682, 1.442695
      %v3687 = vpow.pop %v3686
      %v3688 = vmul.f32 %v3683, 1.442695
      %v3689 = vpow.pop %v3688
      %v3690 = vmul.f32 %v3684, 1.442695
      %v3691 = vpow.pop %v3690
      %v3692 = vmul.f32 %v3685, 1.442695
      %v3693 = vpow.pop %v3692
      %v3694 = vsel %vm2134, %v3687, 0.0
      %3695 = vadd.xlane.f32.xlu0 %v3694
      %v3696 = vpop.xlane.xlu0 %3695
      %v3697 = vsel %vm2134, %v3689, 0.0
      %3698 = vadd.xlane.f32.xlu0 %v3697
      %v3699 = vpop.xlane.xlu0 %3698
      %v3700 = vsel %vm2134, %v3691, 0.0
      %3701 = vadd.xlane.f32.xlu0 %v3700
      %v3702 = vpop.xlane.xlu0 %3701
      %v3703 = vsel %vm2134, %v3693, 0.0
      %3704 = vadd.xlane.f32.xlu0 %v3703
      %v3705 = vpop.xlane.xlu0 %3704
      %v3706 = vrcp.pop %v3696
      %v3707 = vrcp.pop %v3699
      %v3708 = vrcp.pop %v3702
      %v3709 = vrcp.pop %v3705
      %v3710 = vmul.f32 %v3687, %v3706
      %v3711 = vmul.f32 %v3689, %v3707
      %v3712 = vmul.f32 %v3691, %v3708
      %v3713 = vmul.f32 %v3693, %v3709
      %v3714 = vpack.c.bf16 %v3711, %v3710
      %v3715 = vpack.c.bf16 %v3713, %v3712
      %3716 = vrot.lane.b32.xlu0 %v3520, 48
      %v3717 = vpop.permute.xlu0 %3716
      %3718 = vrot.lane.b32.xlu0 %v3521, 48
      %v3719 = vpop.permute.xlu0 %3718
      %v3723 = vsel %vm2134, %v3714, 0
      %v3726 = vsel %vm2134, %v3715, 0
      %3728 = vmatpush.bf16.msra.mxu0 0
      %3729 = vmatpush.bf16.msra.mxu0 0
      %3730 = vmatpush.bf16.msra.mxu0 0
      %3731 = vmatpush.bf16.msra.mxu0 0
      %3732 = vmatpush.bf16.msra.mxu0 0
      %3733 = vmatpush.bf16.msra.mxu0 0
      %3734 = vmatpush.bf16.msra.mxu0 %v3719
      %3735 = vmatpush.bf16.msra.mxu0 %v3717
      %3736 = vmatmul.bf16.gmra.mxu0 %v3723
      %v3737 = vpop.f32.mrf.mxu0
      %v3738 = vadd.f32 0.0, %v3737
      %v3739 = vpop.f32.mrf.mxu0
      %v3740 = vadd.f32 0.0, %v3739
      %3741 = vmatmul.bf16.gmra.mxu0 %v3726
      %v3742 = vpop.f32.mrf.mxu0
      %v3743 = vadd.f32 0.0, %v3742
      %v3744 = vpop.f32.mrf.mxu0
      %v3745 = vadd.f32 0.0, %v3744
      %3746 = vdwg.mxu0
      %3747 = vrot.lane.b32.xlu0 %v3510, 96
      %v3748 = vpop.permute.xlu0 %3747
      %3749 = vrot.lane.b32.xlu0 %v3511, 96
      %v3750 = vpop.permute.xlu0 %3749
      %3751 = vrot.lane.b32.xlu0 %v3520, 96
      %v3752 = vpop.permute.xlu0 %3751
      %3753 = vrot.lane.b32.xlu0 %v3521, 96
      %v3754 = vpop.permute.xlu0 %3753
      %v3756 = vsel %vm3522, %v3748, 0
      %v3759 = vsel %vm3522, %v3750, 0
      %v3762 = vsel %vm3522, %v3752, 0
      %v3765 = vsel %vm3522, %v3754, 0
      %3767 = vmatpush.bf16.xpose.msra.mxu0 0
      %3768 = vmatpush.bf16.xpose.msra.mxu0 0
      %3769 = vmatpush.bf16.xpose.msra.mxu0 0
      %3770 = vmatpush.bf16.xpose.msra.mxu0 0
      %3771 = vmatpush.bf16.xpose.msra.mxu0 0
      %3772 = vmatpush.bf16.xpose.msra.mxu0 0
      %3773 = vmatpush.bf16.xpose.msra.mxu0 %v3765
      %3774 = vmatpush.bf16.xpose.msra.mxu0 %v3762
      %3775 = vmatmul.bf16.gmra.mxu0 %v3756
      %v3776 = vpop.f32.mrf.mxu0
      %v3777 = vadd.f32 0.0, %v3776
      %v3778 = vpop.f32.mrf.mxu0
      %v3779 = vadd.f32 0.0, %v3778
      %3780 = vmatmul.bf16.gmra.mxu0 %v3759
      %v3781 = vpop.f32.mrf.mxu0
      %v3782 = vadd.f32 0.0, %v3781
      %v3783 = vpop.f32.mrf.mxu0
      %v3784 = vadd.f32 0.0, %v3783
      %3785 = vdwg.mxu0
      %v3786 = vsel %vm2134, %v3777, -inf
      %3787 = vmax.xlane.f32.xlu0 %v3786
      %v3788 = vpop.xlane.xlu0 %3787
      %v3789 = vsel %vm2134, %v3779, -inf
      %3790 = vmax.xlane.f32.xlu0 %v3789
      %v3791 = vpop.xlane.xlu0 %3790
      %v3792 = vsel %vm2134, %v3782, -inf
      %3793 = vmax.xlane.f32.xlu0 %v3792
      %v3794 = vpop.xlane.xlu0 %3793
      %v3795 = vsel %vm2134, %v3784, -inf
      %3796 = vmax.xlane.f32.xlu0 %v3795
      %v3797 = vpop.xlane.xlu0 %3796
      %v3798 = vsub.f32 %v3777, %v3788
      %v3799 = vsub.f32 %v3779, %v3791
      %v3800 = vsub.f32 %v3782, %v3794
      %v3801 = vsub.f32 %v3784, %v3797
      %v3802 = vmul.f32 %v3798, 1.442695
      %v3803 = vpow.pop %v3802
      %v3804 = vmul.f32 %v3799, 1.442695
      %v3805 = vpow.pop %v3804
      %v3806 = vmul.f32 %v3800, 1.442695
      %v3807 = vpow.pop %v3806
      %v3808 = vmul.f32 %v3801, 1.442695
      %v3809 = vpow.pop %v3808
      %v3810 = vsel %vm2134, %v3803, 0.0
      %3811 = vadd.xlane.f32.xlu0 %v3810
      %v3812 = vpop.xlane.xlu0 %3811
      %v3813 = vsel %vm2134, %v3805, 0.0
      %3814 = vadd.xlane.f32.xlu0 %v3813
      %v3815 = vpop.xlane.xlu0 %3814
      %v3816 = vsel %vm2134, %v3807, 0.0
      %3817 = vadd.xlane.f32.xlu0 %v3816
      %v3818 = vpop.xlane.xlu0 %3817
      %v3819 = vsel %vm2134, %v3809, 0.0
      %3820 = vadd.xlane.f32.xlu0 %v3819
      %v3821 = vpop.xlane.xlu0 %3820
      %v3822 = vrcp.pop %v3812
      %v3823 = vrcp.pop %v3815
      %v3824 = vrcp.pop %v3818
      %v3825 = vrcp.pop %v3821
      %v3826 = vmul.f32 %v3803, %v3822
      %v3827 = vmul.f32 %v3805, %v3823
      %v3828 = vmul.f32 %v3807, %v3824
      %v3829 = vmul.f32 %v3809, %v3825
      %v3830 = vpack.c.bf16 %v3827, %v3826
      %v3831 = vpack.c.bf16 %v3829, %v3828
      %3832 = vrot.lane.b32.xlu0 %v3520, 32
      %v3833 = vpop.permute.xlu0 %3832
      %3834 = vrot.lane.b32.xlu0 %v3521, 32
      %v3835 = vpop.permute.xlu0 %3834
      %v3839 = vsel %vm2134, %v3830, 0
      %v3842 = vsel %vm2134, %v3831, 0
      %3844 = vmatpush.bf16.msra.mxu0 0
      %3845 = vmatpush.bf16.msra.mxu0 0
      %3846 = vmatpush.bf16.msra.mxu0 0
      %3847 = vmatpush.bf16.msra.mxu0 0
      %3848 = vmatpush.bf16.msra.mxu0 0
      %3849 = vmatpush.bf16.msra.mxu0 0
      %3850 = vmatpush.bf16.msra.mxu0 %v3835
      %3851 = vmatpush.bf16.msra.mxu0 %v3833
      %3852 = vmatmul.bf16.gmra.mxu0 %v3839
      %v3853 = vpop.f32.mrf.mxu0
      %v3854 = vadd.f32 0.0, %v3853
      %v3855 = vpop.f32.mrf.mxu0
      %v3856 = vadd.f32 0.0, %v3855
      %3857 = vmatmul.bf16.gmra.mxu0 %v3842
      %v3858 = vpop.f32.mrf.mxu0
      %v3859 = vadd.f32 0.0, %v3858
      %v3860 = vpop.f32.mrf.mxu0
      %v3861 = vadd.f32 0.0, %v3860
      %3862 = vdwg.mxu0
      %3863 = vrot.lane.b32.xlu0 %v3510, 80
      %v3864 = vpop.permute.xlu0 %3863
      %3865 = vrot.lane.b32.xlu0 %v3511, 80
      %v3866 = vpop.permute.xlu0 %3865
      %3867 = vrot.lane.b32.xlu0 %v3520, 80
      %v3868 = vpop.permute.xlu0 %3867
      %3869 = vrot.lane.b32.xlu0 %v3521, 80
      %v3870 = vpop.permute.xlu0 %3869
      %v3872 = vsel %vm3522, %v3864, 0
      %v3875 = vsel %vm3522, %v3866, 0
      %v3878 = vsel %vm3522, %v3868, 0
      %v3881 = vsel %vm3522, %v3870, 0
      %3883 = vmatpush.bf16.xpose.msra.mxu0 0
      %3884 = vmatpush.bf16.xpose.msra.mxu0 0
      %3885 = vmatpush.bf16.xpose.msra.mxu0 0
      %3886 = vmatpush.bf16.xpose.msra.mxu0 0
      %3887 = vmatpush.bf16.xpose.msra.mxu0 0
      %3888 = vmatpush.bf16.xpose.msra.mxu0 0
      %3889 = vmatpush.bf16.xpose.msra.mxu0 %v3881
      %3890 = vmatpush.bf16.xpose.msra.mxu0 %v3878
      %3891 = vmatmul.bf16.gmra.mxu0 %v3872
      %v3892 = vpop.f32.mrf.mxu0
      %v3893 = vadd.f32 0.0, %v3892
      %v3894 = vpop.f32.mrf.mxu0
      %v3895 = vadd.f32 0.0, %v3894
      %3896 = vmatmul.bf16.gmra.mxu0 %v3875
      %v3897 = vpop.f32.mrf.mxu0
      %v3898 = vadd.f32 0.0, %v3897
      %v3899 = vpop.f32.mrf.mxu0
      %v3900 = vadd.f32 0.0, %v3899
      %3901 = vdwg.mxu0
      %v3902 = vsel %vm2134, %v3893, -inf
      %3903 = vmax.xlane.f32.xlu0 %v3902
      %v3904 = vpop.xlane.xlu0 %3903
      %v3905 = vsel %vm2134, %v3895, -inf
      %3906 = vmax.xlane.f32.xlu0 %v3905
      %v3907 = vpop.xlane.xlu0 %3906
      %v3908 = vsel %vm2134, %v3898, -inf
      %3909 = vmax.xlane.f32.xlu0 %v3908
      %v3910 = vpop.xlane.xlu0 %3909
      %v3911 = vsel %vm2134, %v3900, -inf
      %3912 = vmax.xlane.f32.xlu0 %v3911
      %v3913 = vpop.xlane.xlu0 %3912
      %v3914 = vsub.f32 %v3893, %v3904
      %v3915 = vsub.f32 %v3895, %v3907
      %v3916 = vsub.f32 %v3898, %v3910
      %v3917 = vsub.f32 %v3900, %v3913
      %v3918 = vmul.f32 %v3914, 1.442695
      %v3919 = vpow.pop %v3918
      %v3920 = vmul.f32 %v3915, 1.442695
      %v3921 = vpow.pop %v3920
      %v3922 = vmul.f32 %v3916, 1.442695
      %v3923 = vpow.pop %v3922
      %v3924 = vmul.f32 %v3917, 1.442695
      %v3925 = vpow.pop %v3924
      %v3926 = vsel %vm2134, %v3919, 0.0
      %3927 = vadd.xlane.f32.xlu0 %v3926
      %v3928 = vpop.xlane.xlu0 %3927
      %v3929 = vsel %vm2134, %v3921, 0.0
      %3930 = vadd.xlane.f32.xlu0 %v3929
      %v3931 = vpop.xlane.xlu0 %3930
      %v3932 = vsel %vm2134, %v3923, 0.0
      %3933 = vadd.xlane.f32.xlu0 %v3932
      %v3934 = vpop.xlane.xlu0 %3933
      %v3935 = vsel %vm2134, %v3925, 0.0
      %3936 = vadd.xlane.f32.xlu0 %v3935
      %v3937 = vpop.xlane.xlu0 %3936
      %v3938 = vrcp.pop %v3928
      %v3939 = vrcp.pop %v3931
      %v3940 = vrcp.pop %v3934
      %v3941 = vrcp.pop %v3937
      %v3942 = vmul.f32 %v3919, %v3938
      %v3943 = vmul.f32 %v3921, %v3939
      %v3944 = vmul.f32 %v3923, %v3940
      %v3945 = vmul.f32 %v3925, %v3941
      %v3946 = vpack.c.bf16 %v3943, %v3942
      %v3947 = vpack.c.bf16 %v3945, %v3944
      %3948 = vrot.lane.b32.xlu0 %v3520, 16
      %v3949 = vpop.permute.xlu0 %3948
      %3950 = vrot.lane.b32.xlu0 %v3521, 16
      %v3951 = vpop.permute.xlu0 %3950
      %v3955 = vsel %vm2134, %v3946, 0
      %v3958 = vsel %vm2134, %v3947, 0
      %3960 = vmatpush.bf16.msra.mxu0 0
      %3961 = vmatpush.bf16.msra.mxu0 0
      %3962 = vmatpush.bf16.msra.mxu0 0
      %3963 = vmatpush.bf16.msra.mxu0 0
      %3964 = vmatpush.bf16.msra.mxu0 0
      %3965 = vmatpush.bf16.msra.mxu0 0
      %3966 = vmatpush.bf16.msra.mxu0 %v3951
      %3967 = vmatpush.bf16.msra.mxu0 %v3949
      %3968 = vmatmul.bf16.gmra.mxu0 %v3955
      %v3969 = vpop.f32.mrf.mxu0
      %v3970 = vadd.f32 0.0, %v3969
      %v3971 = vpop.f32.mrf.mxu0
      %v3972 = vadd.f32 0.0, %v3971
      %3973 = vmatmul.bf16.gmra.mxu0 %v3958
      %v3974 = vpop.f32.mrf.mxu0
      %v3975 = vadd.f32 0.0, %v3974
      %v3976 = vpop.f32.mrf.mxu0
      %v3977 = vadd.f32 0.0, %v3976
      %3978 = vdwg.mxu0
      %3983 = vrot.lane.b32.xlu0 %v3738, 16
      %v3984 = vpop.permute.xlu0 %3983
      %3985 = vrot.lane.b32.xlu0 %v3740, 16
      %v3986 = vpop.permute.xlu0 %3985
      %3987 = vrot.lane.b32.xlu0 %v3743, 16
      %v3988 = vpop.permute.xlu0 %3987
      %3989 = vrot.lane.b32.xlu0 %v3745, 16
      %v3990 = vpop.permute.xlu0 %3989
      %3999 = vrot.lane.b32.xlu0 %v3854, 32
      %v4000 = vpop.permute.xlu0 %3999
      %4001 = vrot.lane.b32.xlu0 %v3856, 32
      %v4002 = vpop.permute.xlu0 %4001
      %4003 = vrot.lane.b32.xlu0 %v3859, 32
      %v4004 = vpop.permute.xlu0 %4003
      %4005 = vrot.lane.b32.xlu0 %v3861, 32
      %v4006 = vpop.permute.xlu0 %4005
      %4015 = vrot.lane.b32.xlu0 %v3970, 48
      %v4016 = vpop.permute.xlu0 %4015
      %4017 = vrot.lane.b32.xlu0 %v3972, 48
      %v4018 = vpop.permute.xlu0 %4017
      %4019 = vrot.lane.b32.xlu0 %v3975, 48
      %v4020 = vpop.permute.xlu0 %4019
      %4021 = vrot.lane.b32.xlu0 %v3977, 48
      %v4022 = vpop.permute.xlu0 %4021
      %v4027 = vsel %vm3522, %v3622, %v3984
      %v4028 = vsel %vm3522, %v3624, %v3986
      %v4029 = vsel %vm3522, %v3627, %v3988
      %v4030 = vsel %vm3522, %v3629, %v3990
      %v4031 = vsel %vm2134, %v4027, %v4000
      %v4032 = vsel %vm2134, %v4028, %v4002
      %v4033 = vsel %vm2134, %v4029, %v4004
      %v4034 = vsel %vm2134, %v4030, %v4006
      %vm4035 = vcmask 392192
      %v4036 = vsel %vm4035, %v4031, %v4016
      %v4037 = vsel %vm4035, %v4032, %v4018
      %v4038 = vsel %vm4035, %v4033, %v4020
      %v4039 = vsel %vm4035, %v4034, %v4022
      %v4040 = vpack.c.bf16 %v4037, %v4036
      %v4041 = vpack.c.bf16 %v4039, %v4038
      %v4043 = vperm.slane %v3401, 0
      %v4053 = vunpack.c.l.b16 %v3393
      %v4054 = vunpack.c.l.b16 %v3394
      %v4055 = vunpack.c.l.b16 %v3395
      %v4056 = vunpack.c.l.b16 %v3396
      %v4057 = vunpack.c.l.b16 %v3397
      %v4058 = vunpack.c.l.b16 %v3398
      %v4059 = vunpack.c.l.b16 %v3399
      %v4060 = vunpack.c.l.b16 %v3400
      %v4061 = vpack.c.b16 %v4054, %v4053
      %v4062 = vpack.c.b16 %v4056, %v4055
      %v4063 = vpack.c.b16 %v4058, %v4057
      %v4064 = vpack.c.b16 %v4060, %v4059
      %v4070 = vsel %vm1026, %v4040, 0
      %v4073 = vsel %vm1026, %v4041, 0
      %4075 = vmatpush.bf16.msra.mxu0 0
      %4076 = vmatpush.bf16.msra.mxu0 0
      %4077 = vmatpush.bf16.msra.mxu0 0
      %4078 = vmatpush.bf16.msra.mxu0 0
      %4079 = vmatpush.bf16.msra.mxu0 %v4064
      %4080 = vmatpush.bf16.msra.mxu0 %v4063
      %4081 = vmatpush.bf16.msra.mxu0 %v4062
      %4082 = vmatpush.bf16.msra.mxu0 %v4061
      %4083 = vmatmul.bf16.gmra.mxu0 %v4070
      %v4084 = vpop.f32.mrf.mxu0
      %v4085 = vadd.f32 %v4043, %v4084
      %v4086 = vpop.f32.mrf.mxu0
      %v4087 = vadd.f32 %v4043, %v4086
      %4088 = vmatmul.bf16.gmra.mxu0 %v4073
      %v4089 = vpop.f32.mrf.mxu0
      %v4090 = vadd.f32 %v4043, %v4089
      %v4091 = vpop.f32.mrf.mxu0
      %v4092 = vadd.f32 %v4043, %v4091
      %4093 = vdwg.mxu0
      %v4094 = vadd.f32 %v4085, %v3267
      %v4095 = vadd.f32 %v4087, %v3268
      %v4096 = vadd.f32 %v4090, %v3269
      %v4097 = vadd.f32 %v4092, %v3270
      %v4098 = vld [vmem:[%s45] sm:$0x1]
      %v4099 = vld [vmem:[%s47] sm:$0x1]
      %v4100 = vld [vmem:[%s49] sm:$0xff]
      %v4101 = vld [vmem:[%s49 + $0x8] sm:$0xff]
      %v4102 = vld [vmem:[%s49 + $0x10] sm:$0xff]
      %v4103 = vld [vmem:[%s49 + $0x18] sm:$0xff]
      %v4104 = vld [vmem:[%s49 + $0x20] sm:$0xff]
      %v4105 = vld [vmem:[%s49 + $0x28] sm:$0xff]
      %v4106 = vld [vmem:[%s49 + $0x30] sm:$0xff]
      %v4107 = vld [vmem:[%s49 + $0x38] sm:$0xff]
      %v4108 = vld [vmem:[%s49 + $0x40] sm:$0xff]
      %v4109 = vld [vmem:[%s49 + $0x48] sm:$0xff]
      %v4110 = vld [vmem:[%s49 + $0x50] sm:$0xff]
      %v4111 = vld [vmem:[%s49 + $0x58] sm:$0xff]
      %v4112 = vld [vmem:[%s49 + $0x60] sm:$0xff]
      %v4113 = vld [vmem:[%s49 + $0x68] sm:$0xff]
      %v4114 = vld [vmem:[%s49 + $0x70] sm:$0xff]
      %v4115 = vld [vmem:[%s49 + $0x78] sm:$0xff]
      %v4116 = vld [vmem:[%s51] sm:$0xf]
      %v4117 = vld [vmem:[%s53] sm:$0xf]
      %v4118 = vld [vmem:[%s53 + $0x4] sm:$0xf]
      %v4119 = vld [vmem:[%s53 + $0x8] sm:$0xf]
      %v4120 = vld [vmem:[%s53 + $0xc] sm:$0xf]
      %v4121 = vld [vmem:[%s53 + $0x10] sm:$0xf]
      %v4122 = vld [vmem:[%s53 + $0x14] sm:$0xf]
      %v4123 = vld [vmem:[%s53 + $0x18] sm:$0xf]
      %v4124 = vld [vmem:[%s53 + $0x1c] sm:$0xf]
      %v4125 = vld [vmem:[%s53 + $0x20] sm:$0xf]
      %v4126 = vld [vmem:[%s53 + $0x24] sm:$0xf]
      %v4127 = vld [vmem:[%s53 + $0x28] sm:$0xf]
      %v4128 = vld [vmem:[%s53 + $0x2c] sm:$0xf]
      %v4129 = vld [vmem:[%s53 + $0x30] sm:$0xf]
      %v4130 = vld [vmem:[%s53 + $0x34] sm:$0xf]
      %v4131 = vld [vmem:[%s53 + $0x38] sm:$0xf]
      %v4132 = vld [vmem:[%s53 + $0x3c] sm:$0xf]
      %v4133 = vld [vmem:[%s53 + $0x40] sm:$0xf]
      %v4134 = vld [vmem:[%s53 + $0x44] sm:$0xf]
      %v4135 = vld [vmem:[%s53 + $0x48] sm:$0xf]
      %v4136 = vld [vmem:[%s53 + $0x4c] sm:$0xf]
      %v4137 = vld [vmem:[%s53 + $0x50] sm:$0xf]
      %v4138 = vld [vmem:[%s53 + $0x54] sm:$0xf]
      %v4139 = vld [vmem:[%s53 + $0x58] sm:$0xf]
      %v4140 = vld [vmem:[%s53 + $0x5c] sm:$0xf]
      %v4141 = vld [vmem:[%s53 + $0x60] sm:$0xf]
      %v4142 = vld [vmem:[%s53 + $0x64] sm:$0xf]
      %v4143 = vld [vmem:[%s53 + $0x68] sm:$0xf]
      %v4144 = vld [vmem:[%s53 + $0x6c] sm:$0xf]
      %v4145 = vld [vmem:[%s53 + $0x70] sm:$0xf]
      %v4146 = vld [vmem:[%s53 + $0x74] sm:$0xf]
      %v4147 = vld [vmem:[%s53 + $0x78] sm:$0xf]
      %v4148 = vld [vmem:[%s53 + $0x7c] sm:$0xf]
      %v4149 = vld [vmem:[%s55] sm:$0x1]
      %v4150 = vsel %vm1026, %v4094, 0.0
      %4151 = vadd.xlane.f32.xlu0 %v4150
      %v4152 = vpop.xlane.xlu0 %4151
      %v4153 = vsel %vm1026, %v4095, 0.0
      %4154 = vadd.xlane.f32.xlu0 %v4153
      %v4155 = vpop.xlane.xlu0 %4154
      %v4156 = vsel %vm1026, %v4096, 0.0
      %4157 = vadd.xlane.f32.xlu0 %v4156
      %v4158 = vpop.xlane.xlu0 %4157
      %v4159 = vsel %vm1026, %v4097, 0.0
      %4160 = vadd.xlane.f32.xlu0 %v4159
      %v4161 = vpop.xlane.xlu0 %4160
      %v4162 = vmul.f32 %v4152, %v1045
      %v4163 = vmul.f32 %v4155, %v1045
      %v4164 = vmul.f32 %v4158, %v1045
      %v4165 = vmul.f32 %v4161, %v1045
      %v4166 = vsub.f32 %v4094, %v4162
      %v4167 = vsub.f32 %v4095, %v4163
      %v4168 = vsub.f32 %v4096, %v4164
      %v4169 = vsub.f32 %v4097, %v4165
      %v4170 = vmul.f32 %v4166, %v4166
      %v4171 = vmul.f32 %v4167, %v4167
      %v4172 = vmul.f32 %v4168, %v4168
      %v4173 = vmul.f32 %v4169, %v4169
      %v4174 = vsel %vm1026, %v4170, 0.0
      %4175 = vadd.xlane.f32.xlu0 %v4174
      %v4176 = vpop.xlane.xlu0 %4175
      %v4177 = vsel %vm1026, %v4171, 0.0
      %4178 = vadd.xlane.f32.xlu0 %v4177
      %v4179 = vpop.xlane.xlu0 %4178
      %v4180 = vsel %vm1026, %v4172, 0.0
      %4181 = vadd.xlane.f32.xlu0 %v4180
      %v4182 = vpop.xlane.xlu0 %4181
      %v4183 = vsel %vm1026, %v4173, 0.0
      %4184 = vadd.xlane.f32.xlu0 %v4183
      %v4185 = vpop.xlane.xlu0 %4184
      %v4186 = vmul.f32 %v4176, %v1045
      %v4187 = vmul.f32 %v4179, %v1045
      %v4188 = vmul.f32 %v4182, %v1045
      %v4189 = vmul.f32 %v4185, %v1045
      %v4190 = vadd.f32 %v4186, 1e-05
      %v4191 = vadd.f32 %v4187, 1e-05
      %v4192 = vadd.f32 %v4188, 1e-05
      %v4193 = vadd.f32 %v4189, 1e-05
      %v4194 = vrsqrt.pop %v4190
      %v4195 = vmul.f32 %v4194, %v4190
      %v4196 = vmul.f32 %v4195, %v4194
      %v4197 = vmul.f32 0.5, %v4196
      %v4198 = vsub.f32 1.5, %v4197
      %v4199 = vmul.f32 %v4194, %v4198
      %vm4200 = vweird.f32 %v4190
      %vm4201 = vweird.f32 %v4194
      %vm4202 = vmor %vm4200, %vm4201
      %v4203 = vsel %vm4202, %v4194, %v4199
      %v4204 = vrsqrt.pop %v4191
      %v4205 = vmul.f32 %v4204, %v4191
      %v4206 = vmul.f32 %v4205, %v4204
      %v4207 = vmul.f32 0.5, %v4206
      %v4208 = vsub.f32 1.5, %v4207
      %v4209 = vmul.f32 %v4204, %v4208
      %vm4210 = vweird.f32 %v4191
      %vm4211 = vweird.f32 %v4204
      %vm4212 = vmor %vm4210, %vm4211
      %v4213 = vsel %vm4212, %v4204, %v4209
      %v4214 = vrsqrt.pop %v4192
      %v4215 = vmul.f32 %v4214, %v4192
      %v4216 = vmul.f32 %v4215, %v4214
      %v4217 = vmul.f32 0.5, %v4216
      %v4218 = vsub.f32 1.5, %v4217
      %v4219 = vmul.f32 %v4214, %v4218
      %vm4220 = vweird.f32 %v4192
      %vm4221 = vweird.f32 %v4214
      %vm4222 = vmor %vm4220, %vm4221
      %v4223 = vsel %vm4222, %v4214, %v4219
      %v4224 = vrsqrt.pop %v4193
      %v4225 = vmul.f32 %v4224, %v4193
      %v4226 = vmul.f32 %v4225, %v4224
      %v4227 = vmul.f32 0.5, %v4226
      %v4228 = vsub.f32 1.5, %v4227
      %v4229 = vmul.f32 %v4224, %v4228
      %vm4230 = vweird.f32 %v4193
      %vm4231 = vweird.f32 %v4224
      %vm4232 = vmor %vm4230, %vm4231
      %v4233 = vsel %vm4232, %v4224, %v4229
      %v4234 = vmul.f32 %v4166, %v4203
      %v4235 = vmul.f32 %v4167, %v4213
      %v4236 = vmul.f32 %v4168, %v4223
      %v4237 = vmul.f32 %v4169, %v4233
      %v4239 = vperm.slane %v4098, 0
      %v4241 = vmul.f32 %v4234, %v4239
      %v4242 = vmul.f32 %v4235, %v4239
      %v4243 = vmul.f32 %v4236, %v4239
      %v4244 = vmul.f32 %v4237, %v4239
      %v4246 = vperm.slane %v4099, 0
      %v4248 = vadd.f32 %v4241, %v4246
      %v4249 = vadd.f32 %v4242, %v4246
      %v4250 = vadd.f32 %v4243, %v4246
      %v4251 = vadd.f32 %v4244, %v4246
      %v4252 = vpack.c.bf16 %v4249, %v4248
      %v4253 = vpack.c.bf16 %v4251, %v4250
      %v4255 = vperm.slane %v4116, 0
      %v4256 = vperm.slane %v4116, 1
      %v4257 = vperm.slane %v4116, 2
      %v4258 = vperm.slane %v4116, 3
      %v4279 = vunpack.c.l.b16 %v4100
      %v4280 = vunpack.c.h.b16 %v4100
      %v4281 = vunpack.c.l.b16 %v4101
      %v4282 = vunpack.c.h.b16 %v4101
      %v4283 = vunpack.c.l.b16 %v4102
      %v4284 = vunpack.c.h.b16 %v4102
      %v4285 = vunpack.c.l.b16 %v4103
      %v4286 = vunpack.c.h.b16 %v4103
      %v4287 = vunpack.c.l.b16 %v4104
      %v4288 = vunpack.c.h.b16 %v4104
      %v4289 = vunpack.c.l.b16 %v4105
      %v4290 = vunpack.c.h.b16 %v4105
      %v4291 = vunpack.c.l.b16 %v4106
      %v4292 = vunpack.c.h.b16 %v4106
      %v4293 = vunpack.c.l.b16 %v4107
      %v4294 = vunpack.c.h.b16 %v4107
      %v4295 = vunpack.c.l.b16 %v4108
      %v4296 = vunpack.c.h.b16 %v4108
      %v4297 = vunpack.c.l.b16 %v4109
      %v4298 = vunpack.c.h.b16 %v4109
      %v4299 = vunpack.c.l.b16 %v4110
      %v4300 = vunpack.c.h.b16 %v4110
      %v4301 = vunpack.c.l.b16 %v4111
      %v4302 = vunpack.c.h.b16 %v4111
      %v4303 = vunpack.c.l.b16 %v4112
      %v4304 = vunpack.c.h.b16 %v4112
      %v4305 = vunpack.c.l.b16 %v4113
      %v4306 = vunpack.c.h.b16 %v4113
      %v4307 = vunpack.c.l.b16 %v4114
      %v4308 = vunpack.c.h.b16 %v4114
      %v4309 = vunpack.c.l.b16 %v4115
      %v4310 = vunpack.c.h.b16 %v4115
      %v4311 = vpack.c.b16 %v4283, %v4279
      %v4312 = vpack.c.b16 %v4284, %v4280
      %v4313 = vpack.c.b16 %v4285, %v4281
      %v4314 = vpack.c.b16 %v4286, %v4282
      %v4315 = vpack.c.b16 %v4291, %v4287
      %v4316 = vpack.c.b16 %v4292, %v4288
      %v4317 = vpack.c.b16 %v4293, %v4289
      %v4318 = vpack.c.b16 %v4294, %v4290
      %v4319 = vpack.c.b16 %v4299, %v4295
      %v4320 = vpack.c.b16 %v4300, %v4296
      %v4321 = vpack.c.b16 %v4301, %v4297
      %v4322 = vpack.c.b16 %v4302, %v4298
      %v4323 = vpack.c.b16 %v4307, %v4303
      %v4324 = vpack.c.b16 %v4308, %v4304
      %v4325 = vpack.c.b16 %v4309, %v4305
      %v4326 = vpack.c.b16 %v4310, %v4306
      %v4344 = vsel %vm1026, %v4252, 0
      %v4347 = vsel %vm1026, %v4253, 0
      %4349 = vmatpush.bf16.msra.mxu0 0
      %4350 = vmatpush.bf16.msra.mxu0 0
      %4351 = vmatpush.bf16.msra.mxu0 0
      %4352 = vmatpush.bf16.msra.mxu0 0
      %4353 = vmatpush.bf16.msra.mxu0 %v4323
      %4354 = vmatpush.bf16.msra.mxu0 %v4319
      %4355 = vmatpush.bf16.msra.mxu0 %v4315
      %4356 = vmatpush.bf16.msra.mxu0 %v4311
      %4357 = vmatmul.bf16.gmra.mxu0 %v4344
      %v4358 = vpop.f32.mrf.mxu0
      %v4359 = vadd.f32 %v4255, %v4358
      %v4360 = vpop.f32.mrf.mxu0
      %v4361 = vadd.f32 %v4255, %v4360
      %4362 = vmatmul.bf16.gmra.mxu0 %v4347
      %v4363 = vpop.f32.mrf.mxu0
      %v4364 = vadd.f32 %v4255, %v4363
      %v4365 = vpop.f32.mrf.mxu0
      %v4366 = vadd.f32 %v4255, %v4365
      %4367 = vdwg.mxu0
      %4368 = vmatpush.bf16.msra.mxu0 0
      %4369 = vmatpush.bf16.msra.mxu0 0
      %4370 = vmatpush.bf16.msra.mxu0 0
      %4371 = vmatpush.bf16.msra.mxu0 0
      %4372 = vmatpush.bf16.msra.mxu0 %v4324
      %4373 = vmatpush.bf16.msra.mxu0 %v4320
      %4374 = vmatpush.bf16.msra.mxu0 %v4316
      %4375 = vmatpush.bf16.msra.mxu0 %v4312
      %4376 = vmatmul.bf16.gmra.mxu0 %v4344
      %v4377 = vpop.f32.mrf.mxu0
      %v4378 = vadd.f32 %v4256, %v4377
      %v4379 = vpop.f32.mrf.mxu0
      %v4380 = vadd.f32 %v4256, %v4379
      %4381 = vmatmul.bf16.gmra.mxu0 %v4347
      %v4382 = vpop.f32.mrf.mxu0
      %v4383 = vadd.f32 %v4256, %v4382
      %v4384 = vpop.f32.mrf.mxu0
      %v4385 = vadd.f32 %v4256, %v4384
      %4386 = vdwg.mxu0
      %4387 = vmatpush.bf16.msra.mxu0 0
      %4388 = vmatpush.bf16.msra.mxu0 0
      %4389 = vmatpush.bf16.msra.mxu0 0
      %4390 = vmatpush.bf16.msra.mxu0 0
      %4391 = vmatpush.bf16.msra.mxu0 %v4325
      %4392 = vmatpush.bf16.msra.mxu0 %v4321
      %4393 = vmatpush.bf16.msra.mxu0 %v4317
      %4394 = vmatpush.bf16.msra.mxu0 %v4313
      %4395 = vmatmul.bf16.gmra.mxu0 %v4344
      %v4396 = vpop.f32.mrf.mxu0
      %v4397 = vadd.f32 %v4257, %v4396
      %v4398 = vpop.f32.mrf.mxu0
      %v4399 = vadd.f32 %v4257, %v4398
      %4400 = vmatmul.bf16.gmra.mxu0 %v4347
      %v4401 = vpop.f32.mrf.mxu0
      %v4402 = vadd.f32 %v4257, %v4401
      %v4403 = vpop.f32.mrf.mxu0
      %v4404 = vadd.f32 %v4257, %v4403
      %4405 = vdwg.mxu0
      %4406 = vmatpush.bf16.msra.mxu0 0
      %4407 = vmatpush.bf16.msra.mxu0 0
      %4408 = vmatpush.bf16.msra.mxu0 0
      %4409 = vmatpush.bf16.msra.mxu0 0
      %4410 = vmatpush.bf16.msra.mxu0 %v4326
      %4411 = vmatpush.bf16.msra.mxu0 %v4322
      %4412 = vmatpush.bf16.msra.mxu0 %v4318
      %4413 = vmatpush.bf16.msra.mxu0 %v4314
      %4414 = vmatmul.bf16.gmra.mxu0 %v4344
      %v4415 = vpop.f32.mrf.mxu0
      %v4416 = vadd.f32 %v4258, %v4415
      %v4417 = vpop.f32.mrf.mxu0
      %v4418 = vadd.f32 %v4258, %v4417
      %4419 = vmatmul.bf16.gmra.mxu0 %v4347
      %v4420 = vpop.f32.mrf.mxu0
      %v4421 = vadd.f32 %v4258, %v4420
      %v4422 = vpop.f32.mrf.mxu0
      %v4423 = vadd.f32 %v4258, %v4422
      %4424 = vdwg.mxu0
      %v4425 = vmul.f32 %v4397, 0.5
      %v4426 = vmul.f32 %v4416, 0.5
      %v4427 = vmul.f32 %v4399, 0.5
      %v4428 = vmul.f32 %v4418, 0.5
      %v4429 = vmul.f32 %v4402, 0.5
      %v4430 = vmul.f32 %v4421, 0.5
      %v4431 = vmul.f32 %v4404, 0.5
      %v4432 = vmul.f32 %v4423, 0.5
      %v4433 = vmul.f32 %v4397, 0.70710677
      %v4434 = vmul.f32 %v4416, 0.70710677
      %v4435 = vmul.f32 %v4399, 0.70710677
      %v4436 = vmul.f32 %v4418, 0.70710677
      %v4437 = vmul.f32 %v4402, 0.70710677
      %v4438 = vmul.f32 %v4421, 0.70710677
      %v4439 = vmul.f32 %v4404, 0.70710677
      %v4440 = vmul.f32 %v4423, 0.70710677
      %v4441 = vmul.f32 %v4433, %v4433
      %v4442 = vmin.f32 16.0, %v4441
      %v4443 = vmul.f32 %v4442, 2.1237322e-06
      %v4444 = vadd.f32 %v4443, 0.00028619796
      %v4445 = vmul.f32 %v4442, %v4444
      %v4446 = vadd.f32 %v4445, 0.0036580483
      %v4447 = vmul.f32 %v4442, %v4446
      %v4448 = vadd.f32 %v4447, 0.05243302
      %v4449 = vmul.f32 %v4442, %v4448
      %v4450 = vadd.f32 %v4449, 0.18741608
      %v4451 = vmul.f32 %v4442, %v4450
      %v4452 = vadd.f32 %v4451, 1.1283791
      %v4453 = vmul.f32 %v4433, %v4452
      %v4454 = vmul.f32 %v4442, 3.8918573e-05
      %v4455 = vadd.f32 %v4454, 0.001143296
      %v4456 = vmul.f32 %v4442, %v4455
      %v4457 = vadd.f32 %v4456, 0.014752088
      %v4458 = vmul.f32 %v4442, %v4457
      %v4459 = vadd.f32 %v4458, 0.112945676
      %v4460 = vmul.f32 %v4442, %v4459
      %v4461 = vadd.f32 %v4460, 0.4994258
      %v4462 = vmul.f32 %v4442, %v4461
      %v4463 = vadd.f32 %v4462, 1.0
      %v4464 = vrcp.pop %v4463
      %v4465 = vmul.f32 %v4463, %v4464
      %v4466 = vsub.f32 1.0, %v4465
      %v4467 = vmul.f32 %v4464, %v4466
      %v4468 = vadd.f32 %v4464, %v4467
      %vm4469 = vweird.f32 %v4463
      %vm4470 = vweird.f32 %v4464
      %vm4471 = vmor %vm4469, %vm4470
      %v4472 = vsel %vm4471, %v4464, %v4468
      %v4473 = vand.u32 2147483647, %v4463
      %vm4474 = vcmp.eq.f32.partialorder %v4473, 8.507059e+37
      %v4475 = vand.u32 %v4463, 2147483648
      %v4476 = vor.u32 1.1754944e-38, %v4475
      %v4477 = vsel %vm4474, %v4476, %v4472
      %v4478 = vmul.f32 %v4453, %v4477
      %v4479 = vmin.f32 %v4478, 1.0
      %v4480 = vmax.f32 %v4479, -1.0
      %v4481 = vmul.f32 %v4434, %v4434
      %v4482 = vmin.f32 16.0, %v4481
      %v4483 = vmul.f32 %v4482, 2.1237322e-06
      %v4484 = vadd.f32 %v4483, 0.00028619796
      %v4485 = vmul.f32 %v4482, %v4484
      %v4486 = vadd.f32 %v4485, 0.0036580483
      %v4487 = vmul.f32 %v4482, %v4486
      %v4488 = vadd.f32 %v4487, 0.05243302
      %v4489 = vmul.f32 %v4482, %v4488
      %v4490 = vadd.f32 %v4489, 0.18741608
      %v4491 = vmul.f32 %v4482, %v4490
      %v4492 = vadd.f32 %v4491, 1.1283791
      %v4493 = vmul.f32 %v4434, %v4492
      %v4494 = vmul.f32 %v4482, 3.8918573e-05
      %v4495 = vadd.f32 %v4494, 0.001143296
      %v4496 = vmul.f32 %v4482, %v4495
      %v4497 = vadd.f32 %v4496, 0.014752088
      %v4498 = vmul.f32 %v4482, %v4497
      %v4499 = vadd.f32 %v4498, 0.112945676
      %v4500 = vmul.f32 %v4482, %v4499
      %v4501 = vadd.f32 %v4500, 0.4994258
      %v4502 = vmul.f32 %v4482, %v4501
      %v4503 = vadd.f32 %v4502, 1.0
      %v4504 = vrcp.pop %v4503
      %v4505 = vmul.f32 %v4503, %v4504
      %v4506 = vsub.f32 1.0, %v4505
      %v4507 = vmul.f32 %v4504, %v4506
      %v4508 = vadd.f32 %v4504, %v4507
      %vm4509 = vweird.f32 %v4503
      %vm4510 = vweird.f32 %v4504
      %vm4511 = vmor %vm4509, %vm4510
      %v4512 = vsel %vm4511, %v4504, %v4508
      %v4513 = vand.u32 2147483647, %v4503
      %vm4514 = vcmp.eq.f32.partialorder %v4513, 8.507059e+37
      %v4515 = vand.u32 %v4503, 2147483648
      %v4516 = vor.u32 1.1754944e-38, %v4515
      %v4517 = vsel %vm4514, %v4516, %v4512
      %v4518 = vmul.f32 %v4493, %v4517
      %v4519 = vmin.f32 %v4518, 1.0
      %v4520 = vmax.f32 %v4519, -1.0
      %v4521 = vmul.f32 %v4435, %v4435
      %v4522 = vmin.f32 16.0, %v4521
      %v4523 = vmul.f32 %v4522, 2.1237322e-06
      %v4524 = vadd.f32 %v4523, 0.00028619796
      %v4525 = vmul.f32 %v4522, %v4524
      %v4526 = vadd.f32 %v4525, 0.0036580483
      %v4527 = vmul.f32 %v4522, %v4526
      %v4528 = vadd.f32 %v4527, 0.05243302
      %v4529 = vmul.f32 %v4522, %v4528
      %v4530 = vadd.f32 %v4529, 0.18741608
      %v4531 = vmul.f32 %v4522, %v4530
      %v4532 = vadd.f32 %v4531, 1.1283791
      %v4533 = vmul.f32 %v4435, %v4532
      %v4534 = vmul.f32 %v4522, 3.8918573e-05
      %v4535 = vadd.f32 %v4534, 0.001143296
      %v4536 = vmul.f32 %v4522, %v4535
      %v4537 = vadd.f32 %v4536, 0.014752088
      %v4538 = vmul.f32 %v4522, %v4537
      %v4539 = vadd.f32 %v4538, 0.112945676
      %v4540 = vmul.f32 %v4522, %v4539
      %v4541 = vadd.f32 %v4540, 0.4994258
      %v4542 = vmul.f32 %v4522, %v4541
      %v4543 = vadd.f32 %v4542, 1.0
      %v4544 = vrcp.pop %v4543
      %v4545 = vmul.f32 %v4543, %v4544
      %v4546 = vsub.f32 1.0, %v4545
      %v4547 = vmul.f32 %v4544, %v4546
      %v4548 = vadd.f32 %v4544, %v4547
      %vm4549 = vweird.f32 %v4543
      %vm4550 = vweird.f32 %v4544
      %vm4551 = vmor %vm4549, %vm4550
      %v4552 = vsel %vm4551, %v4544, %v4548
      %v4553 = vand.u32 2147483647, %v4543
      %vm4554 = vcmp.eq.f32.partialorder %v4553, 8.507059e+37
      %v4555 = vand.u32 %v4543, 2147483648
      %v4556 = vor.u32 1.1754944e-38, %v4555
      %v4557 = vsel %vm4554, %v4556, %v4552
      %v4558 = vmul.f32 %v4533, %v4557
      %v4559 = vmin.f32 %v4558, 1.0
      %v4560 = vmax.f32 %v4559, -1.0
      %v4561 = vmul.f32 %v4436, %v4436
      %v4562 = vmin.f32 16.0, %v4561
      %v4563 = vmul.f32 %v4562, 2.1237322e-06
      %v4564 = vadd.f32 %v4563, 0.00028619796
      %v4565 = vmul.f32 %v4562, %v4564
      %v4566 = vadd.f32 %v4565, 0.0036580483
      %v4567 = vmul.f32 %v4562, %v4566
      %v4568 = vadd.f32 %v4567, 0.05243302
      %v4569 = vmul.f32 %v4562, %v4568
      %v4570 = vadd.f32 %v4569, 0.18741608
      %v4571 = vmul.f32 %v4562, %v4570
      %v4572 = vadd.f32 %v4571, 1.1283791
      %v4573 = vmul.f32 %v4436, %v4572
      %v4574 = vmul.f32 %v4562, 3.8918573e-05
      %v4575 = vadd.f32 %v4574, 0.001143296
      %v4576 = vmul.f32 %v4562, %v4575
      %v4577 = vadd.f32 %v4576, 0.014752088
      %v4578 = vmul.f32 %v4562, %v4577
      %v4579 = vadd.f32 %v4578, 0.112945676
      %v4580 = vmul.f32 %v4562, %v4579
      %v4581 = vadd.f32 %v4580, 0.4994258
      %v4582 = vmul.f32 %v4562, %v4581
      %v4583 = vadd.f32 %v4582, 1.0
      %v4584 = vrcp.pop %v4583
      %v4585 = vmul.f32 %v4583, %v4584
      %v4586 = vsub.f32 1.0, %v4585
      %v4587 = vmul.f32 %v4584, %v4586
      %v4588 = vadd.f32 %v4584, %v4587
      %vm4589 = vweird.f32 %v4583
      %vm4590 = vweird.f32 %v4584
      %vm4591 = vmor %vm4589, %vm4590
      %v4592 = vsel %vm4591, %v4584, %v4588
      %v4593 = vand.u32 2147483647, %v4583
      %vm4594 = vcmp.eq.f32.partialorder %v4593, 8.507059e+37
      %v4595 = vand.u32 %v4583, 2147483648
      %v4596 = vor.u32 1.1754944e-38, %v4595
      %v4597 = vsel %vm4594, %v4596, %v4592
      %v4598 = vmul.f32 %v4573, %v4597
      %v4599 = vmin.f32 %v4598, 1.0
      %v4600 = vmax.f32 %v4599, -1.0
      %v4601 = vmul.f32 %v4437, %v4437
      %v4602 = vmin.f32 16.0, %v4601
      %v4603 = vmul.f32 %v4602, 2.1237322e-06
      %v4604 = vadd.f32 %v4603, 0.00028619796
      %v4605 = vmul.f32 %v4602, %v4604
      %v4606 = vadd.f32 %v4605, 0.0036580483
      %v4607 = vmul.f32 %v4602, %v4606
      %v4608 = vadd.f32 %v4607, 0.05243302
      %v4609 = vmul.f32 %v4602, %v4608
      %v4610 = vadd.f32 %v4609, 0.18741608
      %v4611 = vmul.f32 %v4602, %v4610
      %v4612 = vadd.f32 %v4611, 1.1283791
      %v4613 = vmul.f32 %v4437, %v4612
      %v4614 = vmul.f32 %v4602, 3.8918573e-05
      %v4615 = vadd.f32 %v4614, 0.001143296
      %v4616 = vmul.f32 %v4602, %v4615
      %v4617 = vadd.f32 %v4616, 0.014752088
      %v4618 = vmul.f32 %v4602, %v4617
      %v4619 = vadd.f32 %v4618, 0.112945676
      %v4620 = vmul.f32 %v4602, %v4619
      %v4621 = vadd.f32 %v4620, 0.4994258
      %v4622 = vmul.f32 %v4602, %v4621
      %v4623 = vadd.f32 %v4622, 1.0
      %v4624 = vrcp.pop %v4623
      %v4625 = vmul.f32 %v4623, %v4624
      %v4626 = vsub.f32 1.0, %v4625
      %v4627 = vmul.f32 %v4624, %v4626
      %v4628 = vadd.f32 %v4624, %v4627
      %vm4629 = vweird.f32 %v4623
      %vm4630 = vweird.f32 %v4624
      %vm4631 = vmor %vm4629, %vm4630
      %v4632 = vsel %vm4631, %v4624, %v4628
      %v4633 = vand.u32 2147483647, %v4623
      %vm4634 = vcmp.eq.f32.partialorder %v4633, 8.507059e+37
      %v4635 = vand.u32 %v4623, 2147483648
      %v4636 = vor.u32 1.1754944e-38, %v4635
      %v4637 = vsel %vm4634, %v4636, %v4632
      %v4638 = vmul.f32 %v4613, %v4637
      %v4639 = vmin.f32 %v4638, 1.0
      %v4640 = vmax.f32 %v4639, -1.0
      %v4641 = vmul.f32 %v4438, %v4438
      %v4642 = vmin.f32 16.0, %v4641
      %v4643 = vmul.f32 %v4642, 2.1237322e-06
      %v4644 = vadd.f32 %v4643, 0.00028619796
      %v4645 = vmul.f32 %v4642, %v4644
      %v4646 = vadd.f32 %v4645, 0.0036580483
      %v4647 = vmul.f32 %v4642, %v4646
      %v4648 = vadd.f32 %v4647, 0.05243302
      %v4649 = vmul.f32 %v4642, %v4648
      %v4650 = vadd.f32 %v4649, 0.18741608
      %v4651 = vmul.f32 %v4642, %v4650
      %v4652 = vadd.f32 %v4651, 1.1283791
      %v4653 = vmul.f32 %v4438, %v4652
      %v4654 = vmul.f32 %v4642, 3.8918573e-05
      %v4655 = vadd.f32 %v4654, 0.001143296
      %v4656 = vmul.f32 %v4642, %v4655
      %v4657 = vadd.f32 %v4656, 0.014752088
      %v4658 = vmul.f32 %v4642, %v4657
      %v4659 = vadd.f32 %v4658, 0.112945676
      %v4660 = vmul.f32 %v4642, %v4659
      %v4661 = vadd.f32 %v4660, 0.4994258
      %v4662 = vmul.f32 %v4642, %v4661
      %v4663 = vadd.f32 %v4662, 1.0
      %v4664 = vrcp.pop %v4663
      %v4665 = vmul.f32 %v4663, %v4664
      %v4666 = vsub.f32 1.0, %v4665
      %v4667 = vmul.f32 %v4664, %v4666
      %v4668 = vadd.f32 %v4664, %v4667
      %vm4669 = vweird.f32 %v4663
      %vm4670 = vweird.f32 %v4664
      %vm4671 = vmor %vm4669, %vm4670
      %v4672 = vsel %vm4671, %v4664, %v4668
      %v4673 = vand.u32 2147483647, %v4663
      %vm4674 = vcmp.eq.f32.partialorder %v4673, 8.507059e+37
      %v4675 = vand.u32 %v4663, 2147483648
      %v4676 = vor.u32 1.1754944e-38, %v4675
      %v4677 = vsel %vm4674, %v4676, %v4672
      %v4678 = vmul.f32 %v4653, %v4677
      %v4679 = vmin.f32 %v4678, 1.0
      %v4680 = vmax.f32 %v4679, -1.0
      %v4681 = vmul.f32 %v4439, %v4439
      %v4682 = vmin.f32 16.0, %v4681
      %v4683 = vmul.f32 %v4682, 2.1237322e-06
      %v4684 = vadd.f32 %v4683, 0.00028619796
      %v4685 = vmul.f32 %v4682, %v4684
      %v4686 = vadd.f32 %v4685, 0.0036580483
      %v4687 = vmul.f32 %v4682, %v4686
      %v4688 = vadd.f32 %v4687, 0.05243302
      %v4689 = vmul.f32 %v4682, %v4688
      %v4690 = vadd.f32 %v4689, 0.18741608
      %v4691 = vmul.f32 %v4682, %v4690
      %v4692 = vadd.f32 %v4691, 1.1283791
      %v4693 = vmul.f32 %v4439, %v4692
      %v4694 = vmul.f32 %v4682, 3.8918573e-05
      %v4695 = vadd.f32 %v4694, 0.001143296
      %v4696 = vmul.f32 %v4682, %v4695
      %v4697 = vadd.f32 %v4696, 0.014752088
      %v4698 = vmul.f32 %v4682, %v4697
      %v4699 = vadd.f32 %v4698, 0.112945676
      %v4700 = vmul.f32 %v4682, %v4699
      %v4701 = vadd.f32 %v4700, 0.4994258
      %v4702 = vmul.f32 %v4682, %v4701
      %v4703 = vadd.f32 %v4702, 1.0
      %v4704 = vrcp.pop %v4703
      %v4705 = vmul.f32 %v4703, %v4704
      %v4706 = vsub.f32 1.0, %v4705
      %v4707 = vmul.f32 %v4704, %v4706
      %v4708 = vadd.f32 %v4704, %v4707
      %vm4709 = vweird.f32 %v4703
      %vm4710 = vweird.f32 %v4704
      %vm4711 = vmor %vm4709, %vm4710
      %v4712 = vsel %vm4711, %v4704, %v4708
      %v4713 = vand.u32 2147483647, %v4703
      %vm4714 = vcmp.eq.f32.partialorder %v4713, 8.507059e+37
      %v4715 = vand.u32 %v4703, 2147483648
      %v4716 = vor.u32 1.1754944e-38, %v4715
      %v4717 = vsel %vm4714, %v4716, %v4712
      %v4718 = vmul.f32 %v4693, %v4717
      %v4719 = vmin.f32 %v4718, 1.0
      %v4720 = vmax.f32 %v4719, -1.0
      %v4721 = vmul.f32 %v4440, %v4440
      %v4722 = vmin.f32 16.0, %v4721
      %v4723 = vmul.f32 %v4722, 2.1237322e-06
      %v4724 = vadd.f32 %v4723, 0.00028619796
      %v4725 = vmul.f32 %v4722, %v4724
      %v4726 = vadd.f32 %v4725, 0.0036580483
      %v4727 = vmul.f32 %v4722, %v4726
      %v4728 = vadd.f32 %v4727, 0.05243302
      %v4729 = vmul.f32 %v4722, %v4728
      %v4730 = vadd.f32 %v4729, 0.18741608
      %v4731 = vmul.f32 %v4722, %v4730
      %v4732 = vadd.f32 %v4731, 1.1283791
      %v4733 = vmul.f32 %v4440, %v4732
      %v4734 = vmul.f32 %v4722, 3.8918573e-05
      %v4735 = vadd.f32 %v4734, 0.001143296
      %v4736 = vmul.f32 %v4722, %v4735
      %v4737 = vadd.f32 %v4736, 0.014752088
      %v4738 = vmul.f32 %v4722, %v4737
      %v4739 = vadd.f32 %v4738, 0.112945676
      %v4740 = vmul.f32 %v4722, %v4739
      %v4741 = vadd.f32 %v4740, 0.4994258
      %v4742 = vmul.f32 %v4722, %v4741
      %v4743 = vadd.f32 %v4742, 1.0
      %v4744 = vrcp.pop %v4743
      %v4745 = vmul.f32 %v4743, %v4744
      %v4746 = vsub.f32 1.0, %v4745
      %v4747 = vmul.f32 %v4744, %v4746
      %v4748 = vadd.f32 %v4744, %v4747
      %vm4749 = vweird.f32 %v4743
      %vm4750 = vweird.f32 %v4744
      %vm4751 = vmor %vm4749, %vm4750
      %v4752 = vsel %vm4751, %v4744, %v4748
      %v4753 = vand.u32 2147483647, %v4743
      %vm4754 = vcmp.eq.f32.partialorder %v4753, 8.507059e+37
      %v4755 = vand.u32 %v4743, 2147483648
      %v4756 = vor.u32 1.1754944e-38, %v4755
      %v4757 = vsel %vm4754, %v4756, %v4752
      %v4758 = vmul.f32 %v4733, %v4757
      %v4759 = vmin.f32 %v4758, 1.0
      %v4760 = vmax.f32 %v4759, -1.0
      %v4761 = vadd.f32 %v4480, 1.0
      %v4762 = vadd.f32 %v4520, 1.0
      %v4763 = vadd.f32 %v4560, 1.0
      %v4764 = vadd.f32 %v4600, 1.0
      %v4765 = vadd.f32 %v4640, 1.0
      %v4766 = vadd.f32 %v4680, 1.0
      %v4767 = vadd.f32 %v4720, 1.0
      %v4768 = vadd.f32 %v4760, 1.0
      %v4769 = vmul.f32 %v4425, %v4761
      %v4770 = vmul.f32 %v4426, %v4762
      %v4771 = vmul.f32 %v4427, %v4763
      %v4772 = vmul.f32 %v4428, %v4764
      %v4773 = vmul.f32 %v4429, %v4765
      %v4774 = vmul.f32 %v4430, %v4766
      %v4775 = vmul.f32 %v4431, %v4767
      %v4776 = vmul.f32 %v4432, %v4768
      %v4777 = vmul.f32 %v4359, %v4769
      %v4778 = vmul.f32 %v4378, %v4770
      %v4779 = vmul.f32 %v4361, %v4771
      %v4780 = vmul.f32 %v4380, %v4772
      %v4781 = vmul.f32 %v4364, %v4773
      %v4782 = vmul.f32 %v4383, %v4774
      %v4783 = vmul.f32 %v4366, %v4775
      %v4784 = vmul.f32 %v4385, %v4776
      %v4785 = vpack.c.bf16 %v4779, %v4777
      %v4786 = vpack.c.bf16 %v4780, %v4778
      %v4787 = vpack.c.bf16 %v4783, %v4781
      %v4788 = vpack.c.bf16 %v4784, %v4782
      %v4790 = vperm.slane %v4149, 0
      %v4824 = vunpack.c.l.b16 %v4117
      %v4825 = vunpack.c.l.b16 %v4118
      %v4826 = vunpack.c.l.b16 %v4119
      %v4827 = vunpack.c.l.b16 %v4120
      %v4828 = vunpack.c.l.b16 %v4121
      %v4829 = vunpack.c.l.b16 %v4122
      %v4830 = vunpack.c.l.b16 %v4123
      %v4831 = vunpack.c.l.b16 %v4124
      %v4832 = vunpack.c.l.b16 %v4125
      %v4833 = vunpack.c.l.b16 %v4126
      %v4834 = vunpack.c.l.b16 %v4127
      %v4835 = vunpack.c.l.b16 %v4128
      %v4836 = vunpack.c.l.b16 %v4129
      %v4837 = vunpack.c.l.b16 %v4130
      %v4838 = vunpack.c.l.b16 %v4131
      %v4839 = vunpack.c.l.b16 %v4132
      %v4840 = vunpack.c.l.b16 %v4133
      %v4841 = vunpack.c.l.b16 %v4134
      %v4842 = vunpack.c.l.b16 %v4135
      %v4843 = vunpack.c.l.b16 %v4136
      %v4844 = vunpack.c.l.b16 %v4137
      %v4845 = vunpack.c.l.b16 %v4138
      %v4846 = vunpack.c.l.b16 %v4139
      %v4847 = vunpack.c.l.b16 %v4140
      %v4848 = vunpack.c.l.b16 %v4141
      %v4849 = vunpack.c.l.b16 %v4142
      %v4850 = vunpack.c.l.b16 %v4143
      %v4851 = vunpack.c.l.b16 %v4144
      %v4852 = vunpack.c.l.b16 %v4145
      %v4853 = vunpack.c.l.b16 %v4146
      %v4854 = vunpack.c.l.b16 %v4147
      %v4855 = vunpack.c.l.b16 %v4148
      %v4856 = vpack.c.b16 %v4825, %v4824
      %v4857 = vpack.c.b16 %v4827, %v4826
      %v4858 = vpack.c.b16 %v4829, %v4828
      %v4859 = vpack.c.b16 %v4831, %v4830
      %v4860 = vpack.c.b16 %v4833, %v4832
      %v4861 = vpack.c.b16 %v4835, %v4834
      %v4862 = vpack.c.b16 %v4837, %v4836
      %v4863 = vpack.c.b16 %v4839, %v4838
      %v4864 = vpack.c.b16 %v4841, %v4840
      %v4865 = vpack.c.b16 %v4843, %v4842
      %v4866 = vpack.c.b16 %v4845, %v4844
      %v4867 = vpack.c.b16 %v4847, %v4846
      %v4868 = vpack.c.b16 %v4849, %v4848
      %v4869 = vpack.c.b16 %v4851, %v4850
      %v4870 = vpack.c.b16 %v4853, %v4852
      %v4871 = vpack.c.b16 %v4855, %v4854
      %4888 = vmatpush.bf16.msra.mxu0 %v4863
      %4889 = vmatpush.bf16.msra.mxu0 %v4862
      %4890 = vmatpush.bf16.msra.mxu0 %v4861
      %4891 = vmatpush.bf16.msra.mxu0 %v4860
      %4892 = vmatpush.bf16.msra.mxu0 %v4859
      %4893 = vmatpush.bf16.msra.mxu0 %v4858
      %4894 = vmatpush.bf16.msra.mxu0 %v4857
      %4895 = vmatpush.bf16.msra.mxu0 %v4856
      %4896 = vmatmul.bf16.gmra.mxu0 %v4785
      %v4897 = vpop.f32.mrf.mxu0
      %v4898 = vadd.f32 %v4790, %v4897
      %v4899 = vpop.f32.mrf.mxu0
      %v4900 = vadd.f32 %v4790, %v4899
      %4901 = vmatmul.bf16.gmra.mxu0 %v4787
      %v4902 = vpop.f32.mrf.mxu0
      %v4903 = vadd.f32 %v4790, %v4902
      %v4904 = vpop.f32.mrf.mxu0
      %v4905 = vadd.f32 %v4790, %v4904
      %4906 = vdwg.mxu0
      %4907 = vmatpush.bf16.msra.mxu0 %v4871
      %4908 = vmatpush.bf16.msra.mxu0 %v4870
      %4909 = vmatpush.bf16.msra.mxu0 %v4869
      %4910 = vmatpush.bf16.msra.mxu0 %v4868
      %4911 = vmatpush.bf16.msra.mxu0 %v4867
      %4912 = vmatpush.bf16.msra.mxu0 %v4866
      %4913 = vmatpush.bf16.msra.mxu0 %v4865
      %4914 = vmatpush.bf16.msra.mxu0 %v4864
      %4915 = vmatmul.bf16.gmra.mxu0 %v4786
      %v4916 = vpop.f32.mrf.mxu0
      %v4917 = vadd.f32 %v4898, %v4916
      %v4918 = vpop.f32.mrf.mxu0
      %v4919 = vadd.f32 %v4900, %v4918
      %4920 = vmatmul.bf16.gmra.mxu0 %v4788
      %v4921 = vpop.f32.mrf.mxu0
      %v4922 = vadd.f32 %v4903, %v4921
      %v4923 = vpop.f32.mrf.mxu0
      %v4924 = vadd.f32 %v4905, %v4923
      %4925 = vdwg.mxu0
      %v4926 = vadd.f32 %v4917, %v4094
      %v4927 = vadd.f32 %v4919, %v4095
      %v4928 = vadd.f32 %v4922, %v4096
      %v4929 = vadd.f32 %v4924, %v4097
      %s4930 = scalar_lea.vmem %s5, 1
      %v4931 = vld [vmem:[%s4930] sm:$0x1]
      %s4932 = scalar_lea.vmem %s7, 1
      %v4933 = vld [vmem:[%s4932] sm:$0x1]
      %v4934 = vsel %vm1026, %v4926, 0.0
      %4935 = vadd.xlane.f32.xlu0 %v4934
      %v4936 = vpop.xlane.xlu0 %4935
      %v4937 = vsel %vm1026, %v4927, 0.0
      %4938 = vadd.xlane.f32.xlu0 %v4937
      %v4939 = vpop.xlane.xlu0 %4938
      %v4940 = vsel %vm1026, %v4928, 0.0
      %4941 = vadd.xlane.f32.xlu0 %v4940
      %v4942 = vpop.xlane.xlu0 %4941
      %v4943 = vsel %vm1026, %v4929, 0.0
      %4944 = vadd.xlane.f32.xlu0 %v4943
      %v4945 = vpop.xlane.xlu0 %4944
      %v4946 = vmul.f32 %v4936, %v1045
      %v4947 = vmul.f32 %v4939, %v1045
      %v4948 = vmul.f32 %v4942, %v1045
      %v4949 = vmul.f32 %v4945, %v1045
      %v4950 = vsub.f32 %v4926, %v4946
      %v4951 = vsub.f32 %v4927, %v4947
      %v4952 = vsub.f32 %v4928, %v4948
      %v4953 = vsub.f32 %v4929, %v4949
      %v4954 = vmul.f32 %v4950, %v4950
      %v4955 = vmul.f32 %v4951, %v4951
      %v4956 = vmul.f32 %v4952, %v4952
      %v4957 = vmul.f32 %v4953, %v4953
      %v4958 = vsel %vm1026, %v4954, 0.0
      %4959 = vadd.xlane.f32.xlu0 %v4958
      %v4960 = vpop.xlane.xlu0 %4959
      %v4961 = vsel %vm1026, %v4955, 0.0
      %4962 = vadd.xlane.f32.xlu0 %v4961
      %v4963 = vpop.xlane.xlu0 %4962
      %v4964 = vsel %vm1026, %v4956, 0.0
      %4965 = vadd.xlane.f32.xlu0 %v4964
      %v4966 = vpop.xlane.xlu0 %4965
      %v4967 = vsel %vm1026, %v4957, 0.0
      %4968 = vadd.xlane.f32.xlu0 %v4967
      %v4969 = vpop.xlane.xlu0 %4968
      %v4970 = vmul.f32 %v4960, %v1045
      %v4971 = vmul.f32 %v4963, %v1045
      %v4972 = vmul.f32 %v4966, %v1045
      %v4973 = vmul.f32 %v4969, %v1045
      %v4974 = vadd.f32 %v4970, 1e-05
      %v4975 = vadd.f32 %v4971, 1e-05
      %v4976 = vadd.f32 %v4972, 1e-05
      %v4977 = vadd.f32 %v4973, 1e-05
      %v4978 = vrsqrt.pop %v4974
      %v4979 = vmul.f32 %v4978, %v4974
      %v4980 = vmul.f32 %v4979, %v4978
      %v4981 = vmul.f32 0.5, %v4980
      %v4982 = vsub.f32 1.5, %v4981
      %v4983 = vmul.f32 %v4978, %v4982
      %vm4984 = vweird.f32 %v4974
      %vm4985 = vweird.f32 %v4978
      %vm4986 = vmor %vm4984, %vm4985
      %v4987 = vsel %vm4986, %v4978, %v4983
      %v4988 = vrsqrt.pop %v4975
      %v4989 = vmul.f32 %v4988, %v4975
      %v4990 = vmul.f32 %v4989, %v4988
      %v4991 = vmul.f32 0.5, %v4990
      %v4992 = vsub.f32 1.5, %v4991
      %v4993 = vmul.f32 %v4988, %v4992
      %vm4994 = vweird.f32 %v4975
      %vm4995 = vweird.f32 %v4988
      %vm4996 = vmor %vm4994, %vm4995
      %v4997 = vsel %vm4996, %v4988, %v4993
      %v4998 = vrsqrt.pop %v4976
      %v4999 = vmul.f32 %v4998, %v4976
      %v5000 = vmul.f32 %v4999, %v4998
      %v5001 = vmul.f32 0.5, %v5000
      %v5002 = vsub.f32 1.5, %v5001
      %v5003 = vmul.f32 %v4998, %v5002
      %vm5004 = vweird.f32 %v4976
      %vm5005 = vweird.f32 %v4998
      %vm5006 = vmor %vm5004, %vm5005
      %v5007 = vsel %vm5006, %v4998, %v5003
      %v5008 = vrsqrt.pop %v4977
      %v5009 = vmul.f32 %v5008, %v4977
      %v5010 = vmul.f32 %v5009, %v5008
      %v5011 = vmul.f32 0.5, %v5010
      %v5012 = vsub.f32 1.5, %v5011
      %v5013 = vmul.f32 %v5008, %v5012
      %vm5014 = vweird.f32 %v4977
      %vm5015 = vweird.f32 %v5008
      %vm5016 = vmor %vm5014, %vm5015
      %v5017 = vsel %vm5016, %v5008, %v5013
      %v5018 = vmul.f32 %v4950, %v4987
      %v5019 = vmul.f32 %v4951, %v4997
      %v5020 = vmul.f32 %v4952, %v5007
      %v5021 = vmul.f32 %v4953, %v5017
      %v5023 = vperm.slane %v4931, 0
      %v5025 = vmul.f32 %v5018, %v5023
      %v5026 = vmul.f32 %v5019, %v5023
      %v5027 = vmul.f32 %v5020, %v5023
      %v5028 = vmul.f32 %v5021, %v5023
      %v5030 = vperm.slane %v4933, 0
      %v5032 = vadd.f32 %v5025, %v5030
      %v5033 = vadd.f32 %v5026, %v5030
      %v5034 = vadd.f32 %v5027, %v5030
      %v5035 = vadd.f32 %v5028, %v5030
      %v5036 = vpack.c.bf16 %v5033, %v5032
      %v5037 = vpack.c.bf16 %v5035, %v5034
      %s5038 = scalar_lea.vmem %s9, 1
      %v5039 = vld [vmem:[%s5038] sm:$0x1]
      %s5040 = scalar_lea.vmem %s11, 1
      %v5041 = vld [vmem:[%s5040] sm:$0x1]
      %v5043 = vperm.slane %v5039, 0
      %v5045 = vmul.f32 %v1783, %v5043
      %v5046 = vmul.f32 %v1784, %v5043
      %v5047 = vmul.f32 %v1785, %v5043
      %v5048 = vmul.f32 %v1786, %v5043
      %v5049 = vmul.f32 %v1787, %v5043
      %v5050 = vmul.f32 %v1788, %v5043
      %v5051 = vmul.f32 %v1789, %v5043
      %v5052 = vmul.f32 %v1790, %v5043
      %v5053 = vmul.f32 %v1791, %v5043
      %v5054 = vmul.f32 %v1792, %v5043
      %v5055 = vmul.f32 %v1793, %v5043
      %v5056 = vmul.f32 %v1794, %v5043
      %v5057 = vmul.f32 %v1795, %v5043
      %v5058 = vmul.f32 %v1796, %v5043
      %v5059 = vmul.f32 %v1797, %v5043
      %v5060 = vmul.f32 %v1798, %v5043
      %v5061 = vmul.f32 %v1799, %v5043
      %v5062 = vmul.f32 %v1800, %v5043
      %v5063 = vmul.f32 %v1801, %v5043
      %v5064 = vmul.f32 %v1802, %v5043
      %v5065 = vmul.f32 %v1803, %v5043
      %v5066 = vmul.f32 %v1804, %v5043
      %v5067 = vmul.f32 %v1805, %v5043
      %v5068 = vmul.f32 %v1806, %v5043
      %v5069 = vmul.f32 %v1807, %v5043
      %v5070 = vmul.f32 %v1808, %v5043
      %v5071 = vmul.f32 %v1809, %v5043
      %v5072 = vmul.f32 %v1810, %v5043
      %v5073 = vmul.f32 %v1811, %v5043
      %v5074 = vmul.f32 %v1812, %v5043
      %v5075 = vmul.f32 %v1813, %v5043
      %v5076 = vmul.f32 %v1814, %v5043
      %v5078 = vperm.slane %v5041, 0
      %v5080 = vadd.f32 %v5045, %v5078
      %v5081 = vadd.f32 %v5046, %v5078
      %v5082 = vadd.f32 %v5047, %v5078
      %v5083 = vadd.f32 %v5048, %v5078
      %v5084 = vadd.f32 %v5049, %v5078
      %v5085 = vadd.f32 %v5050, %v5078
      %v5086 = vadd.f32 %v5051, %v5078
      %v5087 = vadd.f32 %v5052, %v5078
      %v5088 = vadd.f32 %v5053, %v5078
      %v5089 = vadd.f32 %v5054, %v5078
      %v5090 = vadd.f32 %v5055, %v5078
      %v5091 = vadd.f32 %v5056, %v5078
      %v5092 = vadd.f32 %v5057, %v5078
      %v5093 = vadd.f32 %v5058, %v5078
      %v5094 = vadd.f32 %v5059, %v5078
      %v5095 = vadd.f32 %v5060, %v5078
      %v5096 = vadd.f32 %v5061, %v5078
      %v5097 = vadd.f32 %v5062, %v5078
      %v5098 = vadd.f32 %v5063, %v5078
      %v5099 = vadd.f32 %v5064, %v5078
      %v5100 = vadd.f32 %v5065, %v5078
      %v5101 = vadd.f32 %v5066, %v5078
      %v5102 = vadd.f32 %v5067, %v5078
      %v5103 = vadd.f32 %v5068, %v5078
      %v5104 = vadd.f32 %v5069, %v5078
      %v5105 = vadd.f32 %v5070, %v5078
      %v5106 = vadd.f32 %v5071, %v5078
      %v5107 = vadd.f32 %v5072, %v5078
      %v5108 = vadd.f32 %v5073, %v5078
      %v5109 = vadd.f32 %v5074, %v5078
      %v5110 = vadd.f32 %v5075, %v5078
      %v5111 = vadd.f32 %v5076, %v5078
      %v5112 = vpack.c.bf16 %v5081, %v5080
      %v5113 = vpack.c.bf16 %v5083, %v5082
      %v5114 = vpack.c.bf16 %v5085, %v5084
      %v5115 = vpack.c.bf16 %v5087, %v5086
      %v5116 = vpack.c.bf16 %v5089, %v5088
      %v5117 = vpack.c.bf16 %v5091, %v5090
      %v5118 = vpack.c.bf16 %v5093, %v5092
      %v5119 = vpack.c.bf16 %v5095, %v5094
      %v5120 = vpack.c.bf16 %v5097, %v5096
      %v5121 = vpack.c.bf16 %v5099, %v5098
      %v5122 = vpack.c.bf16 %v5101, %v5100
      %v5123 = vpack.c.bf16 %v5103, %v5102
      %v5124 = vpack.c.bf16 %v5105, %v5104
      %v5125 = vpack.c.bf16 %v5107, %v5106
      %v5126 = vpack.c.bf16 %v5109, %v5108
      %v5127 = vpack.c.bf16 %v5111, %v5110
      %s5128 = scalar_lea.vmem %s13, 32
      %v5129 = vld [vmem:[%s5128] sm:$0xf]
      %v5130 = vld [vmem:[%s5128 + $0x4] sm:$0xf]
      %v5131 = vld [vmem:[%s5128 + $0x8] sm:$0xf]
      %v5132 = vld [vmem:[%s5128 + $0xc] sm:$0xf]
      %v5133 = vld [vmem:[%s5128 + $0x10] sm:$0xf]
      %v5134 = vld [vmem:[%s5128 + $0x14] sm:$0xf]
      %v5135 = vld [vmem:[%s5128 + $0x18] sm:$0xf]
      %v5136 = vld [vmem:[%s5128 + $0x1c] sm:$0xf]
      %s5137 = scalar_lea.vmem %s15, 64
      %v5138 = vld [vmem:[%s5137] sm:$0xf]
      %v5139 = vld [vmem:[%s5137 + $0x4] sm:$0xf]
      %v5140 = vld [vmem:[%s5137 + $0x8] sm:$0xf]
      %v5141 = vld [vmem:[%s5137 + $0xc] sm:$0xf]
      %v5142 = vld [vmem:[%s5137 + $0x10] sm:$0xf]
      %v5143 = vld [vmem:[%s5137 + $0x14] sm:$0xf]
      %v5144 = vld [vmem:[%s5137 + $0x18] sm:$0xf]
      %v5145 = vld [vmem:[%s5137 + $0x1c] sm:$0xf]
      %v5146 = vld [vmem:[%s5137 + $0x20] sm:$0xf]
      %v5147 = vld [vmem:[%s5137 + $0x24] sm:$0xf]
      %v5148 = vld [vmem:[%s5137 + $0x28] sm:$0xf]
      %v5149 = vld [vmem:[%s5137 + $0x2c] sm:$0xf]
      %v5150 = vld [vmem:[%s5137 + $0x30] sm:$0xf]
      %v5151 = vld [vmem:[%s5137 + $0x34] sm:$0xf]
      %v5152 = vld [vmem:[%s5137 + $0x38] sm:$0xf]
      %v5153 = vld [vmem:[%s5137 + $0x3c] sm:$0xf]
      %s5154 = scalar_lea.vmem %s17, 16
      %v5155 = vld [vmem:[%s5154] sm:$0xf]
      %v5156 = vld [vmem:[%s5154 + $0x4] sm:$0xf]
      %v5157 = vld [vmem:[%s5154 + $0x8] sm:$0xf]
      %v5158 = vld [vmem:[%s5154 + $0xc] sm:$0xf]
      %s5159 = scalar_lea.vmem %s19, 1
      %v5160 = vld [vmem:[%s5159] sm:$0x1]
      %v5169 = vunpack.c.l.b16 %v5129
      %v5170 = vunpack.c.l.b16 %v5130
      %v5171 = vunpack.c.l.b16 %v5131
      %v5172 = vunpack.c.l.b16 %v5132
      %v5173 = vunpack.c.l.b16 %v5133
      %v5174 = vunpack.c.l.b16 %v5134
      %v5175 = vunpack.c.l.b16 %v5135
      %v5176 = vunpack.c.l.b16 %v5136
      %v5177 = vpack.c.b16 %v5170, %v5169
      %v5178 = vpack.c.b16 %v5172, %v5171
      %v5179 = vpack.c.b16 %v5174, %v5173
      %v5180 = vpack.c.b16 %v5176, %v5175
      %v5186 = vsel %vm1026, %v5036, 0
      %v5189 = vsel %vm1026, %v5037, 0
      %5191 = vmatpush.bf16.msra.mxu0 0
      %5192 = vmatpush.bf16.msra.mxu0 0
      %5193 = vmatpush.bf16.msra.mxu0 0
      %5194 = vmatpush.bf16.msra.mxu0 0
      %5195 = vmatpush.bf16.msra.mxu0 %v5180
      %5196 = vmatpush.bf16.msra.mxu0 %v5179
      %5197 = vmatpush.bf16.msra.mxu0 %v5178
      %5198 = vmatpush.bf16.msra.mxu0 %v5177
      %5199 = vmatmul.bf16.gmra.mxu0 %v5186
      %v5200 = vpop.f32.mrf.mxu0
      %v5201 = vadd.f32 0.0, %v5200
      %v5202 = vpop.f32.mrf.mxu0
      %v5203 = vadd.f32 0.0, %v5202
      %5204 = vmatmul.bf16.gmra.mxu0 %v5189
      %v5205 = vpop.f32.mrf.mxu0
      %v5206 = vadd.f32 0.0, %v5205
      %v5207 = vpop.f32.mrf.mxu0
      %v5208 = vadd.f32 0.0, %v5207
      %5209 = vdwg.mxu0
      %v5210 = vpack.c.bf16 %v5203, %v5201
      %v5211 = vpack.c.bf16 %v5208, %v5206
      %v5228 = vunpack.c.l.b16 %v5138
      %v5229 = vunpack.c.l.b16 %v5139
      %v5230 = vunpack.c.l.b16 %v5140
      %v5231 = vunpack.c.l.b16 %v5141
      %v5232 = vunpack.c.l.b16 %v5142
      %v5233 = vunpack.c.l.b16 %v5143
      %v5234 = vunpack.c.l.b16 %v5144
      %v5235 = vunpack.c.l.b16 %v5145
      %v5236 = vunpack.c.l.b16 %v5146
      %v5237 = vunpack.c.l.b16 %v5147
      %v5238 = vunpack.c.l.b16 %v5148
      %v5239 = vunpack.c.l.b16 %v5149
      %v5240 = vunpack.c.l.b16 %v5150
      %v5241 = vunpack.c.l.b16 %v5151
      %v5242 = vunpack.c.l.b16 %v5152
      %v5243 = vunpack.c.l.b16 %v5153
      %v5244 = vpack.c.b16 %v5229, %v5228
      %v5245 = vpack.c.b16 %v5231, %v5230
      %v5246 = vpack.c.b16 %v5233, %v5232
      %v5247 = vpack.c.b16 %v5235, %v5234
      %v5248 = vpack.c.b16 %v5237, %v5236
      %v5249 = vpack.c.b16 %v5239, %v5238
      %v5250 = vpack.c.b16 %v5241, %v5240
      %v5251 = vpack.c.b16 %v5243, %v5242
      %5260 = vmatpush.bf16.msra.mxu0 %v5251
      %5261 = vmatpush.bf16.msra.mxu0 %v5250
      %5262 = vmatpush.bf16.msra.mxu0 %v5249
      %5263 = vmatpush.bf16.msra.mxu0 %v5248
      %5264 = vmatpush.bf16.msra.mxu0 %v5247
      %5265 = vmatpush.bf16.msra.mxu0 %v5246
      %5266 = vmatpush.bf16.msra.mxu0 %v5245
      %5267 = vmatpush.bf16.msra.mxu0 %v5244
      %5268 = vmatmul.bf16.gmra.mxu0 %v5112
      %v5269 = vpop.f32.mrf.mxu0
      %v5270 = vadd.f32 0.0, %v5269
      %v5271 = vpop.f32.mrf.mxu0
      %v5272 = vadd.f32 0.0, %v5271
      %5273 = vmatmul.bf16.gmra.mxu0 %v5113
      %v5274 = vpop.f32.mrf.mxu0
      %v5275 = vadd.f32 0.0, %v5274
      %v5276 = vpop.f32.mrf.mxu0
      %v5277 = vadd.f32 0.0, %v5276
      %5278 = vmatmul.bf16.gmra.mxu0 %v5114
      %v5279 = vpop.f32.mrf.mxu0
      %v5280 = vadd.f32 0.0, %v5279
      %v5281 = vpop.f32.mrf.mxu0
      %v5282 = vadd.f32 0.0, %v5281
      %5283 = vmatmul.bf16.gmra.mxu0 %v5115
      %v5284 = vpop.f32.mrf.mxu0
      %v5285 = vadd.f32 0.0, %v5284
      %v5286 = vpop.f32.mrf.mxu0
      %v5287 = vadd.f32 0.0, %v5286
      %5288 = vmatmul.bf16.gmra.mxu0 %v5116
      %v5289 = vpop.f32.mrf.mxu0
      %v5290 = vadd.f32 0.0, %v5289
      %v5291 = vpop.f32.mrf.mxu0
      %v5292 = vadd.f32 0.0, %v5291
      %5293 = vmatmul.bf16.gmra.mxu0 %v5117
      %v5294 = vpop.f32.mrf.mxu0
      %v5295 = vadd.f32 0.0, %v5294
      %v5296 = vpop.f32.mrf.mxu0
      %v5297 = vadd.f32 0.0, %v5296
      %5298 = vmatmul.bf16.gmra.mxu0 %v5118
      %v5299 = vpop.f32.mrf.mxu0
      %v5300 = vadd.f32 0.0, %v5299
      %v5301 = vpop.f32.mrf.mxu0
      %v5302 = vadd.f32 0.0, %v5301
      %5303 = vmatmul.bf16.gmra.mxu0 %v5119
      %v5304 = vpop.f32.mrf.mxu0
      %v5305 = vadd.f32 0.0, %v5304
      %v5306 = vpop.f32.mrf.mxu0
      %v5307 = vadd.f32 0.0, %v5306
      %5308 = vmatmul.bf16.gmra.mxu0 %v5120
      %v5309 = vpop.f32.mrf.mxu0
      %v5310 = vadd.f32 0.0, %v5309
      %v5311 = vpop.f32.mrf.mxu0
      %v5312 = vadd.f32 0.0, %v5311
      %5313 = vmatmul.bf16.gmra.mxu0 %v5121
      %v5314 = vpop.f32.mrf.mxu0
      %v5315 = vadd.f32 0.0, %v5314
      %v5316 = vpop.f32.mrf.mxu0
      %v5317 = vadd.f32 0.0, %v5316
      %5318 = vmatmul.bf16.gmra.mxu0 %v5122
      %v5319 = vpop.f32.mrf.mxu0
      %v5320 = vadd.f32 0.0, %v5319
      %v5321 = vpop.f32.mrf.mxu0
      %v5322 = vadd.f32 0.0, %v5321
      %5323 = vmatmul.bf16.gmra.mxu0 %v5123
      %v5324 = vpop.f32.mrf.mxu0
      %v5325 = vadd.f32 0.0, %v5324
      %v5326 = vpop.f32.mrf.mxu0
      %v5327 = vadd.f32 0.0, %v5326
      %5328 = vmatmul.bf16.gmra.mxu0 %v5124
      %v5329 = vpop.f32.mrf.mxu0
      %v5330 = vadd.f32 0.0, %v5329
      %v5331 = vpop.f32.mrf.mxu0
      %v5332 = vadd.f32 0.0, %v5331
      %5333 = vmatmul.bf16.gmra.mxu0 %v5125
      %v5334 = vpop.f32.mrf.mxu0
      %v5335 = vadd.f32 0.0, %v5334
      %v5336 = vpop.f32.mrf.mxu0
      %v5337 = vadd.f32 0.0, %v5336
      %5338 = vmatmul.bf16.gmra.mxu0 %v5126
      %v5339 = vpop.f32.mrf.mxu0
      %v5340 = vadd.f32 0.0, %v5339
      %v5341 = vpop.f32.mrf.mxu0
      %v5342 = vadd.f32 0.0, %v5341
      %5343 = vmatmul.bf16.gmra.mxu0 %v5127
      %v5344 = vpop.f32.mrf.mxu0
      %v5345 = vadd.f32 0.0, %v5344
      %v5346 = vpop.f32.mrf.mxu0
      %v5347 = vadd.f32 0.0, %v5346
      %5348 = vdwg.mxu0
      %v5349 = vpack.c.bf16 %v5272, %v5270
      %v5350 = vpack.c.bf16 %v5277, %v5275
      %v5351 = vpack.c.bf16 %v5282, %v5280
      %v5352 = vpack.c.bf16 %v5287, %v5285
      %v5353 = vpack.c.bf16 %v5292, %v5290
      %v5354 = vpack.c.bf16 %v5297, %v5295
      %v5355 = vpack.c.bf16 %v5302, %v5300
      %v5356 = vpack.c.bf16 %v5307, %v5305
      %v5357 = vpack.c.bf16 %v5312, %v5310
      %v5358 = vpack.c.bf16 %v5317, %v5315
      %v5359 = vpack.c.bf16 %v5322, %v5320
      %v5360 = vpack.c.bf16 %v5327, %v5325
      %v5361 = vpack.c.bf16 %v5332, %v5330
      %v5362 = vpack.c.bf16 %v5337, %v5335
      %v5363 = vpack.c.bf16 %v5342, %v5340
      %v5364 = vpack.c.bf16 %v5347, %v5345
      %v5366 = vsel %vm2134, %v5210, 0
      %v5369 = vsel %vm2134, %v5211, 0
      %v5372 = vsel %vm2134, %v5349, 0
      %v5375 = vsel %vm2134, %v5350, 0
      %v5378 = vsel %vm2134, %v5351, 0
      %v5381 = vsel %vm2134, %v5352, 0
      %v5384 = vsel %vm2134, %v5353, 0
      %v5387 = vsel %vm2134, %v5354, 0
      %v5390 = vsel %vm2134, %v5355, 0
      %v5393 = vsel %vm2134, %v5356, 0
      %v5396 = vsel %vm2134, %v5357, 0
      %v5399 = vsel %vm2134, %v5358, 0
      %v5402 = vsel %vm2134, %v5359, 0
      %v5405 = vsel %vm2134, %v5360, 0
      %v5408 = vsel %vm2134, %v5361, 0
      %v5411 = vsel %vm2134, %v5362, 0
      %v5414 = vsel %vm2134, %v5363, 0
      %v5417 = vsel %vm2134, %v5364, 0
      %5419 = vmatpush.bf16.xpose.msra.mxu0 %v5393
      %5420 = vmatpush.bf16.xpose.msra.mxu0 %v5390
      %5421 = vmatpush.bf16.xpose.msra.mxu0 %v5387
      %5422 = vmatpush.bf16.xpose.msra.mxu0 %v5384
      %5423 = vmatpush.bf16.xpose.msra.mxu0 %v5381
      %5424 = vmatpush.bf16.xpose.msra.mxu0 %v5378
      %5425 = vmatpush.bf16.xpose.msra.mxu0 %v5375
      %5426 = vmatpush.bf16.xpose.msra.mxu0 %v5372
      %5427 = vmatmul.bf16.gmra.mxu0 %v5366
      %v5428 = vpop.f32.mrf.mxu0
      %v5429 = vadd.f32 0.0, %v5428
      %v5430 = vpop.f32.mrf.mxu0
      %v5431 = vadd.f32 0.0, %v5430
      %5432 = vmatmul.bf16.gmra.mxu0 %v5369
      %v5433 = vpop.f32.mrf.mxu0
      %v5434 = vadd.f32 0.0, %v5433
      %v5435 = vpop.f32.mrf.mxu0
      %v5436 = vadd.f32 0.0, %v5435
      %5437 = vdwg.mxu0
      %5438 = vmatpush.bf16.xpose.msra.mxu0 %v5417
      %5439 = vmatpush.bf16.xpose.msra.mxu0 %v5414
      %5440 = vmatpush.bf16.xpose.msra.mxu0 %v5411
      %5441 = vmatpush.bf16.xpose.msra.mxu0 %v5408
      %5442 = vmatpush.bf16.xpose.msra.mxu0 %v5405
      %5443 = vmatpush.bf16.xpose.msra.mxu0 %v5402
      %5444 = vmatpush.bf16.xpose.msra.mxu0 %v5399
      %5445 = vmatpush.bf16.xpose.msra.mxu0 %v5396
      %5446 = vmatmul.bf16.gmra.mxu0 %v5366
      %v5447 = vpop.f32.mrf.mxu0
      %v5448 = vadd.f32 0.0, %v5447
      %v5449 = vpop.f32.mrf.mxu0
      %v5450 = vadd.f32 0.0, %v5449
      %5451 = vmatmul.bf16.gmra.mxu0 %v5369
      %v5452 = vpop.f32.mrf.mxu0
      %v5453 = vadd.f32 0.0, %v5452
      %v5454 = vpop.f32.mrf.mxu0
      %v5455 = vadd.f32 0.0, %v5454
      %5456 = vdwg.mxu0
      %v5457 = vmax.f32 %v5429, %v5448
      %5458 = vmax.xlane.f32.xlu0 %v5457
      %v5459 = vpop.xlane.xlu0 %5458
      %v5460 = vmax.f32 %v5431, %v5450
      %5461 = vmax.xlane.f32.xlu0 %v5460
      %v5462 = vpop.xlane.xlu0 %5461
      %v5463 = vmax.f32 %v5434, %v5453
      %5464 = vmax.xlane.f32.xlu0 %v5463
      %v5465 = vpop.xlane.xlu0 %5464
      %v5466 = vmax.f32 %v5436, %v5455
      %5467 = vmax.xlane.f32.xlu0 %v5466
      %v5468 = vpop.xlane.xlu0 %5467
      %v5469 = vsub.f32 %v5429, %v5459
      %v5470 = vsub.f32 %v5448, %v5459
      %v5471 = vsub.f32 %v5431, %v5462
      %v5472 = vsub.f32 %v5450, %v5462
      %v5473 = vsub.f32 %v5434, %v5465
      %v5474 = vsub.f32 %v5453, %v5465
      %v5475 = vsub.f32 %v5436, %v5468
      %v5476 = vsub.f32 %v5455, %v5468
      %v5477 = vmul.f32 %v5469, 1.442695
      %v5478 = vpow.pop %v5477
      %v5479 = vmul.f32 %v5470, 1.442695
      %v5480 = vpow.pop %v5479
      %v5481 = vmul.f32 %v5471, 1.442695
      %v5482 = vpow.pop %v5481
      %v5483 = vmul.f32 %v5472, 1.442695
      %v5484 = vpow.pop %v5483
      %v5485 = vmul.f32 %v5473, 1.442695
      %v5486 = vpow.pop %v5485
      %v5487 = vmul.f32 %v5474, 1.442695
      %v5488 = vpow.pop %v5487
      %v5489 = vmul.f32 %v5475, 1.442695
      %v5490 = vpow.pop %v5489
      %v5491 = vmul.f32 %v5476, 1.442695
      %v5492 = vpow.pop %v5491
      %v5493 = vadd.f32 %v5478, %v5480
      %5494 = vadd.xlane.f32.xlu0 %v5493
      %v5495 = vpop.xlane.xlu0 %5494
      %v5496 = vadd.f32 %v5482, %v5484
      %5497 = vadd.xlane.f32.xlu0 %v5496
      %v5498 = vpop.xlane.xlu0 %5497
      %v5499 = vadd.f32 %v5486, %v5488
      %5500 = vadd.xlane.f32.xlu0 %v5499
      %v5501 = vpop.xlane.xlu0 %5500
      %v5502 = vadd.f32 %v5490, %v5492
      %5503 = vadd.xlane.f32.xlu0 %v5502
      %v5504 = vpop.xlane.xlu0 %5503
      %v5505 = vrcp.pop %v5495
      %v5506 = vrcp.pop %v5498
      %v5507 = vrcp.pop %v5501
      %v5508 = vrcp.pop %v5504
      %v5509 = vmul.f32 %v5478, %v5505
      %v5510 = vmul.f32 %v5480, %v5505
      %v5511 = vmul.f32 %v5482, %v5506
      %v5512 = vmul.f32 %v5484, %v5506
      %v5513 = vmul.f32 %v5486, %v5507
      %v5514 = vmul.f32 %v5488, %v5507
      %v5515 = vmul.f32 %v5490, %v5508
      %v5516 = vmul.f32 %v5492, %v5508
      %v5517 = vpack.c.bf16 %v5511, %v5509
      %v5518 = vpack.c.bf16 %v5512, %v5510
      %v5519 = vpack.c.bf16 %v5515, %v5513
      %v5520 = vpack.c.bf16 %v5516, %v5514
      %5537 = vrot.lane.b32.xlu0 %v5349, 96
      %v5538 = vpop.permute.xlu0 %5537
      %5539 = vrot.lane.b32.xlu0 %v5350, 96
      %v5540 = vpop.permute.xlu0 %5539
      %5541 = vrot.lane.b32.xlu0 %v5351, 96
      %v5542 = vpop.permute.xlu0 %5541
      %5543 = vrot.lane.b32.xlu0 %v5352, 96
      %v5544 = vpop.permute.xlu0 %5543
      %5545 = vrot.lane.b32.xlu0 %v5353, 96
      %v5546 = vpop.permute.xlu0 %5545
      %5547 = vrot.lane.b32.xlu0 %v5354, 96
      %v5548 = vpop.permute.xlu0 %5547
      %5549 = vrot.lane.b32.xlu0 %v5355, 96
      %v5550 = vpop.permute.xlu0 %5549
      %5551 = vrot.lane.b32.xlu0 %v5356, 96
      %v5552 = vpop.permute.xlu0 %5551
      %5553 = vrot.lane.b32.xlu0 %v5357, 96
      %v5554 = vpop.permute.xlu0 %5553
      %5555 = vrot.lane.b32.xlu0 %v5358, 96
      %v5556 = vpop.permute.xlu0 %5555
      %5557 = vrot.lane.b32.xlu0 %v5359, 96
      %v5558 = vpop.permute.xlu0 %5557
      %5559 = vrot.lane.b32.xlu0 %v5360, 96
      %v5560 = vpop.permute.xlu0 %5559
      %5561 = vrot.lane.b32.xlu0 %v5361, 96
      %v5562 = vpop.permute.xlu0 %5561
      %5563 = vrot.lane.b32.xlu0 %v5362, 96
      %v5564 = vpop.permute.xlu0 %5563
      %5565 = vrot.lane.b32.xlu0 %v5363, 96
      %v5566 = vpop.permute.xlu0 %5565
      %5567 = vrot.lane.b32.xlu0 %v5364, 96
      %v5568 = vpop.permute.xlu0 %5567
      %5585 = vmatpush.bf16.msra.mxu0 %v5552
      %5586 = vmatpush.bf16.msra.mxu0 %v5550
      %5587 = vmatpush.bf16.msra.mxu0 %v5548
      %5588 = vmatpush.bf16.msra.mxu0 %v5546
      %5589 = vmatpush.bf16.msra.mxu0 %v5544
      %5590 = vmatpush.bf16.msra.mxu0 %v5542
      %5591 = vmatpush.bf16.msra.mxu0 %v5540
      %5592 = vmatpush.bf16.msra.mxu0 %v5538
      %5593 = vmatmul.bf16.gmra.mxu0 %v5517
      %v5594 = vpop.f32.mrf.mxu0
      %v5595 = vadd.f32 0.0, %v5594
      %v5596 = vpop.f32.mrf.mxu0
      %v5597 = vadd.f32 0.0, %v5596
      %5598 = vmatmul.bf16.gmra.mxu0 %v5519
      %v5599 = vpop.f32.mrf.mxu0
      %v5600 = vadd.f32 0.0, %v5599
      %v5601 = vpop.f32.mrf.mxu0
      %v5602 = vadd.f32 0.0, %v5601
      %5603 = vdwg.mxu0
      %5604 = vmatpush.bf16.msra.mxu0 %v5568
      %5605 = vmatpush.bf16.msra.mxu0 %v5566
      %5606 = vmatpush.bf16.msra.mxu0 %v5564
      %5607 = vmatpush.bf16.msra.mxu0 %v5562
      %5608 = vmatpush.bf16.msra.mxu0 %v5560
      %5609 = vmatpush.bf16.msra.mxu0 %v5558
      %5610 = vmatpush.bf16.msra.mxu0 %v5556
      %5611 = vmatpush.bf16.msra.mxu0 %v5554
      %5612 = vmatmul.bf16.gmra.mxu0 %v5518
      %v5613 = vpop.f32.mrf.mxu0
      %v5614 = vadd.f32 %v5595, %v5613
      %v5615 = vpop.f32.mrf.mxu0
      %v5616 = vadd.f32 %v5597, %v5615
      %5617 = vmatmul.bf16.gmra.mxu0 %v5520
      %v5618 = vpop.f32.mrf.mxu0
      %v5619 = vadd.f32 %v5600, %v5618
      %v5620 = vpop.f32.mrf.mxu0
      %v5621 = vadd.f32 %v5602, %v5620
      %5622 = vdwg.mxu0
      %v5623 = vpack.c.bf16 %v5616, %v5614
      %v5624 = vpack.c.bf16 %v5621, %v5619
      %v5626 = vperm.slane %v5160, 0
      %v5632 = vunpack.c.l.b16 %v5155
      %v5633 = vunpack.c.l.b16 %v5156
      %v5634 = vunpack.c.l.b16 %v5157
      %v5635 = vunpack.c.l.b16 %v5158
      %v5636 = vpack.c.b16 %v5633, %v5632
      %v5637 = vpack.c.b16 %v5635, %v5634
      %v5641 = vsel %vm2134, %v5623, 0
      %v5644 = vsel %vm2134, %v5624, 0
      %5646 = vmatpush.bf16.msra.mxu0 0
      %5647 = vmatpush.bf16.msra.mxu0 0
      %5648 = vmatpush.bf16.msra.mxu0 0
      %5649 = vmatpush.bf16.msra.mxu0 0
      %5650 = vmatpush.bf16.msra.mxu0 0
      %5651 = vmatpush.bf16.msra.mxu0 0
      %5652 = vmatpush.bf16.msra.mxu0 %v5637
      %5653 = vmatpush.bf16.msra.mxu0 %v5636
      %5654 = vmatmul.bf16.gmra.mxu0 %v5641
      %v5655 = vpop.f32.mrf.mxu0
      %v5656 = vadd.f32 %v5626, %v5655
      %v5657 = vpop.f32.mrf.mxu0
      %v5658 = vadd.f32 %v5626, %v5657
      %5659 = vmatmul.bf16.gmra.mxu0 %v5644
      %v5660 = vpop.f32.mrf.mxu0
      %v5661 = vadd.f32 %v5626, %v5660
      %v5662 = vpop.f32.mrf.mxu0
      %v5663 = vadd.f32 %v5626, %v5662
      %5664 = vdwg.mxu0
      %v5665 = vadd.f32 %v5656, %v4926
      %v5666 = vadd.f32 %v5658, %v4927
      %v5667 = vadd.f32 %v5661, %v4928
      %v5668 = vadd.f32 %v5663, %v4929
      %s5669 = scalar_lea.vmem %s21, 1
      %v5670 = vld [vmem:[%s5669] sm:$0x1]
      %s5671 = scalar_lea.vmem %s23, 1
      %v5672 = vld [vmem:[%s5671] sm:$0x1]
      %s5673 = scalar_lea.vmem %s25, 128
      %v5674 = vld [vmem:[%s5673] sm:$0xff]
      %v5675 = vld [vmem:[%s5673 + $0x8] sm:$0xff]
      %v5676 = vld [vmem:[%s5673 + $0x10] sm:$0xff]
      %v5677 = vld [vmem:[%s5673 + $0x18] sm:$0xff]
      %v5678 = vld [vmem:[%s5673 + $0x20] sm:$0xff]
      %v5679 = vld [vmem:[%s5673 + $0x28] sm:$0xff]
      %v5680 = vld [vmem:[%s5673 + $0x30] sm:$0xff]
      %v5681 = vld [vmem:[%s5673 + $0x38] sm:$0xff]
      %v5682 = vld [vmem:[%s5673 + $0x40] sm:$0xff]
      %v5683 = vld [vmem:[%s5673 + $0x48] sm:$0xff]
      %v5684 = vld [vmem:[%s5673 + $0x50] sm:$0xff]
      %v5685 = vld [vmem:[%s5673 + $0x58] sm:$0xff]
      %v5686 = vld [vmem:[%s5673 + $0x60] sm:$0xff]
      %v5687 = vld [vmem:[%s5673 + $0x68] sm:$0xff]
      %v5688 = vld [vmem:[%s5673 + $0x70] sm:$0xff]
      %v5689 = vld [vmem:[%s5673 + $0x78] sm:$0xff]
      %s5690 = scalar_lea.vmem %s27, 4
      %v5691 = vld [vmem:[%s5690] sm:$0xf]
      %s5692 = scalar_lea.vmem %s29, 128
      %v5693 = vld [vmem:[%s5692] sm:$0xf]
      %v5694 = vld [vmem:[%s5692 + $0x4] sm:$0xf]
      %v5695 = vld [vmem:[%s5692 + $0x8] sm:$0xf]
      %v5696 = vld [vmem:[%s5692 + $0xc] sm:$0xf]
      %v5697 = vld [vmem:[%s5692 + $0x10] sm:$0xf]
      %v5698 = vld [vmem:[%s5692 + $0x14] sm:$0xf]
      %v5699 = vld [vmem:[%s5692 + $0x18] sm:$0xf]
      %v5700 = vld [vmem:[%s5692 + $0x1c] sm:$0xf]
      %v5701 = vld [vmem:[%s5692 + $0x20] sm:$0xf]
      %v5702 = vld [vmem:[%s5692 + $0x24] sm:$0xf]
      %v5703 = vld [vmem:[%s5692 + $0x28] sm:$0xf]
      %v5704 = vld [vmem:[%s5692 + $0x2c] sm:$0xf]
      %v5705 = vld [vmem:[%s5692 + $0x30] sm:$0xf]
      %v5706 = vld [vmem:[%s5692 + $0x34] sm:$0xf]
      %v5707 = vld [vmem:[%s5692 + $0x38] sm:$0xf]
      %v5708 = vld [vmem:[%s5692 + $0x3c] sm:$0xf]
      %v5709 = vld [vmem:[%s5692 + $0x40] sm:$0xf]
      %v5710 = vld [vmem:[%s5692 + $0x44] sm:$0xf]
      %v5711 = vld [vmem:[%s5692 + $0x48] sm:$0xf]
      %v5712 = vld [vmem:[%s5692 + $0x4c] sm:$0xf]
      %v5713 = vld [vmem:[%s5692 + $0x50] sm:$0xf]
      %v5714 = vld [vmem:[%s5692 + $0x54] sm:$0xf]
      %v5715 = vld [vmem:[%s5692 + $0x58] sm:$0xf]
      %v5716 = vld [vmem:[%s5692 + $0x5c] sm:$0xf]
      %v5717 = vld [vmem:[%s5692 + $0x60] sm:$0xf]
      %v5718 = vld [vmem:[%s5692 + $0x64] sm:$0xf]
      %v5719 = vld [vmem:[%s5692 + $0x68] sm:$0xf]
      %v5720 = vld [vmem:[%s5692 + $0x6c] sm:$0xf]
      %v5721 = vld [vmem:[%s5692 + $0x70] sm:$0xf]
      %v5722 = vld [vmem:[%s5692 + $0x74] sm:$0xf]
      %v5723 = vld [vmem:[%s5692 + $0x78] sm:$0xf]
      %v5724 = vld [vmem:[%s5692 + $0x7c] sm:$0xf]
      %s5725 = scalar_lea.vmem %s31, 1
      %v5726 = vld [vmem:[%s5725] sm:$0x1]
      %v5727 = vsel %vm1026, %v5665, 0.0
      %5728 = vadd.xlane.f32.xlu0 %v5727
      %v5729 = vpop.xlane.xlu0 %5728
      %v5730 = vsel %vm1026, %v5666, 0.0
      %5731 = vadd.xlane.f32.xlu0 %v5730
      %v5732 = vpop.xlane.xlu0 %5731
      %v5733 = vsel %vm1026, %v5667, 0.0
      %5734 = vadd.xlane.f32.xlu0 %v5733
      %v5735 = vpop.xlane.xlu0 %5734
      %v5736 = vsel %vm1026, %v5668, 0.0
      %5737 = vadd.xlane.f32.xlu0 %v5736
      %v5738 = vpop.xlane.xlu0 %5737
      %v5739 = vmul.f32 %v5729, %v1045
      %v5740 = vmul.f32 %v5732, %v1045
      %v5741 = vmul.f32 %v5735, %v1045
      %v5742 = vmul.f32 %v5738, %v1045
      %v5743 = vsub.f32 %v5665, %v5739
      %v5744 = vsub.f32 %v5666, %v5740
      %v5745 = vsub.f32 %v5667, %v5741
      %v5746 = vsub.f32 %v5668, %v5742
      %v5747 = vmul.f32 %v5743, %v5743
      %v5748 = vmul.f32 %v5744, %v5744
      %v5749 = vmul.f32 %v5745, %v5745
      %v5750 = vmul.f32 %v5746, %v5746
      %v5751 = vsel %vm1026, %v5747, 0.0
      %5752 = vadd.xlane.f32.xlu0 %v5751
      %v5753 = vpop.xlane.xlu0 %5752
      %v5754 = vsel %vm1026, %v5748, 0.0
      %5755 = vadd.xlane.f32.xlu0 %v5754
      %v5756 = vpop.xlane.xlu0 %5755
      %v5757 = vsel %vm1026, %v5749, 0.0
      %5758 = vadd.xlane.f32.xlu0 %v5757
      %v5759 = vpop.xlane.xlu0 %5758
      %v5760 = vsel %vm1026, %v5750, 0.0
      %5761 = vadd.xlane.f32.xlu0 %v5760
      %v5762 = vpop.xlane.xlu0 %5761
      %v5763 = vmul.f32 %v5753, %v1045
      %v5764 = vmul.f32 %v5756, %v1045
      %v5765 = vmul.f32 %v5759, %v1045
      %v5766 = vmul.f32 %v5762, %v1045
      %v5767 = vadd.f32 %v5763, 1e-05
      %v5768 = vadd.f32 %v5764, 1e-05
      %v5769 = vadd.f32 %v5765, 1e-05
      %v5770 = vadd.f32 %v5766, 1e-05
      %v5771 = vrsqrt.pop %v5767
      %v5772 = vmul.f32 %v5771, %v5767
      %v5773 = vmul.f32 %v5772, %v5771
      %v5774 = vmul.f32 0.5, %v5773
      %v5775 = vsub.f32 1.5, %v5774
      %v5776 = vmul.f32 %v5771, %v5775
      %vm5777 = vweird.f32 %v5767
      %vm5778 = vweird.f32 %v5771
      %vm5779 = vmor %vm5777, %vm5778
      %v5780 = vsel %vm5779, %v5771, %v5776
      %v5781 = vrsqrt.pop %v5768
      %v5782 = vmul.f32 %v5781, %v5768
      %v5783 = vmul.f32 %v5782, %v5781
      %v5784 = vmul.f32 0.5, %v5783
      %v5785 = vsub.f32 1.5, %v5784
      %v5786 = vmul.f32 %v5781, %v5785
      %vm5787 = vweird.f32 %v5768
      %vm5788 = vweird.f32 %v5781
      %vm5789 = vmor %vm5787, %vm5788
      %v5790 = vsel %vm5789, %v5781, %v5786
      %v5791 = vrsqrt.pop %v5769
      %v5792 = vmul.f32 %v5791, %v5769
      %v5793 = vmul.f32 %v5792, %v5791
      %v5794 = vmul.f32 0.5, %v5793
      %v5795 = vsub.f32 1.5, %v5794
      %v5796 = vmul.f32 %v5791, %v5795
      %vm5797 = vweird.f32 %v5769
      %vm5798 = vweird.f32 %v5791
      %vm5799 = vmor %vm5797, %vm5798
      %v5800 = vsel %vm5799, %v5791, %v5796
      %v5801 = vrsqrt.pop %v5770
      %v5802 = vmul.f32 %v5801, %v5770
      %v5803 = vmul.f32 %v5802, %v5801
      %v5804 = vmul.f32 0.5, %v5803
      %v5805 = vsub.f32 1.5, %v5804
      %v5806 = vmul.f32 %v5801, %v5805
      %vm5807 = vweird.f32 %v5770
      %vm5808 = vweird.f32 %v5801
      %vm5809 = vmor %vm5807, %vm5808
      %v5810 = vsel %vm5809, %v5801, %v5806
      %v5811 = vmul.f32 %v5743, %v5780
      %v5812 = vmul.f32 %v5744, %v5790
      %v5813 = vmul.f32 %v5745, %v5800
      %v5814 = vmul.f32 %v5746, %v5810
      %v5816 = vperm.slane %v5670, 0
      %v5818 = vmul.f32 %v5811, %v5816
      %v5819 = vmul.f32 %v5812, %v5816
      %v5820 = vmul.f32 %v5813, %v5816
      %v5821 = vmul.f32 %v5814, %v5816
      %v5823 = vperm.slane %v5672, 0
      %v5825 = vadd.f32 %v5818, %v5823
      %v5826 = vadd.f32 %v5819, %v5823
      %v5827 = vadd.f32 %v5820, %v5823
      %v5828 = vadd.f32 %v5821, %v5823
      %v5829 = vpack.c.bf16 %v5826, %v5825
      %v5830 = vpack.c.bf16 %v5828, %v5827
      %v5832 = vperm.slane %v5691, 0
      %v5833 = vperm.slane %v5691, 1
      %v5834 = vperm.slane %v5691, 2
      %v5835 = vperm.slane %v5691, 3
      %v5856 = vunpack.c.l.b16 %v5674
      %v5857 = vunpack.c.h.b16 %v5674
      %v5858 = vunpack.c.l.b16 %v5675
      %v5859 = vunpack.c.h.b16 %v5675
      %v5860 = vunpack.c.l.b16 %v5676
      %v5861 = vunpack.c.h.b16 %v5676
      %v5862 = vunpack.c.l.b16 %v5677
      %v5863 = vunpack.c.h.b16 %v5677
      %v5864 = vunpack.c.l.b16 %v5678
      %v5865 = vunpack.c.h.b16 %v5678
      %v5866 = vunpack.c.l.b16 %v5679
      %v5867 = vunpack.c.h.b16 %v5679
      %v5868 = vunpack.c.l.b16 %v5680
      %v5869 = vunpack.c.h.b16 %v5680
      %v5870 = vunpack.c.l.b16 %v5681
      %v5871 = vunpack.c.h.b16 %v5681
      %v5872 = vunpack.c.l.b16 %v5682
      %v5873 = vunpack.c.h.b16 %v5682
      %v5874 = vunpack.c.l.b16 %v5683
      %v5875 = vunpack.c.h.b16 %v5683
      %v5876 = vunpack.c.l.b16 %v5684
      %v5877 = vunpack.c.h.b16 %v5684
      %v5878 = vunpack.c.l.b16 %v5685
      %v5879 = vunpack.c.h.b16 %v5685
      %v5880 = vunpack.c.l.b16 %v5686
      %v5881 = vunpack.c.h.b16 %v5686
      %v5882 = vunpack.c.l.b16 %v5687
      %v5883 = vunpack.c.h.b16 %v5687
      %v5884 = vunpack.c.l.b16 %v5688
      %v5885 = vunpack.c.h.b16 %v5688
      %v5886 = vunpack.c.l.b16 %v5689
      %v5887 = vunpack.c.h.b16 %v5689
      %v5888 = vpack.c.b16 %v5860, %v5856
      %v5889 = vpack.c.b16 %v5861, %v5857
      %v5890 = vpack.c.b16 %v5862, %v5858
      %v5891 = vpack.c.b16 %v5863, %v5859
      %v5892 = vpack.c.b16 %v5868, %v5864
      %v5893 = vpack.c.b16 %v5869, %v5865
      %v5894 = vpack.c.b16 %v5870, %v5866
      %v5895 = vpack.c.b16 %v5871, %v5867
      %v5896 = vpack.c.b16 %v5876, %v5872
      %v5897 = vpack.c.b16 %v5877, %v5873
      %v5898 = vpack.c.b16 %v5878, %v5874
      %v5899 = vpack.c.b16 %v5879, %v5875
      %v5900 = vpack.c.b16 %v5884, %v5880
      %v5901 = vpack.c.b16 %v5885, %v5881
      %v5902 = vpack.c.b16 %v5886, %v5882
      %v5903 = vpack.c.b16 %v5887, %v5883
      %v5921 = vsel %vm1026, %v5829, 0
      %v5924 = vsel %vm1026, %v5830, 0
      %5926 = vmatpush.bf16.msra.mxu0 0
      %5927 = vmatpush.bf16.msra.mxu0 0
      %5928 = vmatpush.bf16.msra.mxu0 0
      %5929 = vmatpush.bf16.msra.mxu0 0
      %5930 = vmatpush.bf16.msra.mxu0 %v5900
      %5931 = vmatpush.bf16.msra.mxu0 %v5896
      %5932 = vmatpush.bf16.msra.mxu0 %v5892
      %5933 = vmatpush.bf16.msra.mxu0 %v5888
      %5934 = vmatmul.bf16.gmra.mxu0 %v5921
      %v5935 = vpop.f32.mrf.mxu0
      %v5936 = vadd.f32 %v5832, %v5935
      %v5937 = vpop.f32.mrf.mxu0
      %v5938 = vadd.f32 %v5832, %v5937
      %5939 = vmatmul.bf16.gmra.mxu0 %v5924
      %v5940 = vpop.f32.mrf.mxu0
      %v5941 = vadd.f32 %v5832, %v5940
      %v5942 = vpop.f32.mrf.mxu0
      %v5943 = vadd.f32 %v5832, %v5942
      %5944 = vdwg.mxu0
      %5945 = vmatpush.bf16.msra.mxu0 0
      %5946 = vmatpush.bf16.msra.mxu0 0
      %5947 = vmatpush.bf16.msra.mxu0 0
      %5948 = vmatpush.bf16.msra.mxu0 0
      %5949 = vmatpush.bf16.msra.mxu0 %v5901
      %5950 = vmatpush.bf16.msra.mxu0 %v5897
      %5951 = vmatpush.bf16.msra.mxu0 %v5893
      %5952 = vmatpush.bf16.msra.mxu0 %v5889
      %5953 = vmatmul.bf16.gmra.mxu0 %v5921
      %v5954 = vpop.f32.mrf.mxu0
      %v5955 = vadd.f32 %v5833, %v5954
      %v5956 = vpop.f32.mrf.mxu0
      %v5957 = vadd.f32 %v5833, %v5956
      %5958 = vmatmul.bf16.gmra.mxu0 %v5924
      %v5959 = vpop.f32.mrf.mxu0
      %v5960 = vadd.f32 %v5833, %v5959
      %v5961 = vpop.f32.mrf.mxu0
      %v5962 = vadd.f32 %v5833, %v5961
      %5963 = vdwg.mxu0
      %5964 = vmatpush.bf16.msra.mxu0 0
      %5965 = vmatpush.bf16.msra.mxu0 0
      %5966 = vmatpush.bf16.msra.mxu0 0
      %5967 = vmatpush.bf16.msra.mxu0 0
      %5968 = vmatpush.bf16.msra.mxu0 %v5902
      %5969 = vmatpush.bf16.msra.mxu0 %v5898
      %5970 = vmatpush.bf16.msra.mxu0 %v5894
      %5971 = vmatpush.bf16.msra.mxu0 %v5890
      %5972 = vmatmul.bf16.gmra.mxu0 %v5921
      %v5973 = vpop.f32.mrf.mxu0
      %v5974 = vadd.f32 %v5834, %v5973
      %v5975 = vpop.f32.mrf.mxu0
      %v5976 = vadd.f32 %v5834, %v5975
      %5977 = vmatmul.bf16.gmra.mxu0 %v5924
      %v5978 = vpop.f32.mrf.mxu0
      %v5979 = vadd.f32 %v5834, %v5978
      %v5980 = vpop.f32.mrf.mxu0
      %v5981 = vadd.f32 %v5834, %v5980
      %5982 = vdwg.mxu0
      %5983 = vmatpush.bf16.msra.mxu0 0
      %5984 = vmatpush.bf16.msra.mxu0 0
      %5985 = vmatpush.bf16.msra.mxu0 0
      %5986 = vmatpush.bf16.msra.mxu0 0
      %5987 = vmatpush.bf16.msra.mxu0 %v5903
      %5988 = vmatpush.bf16.msra.mxu0 %v5899
      %5989 = vmatpush.bf16.msra.mxu0 %v5895
      %5990 = vmatpush.bf16.msra.mxu0 %v5891
      %5991 = vmatmul.bf16.gmra.mxu0 %v5921
      %v5992 = vpop.f32.mrf.mxu0
      %v5993 = vadd.f32 %v5835, %v5992
      %v5994 = vpop.f32.mrf.mxu0
      %v5995 = vadd.f32 %v5835, %v5994
      %5996 = vmatmul.bf16.gmra.mxu0 %v5924
      %v5997 = vpop.f32.mrf.mxu0
      %v5998 = vadd.f32 %v5835, %v5997
      %v5999 = vpop.f32.mrf.mxu0
      %v6000 = vadd.f32 %v5835, %v5999
      %6001 = vdwg.mxu0
      %v6002 = vmul.f32 %v5974, 0.5
      %v6003 = vmul.f32 %v5993, 0.5
      %v6004 = vmul.f32 %v5976, 0.5
      %v6005 = vmul.f32 %v5995, 0.5
      %v6006 = vmul.f32 %v5979, 0.5
      %v6007 = vmul.f32 %v5998, 0.5
      %v6008 = vmul.f32 %v5981, 0.5
      %v6009 = vmul.f32 %v6000, 0.5
      %v6010 = vmul.f32 %v5974, 0.70710677
      %v6011 = vmul.f32 %v5993, 0.70710677
      %v6012 = vmul.f32 %v5976, 0.70710677
      %v6013 = vmul.f32 %v5995, 0.70710677
      %v6014 = vmul.f32 %v5979, 0.70710677
      %v6015 = vmul.f32 %v5998, 0.70710677
      %v6016 = vmul.f32 %v5981, 0.70710677
      %v6017 = vmul.f32 %v6000, 0.70710677
      %v6018 = vmul.f32 %v6010, %v6010
      %v6019 = vmin.f32 16.0, %v6018
      %v6020 = vmul.f32 %v6019, 2.1237322e-06
      %v6021 = vadd.f32 %v6020, 0.00028619796
      %v6022 = vmul.f32 %v6019, %v6021
      %v6023 = vadd.f32 %v6022, 0.0036580483
      %v6024 = vmul.f32 %v6019, %v6023
      %v6025 = vadd.f32 %v6024, 0.05243302
      %v6026 = vmul.f32 %v6019, %v6025
      %v6027 = vadd.f32 %v6026, 0.18741608
      %v6028 = vmul.f32 %v6019, %v6027
      %v6029 = vadd.f32 %v6028, 1.1283791
      %v6030 = vmul.f32 %v6010, %v6029
      %v6031 = vmul.f32 %v6019, 3.8918573e-05
      %v6032 = vadd.f32 %v6031, 0.001143296
      %v6033 = vmul.f32 %v6019, %v6032
      %v6034 = vadd.f32 %v6033, 0.014752088
      %v6035 = vmul.f32 %v6019, %v6034
      %v6036 = vadd.f32 %v6035, 0.112945676
      %v6037 = vmul.f32 %v6019, %v6036
      %v6038 = vadd.f32 %v6037, 0.4994258
      %v6039 = vmul.f32 %v6019, %v6038
      %v6040 = vadd.f32 %v6039, 1.0
      %v6041 = vrcp.pop %v6040
      %v6042 = vmul.f32 %v6040, %v6041
      %v6043 = vsub.f32 1.0, %v6042
      %v6044 = vmul.f32 %v6041, %v6043
      %v6045 = vadd.f32 %v6041, %v6044
      %vm6046 = vweird.f32 %v6040
      %vm6047 = vweird.f32 %v6041
      %vm6048 = vmor %vm6046, %vm6047
      %v6049 = vsel %vm6048, %v6041, %v6045
      %v6050 = vand.u32 2147483647, %v6040
      %vm6051 = vcmp.eq.f32.partialorder %v6050, 8.507059e+37
      %v6052 = vand.u32 %v6040, 2147483648
      %v6053 = vor.u32 1.1754944e-38, %v6052
      %v6054 = vsel %vm6051, %v6053, %v6049
      %v6055 = vmul.f32 %v6030, %v6054
      %v6056 = vmin.f32 %v6055, 1.0
      %v6057 = vmax.f32 %v6056, -1.0
      %v6058 = vmul.f32 %v6011, %v6011
      %v6059 = vmin.f32 16.0, %v6058
      %v6060 = vmul.f32 %v6059, 2.1237322e-06
      %v6061 = vadd.f32 %v6060, 0.00028619796
      %v6062 = vmul.f32 %v6059, %v6061
      %v6063 = vadd.f32 %v6062, 0.0036580483
      %v6064 = vmul.f32 %v6059, %v6063
      %v6065 = vadd.f32 %v6064, 0.05243302
      %v6066 = vmul.f32 %v6059, %v6065
      %v6067 = vadd.f32 %v6066, 0.18741608
      %v6068 = vmul.f32 %v6059, %v6067
      %v6069 = vadd.f32 %v6068, 1.1283791
      %v6070 = vmul.f32 %v6011, %v6069
      %v6071 = vmul.f32 %v6059, 3.8918573e-05
      %v6072 = vadd.f32 %v6071, 0.001143296
      %v6073 = vmul.f32 %v6059, %v6072
      %v6074 = vadd.f32 %v6073, 0.014752088
      %v6075 = vmul.f32 %v6059, %v6074
      %v6076 = vadd.f32 %v6075, 0.112945676
      %v6077 = vmul.f32 %v6059, %v6076
      %v6078 = vadd.f32 %v6077, 0.4994258
      %v6079 = vmul.f32 %v6059, %v6078
      %v6080 = vadd.f32 %v6079, 1.0
      %v6081 = vrcp.pop %v6080
      %v6082 = vmul.f32 %v6080, %v6081
      %v6083 = vsub.f32 1.0, %v6082
      %v6084 = vmul.f32 %v6081, %v6083
      %v6085 = vadd.f32 %v6081, %v6084
      %vm6086 = vweird.f32 %v6080
      %vm6087 = vweird.f32 %v6081
      %vm6088 = vmor %vm6086, %vm6087
      %v6089 = vsel %vm6088, %v6081, %v6085
      %v6090 = vand.u32 2147483647, %v6080
      %vm6091 = vcmp.eq.f32.partialorder %v6090, 8.507059e+37
      %v6092 = vand.u32 %v6080, 2147483648
      %v6093 = vor.u32 1.1754944e-38, %v6092
      %v6094 = vsel %vm6091, %v6093, %v6089
      %v6095 = vmul.f32 %v6070, %v6094
      %v6096 = vmin.f32 %v6095, 1.0
      %v6097 = vmax.f32 %v6096, -1.0
      %v6098 = vmul.f32 %v6012, %v6012
      %v6099 = vmin.f32 16.0, %v6098
      %v6100 = vmul.f32 %v6099, 2.1237322e-06
      %v6101 = vadd.f32 %v6100, 0.00028619796
      %v6102 = vmul.f32 %v6099, %v6101
      %v6103 = vadd.f32 %v6102, 0.0036580483
      %v6104 = vmul.f32 %v6099, %v6103
      %v6105 = vadd.f32 %v6104, 0.05243302
      %v6106 = vmul.f32 %v6099, %v6105
      %v6107 = vadd.f32 %v6106, 0.18741608
      %v6108 = vmul.f32 %v6099, %v6107
      %v6109 = vadd.f32 %v6108, 1.1283791
      %v6110 = vmul.f32 %v6012, %v6109
      %v6111 = vmul.f32 %v6099, 3.8918573e-05
      %v6112 = vadd.f32 %v6111, 0.001143296
      %v6113 = vmul.f32 %v6099, %v6112
      %v6114 = vadd.f32 %v6113, 0.014752088
      %v6115 = vmul.f32 %v6099, %v6114
      %v6116 = vadd.f32 %v6115, 0.112945676
      %v6117 = vmul.f32 %v6099, %v6116
      %v6118 = vadd.f32 %v6117, 0.4994258
      %v6119 = vmul.f32 %v6099, %v6118
      %v6120 = vadd.f32 %v6119, 1.0
      %v6121 = vrcp.pop %v6120
      %v6122 = vmul.f32 %v6120, %v6121
      %v6123 = vsub.f32 1.0, %v6122
      %v6124 = vmul.f32 %v6121, %v6123
      %v6125 = vadd.f32 %v6121, %v6124
      %vm6126 = vweird.f32 %v6120
      %vm6127 = vweird.f32 %v6121
      %vm6128 = vmor %vm6126, %vm6127
      %v6129 = vsel %vm6128, %v6121, %v6125
      %v6130 = vand.u32 2147483647, %v6120
      %vm6131 = vcmp.eq.f32.partialorder %v6130, 8.507059e+37
      %v6132 = vand.u32 %v6120, 2147483648
      %v6133 = vor.u32 1.1754944e-38, %v6132
      %v6134 = vsel %vm6131, %v6133, %v6129
      %v6135 = vmul.f32 %v6110, %v6134
      %v6136 = vmin.f32 %v6135, 1.0
      %v6137 = vmax.f32 %v6136, -1.0
      %v6138 = vmul.f32 %v6013, %v6013
      %v6139 = vmin.f32 16.0, %v6138
      %v6140 = vmul.f32 %v6139, 2.1237322e-06
      %v6141 = vadd.f32 %v6140, 0.00028619796
      %v6142 = vmul.f32 %v6139, %v6141
      %v6143 = vadd.f32 %v6142, 0.0036580483
      %v6144 = vmul.f32 %v6139, %v6143
      %v6145 = vadd.f32 %v6144, 0.05243302
      %v6146 = vmul.f32 %v6139, %v6145
      %v6147 = vadd.f32 %v6146, 0.18741608
      %v6148 = vmul.f32 %v6139, %v6147
      %v6149 = vadd.f32 %v6148, 1.1283791
      %v6150 = vmul.f32 %v6013, %v6149
      %v6151 = vmul.f32 %v6139, 3.8918573e-05
      %v6152 = vadd.f32 %v6151, 0.001143296
      %v6153 = vmul.f32 %v6139, %v6152
      %v6154 = vadd.f32 %v6153, 0.014752088
      %v6155 = vmul.f32 %v6139, %v6154
      %v6156 = vadd.f32 %v6155, 0.112945676
      %v6157 = vmul.f32 %v6139, %v6156
      %v6158 = vadd.f32 %v6157, 0.4994258
      %v6159 = vmul.f32 %v6139, %v6158
      %v6160 = vadd.f32 %v6159, 1.0
      %v6161 = vrcp.pop %v6160
      %v6162 = vmul.f32 %v6160, %v6161
      %v6163 = vsub.f32 1.0, %v6162
      %v6164 = vmul.f32 %v6161, %v6163
      %v6165 = vadd.f32 %v6161, %v6164
      %vm6166 = vweird.f32 %v6160
      %vm6167 = vweird.f32 %v6161
      %vm6168 = vmor %vm6166, %vm6167
      %v6169 = vsel %vm6168, %v6161, %v6165
      %v6170 = vand.u32 2147483647, %v6160
      %vm6171 = vcmp.eq.f32.partialorder %v6170, 8.507059e+37
      %v6172 = vand.u32 %v6160, 2147483648
      %v6173 = vor.u32 1.1754944e-38, %v6172
      %v6174 = vsel %vm6171, %v6173, %v6169
      %v6175 = vmul.f32 %v6150, %v6174
      %v6176 = vmin.f32 %v6175, 1.0
      %v6177 = vmax.f32 %v6176, -1.0
      %v6178 = vmul.f32 %v6014, %v6014
      %v6179 = vmin.f32 16.0, %v6178
      %v6180 = vmul.f32 %v6179, 2.1237322e-06
      %v6181 = vadd.f32 %v6180, 0.00028619796
      %v6182 = vmul.f32 %v6179, %v6181
      %v6183 = vadd.f32 %v6182, 0.0036580483
      %v6184 = vmul.f32 %v6179, %v6183
      %v6185 = vadd.f32 %v6184, 0.05243302
      %v6186 = vmul.f32 %v6179, %v6185
      %v6187 = vadd.f32 %v6186, 0.18741608
      %v6188 = vmul.f32 %v6179, %v6187
      %v6189 = vadd.f32 %v6188, 1.1283791
      %v6190 = vmul.f32 %v6014, %v6189
      %v6191 = vmul.f32 %v6179, 3.8918573e-05
      %v6192 = vadd.f32 %v6191, 0.001143296
      %v6193 = vmul.f32 %v6179, %v6192
      %v6194 = vadd.f32 %v6193, 0.014752088
      %v6195 = vmul.f32 %v6179, %v6194
      %v6196 = vadd.f32 %v6195, 0.112945676
      %v6197 = vmul.f32 %v6179, %v6196
      %v6198 = vadd.f32 %v6197, 0.4994258
      %v6199 = vmul.f32 %v6179, %v6198
      %v6200 = vadd.f32 %v6199, 1.0
      %v6201 = vrcp.pop %v6200
      %v6202 = vmul.f32 %v6200, %v6201
      %v6203 = vsub.f32 1.0, %v6202
      %v6204 = vmul.f32 %v6201, %v6203
      %v6205 = vadd.f32 %v6201, %v6204
      %vm6206 = vweird.f32 %v6200
      %vm6207 = vweird.f32 %v6201
      %vm6208 = vmor %vm6206, %vm6207
      %v6209 = vsel %vm6208, %v6201, %v6205
      %v6210 = vand.u32 2147483647, %v6200
      %vm6211 = vcmp.eq.f32.partialorder %v6210, 8.507059e+37
      %v6212 = vand.u32 %v6200, 2147483648
      %v6213 = vor.u32 1.1754944e-38, %v6212
      %v6214 = vsel %vm6211, %v6213, %v6209
      %v6215 = vmul.f32 %v6190, %v6214
      %v6216 = vmin.f32 %v6215, 1.0
      %v6217 = vmax.f32 %v6216, -1.0
      %v6218 = vmul.f32 %v6015, %v6015
      %v6219 = vmin.f32 16.0, %v6218
      %v6220 = vmul.f32 %v6219, 2.1237322e-06
      %v6221 = vadd.f32 %v6220, 0.00028619796
      %v6222 = vmul.f32 %v6219, %v6221
      %v6223 = vadd.f32 %v6222, 0.0036580483
      %v6224 = vmul.f32 %v6219, %v6223
      %v6225 = vadd.f32 %v6224, 0.05243302
      %v6226 = vmul.f32 %v6219, %v6225
      %v6227 = vadd.f32 %v6226, 0.18741608
      %v6228 = vmul.f32 %v6219, %v6227
      %v6229 = vadd.f32 %v6228, 1.1283791
      %v6230 = vmul.f32 %v6015, %v6229
      %v6231 = vmul.f32 %v6219, 3.8918573e-05
      %v6232 = vadd.f32 %v6231, 0.001143296
      %v6233 = vmul.f32 %v6219, %v6232
      %v6234 = vadd.f32 %v6233, 0.014752088
      %v6235 = vmul.f32 %v6219, %v6234
      %v6236 = vadd.f32 %v6235, 0.112945676
      %v6237 = vmul.f32 %v6219, %v6236
      %v6238 = vadd.f32 %v6237, 0.4994258
      %v6239 = vmul.f32 %v6219, %v6238
      %v6240 = vadd.f32 %v6239, 1.0
      %v6241 = vrcp.pop %v6240
      %v6242 = vmul.f32 %v6240, %v6241
      %v6243 = vsub.f32 1.0, %v6242
      %v6244 = vmul.f32 %v6241, %v6243
      %v6245 = vadd.f32 %v6241, %v6244
      %vm6246 = vweird.f32 %v6240
      %vm6247 = vweird.f32 %v6241
      %vm6248 = vmor %vm6246, %vm6247
      %v6249 = vsel %vm6248, %v6241, %v6245
      %v6250 = vand.u32 2147483647, %v6240
      %vm6251 = vcmp.eq.f32.partialorder %v6250, 8.507059e+37
      %v6252 = vand.u32 %v6240, 2147483648
      %v6253 = vor.u32 1.1754944e-38, %v6252
      %v6254 = vsel %vm6251, %v6253, %v6249
      %v6255 = vmul.f32 %v6230, %v6254
      %v6256 = vmin.f32 %v6255, 1.0
      %v6257 = vmax.f32 %v6256, -1.0
      %v6258 = vmul.f32 %v6016, %v6016
      %v6259 = vmin.f32 16.0, %v6258
      %v6260 = vmul.f32 %v6259, 2.1237322e-06
      %v6261 = vadd.f32 %v6260, 0.00028619796
      %v6262 = vmul.f32 %v6259, %v6261
      %v6263 = vadd.f32 %v6262, 0.0036580483
      %v6264 = vmul.f32 %v6259, %v6263
      %v6265 = vadd.f32 %v6264, 0.05243302
      %v6266 = vmul.f32 %v6259, %v6265
      %v6267 = vadd.f32 %v6266, 0.18741608
      %v6268 = vmul.f32 %v6259, %v6267
      %v6269 = vadd.f32 %v6268, 1.1283791
      %v6270 = vmul.f32 %v6016, %v6269
      %v6271 = vmul.f32 %v6259, 3.8918573e-05
      %v6272 = vadd.f32 %v6271, 0.001143296
      %v6273 = vmul.f32 %v6259, %v6272
      %v6274 = vadd.f32 %v6273, 0.014752088
      %v6275 = vmul.f32 %v6259, %v6274
      %v6276 = vadd.f32 %v6275, 0.112945676
      %v6277 = vmul.f32 %v6259, %v6276
      %v6278 = vadd.f32 %v6277, 0.4994258
      %v6279 = vmul.f32 %v6259, %v6278
      %v6280 = vadd.f32 %v6279, 1.0
      %v6281 = vrcp.pop %v6280
      %v6282 = vmul.f32 %v6280, %v6281
      %v6283 = vsub.f32 1.0, %v6282
      %v6284 = vmul.f32 %v6281, %v6283
      %v6285 = vadd.f32 %v6281, %v6284
      %vm6286 = vweird.f32 %v6280
      %vm6287 = vweird.f32 %v6281
      %vm6288 = vmor %vm6286, %vm6287
      %v6289 = vsel %vm6288, %v6281, %v6285
      %v6290 = vand.u32 2147483647, %v6280
      %vm6291 = vcmp.eq.f32.partialorder %v6290, 8.507059e+37
      %v6292 = vand.u32 %v6280, 2147483648
      %v6293 = vor.u32 1.1754944e-38, %v6292
      %v6294 = vsel %vm6291, %v6293, %v6289
      %v6295 = vmul.f32 %v6270, %v6294
      %v6296 = vmin.f32 %v6295, 1.0
      %v6297 = vmax.f32 %v6296, -1.0
      %v6298 = vmul.f32 %v6017, %v6017
      %v6299 = vmin.f32 16.0, %v6298
      %v6300 = vmul.f32 %v6299, 2.1237322e-06
      %v6301 = vadd.f32 %v6300, 0.00028619796
      %v6302 = vmul.f32 %v6299, %v6301
      %v6303 = vadd.f32 %v6302, 0.0036580483
      %v6304 = vmul.f32 %v6299, %v6303
      %v6305 = vadd.f32 %v6304, 0.05243302
      %v6306 = vmul.f32 %v6299, %v6305
      %v6307 = vadd.f32 %v6306, 0.18741608
      %v6308 = vmul.f32 %v6299, %v6307
      %v6309 = vadd.f32 %v6308, 1.1283791
      %v6310 = vmul.f32 %v6017, %v6309
      %v6311 = vmul.f32 %v6299, 3.8918573e-05
      %v6312 = vadd.f32 %v6311, 0.001143296
      %v6313 = vmul.f32 %v6299, %v6312
      %v6314 = vadd.f32 %v6313, 0.014752088
      %v6315 = vmul.f32 %v6299, %v6314
      %v6316 = vadd.f32 %v6315, 0.112945676
      %v6317 = vmul.f32 %v6299, %v6316
      %v6318 = vadd.f32 %v6317, 0.4994258
      %v6319 = vmul.f32 %v6299, %v6318
      %v6320 = vadd.f32 %v6319, 1.0
      %v6321 = vrcp.pop %v6320
      %v6322 = vmul.f32 %v6320, %v6321
      %v6323 = vsub.f32 1.0, %v6322
      %v6324 = vmul.f32 %v6321, %v6323
      %v6325 = vadd.f32 %v6321, %v6324
      %vm6326 = vweird.f32 %v6320
      %vm6327 = vweird.f32 %v6321
      %vm6328 = vmor %vm6326, %vm6327
      %v6329 = vsel %vm6328, %v6321, %v6325
      %v6330 = vand.u32 2147483647, %v6320
      %vm6331 = vcmp.eq.f32.partialorder %v6330, 8.507059e+37
      %v6332 = vand.u32 %v6320, 2147483648
      %v6333 = vor.u32 1.1754944e-38, %v6332
      %v6334 = vsel %vm6331, %v6333, %v6329
      %v6335 = vmul.f32 %v6310, %v6334
      %v6336 = vmin.f32 %v6335, 1.0
      %v6337 = vmax.f32 %v6336, -1.0
      %v6338 = vadd.f32 %v6057, 1.0
      %v6339 = vadd.f32 %v6097, 1.0
      %v6340 = vadd.f32 %v6137, 1.0
      %v6341 = vadd.f32 %v6177, 1.0
      %v6342 = vadd.f32 %v6217, 1.0
      %v6343 = vadd.f32 %v6257, 1.0
      %v6344 = vadd.f32 %v6297, 1.0
      %v6345 = vadd.f32 %v6337, 1.0
      %v6346 = vmul.f32 %v6002, %v6338
      %v6347 = vmul.f32 %v6003, %v6339
      %v6348 = vmul.f32 %v6004, %v6340
      %v6349 = vmul.f32 %v6005, %v6341
      %v6350 = vmul.f32 %v6006, %v6342
      %v6351 = vmul.f32 %v6007, %v6343
      %v6352 = vmul.f32 %v6008, %v6344
      %v6353 = vmul.f32 %v6009, %v6345
      %v6354 = vmul.f32 %v5936, %v6346
      %v6355 = vmul.f32 %v5955, %v6347
      %v6356 = vmul.f32 %v5938, %v6348
      %v6357 = vmul.f32 %v5957, %v6349
      %v6358 = vmul.f32 %v5941, %v6350
      %v6359 = vmul.f32 %v5960, %v6351
      %v6360 = vmul.f32 %v5943, %v6352
      %v6361 = vmul.f32 %v5962, %v6353
      %v6362 = vpack.c.bf16 %v6356, %v6354
      %v6363 = vpack.c.bf16 %v6357, %v6355
      %v6364 = vpack.c.bf16 %v6360, %v6358
      %v6365 = vpack.c.bf16 %v6361, %v6359
      %v6367 = vperm.slane %v5726, 0
      %v6401 = vunpack.c.l.b16 %v5693
      %v6402 = vunpack.c.l.b16 %v5694
      %v6403 = vunpack.c.l.b16 %v5695
      %v6404 = vunpack.c.l.b16 %v5696
      %v6405 = vunpack.c.l.b16 %v5697
      %v6406 = vunpack.c.l.b16 %v5698
      %v6407 = vunpack.c.l.b16 %v5699
      %v6408 = vunpack.c.l.b16 %v5700
      %v6409 = vunpack.c.l.b16 %v5701
      %v6410 = vunpack.c.l.b16 %v5702
      %v6411 = vunpack.c.l.b16 %v5703
      %v6412 = vunpack.c.l.b16 %v5704
      %v6413 = vunpack.c.l.b16 %v5705
      %v6414 = vunpack.c.l.b16 %v5706
      %v6415 = vunpack.c.l.b16 %v5707
      %v6416 = vunpack.c.l.b16 %v5708
      %v6417 = vunpack.c.l.b16 %v5709
      %v6418 = vunpack.c.l.b16 %v5710
      %v6419 = vunpack.c.l.b16 %v5711
      %v6420 = vunpack.c.l.b16 %v5712
      %v6421 = vunpack.c.l.b16 %v5713
      %v6422 = vunpack.c.l.b16 %v5714
      %v6423 = vunpack.c.l.b16 %v5715
      %v6424 = vunpack.c.l.b16 %v5716
      %v6425 = vunpack.c.l.b16 %v5717
      %v6426 = vunpack.c.l.b16 %v5718
      %v6427 = vunpack.c.l.b16 %v5719
      %v6428 = vunpack.c.l.b16 %v5720
      %v6429 = vunpack.c.l.b16 %v5721
      %v6430 = vunpack.c.l.b16 %v5722
      %v6431 = vunpack.c.l.b16 %v5723
      %v6432 = vunpack.c.l.b16 %v5724
      %v6433 = vpack.c.b16 %v6402, %v6401
      %v6434 = vpack.c.b16 %v6404, %v6403
      %v6435 = vpack.c.b16 %v6406, %v6405
      %v6436 = vpack.c.b16 %v6408, %v6407
      %v6437 = vpack.c.b16 %v6410, %v6409
      %v6438 = vpack.c.b16 %v6412, %v6411
      %v6439 = vpack.c.b16 %v6414, %v6413
      %v6440 = vpack.c.b16 %v6416, %v6415
      %v6441 = vpack.c.b16 %v6418, %v6417
      %v6442 = vpack.c.b16 %v6420, %v6419
      %v6443 = vpack.c.b16 %v6422, %v6421
      %v6444 = vpack.c.b16 %v6424, %v6423
      %v6445 = vpack.c.b16 %v6426, %v6425
      %v6446 = vpack.c.b16 %v6428, %v6427
      %v6447 = vpack.c.b16 %v6430, %v6429
      %v6448 = vpack.c.b16 %v6432, %v6431
      %6465 = vmatpush.bf16.msra.mxu0 %v6440
      %6466 = vmatpush.bf16.msra.mxu0 %v6439
      %6467 = vmatpush.bf16.msra.mxu0 %v6438
      %6468 = vmatpush.bf16.msra.mxu0 %v6437
      %6469 = vmatpush.bf16.msra.mxu0 %v6436
      %6470 = vmatpush.bf16.msra.mxu0 %v6435
      %6471 = vmatpush.bf16.msra.mxu0 %v6434
      %6472 = vmatpush.bf16.msra.mxu0 %v6433
      %6473 = vmatmul.bf16.gmra.mxu0 %v6362
      %v6474 = vpop.f32.mrf.mxu0
      %v6475 = vadd.f32 %v6367, %v6474
      %v6476 = vpop.f32.mrf.mxu0
      %v6477 = vadd.f32 %v6367, %v6476
      %6478 = vmatmul.bf16.gmra.mxu0 %v6364
      %v6479 = vpop.f32.mrf.mxu0
      %v6480 = vadd.f32 %v6367, %v6479
      %v6481 = vpop.f32.mrf.mxu0
      %v6482 = vadd.f32 %v6367, %v6481
      %6483 = vdwg.mxu0
      %6484 = vmatpush.bf16.msra.mxu0 %v6448
      %6485 = vmatpush.bf16.msra.mxu0 %v6447
      %6486 = vmatpush.bf16.msra.mxu0 %v6446
      %6487 = vmatpush.bf16.msra.mxu0 %v6445
      %6488 = vmatpush.bf16.msra.mxu0 %v6444
      %6489 = vmatpush.bf16.msra.mxu0 %v6443
      %6490 = vmatpush.bf16.msra.mxu0 %v6442
      %6491 = vmatpush.bf16.msra.mxu0 %v6441
      %6492 = vmatmul.bf16.gmra.mxu0 %v6363
      %v6493 = vpop.f32.mrf.mxu0
      %v6494 = vadd.f32 %v6475, %v6493
      %v6495 = vpop.f32.mrf.mxu0
      %v6496 = vadd.f32 %v6477, %v6495
      %6497 = vmatmul.bf16.gmra.mxu0 %v6365
      %v6498 = vpop.f32.mrf.mxu0
      %v6499 = vadd.f32 %v6480, %v6498
      %v6500 = vpop.f32.mrf.mxu0
      %v6501 = vadd.f32 %v6482, %v6500
      %6502 = vdwg.mxu0
      %v6503 = vadd.f32 %v6494, %v5665
      %v6504 = vadd.f32 %v6496, %v5666
      %v6505 = vadd.f32 %v6499, %v5667
      %v6506 = vadd.f32 %v6501, %v5668
      %s6507 = scalar_lea.vmem %s33, 1
      %v6508 = vld [vmem:[%s6507] sm:$0x1]
      %s6509 = scalar_lea.vmem %s35, 1
      %v6510 = vld [vmem:[%s6509] sm:$0x1]
      %v6511 = vsel %vm1026, %v6503, 0.0
      %6512 = vadd.xlane.f32.xlu0 %v6511
      %v6513 = vpop.xlane.xlu0 %6512
      %v6514 = vsel %vm1026, %v6504, 0.0
      %6515 = vadd.xlane.f32.xlu0 %v6514
      %v6516 = vpop.xlane.xlu0 %6515
      %v6517 = vsel %vm1026, %v6505, 0.0
      %6518 = vadd.xlane.f32.xlu0 %v6517
      %v6519 = vpop.xlane.xlu0 %6518
      %v6520 = vsel %vm1026, %v6506, 0.0
      %6521 = vadd.xlane.f32.xlu0 %v6520
      %v6522 = vpop.xlane.xlu0 %6521
      %v6523 = vmul.f32 %v6513, %v1045
      %v6524 = vmul.f32 %v6516, %v1045
      %v6525 = vmul.f32 %v6519, %v1045
      %v6526 = vmul.f32 %v6522, %v1045
      %v6527 = vsub.f32 %v6503, %v6523
      %v6528 = vsub.f32 %v6504, %v6524
      %v6529 = vsub.f32 %v6505, %v6525
      %v6530 = vsub.f32 %v6506, %v6526
      %v6531 = vmul.f32 %v6527, %v6527
      %v6532 = vmul.f32 %v6528, %v6528
      %v6533 = vmul.f32 %v6529, %v6529
      %v6534 = vmul.f32 %v6530, %v6530
      %v6535 = vsel %vm1026, %v6531, 0.0
      %6536 = vadd.xlane.f32.xlu0 %v6535
      %v6537 = vpop.xlane.xlu0 %6536
      %v6538 = vsel %vm1026, %v6532, 0.0
      %6539 = vadd.xlane.f32.xlu0 %v6538
      %v6540 = vpop.xlane.xlu0 %6539
      %v6541 = vsel %vm1026, %v6533, 0.0
      %6542 = vadd.xlane.f32.xlu0 %v6541
      %v6543 = vpop.xlane.xlu0 %6542
      %v6544 = vsel %vm1026, %v6534, 0.0
      %6545 = vadd.xlane.f32.xlu0 %v6544
      %v6546 = vpop.xlane.xlu0 %6545
      %v6547 = vmul.f32 %v6537, %v1045
      %v6548 = vmul.f32 %v6540, %v1045
      %v6549 = vmul.f32 %v6543, %v1045
      %v6550 = vmul.f32 %v6546, %v1045
      %v6551 = vadd.f32 %v6547, 1e-05
      %v6552 = vadd.f32 %v6548, 1e-05
      %v6553 = vadd.f32 %v6549, 1e-05
      %v6554 = vadd.f32 %v6550, 1e-05
      %v6555 = vrsqrt.pop %v6551
      %v6556 = vmul.f32 %v6555, %v6551
      %v6557 = vmul.f32 %v6556, %v6555
      %v6558 = vmul.f32 0.5, %v6557
      %v6559 = vsub.f32 1.5, %v6558
      %v6560 = vmul.f32 %v6555, %v6559
      %vm6561 = vweird.f32 %v6551
      %vm6562 = vweird.f32 %v6555
      %vm6563 = vmor %vm6561, %vm6562
      %v6564 = vsel %vm6563, %v6555, %v6560
      %v6565 = vrsqrt.pop %v6552
      %v6566 = vmul.f32 %v6565, %v6552
      %v6567 = vmul.f32 %v6566, %v6565
      %v6568 = vmul.f32 0.5, %v6567
      %v6569 = vsub.f32 1.5, %v6568
      %v6570 = vmul.f32 %v6565, %v6569
      %vm6571 = vweird.f32 %v6552
      %vm6572 = vweird.f32 %v6565
      %vm6573 = vmor %vm6571, %vm6572
      %v6574 = vsel %vm6573, %v6565, %v6570
      %v6575 = vrsqrt.pop %v6553
      %v6576 = vmul.f32 %v6575, %v6553
      %v6577 = vmul.f32 %v6576, %v6575
      %v6578 = vmul.f32 0.5, %v6577
      %v6579 = vsub.f32 1.5, %v6578
      %v6580 = vmul.f32 %v6575, %v6579
      %vm6581 = vweird.f32 %v6553
      %vm6582 = vweird.f32 %v6575
      %vm6583 = vmor %vm6581, %vm6582
      %v6584 = vsel %vm6583, %v6575, %v6580
      %v6585 = vrsqrt.pop %v6554
      %v6586 = vmul.f32 %v6585, %v6554
      %v6587 = vmul.f32 %v6586, %v6585
      %v6588 = vmul.f32 0.5, %v6587
      %v6589 = vsub.f32 1.5, %v6588
      %v6590 = vmul.f32 %v6585, %v6589
      %vm6591 = vweird.f32 %v6554
      %vm6592 = vweird.f32 %v6585
      %vm6593 = vmor %vm6591, %vm6592
      %v6594 = vsel %vm6593, %v6585, %v6590
      %v6595 = vmul.f32 %v6527, %v6564
      %v6596 = vmul.f32 %v6528, %v6574
      %v6597 = vmul.f32 %v6529, %v6584
      %v6598 = vmul.f32 %v6530, %v6594
      %v6600 = vperm.slane %v6508, 0
      %v6602 = vmul.f32 %v6595, %v6600
      %v6603 = vmul.f32 %v6596, %v6600
      %v6604 = vmul.f32 %v6597, %v6600
      %v6605 = vmul.f32 %v6598, %v6600
      %v6607 = vperm.slane %v6510, 0
      %v6609 = vadd.f32 %v6602, %v6607
      %v6610 = vadd.f32 %v6603, %v6607
      %v6611 = vadd.f32 %v6604, %v6607
      %v6612 = vadd.f32 %v6605, %v6607
      %v6613 = vpack.c.bf16 %v6610, %v6609
      %v6614 = vpack.c.bf16 %v6612, %v6611
      %s6615 = scalar_lea.vmem %s37, 32
      %v6616 = vld [vmem:[%s6615] sm:$0xf]
      %v6617 = vld [vmem:[%s6615 + $0x4] sm:$0xf]
      %v6618 = vld [vmem:[%s6615 + $0x8] sm:$0xf]
      %v6619 = vld [vmem:[%s6615 + $0xc] sm:$0xf]
      %v6620 = vld [vmem:[%s6615 + $0x10] sm:$0xf]
      %v6621 = vld [vmem:[%s6615 + $0x14] sm:$0xf]
      %v6622 = vld [vmem:[%s6615 + $0x18] sm:$0xf]
      %v6623 = vld [vmem:[%s6615 + $0x1c] sm:$0xf]
      %s6624 = scalar_lea.vmem %s39, 32
      %v6625 = vld [vmem:[%s6624] sm:$0xf]
      %v6626 = vld [vmem:[%s6624 + $0x4] sm:$0xf]
      %v6627 = vld [vmem:[%s6624 + $0x8] sm:$0xf]
      %v6628 = vld [vmem:[%s6624 + $0xc] sm:$0xf]
      %v6629 = vld [vmem:[%s6624 + $0x10] sm:$0xf]
      %v6630 = vld [vmem:[%s6624 + $0x14] sm:$0xf]
      %v6631 = vld [vmem:[%s6624 + $0x18] sm:$0xf]
      %v6632 = vld [vmem:[%s6624 + $0x1c] sm:$0xf]
      %s6633 = scalar_lea.vmem %s41, 32
      %v6634 = vld [vmem:[%s6633] sm:$0xf]
      %v6635 = vld [vmem:[%s6633 + $0x4] sm:$0xf]
      %v6636 = vld [vmem:[%s6633 + $0x8] sm:$0xf]
      %v6637 = vld [vmem:[%s6633 + $0xc] sm:$0xf]
      %v6638 = vld [vmem:[%s6633 + $0x10] sm:$0xf]
      %v6639 = vld [vmem:[%s6633 + $0x14] sm:$0xf]
      %v6640 = vld [vmem:[%s6633 + $0x18] sm:$0xf]
      %v6641 = vld [vmem:[%s6633 + $0x1c] sm:$0xf]
      %s6642 = scalar_lea.vmem %s43, 1
      %v6643 = vld [vmem:[%s6642] sm:$0x1]
      %v6652 = vunpack.c.l.b16 %v6616
      %v6653 = vunpack.c.l.b16 %v6617
      %v6654 = vunpack.c.l.b16 %v6618
      %v6655 = vunpack.c.l.b16 %v6619
      %v6656 = vunpack.c.l.b16 %v6620
      %v6657 = vunpack.c.l.b16 %v6621
      %v6658 = vunpack.c.l.b16 %v6622
      %v6659 = vunpack.c.l.b16 %v6623
      %v6660 = vpack.c.b16 %v6653, %v6652
      %v6661 = vpack.c.b16 %v6655, %v6654
      %v6662 = vpack.c.b16 %v6657, %v6656
      %v6663 = vpack.c.b16 %v6659, %v6658
      %v6669 = vsel %vm1026, %v6613, 0
      %v6672 = vsel %vm1026, %v6614, 0
      %6674 = vmatpush.bf16.msra.mxu0 0
      %6675 = vmatpush.bf16.msra.mxu0 0
      %6676 = vmatpush.bf16.msra.mxu0 0
      %6677 = vmatpush.bf16.msra.mxu0 0
      %6678 = vmatpush.bf16.msra.mxu0 %v6663
      %6679 = vmatpush.bf16.msra.mxu0 %v6662
      %6680 = vmatpush.bf16.msra.mxu0 %v6661
      %6681 = vmatpush.bf16.msra.mxu0 %v6660
      %6682 = vmatmul.bf16.gmra.mxu0 %v6669
      %v6683 = vpop.f32.mrf.mxu0
      %v6684 = vadd.f32 0.0, %v6683
      %v6685 = vpop.f32.mrf.mxu0
      %v6686 = vadd.f32 0.0, %v6685
      %6687 = vmatmul.bf16.gmra.mxu0 %v6672
      %v6688 = vpop.f32.mrf.mxu0
      %v6689 = vadd.f32 0.0, %v6688
      %v6690 = vpop.f32.mrf.mxu0
      %v6691 = vadd.f32 0.0, %v6690
      %6692 = vdwg.mxu0
      %v6693 = vpack.c.bf16 %v6684, %v6684
      %v6694 = vpack.c.bf16 %v6686, %v6686
      %v6695 = vpack.c.bf16 %v6689, %v6689
      %v6696 = vpack.c.bf16 %v6691, %v6691
      %v6705 = vunpack.c.l.b16 %v6625
      %v6706 = vunpack.c.l.b16 %v6626
      %v6707 = vunpack.c.l.b16 %v6627
      %v6708 = vunpack.c.l.b16 %v6628
      %v6709 = vunpack.c.l.b16 %v6629
      %v6710 = vunpack.c.l.b16 %v6630
      %v6711 = vunpack.c.l.b16 %v6631
      %v6712 = vunpack.c.l.b16 %v6632
      %v6713 = vpack.c.b16 %v6706, %v6705
      %v6714 = vpack.c.b16 %v6708, %v6707
      %v6715 = vpack.c.b16 %v6710, %v6709
      %v6716 = vpack.c.b16 %v6712, %v6711
      %6721 = vmatpush.bf16.msra.mxu0 0
      %6722 = vmatpush.bf16.msra.mxu0 0
      %6723 = vmatpush.bf16.msra.mxu0 0
      %6724 = vmatpush.bf16.msra.mxu0 0
      %6725 = vmatpush.bf16.msra.mxu0 %v6716
      %6726 = vmatpush.bf16.msra.mxu0 %v6715
      %6727 = vmatpush.bf16.msra.mxu0 %v6714
      %6728 = vmatpush.bf16.msra.mxu0 %v6713
      %6729 = vmatmul.bf16.gmra.mxu0 %v6669
      %v6730 = vpop.f32.mrf.mxu0
      %v6731 = vadd.f32 0.0, %v6730
      %v6732 = vpop.f32.mrf.mxu0
      %v6733 = vadd.f32 0.0, %v6732
      %6734 = vmatmul.bf16.gmra.mxu0 %v6672
      %v6735 = vpop.f32.mrf.mxu0
      %v6736 = vadd.f32 0.0, %v6735
      %v6737 = vpop.f32.mrf.mxu0
      %v6738 = vadd.f32 0.0, %v6737
      %6739 = vdwg.mxu0
      %v6740 = vpack.c.bf16 %v6731, %v6731
      %v6741 = vpack.c.bf16 %v6733, %v6733
      %v6742 = vpack.c.bf16 %v6736, %v6736
      %v6743 = vpack.c.bf16 %v6738, %v6738
      %v6748 = vunpack.c.l.b16 %v6693
      %v6749 = vunpack.c.l.b16 %v6694
      %v6750 = vunpack.c.l.b16 %v6695
      %v6751 = vunpack.c.l.b16 %v6696
      %v6752 = vpack.c.b16 %v6749, %v6748
      %v6753 = vpack.c.b16 %v6751, %v6750
      %v6758 = vunpack.c.l.b16 %v6740
      %v6759 = vunpack.c.l.b16 %v6741
      %v6760 = vunpack.c.l.b16 %v6742
      %v6761 = vunpack.c.l.b16 %v6743
      %v6762 = vpack.c.b16 %v6759, %v6758
      %v6763 = vpack.c.b16 %v6761, %v6760
      %v6765 = vsel %vm3522, %v6752, 0
      %v6768 = vsel %vm3522, %v6753, 0
      %v6771 = vsel %vm3522, %v6762, 0
      %v6774 = vsel %vm3522, %v6763, 0
      %6776 = vmatpush.bf16.xpose.msra.mxu0 0
      %6777 = vmatpush.bf16.xpose.msra.mxu0 0
      %6778 = vmatpush.bf16.xpose.msra.mxu0 0
      %6779 = vmatpush.bf16.xpose.msra.mxu0 0
      %6780 = vmatpush.bf16.xpose.msra.mxu0 0
      %6781 = vmatpush.bf16.xpose.msra.mxu0 0
      %6782 = vmatpush.bf16.xpose.msra.mxu0 %v6774
      %6783 = vmatpush.bf16.xpose.msra.mxu0 %v6771
      %6784 = vmatmul.bf16.gmra.mxu0 %v6765
      %v6785 = vpop.f32.mrf.mxu0
      %v6786 = vadd.f32 0.0, %v6785
      %v6787 = vpop.f32.mrf.mxu0
      %v6788 = vadd.f32 0.0, %v6787
      %6789 = vmatmul.bf16.gmra.mxu0 %v6768
      %v6790 = vpop.f32.mrf.mxu0
      %v6791 = vadd.f32 0.0, %v6790
      %v6792 = vpop.f32.mrf.mxu0
      %v6793 = vadd.f32 0.0, %v6792
      %6794 = vdwg.mxu0
      %v6795 = vsel %vm2134, %v6786, -inf
      %6796 = vmax.xlane.f32.xlu0 %v6795
      %v6797 = vpop.xlane.xlu0 %6796
      %v6798 = vsel %vm2134, %v6788, -inf
      %6799 = vmax.xlane.f32.xlu0 %v6798
      %v6800 = vpop.xlane.xlu0 %6799
      %v6801 = vsel %vm2134, %v6791, -inf
      %6802 = vmax.xlane.f32.xlu0 %v6801
      %v6803 = vpop.xlane.xlu0 %6802
      %v6804 = vsel %vm2134, %v6793, -inf
      %6805 = vmax.xlane.f32.xlu0 %v6804
      %v6806 = vpop.xlane.xlu0 %6805
      %v6807 = vsub.f32 %v6786, %v6797
      %v6808 = vsub.f32 %v6788, %v6800
      %v6809 = vsub.f32 %v6791, %v6803
      %v6810 = vsub.f32 %v6793, %v6806
      %v6811 = vmul.f32 %v6807, 1.442695
      %v6812 = vpow.pop %v6811
      %v6813 = vmul.f32 %v6808, 1.442695
      %v6814 = vpow.pop %v6813
      %v6815 = vmul.f32 %v6809, 1.442695
      %v6816 = vpow.pop %v6815
      %v6817 = vmul.f32 %v6810, 1.442695
      %v6818 = vpow.pop %v6817
      %v6819 = vsel %vm2134, %v6812, 0.0
      %6820 = vadd.xlane.f32.xlu0 %v6819
      %v6821 = vpop.xlane.xlu0 %6820
      %v6822 = vsel %vm2134, %v6814, 0.0
      %6823 = vadd.xlane.f32.xlu0 %v6822
      %v6824 = vpop.xlane.xlu0 %6823
      %v6825 = vsel %vm2134, %v6816, 0.0
      %6826 = vadd.xlane.f32.xlu0 %v6825
      %v6827 = vpop.xlane.xlu0 %6826
      %v6828 = vsel %vm2134, %v6818, 0.0
      %6829 = vadd.xlane.f32.xlu0 %v6828
      %v6830 = vpop.xlane.xlu0 %6829
      %v6831 = vrcp.pop %v6821
      %v6832 = vrcp.pop %v6824
      %v6833 = vrcp.pop %v6827
      %v6834 = vrcp.pop %v6830
      %v6835 = vmul.f32 %v6812, %v6831
      %v6836 = vmul.f32 %v6814, %v6832
      %v6837 = vmul.f32 %v6816, %v6833
      %v6838 = vmul.f32 %v6818, %v6834
      %v6839 = vpack.c.bf16 %v6836, %v6835
      %v6840 = vpack.c.bf16 %v6838, %v6837
      %6841 = vrot.lane.b32.xlu0 %v6762, 64
      %v6842 = vpop.permute.xlu0 %6841
      %6843 = vrot.lane.b32.xlu0 %v6763, 64
      %v6844 = vpop.permute.xlu0 %6843
      %v6848 = vsel %vm2134, %v6839, 0
      %v6851 = vsel %vm2134, %v6840, 0
      %6853 = vmatpush.bf16.msra.mxu0 0
      %6854 = vmatpush.bf16.msra.mxu0 0
      %6855 = vmatpush.bf16.msra.mxu0 0
      %6856 = vmatpush.bf16.msra.mxu0 0
      %6857 = vmatpush.bf16.msra.mxu0 0
      %6858 = vmatpush.bf16.msra.mxu0 0
      %6859 = vmatpush.bf16.msra.mxu0 %v6844
      %6860 = vmatpush.bf16.msra.mxu0 %v6842
      %6861 = vmatmul.bf16.gmra.mxu0 %v6848
      %v6862 = vpop.f32.mrf.mxu0
      %v6863 = vadd.f32 0.0, %v6862
      %v6864 = vpop.f32.mrf.mxu0
      %v6865 = vadd.f32 0.0, %v6864
      %6866 = vmatmul.bf16.gmra.mxu0 %v6851
      %v6867 = vpop.f32.mrf.mxu0
      %v6868 = vadd.f32 0.0, %v6867
      %v6869 = vpop.f32.mrf.mxu0
      %v6870 = vadd.f32 0.0, %v6869
      %6871 = vdwg.mxu0
      %6872 = vrot.lane.b32.xlu0 %v6752, 112
      %v6873 = vpop.permute.xlu0 %6872
      %6874 = vrot.lane.b32.xlu0 %v6753, 112
      %v6875 = vpop.permute.xlu0 %6874
      %6876 = vrot.lane.b32.xlu0 %v6762, 112
      %v6877 = vpop.permute.xlu0 %6876
      %6878 = vrot.lane.b32.xlu0 %v6763, 112
      %v6879 = vpop.permute.xlu0 %6878
      %v6881 = vsel %vm3522, %v6873, 0
      %v6884 = vsel %vm3522, %v6875, 0
      %v6887 = vsel %vm3522, %v6877, 0
      %v6890 = vsel %vm3522, %v6879, 0
      %6892 = vmatpush.bf16.xpose.msra.mxu0 0
      %6893 = vmatpush.bf16.xpose.msra.mxu0 0
      %6894 = vmatpush.bf16.xpose.msra.mxu0 0
      %6895 = vmatpush.bf16.xpose.msra.mxu0 0
      %6896 = vmatpush.bf16.xpose.msra.mxu0 0
      %6897 = vmatpush.bf16.xpose.msra.mxu0 0
      %6898 = vmatpush.bf16.xpose.msra.mxu0 %v6890
      %6899 = vmatpush.bf16.xpose.msra.mxu0 %v6887
      %6900 = vmatmul.bf16.gmra.mxu0 %v6881
      %v6901 = vpop.f32.mrf.mxu0
      %v6902 = vadd.f32 0.0, %v6901
      %v6903 = vpop.f32.mrf.mxu0
      %v6904 = vadd.f32 0.0, %v6903
      %6905 = vmatmul.bf16.gmra.mxu0 %v6884
      %v6906 = vpop.f32.mrf.mxu0
      %v6907 = vadd.f32 0.0, %v6906
      %v6908 = vpop.f32.mrf.mxu0
      %v6909 = vadd.f32 0.0, %v6908
      %6910 = vdwg.mxu0
      %v6911 = vsel %vm2134, %v6902, -inf
      %6912 = vmax.xlane.f32.xlu0 %v6911
      %v6913 = vpop.xlane.xlu0 %6912
      %v6914 = vsel %vm2134, %v6904, -inf
      %6915 = vmax.xlane.f32.xlu0 %v6914
      %v6916 = vpop.xlane.xlu0 %6915
      %v6917 = vsel %vm2134, %v6907, -inf
      %6918 = vmax.xlane.f32.xlu0 %v6917
      %v6919 = vpop.xlane.xlu0 %6918
      %v6920 = vsel %vm2134, %v6909, -inf
      %6921 = vmax.xlane.f32.xlu0 %v6920
      %v6922 = vpop.xlane.xlu0 %6921
      %v6923 = vsub.f32 %v6902, %v6913
      %v6924 = vsub.f32 %v6904, %v6916
      %v6925 = vsub.f32 %v6907, %v6919
      %v6926 = vsub.f32 %v6909, %v6922
      %v6927 = vmul.f32 %v6923, 1.442695
      %v6928 = vpow.pop %v6927
      %v6929 = vmul.f32 %v6924, 1.442695
      %v6930 = vpow.pop %v6929
      %v6931 = vmul.f32 %v6925, 1.442695
      %v6932 = vpow.pop %v6931
      %v6933 = vmul.f32 %v6926, 1.442695
      %v6934 = vpow.pop %v6933
      %v6935 = vsel %vm2134, %v6928, 0.0
      %6936 = vadd.xlane.f32.xlu0 %v6935
      %v6937 = vpop.xlane.xlu0 %6936
      %v6938 = vsel %vm2134, %v6930, 0.0
      %6939 = vadd.xlane.f32.xlu0 %v6938
      %v6940 = vpop.xlane.xlu0 %6939
      %v6941 = vsel %vm2134, %v6932, 0.0
      %6942 = vadd.xlane.f32.xlu0 %v6941
      %v6943 = vpop.xlane.xlu0 %6942
      %v6944 = vsel %vm2134, %v6934, 0.0
      %6945 = vadd.xlane.f32.xlu0 %v6944
      %v6946 = vpop.xlane.xlu0 %6945
      %v6947 = vrcp.pop %v6937
      %v6948 = vrcp.pop %v6940
      %v6949 = vrcp.pop %v6943
      %v6950 = vrcp.pop %v6946
      %v6951 = vmul.f32 %v6928, %v6947
      %v6952 = vmul.f32 %v6930, %v6948
      %v6953 = vmul.f32 %v6932, %v6949
      %v6954 = vmul.f32 %v6934, %v6950
      %v6955 = vpack.c.bf16 %v6952, %v6951
      %v6956 = vpack.c.bf16 %v6954, %v6953
      %6957 = vrot.lane.b32.xlu0 %v6762, 48
      %v6958 = vpop.permute.xlu0 %6957
      %6959 = vrot.lane.b32.xlu0 %v6763, 48
      %v6960 = vpop.permute.xlu0 %6959
      %v6964 = vsel %vm2134, %v6955, 0
      %v6967 = vsel %vm2134, %v6956, 0
      %6969 = vmatpush.bf16.msra.mxu0 0
      %6970 = vmatpush.bf16.msra.mxu0 0
      %6971 = vmatpush.bf16.msra.mxu0 0
      %6972 = vmatpush.bf16.msra.mxu0 0
      %6973 = vmatpush.bf16.msra.mxu0 0
      %6974 = vmatpush.bf16.msra.mxu0 0
      %6975 = vmatpush.bf16.msra.mxu0 %v6960
      %6976 = vmatpush.bf16.msra.mxu0 %v6958
      %6977 = vmatmul.bf16.gmra.mxu0 %v6964
      %v6978 = vpop.f32.mrf.mxu0
      %v6979 = vadd.f32 0.0, %v6978
      %v6980 = vpop.f32.mrf.mxu0
      %v6981 = vadd.f32 0.0, %v6980
      %6982 = vmatmul.bf16.gmra.mxu0 %v6967
      %v6983 = vpop.f32.mrf.mxu0
      %v6984 = vadd.f32 0.0, %v6983
      %v6985 = vpop.f32.mrf.mxu0
      %v6986 = vadd.f32 0.0, %v6985
      %6987 = vdwg.mxu0
      %6988 = vrot.lane.b32.xlu0 %v6752, 96
      %v6989 = vpop.permute.xlu0 %6988
      %6990 = vrot.lane.b32.xlu0 %v6753, 96
      %v6991 = vpop.permute.xlu0 %6990
      %6992 = vrot.lane.b32.xlu0 %v6762, 96
      %v6993 = vpop.permute.xlu0 %6992
      %6994 = vrot.lane.b32.xlu0 %v6763, 96
      %v6995 = vpop.permute.xlu0 %6994
      %v6997 = vsel %vm3522, %v6989, 0
      %v7000 = vsel %vm3522, %v6991, 0
      %v7003 = vsel %vm3522, %v6993, 0
      %v7006 = vsel %vm3522, %v6995, 0
      %7008 = vmatpush.bf16.xpose.msra.mxu0 0
      %7009 = vmatpush.bf16.xpose.msra.mxu0 0
      %7010 = vmatpush.bf16.xpose.msra.mxu0 0
      %7011 = vmatpush.bf16.xpose.msra.mxu0 0
      %7012 = vmatpush.bf16.xpose.msra.mxu0 0
      %7013 = vmatpush.bf16.xpose.msra.mxu0 0
      %7014 = vmatpush.bf16.xpose.msra.mxu0 %v7006
      %7015 = vmatpush.bf16.xpose.msra.mxu0 %v7003
      %7016 = vmatmul.bf16.gmra.mxu0 %v6997
      %v7017 = vpop.f32.mrf.mxu0
      %v7018 = vadd.f32 0.0, %v7017
      %v7019 = vpop.f32.mrf.mxu0
      %v7020 = vadd.f32 0.0, %v7019
      %7021 = vmatmul.bf16.gmra.mxu0 %v7000
      %v7022 = vpop.f32.mrf.mxu0
      %v7023 = vadd.f32 0.0, %v7022
      %v7024 = vpop.f32.mrf.mxu0
      %v7025 = vadd.f32 0.0, %v7024
      %7026 = vdwg.mxu0
      %v7027 = vsel %vm2134, %v7018, -inf
      %7028 = vmax.xlane.f32.xlu0 %v7027
      %v7029 = vpop.xlane.xlu0 %7028
      %v7030 = vsel %vm2134, %v7020, -inf
      %7031 = vmax.xlane.f32.xlu0 %v7030
      %v7032 = vpop.xlane.xlu0 %7031
      %v7033 = vsel %vm2134, %v7023, -inf
      %7034 = vmax.xlane.f32.xlu0 %v7033
      %v7035 = vpop.xlane.xlu0 %7034
      %v7036 = vsel %vm2134, %v7025, -inf
      %7037 = vmax.xlane.f32.xlu0 %v7036
      %v7038 = vpop.xlane.xlu0 %7037
      %v7039 = vsub.f32 %v7018, %v7029
      %v7040 = vsub.f32 %v7020, %v7032
      %v7041 = vsub.f32 %v7023, %v7035
      %v7042 = vsub.f32 %v7025, %v7038
      %v7043 = vmul.f32 %v7039, 1.442695
      %v7044 = vpow.pop %v7043
      %v7045 = vmul.f32 %v7040, 1.442695
      %v7046 = vpow.pop %v7045
      %v7047 = vmul.f32 %v7041, 1.442695
      %v7048 = vpow.pop %v7047
      %v7049 = vmul.f32 %v7042, 1.442695
      %v7050 = vpow.pop %v7049
      %v7051 = vsel %vm2134, %v7044, 0.0
      %7052 = vadd.xlane.f32.xlu0 %v7051
      %v7053 = vpop.xlane.xlu0 %7052
      %v7054 = vsel %vm2134, %v7046, 0.0
      %7055 = vadd.xlane.f32.xlu0 %v7054
      %v7056 = vpop.xlane.xlu0 %7055
      %v7057 = vsel %vm2134, %v7048, 0.0
      %7058 = vadd.xlane.f32.xlu0 %v7057
      %v7059 = vpop.xlane.xlu0 %7058
      %v7060 = vsel %vm2134, %v7050, 0.0
      %7061 = vadd.xlane.f32.xlu0 %v7060
      %v7062 = vpop.xlane.xlu0 %7061
      %v7063 = vrcp.pop %v7053
      %v7064 = vrcp.pop %v7056
      %v7065 = vrcp.pop %v7059
      %v7066 = vrcp.pop %v7062
      %v7067 = vmul.f32 %v7044, %v7063
      %v7068 = vmul.f32 %v7046, %v7064
      %v7069 = vmul.f32 %v7048, %v7065
      %v7070 = vmul.f32 %v7050, %v7066
      %v7071 = vpack.c.bf16 %v7068, %v7067
      %v7072 = vpack.c.bf16 %v7070, %v7069
      %7073 = vrot.lane.b32.xlu0 %v6762, 32
      %v7074 = vpop.permute.xlu0 %7073
      %7075 = vrot.lane.b32.xlu0 %v6763, 32
      %v7076 = vpop.permute.xlu0 %7075
      %v7080 = vsel %vm2134, %v7071, 0
      %v7083 = vsel %vm2134, %v7072, 0
      %7085 = vmatpush.bf16.msra.mxu0 0
      %7086 = vmatpush.bf16.msra.mxu0 0
      %7087 = vmatpush.bf16.msra.mxu0 0
      %7088 = vmatpush.bf16.msra.mxu0 0
      %7089 = vmatpush.bf16.msra.mxu0 0
      %7090 = vmatpush.bf16.msra.mxu0 0
      %7091 = vmatpush.bf16.msra.mxu0 %v7076
      %7092 = vmatpush.bf16.msra.mxu0 %v7074
      %7093 = vmatmul.bf16.gmra.mxu0 %v7080
      %v7094 = vpop.f32.mrf.mxu0
      %v7095 = vadd.f32 0.0, %v7094
      %v7096 = vpop.f32.mrf.mxu0
      %v7097 = vadd.f32 0.0, %v7096
      %7098 = vmatmul.bf16.gmra.mxu0 %v7083
      %v7099 = vpop.f32.mrf.mxu0
      %v7100 = vadd.f32 0.0, %v7099
      %v7101 = vpop.f32.mrf.mxu0
      %v7102 = vadd.f32 0.0, %v7101
      %7103 = vdwg.mxu0
      %7104 = vrot.lane.b32.xlu0 %v6752, 80
      %v7105 = vpop.permute.xlu0 %7104
      %7106 = vrot.lane.b32.xlu0 %v6753, 80
      %v7107 = vpop.permute.xlu0 %7106
      %7108 = vrot.lane.b32.xlu0 %v6762, 80
      %v7109 = vpop.permute.xlu0 %7108
      %7110 = vrot.lane.b32.xlu0 %v6763, 80
      %v7111 = vpop.permute.xlu0 %7110
      %v7113 = vsel %vm3522, %v7105, 0
      %v7116 = vsel %vm3522, %v7107, 0
      %v7119 = vsel %vm3522, %v7109, 0
      %v7122 = vsel %vm3522, %v7111, 0
      %7124 = vmatpush.bf16.xpose.msra.mxu0 0
      %7125 = vmatpush.bf16.xpose.msra.mxu0 0
      %7126 = vmatpush.bf16.xpose.msra.mxu0 0
      %7127 = vmatpush.bf16.xpose.msra.mxu0 0
      %7128 = vmatpush.bf16.xpose.msra.mxu0 0
      %7129 = vmatpush.bf16.xpose.msra.mxu0 0
      %7130 = vmatpush.bf16.xpose.msra.mxu0 %v7122
      %7131 = vmatpush.bf16.xpose.msra.mxu0 %v7119
      %7132 = vmatmul.bf16.gmra.mxu0 %v7113
      %v7133 = vpop.f32.mrf.mxu0
      %v7134 = vadd.f32 0.0, %v7133
      %v7135 = vpop.f32.mrf.mxu0
      %v7136 = vadd.f32 0.0, %v7135
      %7137 = vmatmul.bf16.gmra.mxu0 %v7116
      %v7138 = vpop.f32.mrf.mxu0
      %v7139 = vadd.f32 0.0, %v7138
      %v7140 = vpop.f32.mrf.mxu0
      %v7141 = vadd.f32 0.0, %v7140
      %7142 = vdwg.mxu0
      %v7143 = vsel %vm2134, %v7134, -inf
      %7144 = vmax.xlane.f32.xlu0 %v7143
      %v7145 = vpop.xlane.xlu0 %7144
      %v7146 = vsel %vm2134, %v7136, -inf
      %7147 = vmax.xlane.f32.xlu0 %v7146
      %v7148 = vpop.xlane.xlu0 %7147
      %v7149 = vsel %vm2134, %v7139, -inf
      %7150 = vmax.xlane.f32.xlu0 %v7149
      %v7151 = vpop.xlane.xlu0 %7150
      %v7152 = vsel %vm2134, %v7141, -inf
      %7153 = vmax.xlane.f32.xlu0 %v7152
      %v7154 = vpop.xlane.xlu0 %7153
      %v7155 = vsub.f32 %v7134, %v7145
      %v7156 = vsub.f32 %v7136, %v7148
      %v7157 = vsub.f32 %v7139, %v7151
      %v7158 = vsub.f32 %v7141, %v7154
      %v7159 = vmul.f32 %v7155, 1.442695
      %v7160 = vpow.pop %v7159
      %v7161 = vmul.f32 %v7156, 1.442695
      %v7162 = vpow.pop %v7161
      %v7163 = vmul.f32 %v7157, 1.442695
      %v7164 = vpow.pop %v7163
      %v7165 = vmul.f32 %v7158, 1.442695
      %v7166 = vpow.pop %v7165
      %v7167 = vsel %vm2134, %v7160, 0.0
      %7168 = vadd.xlane.f32.xlu0 %v7167
      %v7169 = vpop.xlane.xlu0 %7168
      %v7170 = vsel %vm2134, %v7162, 0.0
      %7171 = vadd.xlane.f32.xlu0 %v7170
      %v7172 = vpop.xlane.xlu0 %7171
      %v7173 = vsel %vm2134, %v7164, 0.0
      %7174 = vadd.xlane.f32.xlu0 %v7173
      %v7175 = vpop.xlane.xlu0 %7174
      %v7176 = vsel %vm2134, %v7166, 0.0
      %7177 = vadd.xlane.f32.xlu0 %v7176
      %v7178 = vpop.xlane.xlu0 %7177
      %v7179 = vrcp.pop %v7169
      %v7180 = vrcp.pop %v7172
      %v7181 = vrcp.pop %v7175
      %v7182 = vrcp.pop %v7178
      %v7183 = vmul.f32 %v7160, %v7179
      %v7184 = vmul.f32 %v7162, %v7180
      %v7185 = vmul.f32 %v7164, %v7181
      %v7186 = vmul.f32 %v7166, %v7182
      %v7187 = vpack.c.bf16 %v7184, %v7183
      %v7188 = vpack.c.bf16 %v7186, %v7185
      %7189 = vrot.lane.b32.xlu0 %v6762, 16
      %v7190 = vpop.permute.xlu0 %7189
      %7191 = vrot.lane.b32.xlu0 %v6763, 16
      %v7192 = vpop.permute.xlu0 %7191
      %v7196 = vsel %vm2134, %v7187, 0
      %v7199 = vsel %vm2134, %v7188, 0
      %7201 = vmatpush.bf16.msra.mxu0 0
      %7202 = vmatpush.bf16.msra.mxu0 0
      %7203 = vmatpush.bf16.msra.mxu0 0
      %7204 = vmatpush.bf16.msra.mxu0 0
      %7205 = vmatpush.bf16.msra.mxu0 0
      %7206 = vmatpush.bf16.msra.mxu0 0
      %7207 = vmatpush.bf16.msra.mxu0 %v7192
      %7208 = vmatpush.bf16.msra.mxu0 %v7190
      %7209 = vmatmul.bf16.gmra.mxu0 %v7196
      %v7210 = vpop.f32.mrf.mxu0
      %v7211 = vadd.f32 0.0, %v7210
      %v7212 = vpop.f32.mrf.mxu0
      %v7213 = vadd.f32 0.0, %v7212
      %7214 = vmatmul.bf16.gmra.mxu0 %v7199
      %v7215 = vpop.f32.mrf.mxu0
      %v7216 = vadd.f32 0.0, %v7215
      %v7217 = vpop.f32.mrf.mxu0
      %v7218 = vadd.f32 0.0, %v7217
      %7219 = vdwg.mxu0
      %7224 = vrot.lane.b32.xlu0 %v6979, 16
      %v7225 = vpop.permute.xlu0 %7224
      %7226 = vrot.lane.b32.xlu0 %v6981, 16
      %v7227 = vpop.permute.xlu0 %7226
      %7228 = vrot.lane.b32.xlu0 %v6984, 16
      %v7229 = vpop.permute.xlu0 %7228
      %7230 = vrot.lane.b32.xlu0 %v6986, 16
      %v7231 = vpop.permute.xlu0 %7230
      %7240 = vrot.lane.b32.xlu0 %v7095, 32
      %v7241 = vpop.permute.xlu0 %7240
      %7242 = vrot.lane.b32.xlu0 %v7097, 32
      %v7243 = vpop.permute.xlu0 %7242
      %7244 = vrot.lane.b32.xlu0 %v7100, 32
      %v7245 = vpop.permute.xlu0 %7244
      %7246 = vrot.lane.b32.xlu0 %v7102, 32
      %v7247 = vpop.permute.xlu0 %7246
      %7256 = vrot.lane.b32.xlu0 %v7211, 48
      %v7257 = vpop.permute.xlu0 %7256
      %7258 = vrot.lane.b32.xlu0 %v7213, 48
      %v7259 = vpop.permute.xlu0 %7258
      %7260 = vrot.lane.b32.xlu0 %v7216, 48
      %v7261 = vpop.permute.xlu0 %7260
      %7262 = vrot.lane.b32.xlu0 %v7218, 48
      %v7263 = vpop.permute.xlu0 %7262
      %v7268 = vsel %vm3522, %v6863, %v7225
      %v7269 = vsel %vm3522, %v6865, %v7227
      %v7270 = vsel %vm3522, %v6868, %v7229
      %v7271 = vsel %vm3522, %v6870, %v7231
      %v7272 = vsel %vm2134, %v7268, %v7241
      %v7273 = vsel %vm2134, %v7269, %v7243
      %v7274 = vsel %vm2134, %v7270, %v7245
      %v7275 = vsel %vm2134, %v7271, %v7247
      %v7276 = vsel %vm4035, %v7272, %v7257
      %v7277 = vsel %vm4035, %v7273, %v7259
      %v7278 = vsel %vm4035, %v7274, %v7261
      %v7279 = vsel %vm4035, %v7275, %v7263
      %v7280 = vpack.c.bf16 %v7277, %v7276
      %v7281 = vpack.c.bf16 %v7279, %v7278
      %v7283 = vperm.slane %v6643, 0
      %v7293 = vunpack.c.l.b16 %v6634
      %v7294 = vunpack.c.l.b16 %v6635
      %v7295 = vunpack.c.l.b16 %v6636
      %v7296 = vunpack.c.l.b16 %v6637
      %v7297 = vunpack.c.l.b16 %v6638
      %v7298 = vunpack.c.l.b16 %v6639
      %v7299 = vunpack.c.l.b16 %v6640
      %v7300 = vunpack.c.l.b16 %v6641
      %v7301 = vpack.c.b16 %v7294, %v7293
      %v7302 = vpack.c.b16 %v7296, %v7295
      %v7303 = vpack.c.b16 %v7298, %v7297
      %v7304 = vpack.c.b16 %v7300, %v7299
      %v7310 = vsel %vm1026, %v7280, 0
      %v7313 = vsel %vm1026, %v7281, 0
      %7315 = vmatpush.bf16.msra.mxu0 0
      %7316 = vmatpush.bf16.msra.mxu0 0
      %7317 = vmatpush.bf16.msra.mxu0 0
      %7318 = vmatpush.bf16.msra.mxu0 0
      %7319 = vmatpush.bf16.msra.mxu0 %v7304
      %7320 = vmatpush.bf16.msra.mxu0 %v7303
      %7321 = vmatpush.bf16.msra.mxu0 %v7302
      %7322 = vmatpush.bf16.msra.mxu0 %v7301
      %7323 = vmatmul.bf16.gmra.mxu0 %v7310
      %v7324 = vpop.f32.mrf.mxu0
      %v7325 = vadd.f32 %v7283, %v7324
      %v7326 = vpop.f32.mrf.mxu0
      %v7327 = vadd.f32 %v7283, %v7326
      %7328 = vmatmul.bf16.gmra.mxu0 %v7313
      %v7329 = vpop.f32.mrf.mxu0
      %v7330 = vadd.f32 %v7283, %v7329
      %v7331 = vpop.f32.mrf.mxu0
      %v7332 = vadd.f32 %v7283, %v7331
      %7333 = vdwg.mxu0
      %v7334 = vadd.f32 %v7325, %v6503
      %v7335 = vadd.f32 %v7327, %v6504
      %v7336 = vadd.f32 %v7330, %v6505
      %v7337 = vadd.f32 %v7332, %v6506
      %s7338 = scalar_lea.vmem %s45, 1
      %v7339 = vld [vmem:[%s7338] sm:$0x1]
      %s7340 = scalar_lea.vmem %s47, 1
      %v7341 = vld [vmem:[%s7340] sm:$0x1]
      %s7342 = scalar_lea.vmem %s49, 128
      %v7343 = vld [vmem:[%s7342] sm:$0xff]
      %v7344 = vld [vmem:[%s7342 + $0x8] sm:$0xff]
      %v7345 = vld [vmem:[%s7342 + $0x10] sm:$0xff]
      %v7346 = vld [vmem:[%s7342 + $0x18] sm:$0xff]
      %v7347 = vld [vmem:[%s7342 + $0x20] sm:$0xff]
      %v7348 = vld [vmem:[%s7342 + $0x28] sm:$0xff]
      %v7349 = vld [vmem:[%s7342 + $0x30] sm:$0xff]
      %v7350 = vld [vmem:[%s7342 + $0x38] sm:$0xff]
      %v7351 = vld [vmem:[%s7342 + $0x40] sm:$0xff]
      %v7352 = vld [vmem:[%s7342 + $0x48] sm:$0xff]
      %v7353 = vld [vmem:[%s7342 + $0x50] sm:$0xff]
      %v7354 = vld [vmem:[%s7342 + $0x58] sm:$0xff]
      %v7355 = vld [vmem:[%s7342 + $0x60] sm:$0xff]
      %v7356 = vld [vmem:[%s7342 + $0x68] sm:$0xff]
      %v7357 = vld [vmem:[%s7342 + $0x70] sm:$0xff]
      %v7358 = vld [vmem:[%s7342 + $0x78] sm:$0xff]
      %s7359 = scalar_lea.vmem %s51, 4
      %v7360 = vld [vmem:[%s7359] sm:$0xf]
      %s7361 = scalar_lea.vmem %s53, 128
      %v7362 = vld [vmem:[%s7361] sm:$0xf]
      %v7363 = vld [vmem:[%s7361 + $0x4] sm:$0xf]
      %v7364 = vld [vmem:[%s7361 + $0x8] sm:$0xf]
      %v7365 = vld [vmem:[%s7361 + $0xc] sm:$0xf]
      %v7366 = vld [vmem:[%s7361 + $0x10] sm:$0xf]
      %v7367 = vld [vmem:[%s7361 + $0x14] sm:$0xf]
      %v7368 = vld [vmem:[%s7361 + $0x18] sm:$0xf]
      %v7369 = vld [vmem:[%s7361 + $0x1c] sm:$0xf]
      %v7370 = vld [vmem:[%s7361 + $0x20] sm:$0xf]
      %v7371 = vld [vmem:[%s7361 + $0x24] sm:$0xf]
      %v7372 = vld [vmem:[%s7361 + $0x28] sm:$0xf]
      %v7373 = vld [vmem:[%s7361 + $0x2c] sm:$0xf]
      %v7374 = vld [vmem:[%s7361 + $0x30] sm:$0xf]
      %v7375 = vld [vmem:[%s7361 + $0x34] sm:$0xf]
      %v7376 = vld [vmem:[%s7361 + $0x38] sm:$0xf]
      %v7377 = vld [vmem:[%s7361 + $0x3c] sm:$0xf]
      %v7378 = vld [vmem:[%s7361 + $0x40] sm:$0xf]
      %v7379 = vld [vmem:[%s7361 + $0x44] sm:$0xf]
      %v7380 = vld [vmem:[%s7361 + $0x48] sm:$0xf]
      %v7381 = vld [vmem:[%s7361 + $0x4c] sm:$0xf]
      %v7382 = vld [vmem:[%s7361 + $0x50] sm:$0xf]
      %v7383 = vld [vmem:[%s7361 + $0x54] sm:$0xf]
      %v7384 = vld [vmem:[%s7361 + $0x58] sm:$0xf]
      %v7385 = vld [vmem:[%s7361 + $0x5c] sm:$0xf]
      %v7386 = vld [vmem:[%s7361 + $0x60] sm:$0xf]
      %v7387 = vld [vmem:[%s7361 + $0x64] sm:$0xf]
      %v7388 = vld [vmem:[%s7361 + $0x68] sm:$0xf]
      %v7389 = vld [vmem:[%s7361 + $0x6c] sm:$0xf]
      %v7390 = vld [vmem:[%s7361 + $0x70] sm:$0xf]
      %v7391 = vld [vmem:[%s7361 + $0x74] sm:$0xf]
      %v7392 = vld [vmem:[%s7361 + $0x78] sm:$0xf]
      %v7393 = vld [vmem:[%s7361 + $0x7c] sm:$0xf]
      %s7394 = scalar_lea.vmem %s55, 1
      %v7395 = vld [vmem:[%s7394] sm:$0x1]
      %v7396 = vsel %vm1026, %v7334, 0.0
      %7397 = vadd.xlane.f32.xlu0 %v7396
      %v7398 = vpop.xlane.xlu0 %7397
      %v7399 = vsel %vm1026, %v7335, 0.0
      %7400 = vadd.xlane.f32.xlu0 %v7399
      %v7401 = vpop.xlane.xlu0 %7400
      %v7402 = vsel %vm1026, %v7336, 0.0
      %7403 = vadd.xlane.f32.xlu0 %v7402
      %v7404 = vpop.xlane.xlu0 %7403
      %v7405 = vsel %vm1026, %v7337, 0.0
      %7406 = vadd.xlane.f32.xlu0 %v7405
      %v7407 = vpop.xlane.xlu0 %7406
      %v7408 = vmul.f32 %v7398, %v1045
      %v7409 = vmul.f32 %v7401, %v1045
      %v7410 = vmul.f32 %v7404, %v1045
      %v7411 = vmul.f32 %v7407, %v1045
      %v7412 = vsub.f32 %v7334, %v7408
      %v7413 = vsub.f32 %v7335, %v7409
      %v7414 = vsub.f32 %v7336, %v7410
      %v7415 = vsub.f32 %v7337, %v7411
      %v7416 = vmul.f32 %v7412, %v7412
      %v7417 = vmul.f32 %v7413, %v7413
      %v7418 = vmul.f32 %v7414, %v7414
      %v7419 = vmul.f32 %v7415, %v7415
      %v7420 = vsel %vm1026, %v7416, 0.0
      %7421 = vadd.xlane.f32.xlu0 %v7420
      %v7422 = vpop.xlane.xlu0 %7421
      %v7423 = vsel %vm1026, %v7417, 0.0
      %7424 = vadd.xlane.f32.xlu0 %v7423
      %v7425 = vpop.xlane.xlu0 %7424
      %v7426 = vsel %vm1026, %v7418, 0.0
      %7427 = vadd.xlane.f32.xlu0 %v7426
      %v7428 = vpop.xlane.xlu0 %7427
      %v7429 = vsel %vm1026, %v7419, 0.0
      %7430 = vadd.xlane.f32.xlu0 %v7429
      %v7431 = vpop.xlane.xlu0 %7430
      %v7432 = vmul.f32 %v7422, %v1045
      %v7433 = vmul.f32 %v7425, %v1045
      %v7434 = vmul.f32 %v7428, %v1045
      %v7435 = vmul.f32 %v7431, %v1045
      %v7436 = vadd.f32 %v7432, 1e-05
      %v7437 = vadd.f32 %v7433, 1e-05
      %v7438 = vadd.f32 %v7434, 1e-05
      %v7439 = vadd.f32 %v7435, 1e-05
      %v7440 = vrsqrt.pop %v7436
      %v7441 = vmul.f32 %v7440, %v7436
      %v7442 = vmul.f32 %v7441, %v7440
      %v7443 = vmul.f32 0.5, %v7442
      %v7444 = vsub.f32 1.5, %v7443
      %v7445 = vmul.f32 %v7440, %v7444
      %vm7446 = vweird.f32 %v7436
      %vm7447 = vweird.f32 %v7440
      %vm7448 = vmor %vm7446, %vm7447
      %v7449 = vsel %vm7448, %v7440, %v7445
      %v7450 = vrsqrt.pop %v7437
      %v7451 = vmul.f32 %v7450, %v7437
      %v7452 = vmul.f32 %v7451, %v7450
      %v7453 = vmul.f32 0.5, %v7452
      %v7454 = vsub.f32 1.5, %v7453
      %v7455 = vmul.f32 %v7450, %v7454
      %vm7456 = vweird.f32 %v7437
      %vm7457 = vweird.f32 %v7450
      %vm7458 = vmor %vm7456, %vm7457
      %v7459 = vsel %vm7458, %v7450, %v7455
      %v7460 = vrsqrt.pop %v7438
      %v7461 = vmul.f32 %v7460, %v7438
      %v7462 = vmul.f32 %v7461, %v7460
      %v7463 = vmul.f32 0.5, %v7462
      %v7464 = vsub.f32 1.5, %v7463
      %v7465 = vmul.f32 %v7460, %v7464
      %vm7466 = vweird.f32 %v7438
      %vm7467 = vweird.f32 %v7460
      %vm7468 = vmor %vm7466, %vm7467
      %v7469 = vsel %vm7468, %v7460, %v7465
      %v7470 = vrsqrt.pop %v7439
      %v7471 = vmul.f32 %v7470, %v7439
      %v7472 = vmul.f32 %v7471, %v7470
      %v7473 = vmul.f32 0.5, %v7472
      %v7474 = vsub.f32 1.5, %v7473
      %v7475 = vmul.f32 %v7470, %v7474
      %vm7476 = vweird.f32 %v7439
      %vm7477 = vweird.f32 %v7470
      %vm7478 = vmor %vm7476, %vm7477
      %v7479 = vsel %vm7478, %v7470, %v7475
      %v7480 = vmul.f32 %v7412, %v7449
      %v7481 = vmul.f32 %v7413, %v7459
      %v7482 = vmul.f32 %v7414, %v7469
      %v7483 = vmul.f32 %v7415, %v7479
      %v7485 = vperm.slane %v7339, 0
      %v7487 = vmul.f32 %v7480, %v7485
      %v7488 = vmul.f32 %v7481, %v7485
      %v7489 = vmul.f32 %v7482, %v7485
      %v7490 = vmul.f32 %v7483, %v7485
      %v7492 = vperm.slane %v7341, 0
      %v7494 = vadd.f32 %v7487, %v7492
      %v7495 = vadd.f32 %v7488, %v7492
      %v7496 = vadd.f32 %v7489, %v7492
      %v7497 = vadd.f32 %v7490, %v7492
      %v7498 = vpack.c.bf16 %v7495, %v7494
      %v7499 = vpack.c.bf16 %v7497, %v7496
      %v7501 = vperm.slane %v7360, 0
      %v7502 = vperm.slane %v7360, 1
      %v7503 = vperm.slane %v7360, 2
      %v7504 = vperm.slane %v7360, 3
      %v7525 = vunpack.c.l.b16 %v7343
      %v7526 = vunpack.c.h.b16 %v7343
      %v7527 = vunpack.c.l.b16 %v7344
      %v7528 = vunpack.c.h.b16 %v7344
      %v7529 = vunpack.c.l.b16 %v7345
      %v7530 = vunpack.c.h.b16 %v7345
      %v7531 = vunpack.c.l.b16 %v7346
      %v7532 = vunpack.c.h.b16 %v7346
      %v7533 = vunpack.c.l.b16 %v7347
      %v7534 = vunpack.c.h.b16 %v7347
      %v7535 = vunpack.c.l.b16 %v7348
      %v7536 = vunpack.c.h.b16 %v7348
      %v7537 = vunpack.c.l.b16 %v7349
      %v7538 = vunpack.c.h.b16 %v7349
      %v7539 = vunpack.c.l.b16 %v7350
      %v7540 = vunpack.c.h.b16 %v7350
      %v7541 = vunpack.c.l.b16 %v7351
      %v7542 = vunpack.c.h.b16 %v7351
      %v7543 = vunpack.c.l.b16 %v7352
      %v7544 = vunpack.c.h.b16 %v7352
      %v7545 = vunpack.c.l.b16 %v7353
      %v7546 = vunpack.c.h.b16 %v7353
      %v7547 = vunpack.c.l.b16 %v7354
      %v7548 = vunpack.c.h.b16 %v7354
      %v7549 = vunpack.c.l.b16 %v7355
      %v7550 = vunpack.c.h.b16 %v7355
      %v7551 = vunpack.c.l.b16 %v7356
      %v7552 = vunpack.c.h.b16 %v7356
      %v7553 = vunpack.c.l.b16 %v7357
      %v7554 = vunpack.c.h.b16 %v7357
      %v7555 = vunpack.c.l.b16 %v7358
      %v7556 = vunpack.c.h.b16 %v7358
      %v7557 = vpack.c.b16 %v7529, %v7525
      %v7558 = vpack.c.b16 %v7530, %v7526
      %v7559 = vpack.c.b16 %v7531, %v7527
      %v7560 = vpack.c.b16 %v7532, %v7528
      %v7561 = vpack.c.b16 %v7537, %v7533
      %v7562 = vpack.c.b16 %v7538, %v7534
      %v7563 = vpack.c.b16 %v7539, %v7535
      %v7564 = vpack.c.b16 %v7540, %v7536
      %v7565 = vpack.c.b16 %v7545, %v7541
      %v7566 = vpack.c.b16 %v7546, %v7542
      %v7567 = vpack.c.b16 %v7547, %v7543
      %v7568 = vpack.c.b16 %v7548, %v7544
      %v7569 = vpack.c.b16 %v7553, %v7549
      %v7570 = vpack.c.b16 %v7554, %v7550
      %v7571 = vpack.c.b16 %v7555, %v7551
      %v7572 = vpack.c.b16 %v7556, %v7552
      %v7590 = vsel %vm1026, %v7498, 0
      %v7593 = vsel %vm1026, %v7499, 0
      %7595 = vmatpush.bf16.msra.mxu0 0
      %7596 = vmatpush.bf16.msra.mxu0 0
      %7597 = vmatpush.bf16.msra.mxu0 0
      %7598 = vmatpush.bf16.msra.mxu0 0
      %7599 = vmatpush.bf16.msra.mxu0 %v7569
      %7600 = vmatpush.bf16.msra.mxu0 %v7565
      %7601 = vmatpush.bf16.msra.mxu0 %v7561
      %7602 = vmatpush.bf16.msra.mxu0 %v7557
      %7603 = vmatmul.bf16.gmra.mxu0 %v7590
      %v7604 = vpop.f32.mrf.mxu0
      %v7605 = vadd.f32 %v7501, %v7604
      %v7606 = vpop.f32.mrf.mxu0
      %v7607 = vadd.f32 %v7501, %v7606
      %7608 = vmatmul.bf16.gmra.mxu0 %v7593
      %v7609 = vpop.f32.mrf.mxu0
      %v7610 = vadd.f32 %v7501, %v7609
      %v7611 = vpop.f32.mrf.mxu0
      %v7612 = vadd.f32 %v7501, %v7611
      %7613 = vdwg.mxu0
      %7614 = vmatpush.bf16.msra.mxu0 0
      %7615 = vmatpush.bf16.msra.mxu0 0
      %7616 = vmatpush.bf16.msra.mxu0 0
      %7617 = vmatpush.bf16.msra.mxu0 0
      %7618 = vmatpush.bf16.msra.mxu0 %v7570
      %7619 = vmatpush.bf16.msra.mxu0 %v7566
      %7620 = vmatpush.bf16.msra.mxu0 %v7562
      %7621 = vmatpush.bf16.msra.mxu0 %v7558
      %7622 = vmatmul.bf16.gmra.mxu0 %v7590
      %v7623 = vpop.f32.mrf.mxu0
      %v7624 = vadd.f32 %v7502, %v7623
      %v7625 = vpop.f32.mrf.mxu0
      %v7626 = vadd.f32 %v7502, %v7625
      %7627 = vmatmul.bf16.gmra.mxu0 %v7593
      %v7628 = vpop.f32.mrf.mxu0
      %v7629 = vadd.f32 %v7502, %v7628
      %v7630 = vpop.f32.mrf.mxu0
      %v7631 = vadd.f32 %v7502, %v7630
      %7632 = vdwg.mxu0
      %7633 = vmatpush.bf16.msra.mxu0 0
      %7634 = vmatpush.bf16.msra.mxu0 0
      %7635 = vmatpush.bf16.msra.mxu0 0
      %7636 = vmatpush.bf16.msra.mxu0 0
      %7637 = vmatpush.bf16.msra.mxu0 %v7571
      %7638 = vmatpush.bf16.msra.mxu0 %v7567
      %7639 = vmatpush.bf16.msra.mxu0 %v7563
      %7640 = vmatpush.bf16.msra.mxu0 %v7559
      %7641 = vmatmul.bf16.gmra.mxu0 %v7590
      %v7642 = vpop.f32.mrf.mxu0
      %v7643 = vadd.f32 %v7503, %v7642
      %v7644 = vpop.f32.mrf.mxu0
      %v7645 = vadd.f32 %v7503, %v7644
      %7646 = vmatmul.bf16.gmra.mxu0 %v7593
      %v7647 = vpop.f32.mrf.mxu0
      %v7648 = vadd.f32 %v7503, %v7647
      %v7649 = vpop.f32.mrf.mxu0
      %v7650 = vadd.f32 %v7503, %v7649
      %7651 = vdwg.mxu0
      %7652 = vmatpush.bf16.msra.mxu0 0
      %7653 = vmatpush.bf16.msra.mxu0 0
      %7654 = vmatpush.bf16.msra.mxu0 0
      %7655 = vmatpush.bf16.msra.mxu0 0
      %7656 = vmatpush.bf16.msra.mxu0 %v7572
      %7657 = vmatpush.bf16.msra.mxu0 %v7568
      %7658 = vmatpush.bf16.msra.mxu0 %v7564
      %7659 = vmatpush.bf16.msra.mxu0 %v7560
      %7660 = vmatmul.bf16.gmra.mxu0 %v7590
      %v7661 = vpop.f32.mrf.mxu0
      %v7662 = vadd.f32 %v7504, %v7661
      %v7663 = vpop.f32.mrf.mxu0
      %v7664 = vadd.f32 %v7504, %v7663
      %7665 = vmatmul.bf16.gmra.mxu0 %v7593
      %v7666 = vpop.f32.mrf.mxu0
      %v7667 = vadd.f32 %v7504, %v7666
      %v7668 = vpop.f32.mrf.mxu0
      %v7669 = vadd.f32 %v7504, %v7668
      %7670 = vdwg.mxu0
      %v7671 = vmul.f32 %v7643, 0.5
      %v7672 = vmul.f32 %v7662, 0.5
      %v7673 = vmul.f32 %v7645, 0.5
      %v7674 = vmul.f32 %v7664, 0.5
      %v7675 = vmul.f32 %v7648, 0.5
      %v7676 = vmul.f32 %v7667, 0.5
      %v7677 = vmul.f32 %v7650, 0.5
      %v7678 = vmul.f32 %v7669, 0.5
      %v7679 = vmul.f32 %v7643, 0.70710677
      %v7680 = vmul.f32 %v7662, 0.70710677
      %v7681 = vmul.f32 %v7645, 0.70710677
      %v7682 = vmul.f32 %v7664, 0.70710677
      %v7683 = vmul.f32 %v7648, 0.70710677
      %v7684 = vmul.f32 %v7667, 0.70710677
      %v7685 = vmul.f32 %v7650, 0.70710677
      %v7686 = vmul.f32 %v7669, 0.70710677
      %v7687 = vmul.f32 %v7679, %v7679
      %v7688 = vmin.f32 16.0, %v7687
      %v7689 = vmul.f32 %v7688, 2.1237322e-06
      %v7690 = vadd.f32 %v7689, 0.00028619796
      %v7691 = vmul.f32 %v7688, %v7690
      %v7692 = vadd.f32 %v7691, 0.0036580483
      %v7693 = vmul.f32 %v7688, %v7692
      %v7694 = vadd.f32 %v7693, 0.05243302
      %v7695 = vmul.f32 %v7688, %v7694
      %v7696 = vadd.f32 %v7695, 0.18741608
      %v7697 = vmul.f32 %v7688, %v7696
      %v7698 = vadd.f32 %v7697, 1.1283791
      %v7699 = vmul.f32 %v7679, %v7698
      %v7700 = vmul.f32 %v7688, 3.8918573e-05
      %v7701 = vadd.f32 %v7700, 0.001143296
      %v7702 = vmul.f32 %v7688, %v7701
      %v7703 = vadd.f32 %v7702, 0.014752088
      %v7704 = vmul.f32 %v7688, %v7703
      %v7705 = vadd.f32 %v7704, 0.112945676
      %v7706 = vmul.f32 %v7688, %v7705
      %v7707 = vadd.f32 %v7706, 0.4994258
      %v7708 = vmul.f32 %v7688, %v7707
      %v7709 = vadd.f32 %v7708, 1.0
      %v7710 = vrcp.pop %v7709
      %v7711 = vmul.f32 %v7709, %v7710
      %v7712 = vsub.f32 1.0, %v7711
      %v7713 = vmul.f32 %v7710, %v7712
      %v7714 = vadd.f32 %v7710, %v7713
      %vm7715 = vweird.f32 %v7709
      %vm7716 = vweird.f32 %v7710
      %vm7717 = vmor %vm7715, %vm7716
      %v7718 = vsel %vm7717, %v7710, %v7714
      %v7719 = vand.u32 2147483647, %v7709
      %vm7720 = vcmp.eq.f32.partialorder %v7719, 8.507059e+37
      %v7721 = vand.u32 %v7709, 2147483648
      %v7722 = vor.u32 1.1754944e-38, %v7721
      %v7723 = vsel %vm7720, %v7722, %v7718
      %v7724 = vmul.f32 %v7699, %v7723
      %v7725 = vmin.f32 %v7724, 1.0
      %v7726 = vmax.f32 %v7725, -1.0
      %v7727 = vmul.f32 %v7680, %v7680
      %v7728 = vmin.f32 16.0, %v7727
      %v7729 = vmul.f32 %v7728, 2.1237322e-06
      %v7730 = vadd.f32 %v7729, 0.00028619796
      %v7731 = vmul.f32 %v7728, %v7730
      %v7732 = vadd.f32 %v7731, 0.0036580483
      %v7733 = vmul.f32 %v7728, %v7732
      %v7734 = vadd.f32 %v7733, 0.05243302
      %v7735 = vmul.f32 %v7728, %v7734
      %v7736 = vadd.f32 %v7735, 0.18741608
      %v7737 = vmul.f32 %v7728, %v7736
      %v7738 = vadd.f32 %v7737, 1.1283791
      %v7739 = vmul.f32 %v7680, %v7738
      %v7740 = vmul.f32 %v7728, 3.8918573e-05
      %v7741 = vadd.f32 %v7740, 0.001143296
      %v7742 = vmul.f32 %v7728, %v7741
      %v7743 = vadd.f32 %v7742, 0.014752088
      %v7744 = vmul.f32 %v7728, %v7743
      %v7745 = vadd.f32 %v7744, 0.112945676
      %v7746 = vmul.f32 %v7728, %v7745
      %v7747 = vadd.f32 %v7746, 0.4994258
      %v7748 = vmul.f32 %v7728, %v7747
      %v7749 = vadd.f32 %v7748, 1.0
      %v7750 = vrcp.pop %v7749
      %v7751 = vmul.f32 %v7749, %v7750
      %v7752 = vsub.f32 1.0, %v7751
      %v7753 = vmul.f32 %v7750, %v7752
      %v7754 = vadd.f32 %v7750, %v7753
      %vm7755 = vweird.f32 %v7749
      %vm7756 = vweird.f32 %v7750
      %vm7757 = vmor %vm7755, %vm7756
      %v7758 = vsel %vm7757, %v7750, %v7754
      %v7759 = vand.u32 2147483647, %v7749
      %vm7760 = vcmp.eq.f32.partialorder %v7759, 8.507059e+37
      %v7761 = vand.u32 %v7749, 2147483648
      %v7762 = vor.u32 1.1754944e-38, %v7761
      %v7763 = vsel %vm7760, %v7762, %v7758
      %v7764 = vmul.f32 %v7739, %v7763
      %v7765 = vmin.f32 %v7764, 1.0
      %v7766 = vmax.f32 %v7765, -1.0
      %v7767 = vmul.f32 %v7681, %v7681
      %v7768 = vmin.f32 16.0, %v7767
      %v7769 = vmul.f32 %v7768, 2.1237322e-06
      %v7770 = vadd.f32 %v7769, 0.00028619796
      %v7771 = vmul.f32 %v7768, %v7770
      %v7772 = vadd.f32 %v7771, 0.0036580483
      %v7773 = vmul.f32 %v7768, %v7772
      %v7774 = vadd.f32 %v7773, 0.05243302
      %v7775 = vmul.f32 %v7768, %v7774
      %v7776 = vadd.f32 %v7775, 0.18741608
      %v7777 = vmul.f32 %v7768, %v7776
      %v7778 = vadd.f32 %v7777, 1.1283791
      %v7779 = vmul.f32 %v7681, %v7778
      %v7780 = vmul.f32 %v7768, 3.8918573e-05
      %v7781 = vadd.f32 %v7780, 0.001143296
      %v7782 = vmul.f32 %v7768, %v7781
      %v7783 = vadd.f32 %v7782, 0.014752088
      %v7784 = vmul.f32 %v7768, %v7783
      %v7785 = vadd.f32 %v7784, 0.112945676
      %v7786 = vmul.f32 %v7768, %v7785
      %v7787 = vadd.f32 %v7786, 0.4994258
      %v7788 = vmul.f32 %v7768, %v7787
      %v7789 = vadd.f32 %v7788, 1.0
      %v7790 = vrcp.pop %v7789
      %v7791 = vmul.f32 %v7789, %v7790
      %v7792 = vsub.f32 1.0, %v7791
      %v7793 = vmul.f32 %v7790, %v7792
      %v7794 = vadd.f32 %v7790, %v7793
      %vm7795 = vweird.f32 %v7789
      %vm7796 = vweird.f32 %v7790
      %vm7797 = vmor %vm7795, %vm7796
      %v7798 = vsel %vm7797, %v7790, %v7794
      %v7799 = vand.u32 2147483647, %v7789
      %vm7800 = vcmp.eq.f32.partialorder %v7799, 8.507059e+37
      %v7801 = vand.u32 %v7789, 2147483648
      %v7802 = vor.u32 1.1754944e-38, %v7801
      %v7803 = vsel %vm7800, %v7802, %v7798
      %v7804 = vmul.f32 %v7779, %v7803
      %v7805 = vmin.f32 %v7804, 1.0
      %v7806 = vmax.f32 %v7805, -1.0
      %v7807 = vmul.f32 %v7682, %v7682
      %v7808 = vmin.f32 16.0, %v7807
      %v7809 = vmul.f32 %v7808, 2.1237322e-06
      %v7810 = vadd.f32 %v7809, 0.00028619796
      %v7811 = vmul.f32 %v7808, %v7810
      %v7812 = vadd.f32 %v7811, 0.0036580483
      %v7813 = vmul.f32 %v7808, %v7812
      %v7814 = vadd.f32 %v7813, 0.05243302
      %v7815 = vmul.f32 %v7808, %v7814
      %v7816 = vadd.f32 %v7815, 0.18741608
      %v7817 = vmul.f32 %v7808, %v7816
      %v7818 = vadd.f32 %v7817, 1.1283791
      %v7819 = vmul.f32 %v7682, %v7818
      %v7820 = vmul.f32 %v7808, 3.8918573e-05
      %v7821 = vadd.f32 %v7820, 0.001143296
      %v7822 = vmul.f32 %v7808, %v7821
      %v7823 = vadd.f32 %v7822, 0.014752088
      %v7824 = vmul.f32 %v7808, %v7823
      %v7825 = vadd.f32 %v7824, 0.112945676
      %v7826 = vmul.f32 %v7808, %v7825
      %v7827 = vadd.f32 %v7826, 0.4994258
      %v7828 = vmul.f32 %v7808, %v7827
      %v7829 = vadd.f32 %v7828, 1.0
      %v7830 = vrcp.pop %v7829
      %v7831 = vmul.f32 %v7829, %v7830
      %v7832 = vsub.f32 1.0, %v7831
      %v7833 = vmul.f32 %v7830, %v7832
      %v7834 = vadd.f32 %v7830, %v7833
      %vm7835 = vweird.f32 %v7829
      %vm7836 = vweird.f32 %v7830
      %vm7837 = vmor %vm7835, %vm7836
      %v7838 = vsel %vm7837, %v7830, %v7834
      %v7839 = vand.u32 2147483647, %v7829
      %vm7840 = vcmp.eq.f32.partialorder %v7839, 8.507059e+37
      %v7841 = vand.u32 %v7829, 2147483648
      %v7842 = vor.u32 1.1754944e-38, %v7841
      %v7843 = vsel %vm7840, %v7842, %v7838
      %v7844 = vmul.f32 %v7819, %v7843
      %v7845 = vmin.f32 %v7844, 1.0
      %v7846 = vmax.f32 %v7845, -1.0
      %v7847 = vmul.f32 %v7683, %v7683
      %v7848 = vmin.f32 16.0, %v7847
      %v7849 = vmul.f32 %v7848, 2.1237322e-06
      %v7850 = vadd.f32 %v7849, 0.00028619796
      %v7851 = vmul.f32 %v7848, %v7850
      %v7852 = vadd.f32 %v7851, 0.0036580483
      %v7853 = vmul.f32 %v7848, %v7852
      %v7854 = vadd.f32 %v7853, 0.05243302
      %v7855 = vmul.f32 %v7848, %v7854
      %v7856 = vadd.f32 %v7855, 0.18741608
      %v7857 = vmul.f32 %v7848, %v7856
      %v7858 = vadd.f32 %v7857, 1.1283791
      %v7859 = vmul.f32 %v7683, %v7858
      %v7860 = vmul.f32 %v7848, 3.8918573e-05
      %v7861 = vadd.f32 %v7860, 0.001143296
      %v7862 = vmul.f32 %v7848, %v7861
      %v7863 = vadd.f32 %v7862, 0.014752088
      %v7864 = vmul.f32 %v7848, %v7863
      %v7865 = vadd.f32 %v7864, 0.112945676
      %v7866 = vmul.f32 %v7848, %v7865
      %v7867 = vadd.f32 %v7866, 0.4994258
      %v7868 = vmul.f32 %v7848, %v7867
      %v7869 = vadd.f32 %v7868, 1.0
      %v7870 = vrcp.pop %v7869
      %v7871 = vmul.f32 %v7869, %v7870
      %v7872 = vsub.f32 1.0, %v7871
      %v7873 = vmul.f32 %v7870, %v7872
      %v7874 = vadd.f32 %v7870, %v7873
      %vm7875 = vweird.f32 %v7869
      %vm7876 = vweird.f32 %v7870
      %vm7877 = vmor %vm7875, %vm7876
      %v7878 = vsel %vm7877, %v7870, %v7874
      %v7879 = vand.u32 2147483647, %v7869
      %vm7880 = vcmp.eq.f32.partialorder %v7879, 8.507059e+37
      %v7881 = vand.u32 %v7869, 2147483648
      %v7882 = vor.u32 1.1754944e-38, %v7881
      %v7883 = vsel %vm7880, %v7882, %v7878
      %v7884 = vmul.f32 %v7859, %v7883
      %v7885 = vmin.f32 %v7884, 1.0
      %v7886 = vmax.f32 %v7885, -1.0
      %v7887 = vmul.f32 %v7684, %v7684
      %v7888 = vmin.f32 16.0, %v7887
      %v7889 = vmul.f32 %v7888, 2.1237322e-06
      %v7890 = vadd.f32 %v7889, 0.00028619796
      %v7891 = vmul.f32 %v7888, %v7890
      %v7892 = vadd.f32 %v7891, 0.0036580483
      %v7893 = vmul.f32 %v7888, %v7892
      %v7894 = vadd.f32 %v7893, 0.05243302
      %v7895 = vmul.f32 %v7888, %v7894
      %v7896 = vadd.f32 %v7895, 0.18741608
      %v7897 = vmul.f32 %v7888, %v7896
      %v7898 = vadd.f32 %v7897, 1.1283791
      %v7899 = vmul.f32 %v7684, %v7898
      %v7900 = vmul.f32 %v7888, 3.8918573e-05
      %v7901 = vadd.f32 %v7900, 0.001143296
      %v7902 = vmul.f32 %v7888, %v7901
      %v7903 = vadd.f32 %v7902, 0.014752088
      %v7904 = vmul.f32 %v7888, %v7903
      %v7905 = vadd.f32 %v7904, 0.112945676
      %v7906 = vmul.f32 %v7888, %v7905
      %v7907 = vadd.f32 %v7906, 0.4994258
      %v7908 = vmul.f32 %v7888, %v7907
      %v7909 = vadd.f32 %v7908, 1.0
      %v7910 = vrcp.pop %v7909
      %v7911 = vmul.f32 %v7909, %v7910
      %v7912 = vsub.f32 1.0, %v7911
      %v7913 = vmul.f32 %v7910, %v7912
      %v7914 = vadd.f32 %v7910, %v7913
      %vm7915 = vweird.f32 %v7909
      %vm7916 = vweird.f32 %v7910
      %vm7917 = vmor %vm7915, %vm7916
      %v7918 = vsel %vm7917, %v7910, %v7914
      %v7919 = vand.u32 2147483647, %v7909
      %vm7920 = vcmp.eq.f32.partialorder %v7919, 8.507059e+37
      %v7921 = vand.u32 %v7909, 2147483648
      %v7922 = vor.u32 1.1754944e-38, %v7921
      %v7923 = vsel %vm7920, %v7922, %v7918
      %v7924 = vmul.f32 %v7899, %v7923
      %v7925 = vmin.f32 %v7924, 1.0
      %v7926 = vmax.f32 %v7925, -1.0
      %v7927 = vmul.f32 %v7685, %v7685
      %v7928 = vmin.f32 16.0, %v7927
      %v7929 = vmul.f32 %v7928, 2.1237322e-06
      %v7930 = vadd.f32 %v7929, 0.00028619796
      %v7931 = vmul.f32 %v7928, %v7930
      %v7932 = vadd.f32 %v7931, 0.0036580483
      %v7933 = vmul.f32 %v7928, %v7932
      %v7934 = vadd.f32 %v7933, 0.05243302
      %v7935 = vmul.f32 %v7928, %v7934
      %v7936 = vadd.f32 %v7935, 0.18741608
      %v7937 = vmul.f32 %v7928, %v7936
      %v7938 = vadd.f32 %v7937, 1.1283791
      %v7939 = vmul.f32 %v7685, %v7938
      %v7940 = vmul.f32 %v7928, 3.8918573e-05
      %v7941 = vadd.f32 %v7940, 0.001143296
      %v7942 = vmul.f32 %v7928, %v7941
      %v7943 = vadd.f32 %v7942, 0.014752088
      %v7944 = vmul.f32 %v7928, %v7943
      %v7945 = vadd.f32 %v7944, 0.112945676
      %v7946 = vmul.f32 %v7928, %v7945
      %v7947 = vadd.f32 %v7946, 0.4994258
      %v7948 = vmul.f32 %v7928, %v7947
      %v7949 = vadd.f32 %v7948, 1.0
      %v7950 = vrcp.pop %v7949
      %v7951 = vmul.f32 %v7949, %v7950
      %v7952 = vsub.f32 1.0, %v7951
      %v7953 = vmul.f32 %v7950, %v7952
      %v7954 = vadd.f32 %v7950, %v7953
      %vm7955 = vweird.f32 %v7949
      %vm7956 = vweird.f32 %v7950
      %vm7957 = vmor %vm7955, %vm7956
      %v7958 = vsel %vm7957, %v7950, %v7954
      %v7959 = vand.u32 2147483647, %v7949
      %vm7960 = vcmp.eq.f32.partialorder %v7959, 8.507059e+37
      %v7961 = vand.u32 %v7949, 2147483648
      %v7962 = vor.u32 1.1754944e-38, %v7961
      %v7963 = vsel %vm7960, %v7962, %v7958
      %v7964 = vmul.f32 %v7939, %v7963
      %v7965 = vmin.f32 %v7964, 1.0
      %v7966 = vmax.f32 %v7965, -1.0
      %v7967 = vmul.f32 %v7686, %v7686
      %v7968 = vmin.f32 16.0, %v7967
      %v7969 = vmul.f32 %v7968, 2.1237322e-06
      %v7970 = vadd.f32 %v7969, 0.00028619796
      %v7971 = vmul.f32 %v7968, %v7970
      %v7972 = vadd.f32 %v7971, 0.0036580483
      %v7973 = vmul.f32 %v7968, %v7972
      %v7974 = vadd.f32 %v7973, 0.05243302
      %v7975 = vmul.f32 %v7968, %v7974
      %v7976 = vadd.f32 %v7975, 0.18741608
      %v7977 = vmul.f32 %v7968, %v7976
      %v7978 = vadd.f32 %v7977, 1.1283791
      %v7979 = vmul.f32 %v7686, %v7978
      %v7980 = vmul.f32 %v7968, 3.8918573e-05
      %v7981 = vadd.f32 %v7980, 0.001143296
      %v7982 = vmul.f32 %v7968, %v7981
      %v7983 = vadd.f32 %v7982, 0.014752088
      %v7984 = vmul.f32 %v7968, %v7983
      %v7985 = vadd.f32 %v7984, 0.112945676
      %v7986 = vmul.f32 %v7968, %v7985
      %v7987 = vadd.f32 %v7986, 0.4994258
      %v7988 = vmul.f32 %v7968, %v7987
      %v7989 = vadd.f32 %v7988, 1.0
      %v7990 = vrcp.pop %v7989
      %v7991 = vmul.f32 %v7989, %v7990
      %v7992 = vsub.f32 1.0, %v7991
      %v7993 = vmul.f32 %v7990, %v7992
      %v7994 = vadd.f32 %v7990, %v7993
      %vm7995 = vweird.f32 %v7989
      %vm7996 = vweird.f32 %v7990
      %vm7997 = vmor %vm7995, %vm7996
      %v7998 = vsel %vm7997, %v7990, %v7994
      %v7999 = vand.u32 2147483647, %v7989
      %vm8000 = vcmp.eq.f32.partialorder %v7999, 8.507059e+37
      %v8001 = vand.u32 %v7989, 2147483648
      %v8002 = vor.u32 1.1754944e-38, %v8001
      %v8003 = vsel %vm8000, %v8002, %v7998
      %v8004 = vmul.f32 %v7979, %v8003
      %v8005 = vmin.f32 %v8004, 1.0
      %v8006 = vmax.f32 %v8005, -1.0
      %v8007 = vadd.f32 %v7726, 1.0
      %v8008 = vadd.f32 %v7766, 1.0
      %v8009 = vadd.f32 %v7806, 1.0
      %v8010 = vadd.f32 %v7846, 1.0
      %v8011 = vadd.f32 %v7886, 1.0
      %v8012 = vadd.f32 %v7926, 1.0
      %v8013 = vadd.f32 %v7966, 1.0
      %v8014 = vadd.f32 %v8006, 1.0
      %v8015 = vmul.f32 %v7671, %v8007
      %v8016 = vmul.f32 %v7672, %v8008
      %v8017 = vmul.f32 %v7673, %v8009
      %v8018 = vmul.f32 %v7674, %v8010
      %v8019 = vmul.f32 %v7675, %v8011
      %v8020 = vmul.f32 %v7676, %v8012
      %v8021 = vmul.f32 %v7677, %v8013
      %v8022 = vmul.f32 %v7678, %v8014
      %v8023 = vmul.f32 %v7605, %v8015
      %v8024 = vmul.f32 %v7624, %v8016
      %v8025 = vmul.f32 %v7607, %v8017
      %v8026 = vmul.f32 %v7626, %v8018
      %v8027 = vmul.f32 %v7610, %v8019
      %v8028 = vmul.f32 %v7629, %v8020
      %v8029 = vmul.f32 %v7612, %v8021
      %v8030 = vmul.f32 %v7631, %v8022
      %v8031 = vpack.c.bf16 %v8025, %v8023
      %v8032 = vpack.c.bf16 %v8026, %v8024
      %v8033 = vpack.c.bf16 %v8029, %v8027
      %v8034 = vpack.c.bf16 %v8030, %v8028
      %v8036 = vperm.slane %v7395, 0
      %v8070 = vunpack.c.l.b16 %v7362
      %v8071 = vunpack.c.l.b16 %v7363
      %v8072 = vunpack.c.l.b16 %v7364
      %v8073 = vunpack.c.l.b16 %v7365
      %v8074 = vunpack.c.l.b16 %v7366
      %v8075 = vunpack.c.l.b16 %v7367
      %v8076 = vunpack.c.l.b16 %v7368
      %v8077 = vunpack.c.l.b16 %v7369
      %v8078 = vunpack.c.l.b16 %v7370
      %v8079 = vunpack.c.l.b16 %v7371
      %v8080 = vunpack.c.l.b16 %v7372
      %v8081 = vunpack.c.l.b16 %v7373
      %v8082 = vunpack.c.l.b16 %v7374
      %v8083 = vunpack.c.l.b16 %v7375
      %v8084 = vunpack.c.l.b16 %v7376
      %v8085 = vunpack.c.l.b16 %v7377
      %v8086 = vunpack.c.l.b16 %v7378
      %v8087 = vunpack.c.l.b16 %v7379
      %v8088 = vunpack.c.l.b16 %v7380
      %v8089 = vunpack.c.l.b16 %v7381
      %v8090 = vunpack.c.l.b16 %v7382
      %v8091 = vunpack.c.l.b16 %v7383
      %v8092 = vunpack.c.l.b16 %v7384
      %v8093 = vunpack.c.l.b16 %v7385
      %v8094 = vunpack.c.l.b16 %v7386
      %v8095 = vunpack.c.l.b16 %v7387
      %v8096 = vunpack.c.l.b16 %v7388
      %v8097 = vunpack.c.l.b16 %v7389
      %v8098 = vunpack.c.l.b16 %v7390
      %v8099 = vunpack.c.l.b16 %v7391
      %v8100 = vunpack.c.l.b16 %v7392
      %v8101 = vunpack.c.l.b16 %v7393
      %v8102 = vpack.c.b16 %v8071, %v8070
      %v8103 = vpack.c.b16 %v8073, %v8072
      %v8104 = vpack.c.b16 %v8075, %v8074
      %v8105 = vpack.c.b16 %v8077, %v8076
      %v8106 = vpack.c.b16 %v8079, %v8078
      %v8107 = vpack.c.b16 %v8081, %v8080
      %v8108 = vpack.c.b16 %v8083, %v8082
      %v8109 = vpack.c.b16 %v8085, %v8084
      %v8110 = vpack.c.b16 %v8087, %v8086
      %v8111 = vpack.c.b16 %v8089, %v8088
      %v8112 = vpack.c.b16 %v8091, %v8090
      %v8113 = vpack.c.b16 %v8093, %v8092
      %v8114 = vpack.c.b16 %v8095, %v8094
      %v8115 = vpack.c.b16 %v8097, %v8096
      %v8116 = vpack.c.b16 %v8099, %v8098
      %v8117 = vpack.c.b16 %v8101, %v8100
      %8134 = vmatpush.bf16.msra.mxu0 %v8109
      %8135 = vmatpush.bf16.msra.mxu0 %v8108
      %8136 = vmatpush.bf16.msra.mxu0 %v8107
      %8137 = vmatpush.bf16.msra.mxu0 %v8106
      %8138 = vmatpush.bf16.msra.mxu0 %v8105
      %8139 = vmatpush.bf16.msra.mxu0 %v8104
      %8140 = vmatpush.bf16.msra.mxu0 %v8103
      %8141 = vmatpush.bf16.msra.mxu0 %v8102
      %8142 = vmatmul.bf16.gmra.mxu0 %v8031
      %v8143 = vpop.f32.mrf.mxu0
      %v8144 = vadd.f32 %v8036, %v8143
      %v8145 = vpop.f32.mrf.mxu0
      %v8146 = vadd.f32 %v8036, %v8145
      %8147 = vmatmul.bf16.gmra.mxu0 %v8033
      %v8148 = vpop.f32.mrf.mxu0
      %v8149 = vadd.f32 %v8036, %v8148
      %v8150 = vpop.f32.mrf.mxu0
      %v8151 = vadd.f32 %v8036, %v8150
      %8152 = vdwg.mxu0
      %8153 = vmatpush.bf16.msra.mxu0 %v8117
      %8154 = vmatpush.bf16.msra.mxu0 %v8116
      %8155 = vmatpush.bf16.msra.mxu0 %v8115
      %8156 = vmatpush.bf16.msra.mxu0 %v8114
      %8157 = vmatpush.bf16.msra.mxu0 %v8113
      %8158 = vmatpush.bf16.msra.mxu0 %v8112
      %8159 = vmatpush.bf16.msra.mxu0 %v8111
      %8160 = vmatpush.bf16.msra.mxu0 %v8110
      %8161 = vmatmul.bf16.gmra.mxu0 %v8032
      %v8162 = vpop.f32.mrf.mxu0
      %v8163 = vadd.f32 %v8144, %v8162
      %v8164 = vpop.f32.mrf.mxu0
      %v8165 = vadd.f32 %v8146, %v8164
      %8166 = vmatmul.bf16.gmra.mxu0 %v8034
      %v8167 = vpop.f32.mrf.mxu0
      %v8168 = vadd.f32 %v8149, %v8167
      %v8169 = vpop.f32.mrf.mxu0
      %v8170 = vadd.f32 %v8151, %v8169
      %8171 = vdwg.mxu0
      %v8172 = vadd.f32 %v8163, %v7334
      %v8173 = vadd.f32 %v8165, %v7335
      %v8174 = vadd.f32 %v8168, %v7336
      %v8175 = vadd.f32 %v8170, %v7337
      %v8176 = vld [vmem:[%s57] sm:$0x1]
      %v8177 = vld [vmem:[%s59] sm:$0x1]
      %v8178 = vsel %vm1026, %v8172, 0.0
      %8179 = vadd.xlane.f32.xlu0 %v8178
      %v8180 = vpop.xlane.xlu0 %8179
      %v8181 = vsel %vm1026, %v8173, 0.0
      %8182 = vadd.xlane.f32.xlu0 %v8181
      %v8183 = vpop.xlane.xlu0 %8182
      %v8184 = vsel %vm1026, %v8174, 0.0
      %8185 = vadd.xlane.f32.xlu0 %v8184
      %v8186 = vpop.xlane.xlu0 %8185
      %v8187 = vsel %vm1026, %v8175, 0.0
      %8188 = vadd.xlane.f32.xlu0 %v8187
      %v8189 = vpop.xlane.xlu0 %8188
      %v8190 = vmul.f32 %v8180, %v1045
      %v8191 = vmul.f32 %v8183, %v1045
      %v8192 = vmul.f32 %v8186, %v1045
      %v8193 = vmul.f32 %v8189, %v1045
      %v8194 = vsub.f32 %v8172, %v8190
      %v8195 = vsub.f32 %v8173, %v8191
      %v8196 = vsub.f32 %v8174, %v8192
      %v8197 = vsub.f32 %v8175, %v8193
      %v8198 = vmul.f32 %v8194, %v8194
      %v8199 = vmul.f32 %v8195, %v8195
      %v8200 = vmul.f32 %v8196, %v8196
      %v8201 = vmul.f32 %v8197, %v8197
      %v8202 = vsel %vm1026, %v8198, 0.0
      %8203 = vadd.xlane.f32.xlu0 %v8202
      %v8204 = vpop.xlane.xlu0 %8203
      %v8205 = vsel %vm1026, %v8199, 0.0
      %8206 = vadd.xlane.f32.xlu0 %v8205
      %v8207 = vpop.xlane.xlu0 %8206
      %v8208 = vsel %vm1026, %v8200, 0.0
      %8209 = vadd.xlane.f32.xlu0 %v8208
      %v8210 = vpop.xlane.xlu0 %8209
      %v8211 = vsel %vm1026, %v8201, 0.0
      %8212 = vadd.xlane.f32.xlu0 %v8211
      %v8213 = vpop.xlane.xlu0 %8212
      %v8214 = vmul.f32 %v8204, %v1045
      %v8215 = vmul.f32 %v8207, %v1045
      %v8216 = vmul.f32 %v8210, %v1045
      %v8217 = vmul.f32 %v8213, %v1045
      %v8218 = vadd.f32 %v8214, 1e-05
      %v8219 = vadd.f32 %v8215, 1e-05
      %v8220 = vadd.f32 %v8216, 1e-05
      %v8221 = vadd.f32 %v8217, 1e-05
      %v8222 = vrsqrt.pop %v8218
      %v8223 = vmul.f32 %v8222, %v8218
      %v8224 = vmul.f32 %v8223, %v8222
      %v8225 = vmul.f32 0.5, %v8224
      %v8226 = vsub.f32 1.5, %v8225
      %v8227 = vmul.f32 %v8222, %v8226
      %vm8228 = vweird.f32 %v8218
      %vm8229 = vweird.f32 %v8222
      %vm8230 = vmor %vm8228, %vm8229
      %v8231 = vsel %vm8230, %v8222, %v8227
      %v8232 = vrsqrt.pop %v8219
      %v8233 = vmul.f32 %v8232, %v8219
      %v8234 = vmul.f32 %v8233, %v8232
      %v8235 = vmul.f32 0.5, %v8234
      %v8236 = vsub.f32 1.5, %v8235
      %v8237 = vmul.f32 %v8232, %v8236
      %vm8238 = vweird.f32 %v8219
      %vm8239 = vweird.f32 %v8232
      %vm8240 = vmor %vm8238, %vm8239
      %v8241 = vsel %vm8240, %v8232, %v8237
      %v8242 = vrsqrt.pop %v8220
      %v8243 = vmul.f32 %v8242, %v8220
      %v8244 = vmul.f32 %v8243, %v8242
      %v8245 = vmul.f32 0.5, %v8244
      %v8246 = vsub.f32 1.5, %v8245
      %v8247 = vmul.f32 %v8242, %v8246
      %vm8248 = vweird.f32 %v8220
      %vm8249 = vweird.f32 %v8242
      %vm8250 = vmor %vm8248, %vm8249
      %v8251 = vsel %vm8250, %v8242, %v8247
      %v8252 = vrsqrt.pop %v8221
      %v8253 = vmul.f32 %v8252, %v8221
      %v8254 = vmul.f32 %v8253, %v8252
      %v8255 = vmul.f32 0.5, %v8254
      %v8256 = vsub.f32 1.5, %v8255
      %v8257 = vmul.f32 %v8252, %v8256
      %vm8258 = vweird.f32 %v8221
      %vm8259 = vweird.f32 %v8252
      %vm8260 = vmor %vm8258, %vm8259
      %v8261 = vsel %vm8260, %v8252, %v8257
      %v8262 = vmul.f32 %v8194, %v8231
      %v8263 = vmul.f32 %v8195, %v8241
      %v8264 = vmul.f32 %v8196, %v8251
      %v8265 = vmul.f32 %v8197, %v8261
      %v8267 = vperm.slane %v8176, 0
      %v8269 = vmul.f32 %v8262, %v8267
      %v8270 = vmul.f32 %v8263, %v8267
      %v8271 = vmul.f32 %v8264, %v8267
      %v8272 = vmul.f32 %v8265, %v8267
      %v8274 = vperm.slane %v8177, 0
      %v8276 = vadd.f32 %v8269, %v8274
      %v8277 = vadd.f32 %v8270, %v8274
      %v8278 = vadd.f32 %v8271, %v8274
      %v8279 = vadd.f32 %v8272, %v8274
      %v8280 = vpack.c.bf16 %v8277, %v8276
      %v8281 = vpack.c.bf16 %v8279, %v8278
      %v8282 = vld [vmem:[%s61] sm:$0xf]
      %v8283 = vld [vmem:[%s61 + $0x4] sm:$0xf]
      %v8284 = vld [vmem:[%s61 + $0x8] sm:$0xf]
      %v8285 = vld [vmem:[%s61 + $0xc] sm:$0xf]
      %v8286 = vld [vmem:[%s61 + $0x10] sm:$0xf]
      %v8287 = vld [vmem:[%s61 + $0x14] sm:$0xf]
      %v8288 = vld [vmem:[%s61 + $0x18] sm:$0xf]
      %v8289 = vld [vmem:[%s61 + $0x1c] sm:$0xf]
      %v8290 = vld [vmem:[%s63] sm:$0x1]
      %v8292 = vperm.slane %v8290, 0
      %v8302 = vunpack.c.l.b16 %v8282
      %v8303 = vunpack.c.l.b16 %v8283
      %v8304 = vunpack.c.l.b16 %v8284
      %v8305 = vunpack.c.l.b16 %v8285
      %v8306 = vunpack.c.l.b16 %v8286
      %v8307 = vunpack.c.l.b16 %v8287
      %v8308 = vunpack.c.l.b16 %v8288
      %v8309 = vunpack.c.l.b16 %v8289
      %v8310 = vpack.c.b16 %v8303, %v8302
      %v8311 = vpack.c.b16 %v8305, %v8304
      %v8312 = vpack.c.b16 %v8307, %v8306
      %v8313 = vpack.c.b16 %v8309, %v8308
      %v8319 = vsel %vm1026, %v8280, 0
      %v8322 = vsel %vm1026, %v8281, 0
      %8324 = vmatpush.bf16.msra.mxu0 0
      %8325 = vmatpush.bf16.msra.mxu0 0
      %8326 = vmatpush.bf16.msra.mxu0 0
      %8327 = vmatpush.bf16.msra.mxu0 0
      %8328 = vmatpush.bf16.msra.mxu0 %v8313
      %8329 = vmatpush.bf16.msra.mxu0 %v8312
      %8330 = vmatpush.bf16.msra.mxu0 %v8311
      %8331 = vmatpush.bf16.msra.mxu0 %v8310
      %8332 = vmatmul.bf16.gmra.mxu0 %v8319
      %v8333 = vpop.f32.mrf.mxu0
      %v8334 = vadd.f32 %v8292, %v8333
      %v8335 = vpop.f32.mrf.mxu0
      %v8336 = vadd.f32 %v8292, %v8335
      %8337 = vmatmul.bf16.gmra.mxu0 %v8322
      %v8338 = vpop.f32.mrf.mxu0
      %v8339 = vadd.f32 %v8292, %v8338
      %v8340 = vpop.f32.mrf.mxu0
      %v8341 = vadd.f32 %v8292, %v8340
      %8342 = vdwg.mxu0
      %8343 = vst [vmem:[%s986] sm:$0xff] %v8334
      %8344 = vst [vmem:[%s986 + $0x8] sm:$0xff] %v8336
      %8345 = vst [vmem:[%s986 + $0x10] sm:$0xff] %v8339
      %8346 = vst [vmem:[%s986 + $0x18] sm:$0xff] %v8341
      %p8347 = scmp.lt.s32.totalorder %s76, 1
      %s8348 = scalar_select %p8347, %s76, 1
      %s8349 = smul.addr %s8348, 4
      %s8350 = smul.addr %s8349, 8
      %s8351 = scalar_lea.vmem %s65, %s8350
      // Predicated region
      $region149: #{perceiver_forward.1} parent=147 // pred_check
        %p8352 = pneg %p771
      $region150: #{perceiver_forward.1} parent=147 // pred_check_branch
        %8354 = sbr.rel (%p8352) target = $region152
      $region151: #{perceiver_forward.1} parent=147 // pred_region
        _
      $region152: #{perceiver_forward.1} parent=147 // pred_fallthru
        _
    $region148: #{perceiver_forward.1} parent=5 // pred_fallthru
      _
    %p8355 = scmp.le.s32.totalorder 2, %s71
    // Predicated region
    $region153: #{perceiver_forward.1} parent=5 // pred_check
      %p8356 = pneg %p8355
    $region154: #{perceiver_forward.1} parent=5 // pred_check_branch
      %8358 = sbr.rel (%p8356) target = $region156
    $region155: #{perceiver_forward.1} parent=5 // pred_region
      %s8359 = ssub.s32 %s71, 2
      // Predicated region
      $region157: #{perceiver_forward.1} parent=155 // pred_check
        %p8360 = pneg %p777
      $region158: #{perceiver_forward.1} parent=155 // pred_check_branch
        %8362 = sbr.rel (%p8360) target = $region160
      $region159: #{perceiver_forward.1} parent=155 // pred_region
        %p8363 = scmp.lt.s32.totalorder %s77, 1
        %s8364 = scalar_select %p8363, %s77, 1
        %s8365 = smul.addr %s8364, 4
        %s8366 = smul.addr %s8365, 8
        %s8367 = scalar_lea.vmem %s65, %s8366
      $region160: #{perceiver_forward.1} parent=155 // pred_fallthru
        _
    $region156: #{perceiver_forward.1} parent=5 // pred_fallthru
      _
  $region6: #{perceiver_forward.1} parent=0 // loop_footer
    %s75 = sadd.s32 1, %s71
  $region7: #{perceiver_forward.1} parent=0 // loop_footer_branch
    %70 = sbr.rel target = $region3
  $region8: #{perceiver_forward.1} parent=0 // loop_exit
    _

</llo_original>
